<compile_context>
chip_gen: v6e
topology: v6e:2x2x1
jax: 0.10.0
libtpu: 0.0.40
codegen_flags: <defaults>
</compile_context>

<pallas_src>
import jax
import jax.numpy as jnp
from jax.experimental import pallas as pl
from jax.experimental.pallas import tpu as pltpu


# ----------------------------------------------------------------------------
# Fused head kernel: BN0 + ReLU -> 1x1 conv (split-K MXU matmuls) -> (+shift1)
#                    + ReLU -> 20x20 conv (partial contraction over this
#                    P-slice; partials are summed by the wrapper).
# ----------------------------------------------------------------------------
def _head_fused_kernel(f1_ref, f2_ref, bn0_ref, w1a_ref, w1b_ref, b1_ref,
                       w2_ref, o_ref):
    # f1/f2: (Bt, Pt, C1) trunk features (f32 or bf16, no wrapper cast)
    # bn0:   (4, C1)  f32 packed folded BatchNorm2d(2048): [s0a, b0a, s0b, b0b]
    # w1a/b: (C1, Cm) bf16 halves of the 1x1 conv weight, BN1 scale folded in
    # b1:    (1, Cm)  f32 BN1 shift
    # w2:    (Cout, Pt, Cm) f32 slice of the final conv weight
    # o:     (Bt, Cout) f32 partial output for this P-slice
    Bt, Pt, C1 = f1_ref.shape
    Cout = w2_ref.shape[0]
    Cm = w1a_ref.shape[1]

    f1 = f1_ref[...].reshape(Bt * Pt, C1)
    f2 = f2_ref[...].reshape(Bt * Pt, C1)

    # BatchNorm2d(2048) + ReLU per concat half (split-K: the concat is never
    # materialized).  f32 math; bf16 only at the MXU inputs.
    x1 = jnp.maximum(f1 * bn0_ref[0:1, :] + bn0_ref[1:2, :], 0.0)
    x2 = jnp.maximum(f2 * bn0_ref[2:3, :] + bn0_ref[3:4, :], 0.0)

    # 1x1 conv (no bias) as two bf16 MXU matmuls with f32 accumulation.
    h = jnp.dot(x1.astype(jnp.bfloat16), w1a_ref[...],
                preferred_element_type=jnp.float32)
    h = h + jnp.dot(x2.astype(jnp.bfloat16), w1b_ref[...],
                    preferred_element_type=jnp.float32)

    # BatchNorm2d(64): scale already folded into w1; apply shift, then ReLU.
    h = jnp.maximum(h + b1_ref[...], 0.0)                     # (Bt*Pt, Cm) f32

    # 20x20 conv, stride 1, no pad -> contraction over (P, Cm); this grid step
    # contributes the partial sum over its Pt rows.
    w2 = w2_ref[...]                                          # (Cout, Pt, Cm)
    for b in range(Bt):                                       # Bt tiny & static
        hb = h[b * Pt:(b + 1) * Pt, :]                        # (Pt, Cm)
        acc = jnp.sum(w2 * hb[None, :, :], axis=(1, 2))       # (Cout,)
        o_ref[b:b + 1, :] = acc.reshape(1, Cout).astype(o_ref.dtype)


# ----------------------------------------------------------------------------
# Parameter folding (eval-mode BatchNorm -> scale/shift, BN1 scale into w1,
# split into the two concat halves, BN0 halves packed into one array).
# Shared by the wrapper and the matched reference so the test isolates kernel
# correctness from bf16 quantization.
# ----------------------------------------------------------------------------
def _prepare_params(params, c1):
    eps = 1e-5
    cm = params["w1"].shape[-1]
    s0 = params["bn0_gamma"] / jnp.sqrt(params["bn0_var"] + eps)
    b0 = params["bn0_beta"] - params["bn0_mean"] * s0
    s1 = params["bn1_gamma"] / jnp.sqrt(params["bn1_var"] + eps)
    b1 = (params["bn1_beta"] - params["bn1_mean"] * s1).reshape(1, cm)
    w1f = params["w1"] * s1.reshape(1, cm)                    # fold BN1 scale
    bn0 = jnp.stack([s0[:c1], b0[:c1], s0[c1:], b0[c1:]], axis=0)   # (4, C1)
    return {
        "bn0": bn0.astype(jnp.float32),
        "w1a": w1f[:c1].astype(jnp.bfloat16),
        "w1b": w1f[c1:].astype(jnp.bfloat16),
        "b1": b1,
        "w2": params["w2"],                                   # (Cout, P, Cm) f32
    }


# ----------------------------------------------------------------------------
# Wrapper
# ----------------------------------------------------------------------------
def head_forward(f1, f2, params, *, batch_block=None, p_split=None):
    """graspnet_val / suctionnet_val / gsnet_val head on the two trunk features.

    f1, f2 : (B, H, W, C1) trunk feature maps (NHWC, f32 or bf16).
    returns: (B, Cout, 1, 1) float32 (NCHW, matching the PyTorch output).
    """
    B, H, W, C1 = f1.shape
    Cm = params["w1"].shape[-1]
    Cout, PK, _ = params["w2"].shape
    K = params["ksize"]
    assert H == K and W == K and PK == K * K, \
        "head expects H == W == conv kernel size (1x1 spatial output)"
    P = H * W

    # P-split: with B == 1, split P across a second parallel grid axis so both
    # v7x TensorCores get work (partial outputs summed below).
    if p_split is None:
        p_split = 2 if (B == 1 and P % 2 == 0 and (P // 2) % 8 == 0) else 1
    assert P % p_split == 0
    Pt = P // p_split
    assert Pt % 8 == 0, "P slice must keep sublane alignment"

    # Batch blocking: fewer grid steps on single-TC chips (amortizes ~0.35us
    # per-step overhead) while keeping >= 2 parallel steps whenever B >= 2.
    if batch_block is None:
        batch_block = 1
        for cand in (4, 3, 2):
            if B % cand == 0 and (B // cand) * p_split >= 2:
                batch_block = cand
                break
    Bt = batch_block
    assert B % Bt == 0
    nb = B // Bt

    pp = _prepare_params(params, C1)

    # Trunk features enter the kernel in their native dtype: no standalone
    # wrapper cast (avoids an extra HBM round trip of the dominant input).
    f1p = f1.reshape(B, P, C1)
    f2p = f2.reshape(B, P, C1)
    feat_itemsize = jnp.dtype(f1p.dtype).itemsize

    # VMEM budget derived from the actual resident footprint (double-buffered),
    # floor 16 MiB — leaves scoped VMEM for neighboring fusions on v7x.
    vmem_bytes = int(1.5 * (
        2 * 2 * Bt * Pt * C1 * feat_itemsize          # f1 + f2 blocks
        + 2 * 2 * C1 * Cm * 2                         # w1a + w1b (bf16)
        + 2 * (4 * C1 * 4 + Cm * 4)                   # bn0 + b1
        + 2 * Cout * Pt * Cm * 4                      # w2 slice
        + 2 * Bt * Cout * 4))                         # output block
    vmem_bytes = min(max(vmem_bytes, 16 * 1024 * 1024), 96 * 1024 * 1024)

    out = pl.pallas_call(
        _head_fused_kernel,
        out_shape=jax.ShapeDtypeStruct((nb, p_split, Bt, Cout), jnp.float32),
        grid=(nb, p_split),
        in_specs=[
            pl.BlockSpec((Bt, Pt, C1), lambda b, s: (b, s, 0)),    # f1
            pl.BlockSpec((Bt, Pt, C1), lambda b, s: (b, s, 0)),    # f2
            pl.BlockSpec((4, C1), lambda b, s: (0, 0)),            # bn0 (packed)
            pl.BlockSpec((C1, Cm), lambda b, s: (0, 0)),           # w1a (resident)
            pl.BlockSpec((C1, Cm), lambda b, s: (0, 0)),           # w1b (resident)
            pl.BlockSpec((1, Cm), lambda b, s: (0, 0)),            # b1
            pl.BlockSpec((Cout, Pt, Cm), lambda b, s: (0, s, 0)),  # w2 slice
        ],
        out_specs=pl.BlockSpec((None, None, Bt, Cout), lambda b, s: (b, s, 0, 0)),
        compiler_params=pltpu.CompilerParams(
            dimension_semantics=("parallel", "parallel"),
            vmem_limit_bytes=vmem_bytes),
    )(f1p, f2p, pp["bn0"], pp["w1a"], pp["w1b"], pp["b1"], pp["w2"])

    # Reduce the P-split partials (no-op slice-sum when p_split == 1).
    q = out.sum(axis=1).reshape(B, Cout)
    return q.reshape(B, Cout, 1, 1)                 # NCHW, Ho = Wo = 1


# ----------------------------------------------------------------------------
# Deterministic parameter init (mirrors the module's __init__):
#   Conv2d -> kaiming_normal_, BatchNorm2d -> weight=1, bias=0 (running stats
#   mean=0 / var=1).  graspnet_val/suctionnet_val: Conv2d(2048,64,1) then
#   Conv2d(64,1,20).
# ----------------------------------------------------------------------------
def init_head_params(key, c_in=2048, c_mid=64, c_out=1, ksize=20):
    k1, k2 = jax.random.split(key)
    # 1x1 conv: PyTorch weight (c_mid, c_in, 1, 1); kaiming fan_in = c_in
    std1 = (2.0 / c_in) ** 0.5
    w1_pt = jax.random.normal(k1, (c_mid, c_in), jnp.float32) * std1
    w1 = w1_pt.T                                                # (C, Cm)
    # KxK conv: PyTorch weight (c_out, c_mid, K, K); kaiming fan_in = c_mid*K*K
    std2 = (2.0 / (c_mid * ksize * ksize)) ** 0.5
    w2_pt = jax.random.normal(k2, (c_out, c_mid, ksize, ksize), jnp.float32) * std2
    # -> (Cout, K, K, Cm) -> (Cout, K*K, Cm), matching row-major (H, W) flatten
    w2 = jnp.transpose(w2_pt, (0, 2, 3, 1)).reshape(c_out, ksize * ksize, c_mid)
    return {
        "w1": w1,
        "w2": w2,
        "ksize": ksize,
        "bn0_gamma": jnp.ones((c_in,), jnp.float32),
        "bn0_beta": jnp.zeros((c_in,), jnp.float32),
        "bn0_mean": jnp.zeros((c_in,), jnp.float32),
        "bn0_var": jnp.ones((c_in,), jnp.float32),
        "bn1_gamma": jnp.ones((c_mid,), jnp.float32),
        "bn1_beta": jnp.zeros((c_mid,), jnp.float32),
        "bn1_mean": jnp.zeros((c_mid,), jnp.float32),
        "bn1_var": jnp.ones((c_mid,), jnp.float32),
    }


# ----------------------------------------------------------------------------
# References (correctness check only)
# ----------------------------------------------------------------------------
def _reference_f32(f1, f2, params):
    """Pure-f32 semantics of the PyTorch head (concat -> BN -> ReLU -> ...)."""
    B, H, W, C1 = f1.shape
    P = H * W
    eps = 1e-5
    x = jnp.concatenate([f1.reshape(B, P, C1).astype(jnp.float32),
                         f2.reshape(B, P, C1).astype(jnp.float32)], axis=-1)
    s0 = params["bn0_gamma"] / jnp.sqrt(params["bn0_var"] + eps)
    x = jnp.maximum(x * s0 + (params["bn0_beta"] - params["bn0_mean"] * s0), 0.0)
    h = jnp.einsum("bpc,cd->bpd", x, params["w1"])
    s1 = params["bn1_gamma"] / jnp.sqrt(params["bn1_var"] + eps)
    h = jnp.maximum(h * s1 + (params["bn1_beta"] - params["bn1_mean"] * s1), 0.0)
    out = jnp.einsum("bpc,opc->bo", h, params["w2"])
    return out.reshape(B, -1, 1, 1)


def _reference_matched(f1, f2, params):
    """Same math as the kernel (bf16 MXU inputs, f32 accumulate), plain JAX."""
    B, H, W, C1 = f1.shape
    P = H * W
    pp = _prepare_params(params, C1)
    f1p = f1.reshape(B, P, C1).astype(jnp.float32)
    f2p = f2.reshape(B, P, C1).astype(jnp.float32)
    s0a, b0a = pp["bn0"][0:1], pp["bn0"][1:2]
    s0b, b0b = pp["bn0"][2:3], pp["bn0"][3:4]
    x1 = jnp.maximum(f1p * s0a + b0a, 0.0).astype(jnp.bfloat16).astype(jnp.float32)
    x2 = jnp.maximum(f2p * s0b + b0b, 0.0).astype(jnp.bfloat16).astype(jnp.float32)
    h = (jnp.einsum("bpc,cd->bpd", x1, pp["w1a"].astype(jnp.float32))
         + jnp.einsum("bpc,cd->bpd", x2, pp["w1b"].astype(jnp.float32)))
    h = jnp.maximum(h + pp["b1"], 0.0)
    out = jnp.einsum("bpc,opc->bo", h, pp["w2"])
    return out.reshape(B, -1, 1, 1)


if __name__ == "__main__":
    key = jax.random.PRNGKey(0)
    kf, kp = jax.random.split(key)

    # densenet121 trunk emits 1024 channels; concat of the two trunks -> 2048.
    H = W = 20
    C1 = 1024
    params = init_head_params(kp, c_in=2 * C1, c_mid=64, c_out=1, ksize=20)

    def check(B, tag):
        k1, k2 = jax.random.split(jax.random.fold_in(kf, B))
        # Synthetic stand-ins for grasp_depth_trunk.features(rotate_depth) and
        # grasp_depth_trunk.features(m_input_depth_data).  (identity rotation,
        # since num_rotations == 1 -> theta == 0.)
        f1 = jax.random.normal(k1, (B, H, W, C1), jnp.float32)
        f2 = jax.random.normal(k2, (B, H, W, C1), jnp.float32)

        out = jax.block_until_ready(head_forward(f1, f2, params))
        assert out.shape == (B, 1, 1, 1), (tag, out.shape)

        # Tight check against a reference mirroring the kernel's bf16/f32 math.
        ref_m = _reference_matched(f1, f2, params)
        assert jnp.allclose(out, ref_m, rtol=5e-3, atol=5e-3), \
            (tag, float(jnp.max(jnp.abs(out - ref_m))))

        # Looser check against the pure-f32 PyTorch semantics.
        ref_f = _reference_f32(f1, f2, params)
        assert jnp.allclose(out, ref_f, rtol=3e-2, atol=3e-2), \
            (tag, float(jnp.max(jnp.abs(out - ref_f))))

    check(2, "B=2")   # grid (2, 1): two parallel batch steps (v7x both TCs)
    check(1, "B=1")   # grid (1, 2): P split in halves of 200 (v7x both TCs)
    check(4, "B=4")   # grid (2, 1) with Bt=2: batch-blocked path (v5e/v6e)

    print("KERNEL_OK")
</pallas_src>

<mosaic_0001>
module attributes {stable_mosaic.version = 11 : i64} {
  func.func @_head_fused_kernel(%arg0: i32, %arg1: i32, %arg2: memref<1x400x1024xf32, #tpu.memory_space<vmem>>, %arg3: memref<1x400x1024xf32, #tpu.memory_space<vmem>>, %arg4: memref<4x1024xf32, #tpu.memory_space<vmem>>, %arg5: memref<1024x64xbf16, #tpu.memory_space<vmem>>, %arg6: memref<1024x64xbf16, #tpu.memory_space<vmem>>, %arg7: memref<1x64xf32, #tpu.memory_space<vmem>>, %arg8: memref<1x400x64xf32, #tpu.memory_space<vmem>>, %arg9: memref<1x1x1x1xf32, #tpu.memory_space<vmem>>) attributes {dimension_semantics = [#tpu.dimension_semantics<parallel>, #tpu.dimension_semantics<parallel>], iteration_bounds = array<i64: 2, 1>, scalar_prefetch = 0 : i64, scratch_operands = 0 : i64, tpu.core_type = #tpu.core_type<tc>, window_params = [{transform_indices = @transform_0, window_bounds = array<i64: 1, 400, 1024>}, {transform_indices = @transform_1, window_bounds = array<i64: 1, 400, 1024>}, {pipeline_mode = #tpu.pipeline_mode<synchronous>, transform_indices = @transform_2, window_bounds = array<i64: 4, 1024>}, {pipeline_mode = #tpu.pipeline_mode<synchronous>, transform_indices = @transform_3, window_bounds = array<i64: 1024, 64>}, {pipeline_mode = #tpu.pipeline_mode<synchronous>, transform_indices = @transform_4, window_bounds = array<i64: 1024, 64>}, {pipeline_mode = #tpu.pipeline_mode<synchronous>, transform_indices = @transform_5, window_bounds = array<i64: 1, 64>}, {transform_indices = @transform_6, window_bounds = array<i64: 1, 400, 64>}, {transform_indices = @transform_7, window_bounds = array<i64: 1, 1, 1, 1>}]} {
    %c0 = arith.constant 0 : index
    %c0_0 = arith.constant 0 : index
    %c0_1 = arith.constant 0 : index
    %0 = vector.load %arg2[%c0, %c0_0, %c0_1] : memref<1x400x1024xf32, #tpu.memory_space<vmem>>, vector<1x400x1024xf32>
    %1 = vector.shape_cast %0 : vector<1x400x1024xf32> to vector<400x1024xf32>
    %c0_2 = arith.constant 0 : index
    %c0_3 = arith.constant 0 : index
    %c0_4 = arith.constant 0 : index
    %2 = vector.load %arg3[%c0_2, %c0_3, %c0_4] : memref<1x400x1024xf32, #tpu.memory_space<vmem>>, vector<1x400x1024xf32>
    %3 = vector.shape_cast %2 : vector<1x400x1024xf32> to vector<400x1024xf32>
    %c0_5 = arith.constant 0 : index
    %c0_6 = arith.constant 0 : index
    %4 = vector.load %arg4[%c0_5, %c0_6] : memref<4x1024xf32, #tpu.memory_space<vmem>>, vector<1x1024xf32>
    %5 = vector.broadcast %4 : vector<1x1024xf32> to vector<400x1024xf32>
    %6 = arith.mulf %1, %5 : vector<400x1024xf32>
    %c1 = arith.constant 1 : index
    %c0_7 = arith.constant 0 : index
    %7 = vector.load %arg4[%c1, %c0_7] : memref<4x1024xf32, #tpu.memory_space<vmem>>, vector<1x1024xf32>
    %8 = vector.broadcast %7 : vector<1x1024xf32> to vector<400x1024xf32>
    %9 = arith.addf %6, %8 : vector<400x1024xf32>
    %cst = arith.constant 0.000000e+00 : f32
    %10 = vector.broadcast %cst : f32 to vector<400x1024xf32>
    %11 = arith.maximumf %9, %10 : vector<400x1024xf32>
    %c2 = arith.constant 2 : index
    %c0_8 = arith.constant 0 : index
    %12 = vector.load %arg4[%c2, %c0_8] : memref<4x1024xf32, #tpu.memory_space<vmem>>, vector<1x1024xf32>
    %13 = vector.broadcast %12 : vector<1x1024xf32> to vector<400x1024xf32>
    %14 = arith.mulf %3, %13 : vector<400x1024xf32>
    %c3 = arith.constant 3 : index
    %c0_9 = arith.constant 0 : index
    %15 = vector.load %arg4[%c3, %c0_9] : memref<4x1024xf32, #tpu.memory_space<vmem>>, vector<1x1024xf32>
    %16 = vector.broadcast %15 : vector<1x1024xf32> to vector<400x1024xf32>
    %17 = arith.addf %14, %16 : vector<400x1024xf32>
    %cst_10 = arith.constant 0.000000e+00 : f32
    %18 = vector.broadcast %cst_10 : f32 to vector<400x1024xf32>
    %19 = arith.maximumf %17, %18 : vector<400x1024xf32>
    %20 = arith.truncf %11 : vector<400x1024xf32> to vector<400x1024xbf16>
    %c0_11 = arith.constant 0 : index
    %c0_12 = arith.constant 0 : index
    %21 = vector.load %arg5[%c0_11, %c0_12] : memref<1024x64xbf16, #tpu.memory_space<vmem>>, vector<1024x64xbf16>
    %cst_13 = arith.constant dense<0.000000e+00> : vector<400x64xf32>
    %22 = tpu.matmul %20, %21, %cst_13 {dimension_numbers = #tpu.dot_dimension_numbers<[1], [0], [0], [1], [0, 0, 1, 1], [], []>} : vector<400x1024xbf16>, vector<1024x64xbf16>, vector<400x64xf32> -> vector<400x64xf32>
    %23 = arith.truncf %19 : vector<400x1024xf32> to vector<400x1024xbf16>
    %c0_14 = arith.constant 0 : index
    %c0_15 = arith.constant 0 : index
    %24 = vector.load %arg6[%c0_14, %c0_15] : memref<1024x64xbf16, #tpu.memory_space<vmem>>, vector<1024x64xbf16>
    %cst_16 = arith.constant dense<0.000000e+00> : vector<400x64xf32>
    %25 = tpu.matmul %23, %24, %cst_16 {dimension_numbers = #tpu.dot_dimension_numbers<[1], [0], [0], [1], [0, 0, 1, 1], [], []>} : vector<400x1024xbf16>, vector<1024x64xbf16>, vector<400x64xf32> -> vector<400x64xf32>
    %26 = arith.addf %22, %25 : vector<400x64xf32>
    %c0_17 = arith.constant 0 : index
    %c0_18 = arith.constant 0 : index
    %27 = vector.load %arg7[%c0_17, %c0_18] : memref<1x64xf32, #tpu.memory_space<vmem>>, vector<1x64xf32>
    %28 = vector.broadcast %27 : vector<1x64xf32> to vector<400x64xf32>
    %29 = arith.addf %26, %28 : vector<400x64xf32>
    %cst_19 = arith.constant 0.000000e+00 : f32
    %30 = vector.broadcast %cst_19 : f32 to vector<400x64xf32>
    %31 = arith.maximumf %29, %30 : vector<400x64xf32>
    %c0_20 = arith.constant 0 : index
    %c0_21 = arith.constant 0 : index
    %c0_22 = arith.constant 0 : index
    %32 = vector.load %arg8[%c0_20, %c0_21, %c0_22] : memref<1x400x64xf32, #tpu.memory_space<vmem>>, vector<1x400x64xf32>
    %33 = vector.shape_cast %31 : vector<400x64xf32> to vector<1x400x64xf32>
    %34 = arith.mulf %32, %33 : vector<1x400x64xf32>
    %cst_23 = arith.constant dense<0.000000e+00> : vector<1xf32>
    %35 = vector.multi_reduction <add>, %34, %cst_23 [1, 2] : vector<1x400x64xf32> to vector<1xf32>
    %36 = vector.shape_cast %35 : vector<1xf32> to vector<1x1xf32>
    %c0_24 = arith.constant 0 : index
    %c0_25 = arith.constant 0 : index
    %c0_26 = arith.constant 0 : index
    %c0_27 = arith.constant 0 : index
    %37 = vector.load %arg9[%c0_24, %c0_25, %c0_26, %c0_27] : memref<1x1x1x1xf32, #tpu.memory_space<vmem>>, vector<1x1x1x1xf32>
    %38 = vector.shape_cast %37 : vector<1x1x1x1xf32> to vector<1x1xf32>
    %39 = vector.shape_cast %36 : vector<1x1xf32> to vector<1x1x1x1xf32>
    tpu.vector_store %arg9[%c0_24, %c0_25, %c0_26, %c0_27], %39 {strides = array<i32>} : memref<1x1x1x1xf32, #tpu.memory_space<vmem>>, vector<1x1x1x1xf32>,
    return
  }
  func.func @transform_0(%arg0: i32, %arg1: i32) -> (i32, i32, i32) {
    %c0_i32 = arith.constant 0 : i32
    %c0_i32_0 = arith.constant 0 : i32
    return %arg0, %arg1, %c0_i32 : i32, i32, i32
  }
  func.func @transform_1(%arg0: i32, %arg1: i32) -> (i32, i32, i32) {
    %c0_i32 = arith.constant 0 : i32
    %c0_i32_0 = arith.constant 0 : i32
    return %arg0, %arg1, %c0_i32 : i32, i32, i32
  }
  func.func @transform_2(%arg0: i32, %arg1: i32) -> (i32, i32) {
    %c0_i32 = arith.constant 0 : i32
    %c0_i32_0 = arith.constant 0 : i32
    %c0_i32_1 = arith.constant 0 : i32
    return %c0_i32, %c0_i32_0 : i32, i32
  }
  func.func @transform_3(%arg0: i32, %arg1: i32) -> (i32, i32) {
    %c0_i32 = arith.constant 0 : i32
    %c0_i32_0 = arith.constant 0 : i32
    %c0_i32_1 = arith.constant 0 : i32
    return %c0_i32, %c0_i32_0 : i32, i32
  }
  func.func @transform_4(%arg0: i32, %arg1: i32) -> (i32, i32) {
    %c0_i32 = arith.constant 0 : i32
    %c0_i32_0 = arith.constant 0 : i32
    %c0_i32_1 = arith.constant 0 : i32
    return %c0_i32, %c0_i32_0 : i32, i32
  }
  func.func @transform_5(%arg0: i32, %arg1: i32) -> (i32, i32) {
    %c0_i32 = arith.constant 0 : i32
    %c0_i32_0 = arith.constant 0 : i32
    %c0_i32_1 = arith.constant 0 : i32
    return %c0_i32, %c0_i32_0 : i32, i32
  }
  func.func @transform_6(%arg0: i32, %arg1: i32) -> (i32, i32, i32) {
    %c0_i32 = arith.constant 0 : i32
    %c0_i32_0 = arith.constant 0 : i32
    %c0_i32_1 = arith.constant 0 : i32
    return %c0_i32, %arg1, %c0_i32_0 : i32, i32, i32
  }
  func.func @transform_7(%arg0: i32, %arg1: i32) -> (i32, i32, i32, i32) {
    %c0_i32 = arith.constant 0 : i32
    %c0_i32_0 = arith.constant 0 : i32
    %c0_i32_1 = arith.constant 0 : i32
    return %arg0, %arg1, %c0_i32, %c0_i32_0 : i32, i32, i32, i32
  }
}

</mosaic_0001>

<llo_original>
// kernel: tpu_custom_call.1
$region0: #{tpu_custom_call.1}
  #allocation0 [shape = 'u32[]', space=smem, size = 0x4, offset = 0x4, fixed_abs, tag = 'smem constant byte address 0x4 - core index']
  #allocation1 [shape = 'u32[144,128]{1,0:T(1,128)}', space=vmem, size = 0x12000, scoped, tag = 'internal scratch']
  %s0 = inlined_call_operand.hbm [shape: f32[2,400,1024], index: 0, kind: input, shape index: {}]
  %s1 = inlined_call_operand.hbm [shape: f32[2,400,1024], index: 1, kind: input, shape index: {}]
  %s2 = inlined_call_operand.hbm [shape: f32[4,1024], index: 2, kind: input, shape index: {}]
  %s3 = inlined_call_operand.vmem [shape: bf16[1024,64], index: 3, kind: input, shape index: {}]
  %s4 = inlined_call_operand.vmem [shape: bf16[1024,64], index: 4, kind: input, shape index: {}]
  %s5 = inlined_call_operand.hbm [shape: f32[1,64], index: 5, kind: input, shape index: {}]
  %s6 = inlined_call_operand.vmem [shape: f32[1,400,64], index: 6, kind: input, shape index: {}]
  %s7 = inlined_call_operand.vmem [shape: f32[2,1,1,1], index: 7, kind: output, shape index: {}]
  %s8 = sld [smem:[#allocation0]]
  $region77: #{tpu_custom_call.1} parent=0
    _
  %s10 = ssub.s32 1, %s8
  %s11 = scalar_select 0, %s10, %s8
  $region1: #{tpu_custom_call.1} parent=0
    #allocation2 [shape = 'u8[3276800]{0}', space=vmem, size = 0x320000, scoped, tag = 'input window, operand 0']
    #allocation3 [shape = 's32[2]{0}', space=sflag, size = 0x8, scoped, tag = 'scoped memory for tpu_custom_call.1']
    #allocation4 [shape = 'u8[3276800]{0}', space=vmem, size = 0x320000, scoped, tag = 'input window, operand 1']
    #allocation5 [shape = 's32[2]{0}', space=sflag, size = 0x8, scoped, tag = 'scoped memory for tpu_custom_call.1']
    #allocation6 [shape = 'u8[16384]{0}', space=vmem, size = 0x4000, scoped, tag = 'input window, operand 2, single buffered']
    #allocation7 [shape = 'u8[512]{0}', space=vmem, size = 0x400, scoped, tag = 'input window, operand 5, single buffered']
    #allocation8 [shape = 's32[1]{0}', space=sflag, size = 0x4, scoped, tag = 'scoped memory for tpu_custom_call.1']
    %12 = vsyncpa [#allocation3], 0
    %s13 = scalar_lea.sflag [#allocation3], 1
    %14 = vsyncpa %s13, 0
    %15 = vsyncpa [#allocation5], 0
    %s16 = scalar_lea.sflag [#allocation5], 1
    %17 = vsyncpa %s16, 0
    %18 = vsyncpa [#allocation8], 0
    loop: start=0, step=1, limit=4
    $region2: #{tpu_custom_call.1} parent=1 // loop_pre_header
      _
    $region3: #{tpu_custom_call.1} parent=1 // loop_header
      %s20 = sphi 0, %s24
      %p21 = scmp.ge.s32.totalorder %s20, 4
      %s27 = sphi 0, %s39
      %s28 = sphi 0, %s35
      %s29 = sphi 0, %s27
      %s30 = sphi 0, %s28
      %s31 = sphi 0, %s29
      %s32 = sphi 0, %s30
      %s44 = sphi 0, %s46
      %s47 = sphi 0, %s44
      %s48 = sphi 0, %s47
      %s64 = sphi 0, %s48
      %s72 = sphi 0, %s74
      %s75 = sphi 0, %s72
      %s76 = sphi 0, %s75
      %s92 = sphi 0, %s76
      %s96 = sphi 0, %s96
      %s98 = sphi 0, %s96
      %s99 = sphi 0, %s98
      %s113 = sphi 0, %s99
      %s117 = sphi 0, %s117
      %s119 = sphi 0, %s117
      %s120 = sphi 0, %s119
      %s134 = sphi 0, %s120
      %s138 = sphi 0, %s138
      %s140 = sphi 0, %s138
      %s141 = sphi 0, %s140
      %s155 = sphi 0, %s141
      %s159 = sphi 0, %s159
      %s161 = sphi 0, %s159
      %s162 = sphi 0, %s161
      %s176 = sphi 0, %s162
      %s182 = sphi 0, %s184
      %s185 = sphi 0, %s182
      %s186 = sphi 0, %s185
      %s202 = sphi 0, %s186
      %s210 = sphi 0, %s212
      %s213 = sphi 0, %s210
      %s214 = sphi 0, %s213
      %s230 = sphi 0, %s214
    $region4: #{tpu_custom_call.1} parent=1 // loop_header_branch
      %23 = sbr.rel (%p21) target = $region8
    $region5: #{tpu_custom_call.1} parent=1 // loop_body
      %s25 = ssub.s32 %s20, 1
      %s26 = ssub.s32 %s20, 2
      %s33 = sadd.s32 1, %s28
      %p34 = scmp.ge.s32.totalorder %s33, 1
      %s35 = scalar_select %p34, 0, %s33
      %s36 = sadd.s32 1, %s27
      %s37 = scalar_select %p34, %s36, %s27
      %p38 = scmp.ge.s32.totalorder %s37, 2
      %s39 = scalar_select %p38, 0, %s37
      %s40 = ssub.s32 %s27, %s39
      %s41 = ssub.s32 %s28, %s35
      %s42 = sor.u32 %s40, %s41
      %p43 = scmp.eq.s32.totalorder %s42, 0
      %s45 = sadd.s32 %s44, 1
      %s46 = scalar_select %p43, %s44, %s45
      %p49 = pneg %p43
      %p50 = scmp.eq.s32.totalorder %s20, 1
      %p51 = por %p49, %p50
      %p52 = scmp.ne.s32.totalorder %s44, %s47
      %p53 = scmp.eq.s32.totalorder %s20, 0
      %p54 = por %p52, %p53
      %p55 = scmp.ne.s32.totalorder %s44, %s47
      %p56 = scmp.eq.s32.totalorder %s25, 1
      %p57 = por %p55, %p56
      %p58 = scmp.ne.s32.totalorder %s47, %s48
      %p59 = scmp.eq.s32.totalorder %s25, 0
      %p60 = por %p58, %p59
      %p61 = scmp.ne.s32.totalorder %s47, %s48
      %p62 = scmp.eq.s32.totalorder %s26, 1
      %p63 = por %p61, %p62
      %p65 = scmp.ne.s32.totalorder %s48, %s64
      %p66 = scmp.eq.s32.totalorder %s26, 0
      %p67 = por %p65, %p66
      %s68 = ssub.s32 %s27, %s39
      %s69 = ssub.s32 %s28, %s35
      %s70 = sor.u32 %s68, %s69
      %p71 = scmp.eq.s32.totalorder %s70, 0
      %s73 = sadd.s32 %s72, 1
      %s74 = scalar_select %p71, %s72, %s73
      %p77 = pneg %p71
      %p78 = scmp.eq.s32.totalorder %s20, 1
      %p79 = por %p77, %p78
      %p80 = scmp.ne.s32.totalorder %s72, %s75
      %p81 = scmp.eq.s32.totalorder %s20, 0
      %p82 = por %p80, %p81
      %p83 = scmp.ne.s32.totalorder %s72, %s75
      %p84 = scmp.eq.s32.totalorder %s25, 1
      %p85 = por %p83, %p84
      %p86 = scmp.ne.s32.totalorder %s75, %s76
      %p87 = scmp.eq.s32.totalorder %s25, 0
      %p88 = por %p86, %p87
      %p89 = scmp.ne.s32.totalorder %s75, %s76
      %p90 = scmp.eq.s32.totalorder %s26, 1
      %p91 = por %p89, %p90
      %p93 = scmp.ne.s32.totalorder %s76, %s92
      %p94 = scmp.eq.s32.totalorder %s26, 0
      %p95 = por %p93, %p94
      %s97 = sadd.s32 %s96, 1
      %p100 = scmp.eq.s32.totalorder %s20, 1
      %p101 = scmp.ne.s32.totalorder %s96, %s98
      %p102 = scmp.eq.s32.totalorder %s20, 0
      %p103 = por %p101, %p102
      %p104 = scmp.ne.s32.totalorder %s96, %s98
      %p105 = scmp.eq.s32.totalorder %s25, 1
      %p106 = por %p104, %p105
      %p107 = scmp.ne.s32.totalorder %s98, %s99
      %p108 = scmp.eq.s32.totalorder %s25, 0
      %p109 = por %p107, %p108
      %p110 = scmp.ne.s32.totalorder %s98, %s99
      %p111 = scmp.eq.s32.totalorder %s26, 1
      %p112 = por %p110, %p111
      %p114 = scmp.ne.s32.totalorder %s99, %s113
      %p115 = scmp.eq.s32.totalorder %s26, 0
      %p116 = por %p114, %p115
      %s118 = sadd.s32 %s117, 1
      %p121 = scmp.eq.s32.totalorder %s20, 1
      %p122 = scmp.ne.s32.totalorder %s117, %s119
      %p123 = scmp.eq.s32.totalorder %s20, 0
      %p124 = por %p122, %p123
      %p125 = scmp.ne.s32.totalorder %s117, %s119
      %p126 = scmp.eq.s32.totalorder %s25, 1
      %p127 = por %p125, %p126
      %p128 = scmp.ne.s32.totalorder %s119, %s120
      %p129 = scmp.eq.s32.totalorder %s25, 0
      %p130 = por %p128, %p129
      %p131 = scmp.ne.s32.totalorder %s119, %s120
      %p132 = scmp.eq.s32.totalorder %s26, 1
      %p133 = por %p131, %p132
      %p135 = scmp.ne.s32.totalorder %s120, %s134
      %p136 = scmp.eq.s32.totalorder %s26, 0
      %p137 = por %p135, %p136
      %s139 = sadd.s32 %s138, 1
      %p142 = scmp.eq.s32.totalorder %s20, 1
      %p143 = scmp.ne.s32.totalorder %s138, %s140
      %p144 = scmp.eq.s32.totalorder %s20, 0
      %p145 = por %p143, %p144
      %p146 = scmp.ne.s32.totalorder %s138, %s140
      %p147 = scmp.eq.s32.totalorder %s25, 1
      %p148 = por %p146, %p147
      %p149 = scmp.ne.s32.totalorder %s140, %s141
      %p150 = scmp.eq.s32.totalorder %s25, 0
      %p151 = por %p149, %p150
      %p152 = scmp.ne.s32.totalorder %s140, %s141
      %p153 = scmp.eq.s32.totalorder %s26, 1
      %p154 = por %p152, %p153
      %p156 = scmp.ne.s32.totalorder %s141, %s155
      %p157 = scmp.eq.s32.totalorder %s26, 0
      %p158 = por %p156, %p157
      %s160 = sadd.s32 %s159, 1
      %p163 = scmp.eq.s32.totalorder %s20, 1
      %p164 = scmp.ne.s32.totalorder %s159, %s161
      %p165 = scmp.eq.s32.totalorder %s20, 0
      %p166 = por %p164, %p165
      %p167 = scmp.ne.s32.totalorder %s159, %s161
      %p168 = scmp.eq.s32.totalorder %s25, 1
      %p169 = por %p167, %p168
      %p170 = scmp.ne.s32.totalorder %s161, %s162
      %p171 = scmp.eq.s32.totalorder %s25, 0
      %p172 = por %p170, %p171
      %p173 = scmp.ne.s32.totalorder %s161, %s162
      %p174 = scmp.eq.s32.totalorder %s26, 1
      %p175 = por %p173, %p174
      %p177 = scmp.ne.s32.totalorder %s162, %s176
      %p178 = scmp.eq.s32.totalorder %s26, 0
      %p179 = por %p177, %p178
      %s180 = ssub.s32 %s28, %s35
      %p181 = scmp.eq.s32.totalorder %s180, 0
      %s183 = sadd.s32 %s182, 1
      %s184 = scalar_select %p181, %s182, %s183
      %p187 = pneg %p181
      %p188 = scmp.eq.s32.totalorder %s20, 1
      %p189 = por %p187, %p188
      %p190 = scmp.ne.s32.totalorder %s182, %s185
      %p191 = scmp.eq.s32.totalorder %s20, 0
      %p192 = por %p190, %p191
      %p193 = scmp.ne.s32.totalorder %s182, %s185
      %p194 = scmp.eq.s32.totalorder %s25, 1
      %p195 = por %p193, %p194
      %p196 = scmp.ne.s32.totalorder %s185, %s186
      %p197 = scmp.eq.s32.totalorder %s25, 0
      %p198 = por %p196, %p197
      %p199 = scmp.ne.s32.totalorder %s185, %s186
      %p200 = scmp.eq.s32.totalorder %s26, 1
      %p201 = por %p199, %p200
      %p203 = scmp.ne.s32.totalorder %s186, %s202
      %p204 = scmp.eq.s32.totalorder %s26, 0
      %p205 = por %p203, %p204
      %s206 = ssub.s32 %s27, %s39
      %s207 = ssub.s32 %s28, %s35
      %s208 = sor.u32 %s206, %s207
      %p209 = scmp.eq.s32.totalorder %s208, 0
      %s211 = sadd.s32 %s210, 1
      %s212 = scalar_select %p209, %s210, %s211
      %p215 = pneg %p209
      %p216 = scmp.eq.s32.totalorder %s20, 1
      %p217 = por %p215, %p216
      %p218 = scmp.ne.s32.totalorder %s210, %s213
      %p219 = scmp.eq.s32.totalorder %s20, 0
      %p220 = por %p218, %p219
      %p221 = scmp.ne.s32.totalorder %s210, %s213
      %p222 = scmp.eq.s32.totalorder %s25, 1
      %p223 = por %p221, %p222
      %p224 = scmp.ne.s32.totalorder %s213, %s214
      %p225 = scmp.eq.s32.totalorder %s25, 0
      %p226 = por %p224, %p225
      %p227 = scmp.ne.s32.totalorder %s213, %s214
      %p228 = scmp.eq.s32.totalorder %s26, 1
      %p229 = por %p227, %p228
      %p231 = scmp.ne.s32.totalorder %s214, %s230
      %p232 = scmp.eq.s32.totalorder %s26, 0
      %p233 = por %p231, %p232
      %p234 = scmp.le.s32.totalorder 1, %s20
      %p235 = scmp.lt.s32.totalorder %s20, 3
      %p236 = pnand %p234, %p235
      %p237 = pneg %p236
      // Predicated region
      $region9: #{tpu_custom_call.1} parent=5 // pred_check
        _
      $region10: #{tpu_custom_call.1} parent=5 // pred_check_branch
        %239 = sbr.rel (%p236) target = $region12
      $region11: #{tpu_custom_call.1} parent=5 // pred_region
        %s240 = ssub.s32 %s20, 1
        // Predicated region
        $region13: #{tpu_custom_call.1} parent=11 // pred_check
          %p241 = pneg %p109
        $region14: #{tpu_custom_call.1} parent=11 // pred_check_branch
          %243 = sbr.rel (%p241) target = $region16
        $region15: #{tpu_custom_call.1} parent=11 // pred_region
          %s245 = ssub.s32 512, 512
          %246 = vsyncadd [#allocation5], %s245
          %s248 = sshll.u32 [#allocation6], 4
          %s249 = int_to_ptr.vmem [resolvable:$true] %s248
          %251 = dma.hbm_to_vmem [thread:$0]  %s2, 512, %s249, [#allocation5]
        $region16: #{tpu_custom_call.1} parent=11 // pred_fallthru
          _
        // Predicated region
        $region17: #{tpu_custom_call.1} parent=11 // pred_check
          %p252 = pneg %p130
        $region18: #{tpu_custom_call.1} parent=11 // pred_check_branch
          %254 = sbr.rel (%p252) target = $region20
        $region19: #{tpu_custom_call.1} parent=11 // pred_region
          _
        $region20: #{tpu_custom_call.1} parent=11 // pred_fallthru
          _
        // Predicated region
        $region21: #{tpu_custom_call.1} parent=11 // pred_check
          %p255 = pneg %p151
        $region22: #{tpu_custom_call.1} parent=11 // pred_check_branch
          %257 = sbr.rel (%p255) target = $region24
        $region23: #{tpu_custom_call.1} parent=11 // pred_region
          _
        $region24: #{tpu_custom_call.1} parent=11 // pred_fallthru
          _
        // Predicated region
        $region25: #{tpu_custom_call.1} parent=11 // pred_check
          %p258 = pneg %p172
        $region26: #{tpu_custom_call.1} parent=11 // pred_check_branch
          %260 = sbr.rel (%p258) target = $region28
        $region27: #{tpu_custom_call.1} parent=11 // pred_region
          %s262 = ssub.s32 16, 16
          %263 = vsyncadd [#allocation8], %s262
          %s265 = sshll.u32 [#allocation7], 4
          %s266 = int_to_ptr.vmem [resolvable:$true] %s265
          %268 = dma.hbm_to_vmem [thread:$0]  %s5, 16, %s266, [#allocation8]
        $region28: #{tpu_custom_call.1} parent=11 // pred_fallthru
          _
        // Predicated region
        $region29: #{tpu_custom_call.1} parent=11 // pred_check
          %p269 = pneg %p198
        $region30: #{tpu_custom_call.1} parent=11 // pred_check_branch
          %271 = sbr.rel (%p269) target = $region32
        $region31: #{tpu_custom_call.1} parent=11 // pred_region
          %s272 = smul.u32 50, %s30
          %p273 = scmp.lt.s32.totalorder %s272, 49
          %s274 = scalar_select %p273, %s272, 49
          %s275 = smul.addr %s274, 8
          %s276 = scalar_lea.vmem %s6, %s275
          %s277 = smul.u32 50, %s30
        $region32: #{tpu_custom_call.1} parent=11 // pred_fallthru
          _
      $region12: #{tpu_custom_call.1} parent=5 // pred_fallthru
        _
      %p278 = scmp.lt.s32.totalorder %s20, 2
      // Predicated region
      $region33: #{tpu_custom_call.1} parent=5 // pred_check
        %p279 = pneg %p278
      $region34: #{tpu_custom_call.1} parent=5 // pred_check_branch
        %281 = sbr.rel (%p279) target = $region36
      $region35: #{tpu_custom_call.1} parent=5 // pred_region
        // Predicated region
        $region37: #{tpu_custom_call.1} parent=35 // pred_check
          %p282 = pneg %p54
        $region38: #{tpu_custom_call.1} parent=35 // pred_check_branch
          %284 = sbr.rel (%p282) target = $region40
        $region39: #{tpu_custom_call.1} parent=35 // pred_region
          %s285 = sand.u32 %s44, 1
          %s286 = scalar_lea.sflag [#allocation3], %s285
          %s287 = sand.u32 %s44, 1
          %s288 = smul.addr %s287, 3200
          %s289 = scalar_lea.vmem [#allocation2], %s288
          %s290 = smul.u32 50, %s28
          %s292 = ssub.s32 51200, 51200
          %293 = vsyncadd %s286, %s292
          %s294 = smul.addr %s290, 8
          %s295 = smul.addr %s27, 400
          %s296 = sadd.s32 %s294, %s295
          %s297 = smul.addr %s296, 128
          %s298 = scalar_lea.hbm %s0, %s297
          %s299 = sshll.u32 %s289, 4
          %s300 = int_to_ptr.vmem [resolvable:$true] %s299
          %305 = dma.hbm_to_vmem [thread:$0]  %s298, 51200, %s300, %s286, 1024, 1024, 64
        $region40: #{tpu_custom_call.1} parent=35 // pred_fallthru
          _
        // Predicated region
        $region41: #{tpu_custom_call.1} parent=35 // pred_check
          %p306 = pneg %p82
        $region42: #{tpu_custom_call.1} parent=35 // pred_check_branch
          %308 = sbr.rel (%p306) target = $region44
        $region43: #{tpu_custom_call.1} parent=35 // pred_region
          %s309 = sand.u32 %s20, 1
          %s310 = scalar_lea.sflag [#allocation5], %s309
          %s311 = sand.u32 %s72, 1
          %s312 = smul.addr %s311, 3200
          %s313 = scalar_lea.vmem [#allocation4], %s312
          %s314 = smul.u32 50, %s28
          %s316 = ssub.s32 51200, 51200
          %317 = vsyncadd %s310, %s316
          %s318 = smul.addr %s314, 8
          %s319 = smul.addr %s27, 400
          %s320 = sadd.s32 %s318, %s319
          %s321 = smul.addr %s320, 128
          %s322 = scalar_lea.hbm %s1, %s321
          %s323 = sshll.u32 %s313, 4
          %s324 = int_to_ptr.vmem [resolvable:$true] %s323
          %329 = dma.hbm_to_vmem [thread:$0]  %s322, 51200, %s324, %s310, 1024, 1024, 64
        $region44: #{tpu_custom_call.1} parent=35 // pred_fallthru
          _
      $region36: #{tpu_custom_call.1} parent=5 // pred_fallthru
        _
      %p330 = scmp.le.s32.totalorder 1, %s20
      %p331 = scmp.lt.s32.totalorder %s20, 3
      %p332 = pnand %p330, %p331
      %p333 = pneg %p332
      // Predicated region
      $region45: #{tpu_custom_call.1} parent=5 // pred_check
        _
      $region46: #{tpu_custom_call.1} parent=5 // pred_check_branch
        %335 = sbr.rel (%p332) target = $region48
      $region47: #{tpu_custom_call.1} parent=5 // pred_region
        %s336 = ssub.s32 %s20, 1
        %s337 = sand.u32 %s47, 1
        %s338 = scalar_lea.sflag [#allocation3], %s337
        %s339 = sand.u32 %s47, 1
        %s340 = smul.addr %s339, 3200
        %s341 = scalar_lea.vmem [#allocation2], %s340
        // Predicated region
        $region49: #{tpu_custom_call.1} parent=47 // pred_check
          %p342 = pneg %p60
        $region50: #{tpu_custom_call.1} parent=47 // pred_check_branch
          %344 = sbr.rel (%p342) target = $region52
        $region51: #{tpu_custom_call.1} parent=47 // pred_region
          %345 = dma.done %s338, 51200
        $region52: #{tpu_custom_call.1} parent=47 // pred_fallthru
          _
        %s346 = sand.u32 %s25, 1
        %s347 = scalar_lea.sflag [#allocation5], %s346
        %s348 = sand.u32 %s75, 1
        %s349 = smul.addr %s348, 3200
        %s350 = scalar_lea.vmem [#allocation4], %s349
        // Predicated region
        $region53: #{tpu_custom_call.1} parent=47 // pred_check
          %p351 = pneg %p88
        $region54: #{tpu_custom_call.1} parent=47 // pred_check_branch
          %353 = sbr.rel (%p351) target = $region56
        $region55: #{tpu_custom_call.1} parent=47 // pred_region
          %354 = dma.done %s347, 51200
        $region56: #{tpu_custom_call.1} parent=47 // pred_fallthru
          _
        // Predicated region
        $region57: #{tpu_custom_call.1} parent=47 // pred_check
          %p355 = pneg %p109
        $region58: #{tpu_custom_call.1} parent=47 // pred_check_branch
          %357 = sbr.rel (%p355) target = $region60
        $region59: #{tpu_custom_call.1} parent=47 // pred_region
          %358 = dma.done [#allocation5], 512
        $region60: #{tpu_custom_call.1} parent=47 // pred_fallthru
          _
        // Predicated region
        $region61: #{tpu_custom_call.1} parent=47 // pred_check
          %p359 = pneg %p172
        $region62: #{tpu_custom_call.1} parent=47 // pred_check_branch
          %361 = sbr.rel (%p359) target = $region64
        $region63: #{tpu_custom_call.1} parent=47 // pred_region
          %362 = dma.done [#allocation8], 16
        $region64: #{tpu_custom_call.1} parent=47 // pred_fallthru
          _
        %s363 = sand.u32 %s47, 1
        %s364 = scalar_lea.sflag [#allocation3], %s363
        %s365 = sand.u32 %s47, 1
        %s366 = smul.addr %s365, 3200
        %s367 = scalar_lea.vmem [#allocation2], %s366
        %p368 = pneg %p60
        %p369 = pneg %p57
        %s370 = sand.u32 %s25, 1
        %s371 = scalar_lea.sflag [#allocation5], %s370
        %s372 = sand.u32 %s75, 1
        %s373 = smul.addr %s372, 3200
        %s374 = scalar_lea.vmem [#allocation4], %s373
        %p375 = pneg %p88
        %p376 = pneg %p85
        %p377 = pneg %p109
        %p378 = pneg %p106
        %p379 = pneg %p130
        %p380 = pneg %p127
        %p381 = pneg %p151
        %p382 = pneg %p148
        %p383 = pneg %p172
        %p384 = pneg %p169
        %s385 = smul.u32 50, %s30
        %p386 = scmp.lt.s32.totalorder %s385, 49
        %s387 = scalar_select %p386, %s385, 49
        %s388 = smul.addr %s387, 8
        %s389 = scalar_lea.vmem %s6, %s388
        %p390 = pneg %p198
        %p391 = pneg %p195
        %p392 = pneg %p226
        %p393 = pneg %p223
        %p394 = scmp.lt.s32.totalorder %s29, 1
        %s395 = scalar_select %p394, %s29, 1
        %p396 = scmp.lt.s32.totalorder %s30, 0
        %s397 = scalar_select %p396, %s30, 0
        %s398 = sadd.s32 %s397, %s395
        %s399 = scalar_lea.vmem %s7, %s398
        %s400 = smul.u32 50, %s30
        %s401 = smul.u32 50, %s30
        %s402 = smul.u32 50, %s30
        %p403 = scmp.lt.s32.totalorder %s402, 49
        %s404 = scalar_select %p403, %s402, 49
        %s405 = smul.addr %s404, 8
        %s406 = scalar_lea.vmem %s6, %s405
        %s407 = smul.u32 50, %s30
        %p408 = scmp.lt.s32.totalorder %s29, 1
        %s409 = scalar_select %p408, %s29, 1
        %p410 = scmp.lt.s32.totalorder %s30, 0
        %s411 = scalar_select %p410, %s30, 0
        %s412 = sadd.s32 %s411, %s409
        %s413 = scalar_lea.vmem %s7, %s412
        %v415 = vld [vmem:[%s341] sm:$0xff]
        %v416 = vld [vmem:[%s341 + $0x8] sm:$0xff]
        %v417 = vld [vmem:[%s341 + $0x10] sm:$0xff]
        %v418 = vld [vmem:[%s341 + $0x18] sm:$0xff]
        %v419 = vld [vmem:[%s341 + $0x20] sm:$0xff]
        %v420 = vld [vmem:[%s341 + $0x28] sm:$0xff]
        %v421 = vld [vmem:[%s341 + $0x30] sm:$0xff]
        %v422 = vld [vmem:[%s341 + $0x38] sm:$0xff]
        %v423 = vld [vmem:[%s341 + $0x40] sm:$0xff]
        %v424 = vld [vmem:[%s341 + $0x48] sm:$0xff]
        %v425 = vld [vmem:[%s341 + $0x50] sm:$0xff]
        %v426 = vld [vmem:[%s341 + $0x58] sm:$0xff]
        %v427 = vld [vmem:[%s341 + $0x60] sm:$0xff]
        %v428 = vld [vmem:[%s341 + $0x68] sm:$0xff]
        %v429 = vld [vmem:[%s341 + $0x70] sm:$0xff]
        %v430 = vld [vmem:[%s341 + $0x78] sm:$0xff]
        %v431 = vld [vmem:[%s341 + $0x80] sm:$0xff]
        %v432 = vld [vmem:[%s341 + $0x88] sm:$0xff]
        %v433 = vld [vmem:[%s341 + $0x90] sm:$0xff]
        %v434 = vld [vmem:[%s341 + $0x98] sm:$0xff]
        %v435 = vld [vmem:[%s341 + $0xa0] sm:$0xff]
        %v436 = vld [vmem:[%s341 + $0xa8] sm:$0xff]
        %v437 = vld [vmem:[%s341 + $0xb0] sm:$0xff]
        %v438 = vld [vmem:[%s341 + $0xb8] sm:$0xff]
        %v439 = vld [vmem:[%s341 + $0xc0] sm:$0xff]
        %v440 = vld [vmem:[%s341 + $0xc8] sm:$0xff]
        %v441 = vld [vmem:[%s341 + $0xd0] sm:$0xff]
        %v442 = vld [vmem:[%s341 + $0xd8] sm:$0xff]
        %v443 = vld [vmem:[%s341 + $0xe0] sm:$0xff]
        %v444 = vld [vmem:[%s341 + $0xe8] sm:$0xff]
        %v445 = vld [vmem:[%s341 + $0xf0] sm:$0xff]
        %v446 = vld [vmem:[%s341 + $0xf8] sm:$0xff]
        %v447 = vld [vmem:[%s341 + $0x100] sm:$0xff]
        %v448 = vld [vmem:[%s341 + $0x108] sm:$0xff]
        %v449 = vld [vmem:[%s341 + $0x110] sm:$0xff]
        %v450 = vld [vmem:[%s341 + $0x118] sm:$0xff]
        %v451 = vld [vmem:[%s341 + $0x120] sm:$0xff]
        %v452 = vld [vmem:[%s341 + $0x128] sm:$0xff]
        %v453 = vld [vmem:[%s341 + $0x130] sm:$0xff]
        %v454 = vld [vmem:[%s341 + $0x138] sm:$0xff]
        %v455 = vld [vmem:[%s341 + $0x140] sm:$0xff]
        %v456 = vld [vmem:[%s341 + $0x148] sm:$0xff]
        %v457 = vld [vmem:[%s341 + $0x150] sm:$0xff]
        %v458 = vld [vmem:[%s341 + $0x158] sm:$0xff]
        %v459 = vld [vmem:[%s341 + $0x160] sm:$0xff]
        %v460 = vld [vmem:[%s341 + $0x168] sm:$0xff]
        %v461 = vld [vmem:[%s341 + $0x170] sm:$0xff]
        %v462 = vld [vmem:[%s341 + $0x178] sm:$0xff]
        %v463 = vld [vmem:[%s341 + $0x180] sm:$0xff]
        %v464 = vld [vmem:[%s341 + $0x188] sm:$0xff]
        %v465 = vld [vmem:[%s341 + $0x190] sm:$0xff]
        %v466 = vld [vmem:[%s341 + $0x198] sm:$0xff]
        %v467 = vld [vmem:[%s341 + $0x1a0] sm:$0xff]
        %v468 = vld [vmem:[%s341 + $0x1a8] sm:$0xff]
        %v469 = vld [vmem:[%s341 + $0x1b0] sm:$0xff]
        %v470 = vld [vmem:[%s341 + $0x1b8] sm:$0xff]
        %v471 = vld [vmem:[%s341 + $0x1c0] sm:$0xff]
        %v472 = vld [vmem:[%s341 + $0x1c8] sm:$0xff]
        %v473 = vld [vmem:[%s341 + $0x1d0] sm:$0xff]
        %v474 = vld [vmem:[%s341 + $0x1d8] sm:$0xff]
        %v475 = vld [vmem:[%s341 + $0x1e0] sm:$0xff]
        %v476 = vld [vmem:[%s341 + $0x1e8] sm:$0xff]
        %v477 = vld [vmem:[%s341 + $0x1f0] sm:$0xff]
        %v478 = vld [vmem:[%s341 + $0x1f8] sm:$0xff]
        %v479 = vld [vmem:[%s341 + $0x200] sm:$0xff]
        %v480 = vld [vmem:[%s341 + $0x208] sm:$0xff]
        %v481 = vld [vmem:[%s341 + $0x210] sm:$0xff]
        %v482 = vld [vmem:[%s341 + $0x218] sm:$0xff]
        %v483 = vld [vmem:[%s341 + $0x220] sm:$0xff]
        %v484 = vld [vmem:[%s341 + $0x228] sm:$0xff]
        %v485 = vld [vmem:[%s341 + $0x230] sm:$0xff]
        %v486 = vld [vmem:[%s341 + $0x238] sm:$0xff]
        %v487 = vld [vmem:[%s341 + $0x240] sm:$0xff]
        %v488 = vld [vmem:[%s341 + $0x248] sm:$0xff]
        %v489 = vld [vmem:[%s341 + $0x250] sm:$0xff]
        %v490 = vld [vmem:[%s341 + $0x258] sm:$0xff]
        %v491 = vld [vmem:[%s341 + $0x260] sm:$0xff]
        %v492 = vld [vmem:[%s341 + $0x268] sm:$0xff]
        %v493 = vld [vmem:[%s341 + $0x270] sm:$0xff]
        %v494 = vld [vmem:[%s341 + $0x278] sm:$0xff]
        %v495 = vld [vmem:[%s341 + $0x280] sm:$0xff]
        %v496 = vld [vmem:[%s341 + $0x288] sm:$0xff]
        %v497 = vld [vmem:[%s341 + $0x290] sm:$0xff]
        %v498 = vld [vmem:[%s341 + $0x298] sm:$0xff]
        %v499 = vld [vmem:[%s341 + $0x2a0] sm:$0xff]
        %v500 = vld [vmem:[%s341 + $0x2a8] sm:$0xff]
        %v501 = vld [vmem:[%s341 + $0x2b0] sm:$0xff]
        %v502 = vld [vmem:[%s341 + $0x2b8] sm:$0xff]
        %v503 = vld [vmem:[%s341 + $0x2c0] sm:$0xff]
        %v504 = vld [vmem:[%s341 + $0x2c8] sm:$0xff]
        %v505 = vld [vmem:[%s341 + $0x2d0] sm:$0xff]
        %v506 = vld [vmem:[%s341 + $0x2d8] sm:$0xff]
        %v507 = vld [vmem:[%s341 + $0x2e0] sm:$0xff]
        %v508 = vld [vmem:[%s341 + $0x2e8] sm:$0xff]
        %v509 = vld [vmem:[%s341 + $0x2f0] sm:$0xff]
        %v510 = vld [vmem:[%s341 + $0x2f8] sm:$0xff]
        %v511 = vld [vmem:[%s341 + $0x300] sm:$0xff]
        %v512 = vld [vmem:[%s341 + $0x308] sm:$0xff]
        %v513 = vld [vmem:[%s341 + $0x310] sm:$0xff]
        %v514 = vld [vmem:[%s341 + $0x318] sm:$0xff]
        %v515 = vld [vmem:[%s341 + $0x320] sm:$0xff]
        %v516 = vld [vmem:[%s341 + $0x328] sm:$0xff]
        %v517 = vld [vmem:[%s341 + $0x330] sm:$0xff]
        %v518 = vld [vmem:[%s341 + $0x338] sm:$0xff]
        %v519 = vld [vmem:[%s341 + $0x340] sm:$0xff]
        %v520 = vld [vmem:[%s341 + $0x348] sm:$0xff]
        %v521 = vld [vmem:[%s341 + $0x350] sm:$0xff]
        %v522 = vld [vmem:[%s341 + $0x358] sm:$0xff]
        %v523 = vld [vmem:[%s341 + $0x360] sm:$0xff]
        %v524 = vld [vmem:[%s341 + $0x368] sm:$0xff]
        %v525 = vld [vmem:[%s341 + $0x370] sm:$0xff]
        %v526 = vld [vmem:[%s341 + $0x378] sm:$0xff]
        %v527 = vld [vmem:[%s341 + $0x380] sm:$0xff]
        %v528 = vld [vmem:[%s341 + $0x388] sm:$0xff]
        %v529 = vld [vmem:[%s341 + $0x390] sm:$0xff]
        %v530 = vld [vmem:[%s341 + $0x398] sm:$0xff]
        %v531 = vld [vmem:[%s341 + $0x3a0] sm:$0xff]
        %v532 = vld [vmem:[%s341 + $0x3a8] sm:$0xff]
        %v533 = vld [vmem:[%s341 + $0x3b0] sm:$0xff]
        %v534 = vld [vmem:[%s341 + $0x3b8] sm:$0xff]
        %v535 = vld [vmem:[%s341 + $0x3c0] sm:$0xff]
        %v536 = vld [vmem:[%s341 + $0x3c8] sm:$0xff]
        %v537 = vld [vmem:[%s341 + $0x3d0] sm:$0xff]
        %v538 = vld [vmem:[%s341 + $0x3d8] sm:$0xff]
        %v539 = vld [vmem:[%s341 + $0x3e0] sm:$0xff]
        %v540 = vld [vmem:[%s341 + $0x3e8] sm:$0xff]
        %v541 = vld [vmem:[%s341 + $0x3f0] sm:$0xff]
        %v542 = vld [vmem:[%s341 + $0x3f8] sm:$0xff]
        %v543 = vld [vmem:[%s341 + $0x400] sm:$0xff]
        %v544 = vld [vmem:[%s341 + $0x408] sm:$0xff]
        %v545 = vld [vmem:[%s341 + $0x410] sm:$0xff]
        %v546 = vld [vmem:[%s341 + $0x418] sm:$0xff]
        %v547 = vld [vmem:[%s341 + $0x420] sm:$0xff]
        %v548 = vld [vmem:[%s341 + $0x428] sm:$0xff]
        %v549 = vld [vmem:[%s341 + $0x430] sm:$0xff]
        %v550 = vld [vmem:[%s341 + $0x438] sm:$0xff]
        %v551 = vld [vmem:[%s341 + $0x440] sm:$0xff]
        %v552 = vld [vmem:[%s341 + $0x448] sm:$0xff]
        %v553 = vld [vmem:[%s341 + $0x450] sm:$0xff]
        %v554 = vld [vmem:[%s341 + $0x458] sm:$0xff]
        %v555 = vld [vmem:[%s341 + $0x460] sm:$0xff]
        %v556 = vld [vmem:[%s341 + $0x468] sm:$0xff]
        %v557 = vld [vmem:[%s341 + $0x470] sm:$0xff]
        %v558 = vld [vmem:[%s341 + $0x478] sm:$0xff]
        %v559 = vld [vmem:[%s341 + $0x480] sm:$0xff]
        %v560 = vld [vmem:[%s341 + $0x488] sm:$0xff]
        %v561 = vld [vmem:[%s341 + $0x490] sm:$0xff]
        %v562 = vld [vmem:[%s341 + $0x498] sm:$0xff]
        %v563 = vld [vmem:[%s341 + $0x4a0] sm:$0xff]
        %v564 = vld [vmem:[%s341 + $0x4a8] sm:$0xff]
        %v565 = vld [vmem:[%s341 + $0x4b0] sm:$0xff]
        %v566 = vld [vmem:[%s341 + $0x4b8] sm:$0xff]
        %v567 = vld [vmem:[%s341 + $0x4c0] sm:$0xff]
        %v568 = vld [vmem:[%s341 + $0x4c8] sm:$0xff]
        %v569 = vld [vmem:[%s341 + $0x4d0] sm:$0xff]
        %v570 = vld [vmem:[%s341 + $0x4d8] sm:$0xff]
        %v571 = vld [vmem:[%s341 + $0x4e0] sm:$0xff]
        %v572 = vld [vmem:[%s341 + $0x4e8] sm:$0xff]
        %v573 = vld [vmem:[%s341 + $0x4f0] sm:$0xff]
        %v574 = vld [vmem:[%s341 + $0x4f8] sm:$0xff]
        %v575 = vld [vmem:[%s341 + $0x500] sm:$0xff]
        %v576 = vld [vmem:[%s341 + $0x508] sm:$0xff]
        %v577 = vld [vmem:[%s341 + $0x510] sm:$0xff]
        %v578 = vld [vmem:[%s341 + $0x518] sm:$0xff]
        %v579 = vld [vmem:[%s341 + $0x520] sm:$0xff]
        %v580 = vld [vmem:[%s341 + $0x528] sm:$0xff]
        %v581 = vld [vmem:[%s341 + $0x530] sm:$0xff]
        %v582 = vld [vmem:[%s341 + $0x538] sm:$0xff]
        %v583 = vld [vmem:[%s341 + $0x540] sm:$0xff]
        %v584 = vld [vmem:[%s341 + $0x548] sm:$0xff]
        %v585 = vld [vmem:[%s341 + $0x550] sm:$0xff]
        %v586 = vld [vmem:[%s341 + $0x558] sm:$0xff]
        %v587 = vld [vmem:[%s341 + $0x560] sm:$0xff]
        %v588 = vld [vmem:[%s341 + $0x568] sm:$0xff]
        %v589 = vld [vmem:[%s341 + $0x570] sm:$0xff]
        %v590 = vld [vmem:[%s341 + $0x578] sm:$0xff]
        %v591 = vld [vmem:[%s341 + $0x580] sm:$0xff]
        %v592 = vld [vmem:[%s341 + $0x588] sm:$0xff]
        %v593 = vld [vmem:[%s341 + $0x590] sm:$0xff]
        %v594 = vld [vmem:[%s341 + $0x598] sm:$0xff]
        %v595 = vld [vmem:[%s341 + $0x5a0] sm:$0xff]
        %v596 = vld [vmem:[%s341 + $0x5a8] sm:$0xff]
        %v597 = vld [vmem:[%s341 + $0x5b0] sm:$0xff]
        %v598 = vld [vmem:[%s341 + $0x5b8] sm:$0xff]
        %v599 = vld [vmem:[%s341 + $0x5c0] sm:$0xff]
        %v600 = vld [vmem:[%s341 + $0x5c8] sm:$0xff]
        %v601 = vld [vmem:[%s341 + $0x5d0] sm:$0xff]
        %v602 = vld [vmem:[%s341 + $0x5d8] sm:$0xff]
        %v603 = vld [vmem:[%s341 + $0x5e0] sm:$0xff]
        %v604 = vld [vmem:[%s341 + $0x5e8] sm:$0xff]
        %v605 = vld [vmem:[%s341 + $0x5f0] sm:$0xff]
        %v606 = vld [vmem:[%s341 + $0x5f8] sm:$0xff]
        %v607 = vld [vmem:[%s341 + $0x600] sm:$0xff]
        %v608 = vld [vmem:[%s341 + $0x608] sm:$0xff]
        %v609 = vld [vmem:[%s341 + $0x610] sm:$0xff]
        %v610 = vld [vmem:[%s341 + $0x618] sm:$0xff]
        %v611 = vld [vmem:[%s341 + $0x620] sm:$0xff]
        %v612 = vld [vmem:[%s341 + $0x628] sm:$0xff]
        %v613 = vld [vmem:[%s341 + $0x630] sm:$0xff]
        %v614 = vld [vmem:[%s341 + $0x638] sm:$0xff]
        %v615 = vld [vmem:[%s341 + $0x640] sm:$0xff]
        %v616 = vld [vmem:[%s341 + $0x648] sm:$0xff]
        %v617 = vld [vmem:[%s341 + $0x650] sm:$0xff]
        %v618 = vld [vmem:[%s341 + $0x658] sm:$0xff]
        %v619 = vld [vmem:[%s341 + $0x660] sm:$0xff]
        %v620 = vld [vmem:[%s341 + $0x668] sm:$0xff]
        %v621 = vld [vmem:[%s341 + $0x670] sm:$0xff]
        %v622 = vld [vmem:[%s341 + $0x678] sm:$0xff]
        %v623 = vld [vmem:[%s341 + $0x680] sm:$0xff]
        %v624 = vld [vmem:[%s341 + $0x688] sm:$0xff]
        %v625 = vld [vmem:[%s341 + $0x690] sm:$0xff]
        %v626 = vld [vmem:[%s341 + $0x698] sm:$0xff]
        %v627 = vld [vmem:[%s341 + $0x6a0] sm:$0xff]
        %v628 = vld [vmem:[%s341 + $0x6a8] sm:$0xff]
        %v629 = vld [vmem:[%s341 + $0x6b0] sm:$0xff]
        %v630 = vld [vmem:[%s341 + $0x6b8] sm:$0xff]
        %v631 = vld [vmem:[%s341 + $0x6c0] sm:$0xff]
        %v632 = vld [vmem:[%s341 + $0x6c8] sm:$0xff]
        %v633 = vld [vmem:[%s341 + $0x6d0] sm:$0xff]
        %v634 = vld [vmem:[%s341 + $0x6d8] sm:$0xff]
        %v635 = vld [vmem:[%s341 + $0x6e0] sm:$0xff]
        %v636 = vld [vmem:[%s341 + $0x6e8] sm:$0xff]
        %v637 = vld [vmem:[%s341 + $0x6f0] sm:$0xff]
        %v638 = vld [vmem:[%s341 + $0x6f8] sm:$0xff]
        %v639 = vld [vmem:[%s341 + $0x700] sm:$0xff]
        %v640 = vld [vmem:[%s341 + $0x708] sm:$0xff]
        %v641 = vld [vmem:[%s341 + $0x710] sm:$0xff]
        %v642 = vld [vmem:[%s341 + $0x718] sm:$0xff]
        %v643 = vld [vmem:[%s341 + $0x720] sm:$0xff]
        %v644 = vld [vmem:[%s341 + $0x728] sm:$0xff]
        %v645 = vld [vmem:[%s341 + $0x730] sm:$0xff]
        %v646 = vld [vmem:[%s341 + $0x738] sm:$0xff]
        %v647 = vld [vmem:[%s341 + $0x740] sm:$0xff]
        %v648 = vld [vmem:[%s341 + $0x748] sm:$0xff]
        %v649 = vld [vmem:[%s341 + $0x750] sm:$0xff]
        %v650 = vld [vmem:[%s341 + $0x758] sm:$0xff]
        %v651 = vld [vmem:[%s341 + $0x760] sm:$0xff]
        %v652 = vld [vmem:[%s341 + $0x768] sm:$0xff]
        %v653 = vld [vmem:[%s341 + $0x770] sm:$0xff]
        %v654 = vld [vmem:[%s341 + $0x778] sm:$0xff]
        %v655 = vld [vmem:[%s341 + $0x780] sm:$0xff]
        %v656 = vld [vmem:[%s341 + $0x788] sm:$0xff]
        %v657 = vld [vmem:[%s341 + $0x790] sm:$0xff]
        %v658 = vld [vmem:[%s341 + $0x798] sm:$0xff]
        %v659 = vld [vmem:[%s341 + $0x7a0] sm:$0xff]
        %v660 = vld [vmem:[%s341 + $0x7a8] sm:$0xff]
        %v661 = vld [vmem:[%s341 + $0x7b0] sm:$0xff]
        %v662 = vld [vmem:[%s341 + $0x7b8] sm:$0xff]
        %v663 = vld [vmem:[%s341 + $0x7c0] sm:$0xff]
        %v664 = vld [vmem:[%s341 + $0x7c8] sm:$0xff]
        %v665 = vld [vmem:[%s341 + $0x7d0] sm:$0xff]
        %v666 = vld [vmem:[%s341 + $0x7d8] sm:$0xff]
        %v667 = vld [vmem:[%s341 + $0x7e0] sm:$0xff]
        %v668 = vld [vmem:[%s341 + $0x7e8] sm:$0xff]
        %v669 = vld [vmem:[%s341 + $0x7f0] sm:$0xff]
        %v670 = vld [vmem:[%s341 + $0x7f8] sm:$0xff]
        %v671 = vld [vmem:[%s341 + $0x800] sm:$0xff]
        %v672 = vld [vmem:[%s341 + $0x808] sm:$0xff]
        %v673 = vld [vmem:[%s341 + $0x810] sm:$0xff]
        %v674 = vld [vmem:[%s341 + $0x818] sm:$0xff]
        %v675 = vld [vmem:[%s341 + $0x820] sm:$0xff]
        %v676 = vld [vmem:[%s341 + $0x828] sm:$0xff]
        %v677 = vld [vmem:[%s341 + $0x830] sm:$0xff]
        %v678 = vld [vmem:[%s341 + $0x838] sm:$0xff]
        %v679 = vld [vmem:[%s341 + $0x840] sm:$0xff]
        %v680 = vld [vmem:[%s341 + $0x848] sm:$0xff]
        %v681 = vld [vmem:[%s341 + $0x850] sm:$0xff]
        %v682 = vld [vmem:[%s341 + $0x858] sm:$0xff]
        %v683 = vld [vmem:[%s341 + $0x860] sm:$0xff]
        %v684 = vld [vmem:[%s341 + $0x868] sm:$0xff]
        %v685 = vld [vmem:[%s341 + $0x870] sm:$0xff]
        %v686 = vld [vmem:[%s341 + $0x878] sm:$0xff]
        %v687 = vld [vmem:[%s341 + $0x880] sm:$0xff]
        %v688 = vld [vmem:[%s341 + $0x888] sm:$0xff]
        %v689 = vld [vmem:[%s341 + $0x890] sm:$0xff]
        %v690 = vld [vmem:[%s341 + $0x898] sm:$0xff]
        %v691 = vld [vmem:[%s341 + $0x8a0] sm:$0xff]
        %v692 = vld [vmem:[%s341 + $0x8a8] sm:$0xff]
        %v693 = vld [vmem:[%s341 + $0x8b0] sm:$0xff]
        %v694 = vld [vmem:[%s341 + $0x8b8] sm:$0xff]
        %v695 = vld [vmem:[%s341 + $0x8c0] sm:$0xff]
        %v696 = vld [vmem:[%s341 + $0x8c8] sm:$0xff]
        %v697 = vld [vmem:[%s341 + $0x8d0] sm:$0xff]
        %v698 = vld [vmem:[%s341 + $0x8d8] sm:$0xff]
        %v699 = vld [vmem:[%s341 + $0x8e0] sm:$0xff]
        %v700 = vld [vmem:[%s341 + $0x8e8] sm:$0xff]
        %v701 = vld [vmem:[%s341 + $0x8f0] sm:$0xff]
        %v702 = vld [vmem:[%s341 + $0x8f8] sm:$0xff]
        %v703 = vld [vmem:[%s341 + $0x900] sm:$0xff]
        %v704 = vld [vmem:[%s341 + $0x908] sm:$0xff]
        %v705 = vld [vmem:[%s341 + $0x910] sm:$0xff]
        %v706 = vld [vmem:[%s341 + $0x918] sm:$0xff]
        %v707 = vld [vmem:[%s341 + $0x920] sm:$0xff]
        %v708 = vld [vmem:[%s341 + $0x928] sm:$0xff]
        %v709 = vld [vmem:[%s341 + $0x930] sm:$0xff]
        %v710 = vld [vmem:[%s341 + $0x938] sm:$0xff]
        %v711 = vld [vmem:[%s341 + $0x940] sm:$0xff]
        %v712 = vld [vmem:[%s341 + $0x948] sm:$0xff]
        %v713 = vld [vmem:[%s341 + $0x950] sm:$0xff]
        %v714 = vld [vmem:[%s341 + $0x958] sm:$0xff]
        %v715 = vld [vmem:[%s341 + $0x960] sm:$0xff]
        %v716 = vld [vmem:[%s341 + $0x968] sm:$0xff]
        %v717 = vld [vmem:[%s341 + $0x970] sm:$0xff]
        %v718 = vld [vmem:[%s341 + $0x978] sm:$0xff]
        %v719 = vld [vmem:[%s341 + $0x980] sm:$0xff]
        %v720 = vld [vmem:[%s341 + $0x988] sm:$0xff]
        %v721 = vld [vmem:[%s341 + $0x990] sm:$0xff]
        %v722 = vld [vmem:[%s341 + $0x998] sm:$0xff]
        %v723 = vld [vmem:[%s341 + $0x9a0] sm:$0xff]
        %v724 = vld [vmem:[%s341 + $0x9a8] sm:$0xff]
        %v725 = vld [vmem:[%s341 + $0x9b0] sm:$0xff]
        %v726 = vld [vmem:[%s341 + $0x9b8] sm:$0xff]
        %v727 = vld [vmem:[%s341 + $0x9c0] sm:$0xff]
        %v728 = vld [vmem:[%s341 + $0x9c8] sm:$0xff]
        %v729 = vld [vmem:[%s341 + $0x9d0] sm:$0xff]
        %v730 = vld [vmem:[%s341 + $0x9d8] sm:$0xff]
        %v731 = vld [vmem:[%s341 + $0x9e0] sm:$0xff]
        %v732 = vld [vmem:[%s341 + $0x9e8] sm:$0xff]
        %v733 = vld [vmem:[%s341 + $0x9f0] sm:$0xff]
        %v734 = vld [vmem:[%s341 + $0x9f8] sm:$0xff]
        %v735 = vld [vmem:[%s341 + $0xa00] sm:$0xff]
        %v736 = vld [vmem:[%s341 + $0xa08] sm:$0xff]
        %v737 = vld [vmem:[%s341 + $0xa10] sm:$0xff]
        %v738 = vld [vmem:[%s341 + $0xa18] sm:$0xff]
        %v739 = vld [vmem:[%s341 + $0xa20] sm:$0xff]
        %v740 = vld [vmem:[%s341 + $0xa28] sm:$0xff]
        %v741 = vld [vmem:[%s341 + $0xa30] sm:$0xff]
        %v742 = vld [vmem:[%s341 + $0xa38] sm:$0xff]
        %v743 = vld [vmem:[%s341 + $0xa40] sm:$0xff]
        %v744 = vld [vmem:[%s341 + $0xa48] sm:$0xff]
        %v745 = vld [vmem:[%s341 + $0xa50] sm:$0xff]
        %v746 = vld [vmem:[%s341 + $0xa58] sm:$0xff]
        %v747 = vld [vmem:[%s341 + $0xa60] sm:$0xff]
        %v748 = vld [vmem:[%s341 + $0xa68] sm:$0xff]
        %v749 = vld [vmem:[%s341 + $0xa70] sm:$0xff]
        %v750 = vld [vmem:[%s341 + $0xa78] sm:$0xff]
        %v751 = vld [vmem:[%s341 + $0xa80] sm:$0xff]
        %v752 = vld [vmem:[%s341 + $0xa88] sm:$0xff]
        %v753 = vld [vmem:[%s341 + $0xa90] sm:$0xff]
        %v754 = vld [vmem:[%s341 + $0xa98] sm:$0xff]
        %v755 = vld [vmem:[%s341 + $0xaa0] sm:$0xff]
        %v756 = vld [vmem:[%s341 + $0xaa8] sm:$0xff]
        %v757 = vld [vmem:[%s341 + $0xab0] sm:$0xff]
        %v758 = vld [vmem:[%s341 + $0xab8] sm:$0xff]
        %v759 = vld [vmem:[%s341 + $0xac0] sm:$0xff]
        %v760 = vld [vmem:[%s341 + $0xac8] sm:$0xff]
        %v761 = vld [vmem:[%s341 + $0xad0] sm:$0xff]
        %v762 = vld [vmem:[%s341 + $0xad8] sm:$0xff]
        %v763 = vld [vmem:[%s341 + $0xae0] sm:$0xff]
        %v764 = vld [vmem:[%s341 + $0xae8] sm:$0xff]
        %v765 = vld [vmem:[%s341 + $0xaf0] sm:$0xff]
        %v766 = vld [vmem:[%s341 + $0xaf8] sm:$0xff]
        %v767 = vld [vmem:[%s341 + $0xb00] sm:$0xff]
        %v768 = vld [vmem:[%s341 + $0xb08] sm:$0xff]
        %v769 = vld [vmem:[%s341 + $0xb10] sm:$0xff]
        %v770 = vld [vmem:[%s341 + $0xb18] sm:$0xff]
        %v771 = vld [vmem:[%s341 + $0xb20] sm:$0xff]
        %v772 = vld [vmem:[%s341 + $0xb28] sm:$0xff]
        %v773 = vld [vmem:[%s341 + $0xb30] sm:$0xff]
        %v774 = vld [vmem:[%s341 + $0xb38] sm:$0xff]
        %v775 = vld [vmem:[%s341 + $0xb40] sm:$0xff]
        %v776 = vld [vmem:[%s341 + $0xb48] sm:$0xff]
        %v777 = vld [vmem:[%s341 + $0xb50] sm:$0xff]
        %v778 = vld [vmem:[%s341 + $0xb58] sm:$0xff]
        %v779 = vld [vmem:[%s341 + $0xb60] sm:$0xff]
        %v780 = vld [vmem:[%s341 + $0xb68] sm:$0xff]
        %v781 = vld [vmem:[%s341 + $0xb70] sm:$0xff]
        %v782 = vld [vmem:[%s341 + $0xb78] sm:$0xff]
        %v783 = vld [vmem:[%s341 + $0xb80] sm:$0xff]
        %v784 = vld [vmem:[%s341 + $0xb88] sm:$0xff]
        %v785 = vld [vmem:[%s341 + $0xb90] sm:$0xff]
        %v786 = vld [vmem:[%s341 + $0xb98] sm:$0xff]
        %v787 = vld [vmem:[%s341 + $0xba0] sm:$0xff]
        %v788 = vld [vmem:[%s341 + $0xba8] sm:$0xff]
        %v789 = vld [vmem:[%s341 + $0xbb0] sm:$0xff]
        %v790 = vld [vmem:[%s341 + $0xbb8] sm:$0xff]
        %v791 = vld [vmem:[%s341 + $0xbc0] sm:$0xff]
        %v792 = vld [vmem:[%s341 + $0xbc8] sm:$0xff]
        %v793 = vld [vmem:[%s341 + $0xbd0] sm:$0xff]
        %v794 = vld [vmem:[%s341 + $0xbd8] sm:$0xff]
        %v795 = vld [vmem:[%s341 + $0xbe0] sm:$0xff]
        %v796 = vld [vmem:[%s341 + $0xbe8] sm:$0xff]
        %v797 = vld [vmem:[%s341 + $0xbf0] sm:$0xff]
        %v798 = vld [vmem:[%s341 + $0xbf8] sm:$0xff]
        %v799 = vld [vmem:[%s341 + $0xc00] sm:$0xff]
        %v800 = vld [vmem:[%s341 + $0xc08] sm:$0xff]
        %v801 = vld [vmem:[%s341 + $0xc10] sm:$0xff]
        %v802 = vld [vmem:[%s341 + $0xc18] sm:$0xff]
        %v803 = vld [vmem:[%s341 + $0xc20] sm:$0xff]
        %v804 = vld [vmem:[%s341 + $0xc28] sm:$0xff]
        %v805 = vld [vmem:[%s341 + $0xc30] sm:$0xff]
        %v806 = vld [vmem:[%s341 + $0xc38] sm:$0xff]
        %v807 = vld [vmem:[%s341 + $0xc40] sm:$0xff]
        %v808 = vld [vmem:[%s341 + $0xc48] sm:$0xff]
        %v809 = vld [vmem:[%s341 + $0xc50] sm:$0xff]
        %v810 = vld [vmem:[%s341 + $0xc58] sm:$0xff]
        %v811 = vld [vmem:[%s341 + $0xc60] sm:$0xff]
        %v812 = vld [vmem:[%s341 + $0xc68] sm:$0xff]
        %v813 = vld [vmem:[%s341 + $0xc70] sm:$0xff]
        %v814 = vld [vmem:[%s341 + $0xc78] sm:$0xff]
        %v815 = vld [vmem:[%s350] sm:$0xff]
        %v816 = vld [vmem:[%s350 + $0x8] sm:$0xff]
        %v817 = vld [vmem:[%s350 + $0x10] sm:$0xff]
        %v818 = vld [vmem:[%s350 + $0x18] sm:$0xff]
        %v819 = vld [vmem:[%s350 + $0x20] sm:$0xff]
        %v820 = vld [vmem:[%s350 + $0x28] sm:$0xff]
        %v821 = vld [vmem:[%s350 + $0x30] sm:$0xff]
        %v822 = vld [vmem:[%s350 + $0x38] sm:$0xff]
        %v823 = vld [vmem:[%s350 + $0x40] sm:$0xff]
        %v824 = vld [vmem:[%s350 + $0x48] sm:$0xff]
        %v825 = vld [vmem:[%s350 + $0x50] sm:$0xff]
        %v826 = vld [vmem:[%s350 + $0x58] sm:$0xff]
        %v827 = vld [vmem:[%s350 + $0x60] sm:$0xff]
        %v828 = vld [vmem:[%s350 + $0x68] sm:$0xff]
        %v829 = vld [vmem:[%s350 + $0x70] sm:$0xff]
        %v830 = vld [vmem:[%s350 + $0x78] sm:$0xff]
        %v831 = vld [vmem:[%s350 + $0x80] sm:$0xff]
        %v832 = vld [vmem:[%s350 + $0x88] sm:$0xff]
        %v833 = vld [vmem:[%s350 + $0x90] sm:$0xff]
        %v834 = vld [vmem:[%s350 + $0x98] sm:$0xff]
        %v835 = vld [vmem:[%s350 + $0xa0] sm:$0xff]
        %v836 = vld [vmem:[%s350 + $0xa8] sm:$0xff]
        %v837 = vld [vmem:[%s350 + $0xb0] sm:$0xff]
        %v838 = vld [vmem:[%s350 + $0xb8] sm:$0xff]
        %v839 = vld [vmem:[%s350 + $0xc0] sm:$0xff]
        %v840 = vld [vmem:[%s350 + $0xc8] sm:$0xff]
        %v841 = vld [vmem:[%s350 + $0xd0] sm:$0xff]
        %v842 = vld [vmem:[%s350 + $0xd8] sm:$0xff]
        %v843 = vld [vmem:[%s350 + $0xe0] sm:$0xff]
        %v844 = vld [vmem:[%s350 + $0xe8] sm:$0xff]
        %v845 = vld [vmem:[%s350 + $0xf0] sm:$0xff]
        %v846 = vld [vmem:[%s350 + $0xf8] sm:$0xff]
        %v847 = vld [vmem:[%s350 + $0x100] sm:$0xff]
        %v848 = vld [vmem:[%s350 + $0x108] sm:$0xff]
        %v849 = vld [vmem:[%s350 + $0x110] sm:$0xff]
        %v850 = vld [vmem:[%s350 + $0x118] sm:$0xff]
        %v851 = vld [vmem:[%s350 + $0x120] sm:$0xff]
        %v852 = vld [vmem:[%s350 + $0x128] sm:$0xff]
        %v853 = vld [vmem:[%s350 + $0x130] sm:$0xff]
        %v854 = vld [vmem:[%s350 + $0x138] sm:$0xff]
        %v855 = vld [vmem:[%s350 + $0x140] sm:$0xff]
        %v856 = vld [vmem:[%s350 + $0x148] sm:$0xff]
        %v857 = vld [vmem:[%s350 + $0x150] sm:$0xff]
        %v858 = vld [vmem:[%s350 + $0x158] sm:$0xff]
        %v859 = vld [vmem:[%s350 + $0x160] sm:$0xff]
        %v860 = vld [vmem:[%s350 + $0x168] sm:$0xff]
        %v861 = vld [vmem:[%s350 + $0x170] sm:$0xff]
        %v862 = vld [vmem:[%s350 + $0x178] sm:$0xff]
        %v863 = vld [vmem:[%s350 + $0x180] sm:$0xff]
        %v864 = vld [vmem:[%s350 + $0x188] sm:$0xff]
        %v865 = vld [vmem:[%s350 + $0x190] sm:$0xff]
        %v866 = vld [vmem:[%s350 + $0x198] sm:$0xff]
        %v867 = vld [vmem:[%s350 + $0x1a0] sm:$0xff]
        %v868 = vld [vmem:[%s350 + $0x1a8] sm:$0xff]
        %v869 = vld [vmem:[%s350 + $0x1b0] sm:$0xff]
        %v870 = vld [vmem:[%s350 + $0x1b8] sm:$0xff]
        %v871 = vld [vmem:[%s350 + $0x1c0] sm:$0xff]
        %v872 = vld [vmem:[%s350 + $0x1c8] sm:$0xff]
        %v873 = vld [vmem:[%s350 + $0x1d0] sm:$0xff]
        %v874 = vld [vmem:[%s350 + $0x1d8] sm:$0xff]
        %v875 = vld [vmem:[%s350 + $0x1e0] sm:$0xff]
        %v876 = vld [vmem:[%s350 + $0x1e8] sm:$0xff]
        %v877 = vld [vmem:[%s350 + $0x1f0] sm:$0xff]
        %v878 = vld [vmem:[%s350 + $0x1f8] sm:$0xff]
        %v879 = vld [vmem:[%s350 + $0x200] sm:$0xff]
        %v880 = vld [vmem:[%s350 + $0x208] sm:$0xff]
        %v881 = vld [vmem:[%s350 + $0x210] sm:$0xff]
        %v882 = vld [vmem:[%s350 + $0x218] sm:$0xff]
        %v883 = vld [vmem:[%s350 + $0x220] sm:$0xff]
        %v884 = vld [vmem:[%s350 + $0x228] sm:$0xff]
        %v885 = vld [vmem:[%s350 + $0x230] sm:$0xff]
        %v886 = vld [vmem:[%s350 + $0x238] sm:$0xff]
        %v887 = vld [vmem:[%s350 + $0x240] sm:$0xff]
        %v888 = vld [vmem:[%s350 + $0x248] sm:$0xff]
        %v889 = vld [vmem:[%s350 + $0x250] sm:$0xff]
        %v890 = vld [vmem:[%s350 + $0x258] sm:$0xff]
        %v891 = vld [vmem:[%s350 + $0x260] sm:$0xff]
        %v892 = vld [vmem:[%s350 + $0x268] sm:$0xff]
        %v893 = vld [vmem:[%s350 + $0x270] sm:$0xff]
        %v894 = vld [vmem:[%s350 + $0x278] sm:$0xff]
        %v895 = vld [vmem:[%s350 + $0x280] sm:$0xff]
        %v896 = vld [vmem:[%s350 + $0x288] sm:$0xff]
        %v897 = vld [vmem:[%s350 + $0x290] sm:$0xff]
        %v898 = vld [vmem:[%s350 + $0x298] sm:$0xff]
        %v899 = vld [vmem:[%s350 + $0x2a0] sm:$0xff]
        %v900 = vld [vmem:[%s350 + $0x2a8] sm:$0xff]
        %v901 = vld [vmem:[%s350 + $0x2b0] sm:$0xff]
        %v902 = vld [vmem:[%s350 + $0x2b8] sm:$0xff]
        %v903 = vld [vmem:[%s350 + $0x2c0] sm:$0xff]
        %v904 = vld [vmem:[%s350 + $0x2c8] sm:$0xff]
        %v905 = vld [vmem:[%s350 + $0x2d0] sm:$0xff]
        %v906 = vld [vmem:[%s350 + $0x2d8] sm:$0xff]
        %v907 = vld [vmem:[%s350 + $0x2e0] sm:$0xff]
        %v908 = vld [vmem:[%s350 + $0x2e8] sm:$0xff]
        %v909 = vld [vmem:[%s350 + $0x2f0] sm:$0xff]
        %v910 = vld [vmem:[%s350 + $0x2f8] sm:$0xff]
        %v911 = vld [vmem:[%s350 + $0x300] sm:$0xff]
        %v912 = vld [vmem:[%s350 + $0x308] sm:$0xff]
        %v913 = vld [vmem:[%s350 + $0x310] sm:$0xff]
        %v914 = vld [vmem:[%s350 + $0x318] sm:$0xff]
        %v915 = vld [vmem:[%s350 + $0x320] sm:$0xff]
        %v916 = vld [vmem:[%s350 + $0x328] sm:$0xff]
        %v917 = vld [vmem:[%s350 + $0x330] sm:$0xff]
        %v918 = vld [vmem:[%s350 + $0x338] sm:$0xff]
        %v919 = vld [vmem:[%s350 + $0x340] sm:$0xff]
        %v920 = vld [vmem:[%s350 + $0x348] sm:$0xff]
        %v921 = vld [vmem:[%s350 + $0x350] sm:$0xff]
        %v922 = vld [vmem:[%s350 + $0x358] sm:$0xff]
        %v923 = vld [vmem:[%s350 + $0x360] sm:$0xff]
        %v924 = vld [vmem:[%s350 + $0x368] sm:$0xff]
        %v925 = vld [vmem:[%s350 + $0x370] sm:$0xff]
        %v926 = vld [vmem:[%s350 + $0x378] sm:$0xff]
        %v927 = vld [vmem:[%s350 + $0x380] sm:$0xff]
        %v928 = vld [vmem:[%s350 + $0x388] sm:$0xff]
        %v929 = vld [vmem:[%s350 + $0x390] sm:$0xff]
        %v930 = vld [vmem:[%s350 + $0x398] sm:$0xff]
        %v931 = vld [vmem:[%s350 + $0x3a0] sm:$0xff]
        %v932 = vld [vmem:[%s350 + $0x3a8] sm:$0xff]
        %v933 = vld [vmem:[%s350 + $0x3b0] sm:$0xff]
        %v934 = vld [vmem:[%s350 + $0x3b8] sm:$0xff]
        %v935 = vld [vmem:[%s350 + $0x3c0] sm:$0xff]
        %v936 = vld [vmem:[%s350 + $0x3c8] sm:$0xff]
        %v937 = vld [vmem:[%s350 + $0x3d0] sm:$0xff]
        %v938 = vld [vmem:[%s350 + $0x3d8] sm:$0xff]
        %v939 = vld [vmem:[%s350 + $0x3e0] sm:$0xff]
        %v940 = vld [vmem:[%s350 + $0x3e8] sm:$0xff]
        %v941 = vld [vmem:[%s350 + $0x3f0] sm:$0xff]
        %v942 = vld [vmem:[%s350 + $0x3f8] sm:$0xff]
        %v943 = vld [vmem:[%s350 + $0x400] sm:$0xff]
        %v944 = vld [vmem:[%s350 + $0x408] sm:$0xff]
        %v945 = vld [vmem:[%s350 + $0x410] sm:$0xff]
        %v946 = vld [vmem:[%s350 + $0x418] sm:$0xff]
        %v947 = vld [vmem:[%s350 + $0x420] sm:$0xff]
        %v948 = vld [vmem:[%s350 + $0x428] sm:$0xff]
        %v949 = vld [vmem:[%s350 + $0x430] sm:$0xff]
        %v950 = vld [vmem:[%s350 + $0x438] sm:$0xff]
        %v951 = vld [vmem:[%s350 + $0x440] sm:$0xff]
        %v952 = vld [vmem:[%s350 + $0x448] sm:$0xff]
        %v953 = vld [vmem:[%s350 + $0x450] sm:$0xff]
        %v954 = vld [vmem:[%s350 + $0x458] sm:$0xff]
        %v955 = vld [vmem:[%s350 + $0x460] sm:$0xff]
        %v956 = vld [vmem:[%s350 + $0x468] sm:$0xff]
        %v957 = vld [vmem:[%s350 + $0x470] sm:$0xff]
        %v958 = vld [vmem:[%s350 + $0x478] sm:$0xff]
        %v959 = vld [vmem:[%s350 + $0x480] sm:$0xff]
        %v960 = vld [vmem:[%s350 + $0x488] sm:$0xff]
        %v961 = vld [vmem:[%s350 + $0x490] sm:$0xff]
        %v962 = vld [vmem:[%s350 + $0x498] sm:$0xff]
        %v963 = vld [vmem:[%s350 + $0x4a0] sm:$0xff]
        %v964 = vld [vmem:[%s350 + $0x4a8] sm:$0xff]
        %v965 = vld [vmem:[%s350 + $0x4b0] sm:$0xff]
        %v966 = vld [vmem:[%s350 + $0x4b8] sm:$0xff]
        %v967 = vld [vmem:[%s350 + $0x4c0] sm:$0xff]
        %v968 = vld [vmem:[%s350 + $0x4c8] sm:$0xff]
        %v969 = vld [vmem:[%s350 + $0x4d0] sm:$0xff]
        %v970 = vld [vmem:[%s350 + $0x4d8] sm:$0xff]
        %v971 = vld [vmem:[%s350 + $0x4e0] sm:$0xff]
        %v972 = vld [vmem:[%s350 + $0x4e8] sm:$0xff]
        %v973 = vld [vmem:[%s350 + $0x4f0] sm:$0xff]
        %v974 = vld [vmem:[%s350 + $0x4f8] sm:$0xff]
        %v975 = vld [vmem:[%s350 + $0x500] sm:$0xff]
        %v976 = vld [vmem:[%s350 + $0x508] sm:$0xff]
        %v977 = vld [vmem:[%s350 + $0x510] sm:$0xff]
        %v978 = vld [vmem:[%s350 + $0x518] sm:$0xff]
        %v979 = vld [vmem:[%s350 + $0x520] sm:$0xff]
        %v980 = vld [vmem:[%s350 + $0x528] sm:$0xff]
        %v981 = vld [vmem:[%s350 + $0x530] sm:$0xff]
        %v982 = vld [vmem:[%s350 + $0x538] sm:$0xff]
        %v983 = vld [vmem:[%s350 + $0x540] sm:$0xff]
        %v984 = vld [vmem:[%s350 + $0x548] sm:$0xff]
        %v985 = vld [vmem:[%s350 + $0x550] sm:$0xff]
        %v986 = vld [vmem:[%s350 + $0x558] sm:$0xff]
        %v987 = vld [vmem:[%s350 + $0x560] sm:$0xff]
        %v988 = vld [vmem:[%s350 + $0x568] sm:$0xff]
        %v989 = vld [vmem:[%s350 + $0x570] sm:$0xff]
        %v990 = vld [vmem:[%s350 + $0x578] sm:$0xff]
        %v991 = vld [vmem:[%s350 + $0x580] sm:$0xff]
        %v992 = vld [vmem:[%s350 + $0x588] sm:$0xff]
        %v993 = vld [vmem:[%s350 + $0x590] sm:$0xff]
        %v994 = vld [vmem:[%s350 + $0x598] sm:$0xff]
        %v995 = vld [vmem:[%s350 + $0x5a0] sm:$0xff]
        %v996 = vld [vmem:[%s350 + $0x5a8] sm:$0xff]
        %v997 = vld [vmem:[%s350 + $0x5b0] sm:$0xff]
        %v998 = vld [vmem:[%s350 + $0x5b8] sm:$0xff]
        %v999 = vld [vmem:[%s350 + $0x5c0] sm:$0xff]
        %v1000 = vld [vmem:[%s350 + $0x5c8] sm:$0xff]
        %v1001 = vld [vmem:[%s350 + $0x5d0] sm:$0xff]
        %v1002 = vld [vmem:[%s350 + $0x5d8] sm:$0xff]
        %v1003 = vld [vmem:[%s350 + $0x5e0] sm:$0xff]
        %v1004 = vld [vmem:[%s350 + $0x5e8] sm:$0xff]
        %v1005 = vld [vmem:[%s350 + $0x5f0] sm:$0xff]
        %v1006 = vld [vmem:[%s350 + $0x5f8] sm:$0xff]
        %v1007 = vld [vmem:[%s350 + $0x600] sm:$0xff]
        %v1008 = vld [vmem:[%s350 + $0x608] sm:$0xff]
        %v1009 = vld [vmem:[%s350 + $0x610] sm:$0xff]
        %v1010 = vld [vmem:[%s350 + $0x618] sm:$0xff]
        %v1011 = vld [vmem:[%s350 + $0x620] sm:$0xff]
        %v1012 = vld [vmem:[%s350 + $0x628] sm:$0xff]
        %v1013 = vld [vmem:[%s350 + $0x630] sm:$0xff]
        %v1014 = vld [vmem:[%s350 + $0x638] sm:$0xff]
        %v1015 = vld [vmem:[%s350 + $0x640] sm:$0xff]
        %v1016 = vld [vmem:[%s350 + $0x648] sm:$0xff]
        %v1017 = vld [vmem:[%s350 + $0x650] sm:$0xff]
        %v1018 = vld [vmem:[%s350 + $0x658] sm:$0xff]
        %v1019 = vld [vmem:[%s350 + $0x660] sm:$0xff]
        %v1020 = vld [vmem:[%s350 + $0x668] sm:$0xff]
        %v1021 = vld [vmem:[%s350 + $0x670] sm:$0xff]
        %v1022 = vld [vmem:[%s350 + $0x678] sm:$0xff]
        %v1023 = vld [vmem:[%s350 + $0x680] sm:$0xff]
        %v1024 = vld [vmem:[%s350 + $0x688] sm:$0xff]
        %v1025 = vld [vmem:[%s350 + $0x690] sm:$0xff]
        %v1026 = vld [vmem:[%s350 + $0x698] sm:$0xff]
        %v1027 = vld [vmem:[%s350 + $0x6a0] sm:$0xff]
        %v1028 = vld [vmem:[%s350 + $0x6a8] sm:$0xff]
        %v1029 = vld [vmem:[%s350 + $0x6b0] sm:$0xff]
        %v1030 = vld [vmem:[%s350 + $0x6b8] sm:$0xff]
        %v1031 = vld [vmem:[%s350 + $0x6c0] sm:$0xff]
        %v1032 = vld [vmem:[%s350 + $0x6c8] sm:$0xff]
        %v1033 = vld [vmem:[%s350 + $0x6d0] sm:$0xff]
        %v1034 = vld [vmem:[%s350 + $0x6d8] sm:$0xff]
        %v1035 = vld [vmem:[%s350 + $0x6e0] sm:$0xff]
        %v1036 = vld [vmem:[%s350 + $0x6e8] sm:$0xff]
        %v1037 = vld [vmem:[%s350 + $0x6f0] sm:$0xff]
        %v1038 = vld [vmem:[%s350 + $0x6f8] sm:$0xff]
        %v1039 = vld [vmem:[%s350 + $0x700] sm:$0xff]
        %v1040 = vld [vmem:[%s350 + $0x708] sm:$0xff]
        %v1041 = vld [vmem:[%s350 + $0x710] sm:$0xff]
        %v1042 = vld [vmem:[%s350 + $0x718] sm:$0xff]
        %v1043 = vld [vmem:[%s350 + $0x720] sm:$0xff]
        %v1044 = vld [vmem:[%s350 + $0x728] sm:$0xff]
        %v1045 = vld [vmem:[%s350 + $0x730] sm:$0xff]
        %v1046 = vld [vmem:[%s350 + $0x738] sm:$0xff]
        %v1047 = vld [vmem:[%s350 + $0x740] sm:$0xff]
        %v1048 = vld [vmem:[%s350 + $0x748] sm:$0xff]
        %v1049 = vld [vmem:[%s350 + $0x750] sm:$0xff]
        %v1050 = vld [vmem:[%s350 + $0x758] sm:$0xff]
        %v1051 = vld [vmem:[%s350 + $0x760] sm:$0xff]
        %v1052 = vld [vmem:[%s350 + $0x768] sm:$0xff]
        %v1053 = vld [vmem:[%s350 + $0x770] sm:$0xff]
        %v1054 = vld [vmem:[%s350 + $0x778] sm:$0xff]
        %v1055 = vld [vmem:[%s350 + $0x780] sm:$0xff]
        %v1056 = vld [vmem:[%s350 + $0x788] sm:$0xff]
        %v1057 = vld [vmem:[%s350 + $0x790] sm:$0xff]
        %v1058 = vld [vmem:[%s350 + $0x798] sm:$0xff]
        %v1059 = vld [vmem:[%s350 + $0x7a0] sm:$0xff]
        %v1060 = vld [vmem:[%s350 + $0x7a8] sm:$0xff]
        %v1061 = vld [vmem:[%s350 + $0x7b0] sm:$0xff]
        %v1062 = vld [vmem:[%s350 + $0x7b8] sm:$0xff]
        %v1063 = vld [vmem:[%s350 + $0x7c0] sm:$0xff]
        %v1064 = vld [vmem:[%s350 + $0x7c8] sm:$0xff]
        %v1065 = vld [vmem:[%s350 + $0x7d0] sm:$0xff]
        %v1066 = vld [vmem:[%s350 + $0x7d8] sm:$0xff]
        %v1067 = vld [vmem:[%s350 + $0x7e0] sm:$0xff]
        %v1068 = vld [vmem:[%s350 + $0x7e8] sm:$0xff]
        %v1069 = vld [vmem:[%s350 + $0x7f0] sm:$0xff]
        %v1070 = vld [vmem:[%s350 + $0x7f8] sm:$0xff]
        %v1071 = vld [vmem:[%s350 + $0x800] sm:$0xff]
        %v1072 = vld [vmem:[%s350 + $0x808] sm:$0xff]
        %v1073 = vld [vmem:[%s350 + $0x810] sm:$0xff]
        %v1074 = vld [vmem:[%s350 + $0x818] sm:$0xff]
        %v1075 = vld [vmem:[%s350 + $0x820] sm:$0xff]
        %v1076 = vld [vmem:[%s350 + $0x828] sm:$0xff]
        %v1077 = vld [vmem:[%s350 + $0x830] sm:$0xff]
        %v1078 = vld [vmem:[%s350 + $0x838] sm:$0xff]
        %v1079 = vld [vmem:[%s350 + $0x840] sm:$0xff]
        %v1080 = vld [vmem:[%s350 + $0x848] sm:$0xff]
        %v1081 = vld [vmem:[%s350 + $0x850] sm:$0xff]
        %v1082 = vld [vmem:[%s350 + $0x858] sm:$0xff]
        %v1083 = vld [vmem:[%s350 + $0x860] sm:$0xff]
        %v1084 = vld [vmem:[%s350 + $0x868] sm:$0xff]
        %v1085 = vld [vmem:[%s350 + $0x870] sm:$0xff]
        %v1086 = vld [vmem:[%s350 + $0x878] sm:$0xff]
        %v1087 = vld [vmem:[%s350 + $0x880] sm:$0xff]
        %v1088 = vld [vmem:[%s350 + $0x888] sm:$0xff]
        %v1089 = vld [vmem:[%s350 + $0x890] sm:$0xff]
        %v1090 = vld [vmem:[%s350 + $0x898] sm:$0xff]
        %v1091 = vld [vmem:[%s350 + $0x8a0] sm:$0xff]
        %v1092 = vld [vmem:[%s350 + $0x8a8] sm:$0xff]
        %v1093 = vld [vmem:[%s350 + $0x8b0] sm:$0xff]
        %v1094 = vld [vmem:[%s350 + $0x8b8] sm:$0xff]
        %v1095 = vld [vmem:[%s350 + $0x8c0] sm:$0xff]
        %v1096 = vld [vmem:[%s350 + $0x8c8] sm:$0xff]
        %v1097 = vld [vmem:[%s350 + $0x8d0] sm:$0xff]
        %v1098 = vld [vmem:[%s350 + $0x8d8] sm:$0xff]
        %v1099 = vld [vmem:[%s350 + $0x8e0] sm:$0xff]
        %v1100 = vld [vmem:[%s350 + $0x8e8] sm:$0xff]
        %v1101 = vld [vmem:[%s350 + $0x8f0] sm:$0xff]
        %v1102 = vld [vmem:[%s350 + $0x8f8] sm:$0xff]
        %v1103 = vld [vmem:[%s350 + $0x900] sm:$0xff]
        %v1104 = vld [vmem:[%s350 + $0x908] sm:$0xff]
        %v1105 = vld [vmem:[%s350 + $0x910] sm:$0xff]
        %v1106 = vld [vmem:[%s350 + $0x918] sm:$0xff]
        %v1107 = vld [vmem:[%s350 + $0x920] sm:$0xff]
        %v1108 = vld [vmem:[%s350 + $0x928] sm:$0xff]
        %v1109 = vld [vmem:[%s350 + $0x930] sm:$0xff]
        %v1110 = vld [vmem:[%s350 + $0x938] sm:$0xff]
        %v1111 = vld [vmem:[%s350 + $0x940] sm:$0xff]
        %v1112 = vld [vmem:[%s350 + $0x948] sm:$0xff]
        %v1113 = vld [vmem:[%s350 + $0x950] sm:$0xff]
        %v1114 = vld [vmem:[%s350 + $0x958] sm:$0xff]
        %v1115 = vld [vmem:[%s350 + $0x960] sm:$0xff]
        %v1116 = vld [vmem:[%s350 + $0x968] sm:$0xff]
        %v1117 = vld [vmem:[%s350 + $0x970] sm:$0xff]
        %v1118 = vld [vmem:[%s350 + $0x978] sm:$0xff]
        %v1119 = vld [vmem:[%s350 + $0x980] sm:$0xff]
        %v1120 = vld [vmem:[%s350 + $0x988] sm:$0xff]
        %v1121 = vld [vmem:[%s350 + $0x990] sm:$0xff]
        %v1122 = vld [vmem:[%s350 + $0x998] sm:$0xff]
        %v1123 = vld [vmem:[%s350 + $0x9a0] sm:$0xff]
        %v1124 = vld [vmem:[%s350 + $0x9a8] sm:$0xff]
        %v1125 = vld [vmem:[%s350 + $0x9b0] sm:$0xff]
        %v1126 = vld [vmem:[%s350 + $0x9b8] sm:$0xff]
        %v1127 = vld [vmem:[%s350 + $0x9c0] sm:$0xff]
        %v1128 = vld [vmem:[%s350 + $0x9c8] sm:$0xff]
        %v1129 = vld [vmem:[%s350 + $0x9d0] sm:$0xff]
        %v1130 = vld [vmem:[%s350 + $0x9d8] sm:$0xff]
        %v1131 = vld [vmem:[%s350 + $0x9e0] sm:$0xff]
        %v1132 = vld [vmem:[%s350 + $0x9e8] sm:$0xff]
        %v1133 = vld [vmem:[%s350 + $0x9f0] sm:$0xff]
        %v1134 = vld [vmem:[%s350 + $0x9f8] sm:$0xff]
        %v1135 = vld [vmem:[%s350 + $0xa00] sm:$0xff]
        %v1136 = vld [vmem:[%s350 + $0xa08] sm:$0xff]
        %v1137 = vld [vmem:[%s350 + $0xa10] sm:$0xff]
        %v1138 = vld [vmem:[%s350 + $0xa18] sm:$0xff]
        %v1139 = vld [vmem:[%s350 + $0xa20] sm:$0xff]
        %v1140 = vld [vmem:[%s350 + $0xa28] sm:$0xff]
        %v1141 = vld [vmem:[%s350 + $0xa30] sm:$0xff]
        %v1142 = vld [vmem:[%s350 + $0xa38] sm:$0xff]
        %v1143 = vld [vmem:[%s350 + $0xa40] sm:$0xff]
        %v1144 = vld [vmem:[%s350 + $0xa48] sm:$0xff]
        %v1145 = vld [vmem:[%s350 + $0xa50] sm:$0xff]
        %v1146 = vld [vmem:[%s350 + $0xa58] sm:$0xff]
        %v1147 = vld [vmem:[%s350 + $0xa60] sm:$0xff]
        %v1148 = vld [vmem:[%s350 + $0xa68] sm:$0xff]
        %v1149 = vld [vmem:[%s350 + $0xa70] sm:$0xff]
        %v1150 = vld [vmem:[%s350 + $0xa78] sm:$0xff]
        %v1151 = vld [vmem:[%s350 + $0xa80] sm:$0xff]
        %v1152 = vld [vmem:[%s350 + $0xa88] sm:$0xff]
        %v1153 = vld [vmem:[%s350 + $0xa90] sm:$0xff]
        %v1154 = vld [vmem:[%s350 + $0xa98] sm:$0xff]
        %v1155 = vld [vmem:[%s350 + $0xaa0] sm:$0xff]
        %v1156 = vld [vmem:[%s350 + $0xaa8] sm:$0xff]
        %v1157 = vld [vmem:[%s350 + $0xab0] sm:$0xff]
        %v1158 = vld [vmem:[%s350 + $0xab8] sm:$0xff]
        %v1159 = vld [vmem:[%s350 + $0xac0] sm:$0xff]
        %v1160 = vld [vmem:[%s350 + $0xac8] sm:$0xff]
        %v1161 = vld [vmem:[%s350 + $0xad0] sm:$0xff]
        %v1162 = vld [vmem:[%s350 + $0xad8] sm:$0xff]
        %v1163 = vld [vmem:[%s350 + $0xae0] sm:$0xff]
        %v1164 = vld [vmem:[%s350 + $0xae8] sm:$0xff]
        %v1165 = vld [vmem:[%s350 + $0xaf0] sm:$0xff]
        %v1166 = vld [vmem:[%s350 + $0xaf8] sm:$0xff]
        %v1167 = vld [vmem:[%s350 + $0xb00] sm:$0xff]
        %v1168 = vld [vmem:[%s350 + $0xb08] sm:$0xff]
        %v1169 = vld [vmem:[%s350 + $0xb10] sm:$0xff]
        %v1170 = vld [vmem:[%s350 + $0xb18] sm:$0xff]
        %v1171 = vld [vmem:[%s350 + $0xb20] sm:$0xff]
        %v1172 = vld [vmem:[%s350 + $0xb28] sm:$0xff]
        %v1173 = vld [vmem:[%s350 + $0xb30] sm:$0xff]
        %v1174 = vld [vmem:[%s350 + $0xb38] sm:$0xff]
        %v1175 = vld [vmem:[%s350 + $0xb40] sm:$0xff]
        %v1176 = vld [vmem:[%s350 + $0xb48] sm:$0xff]
        %v1177 = vld [vmem:[%s350 + $0xb50] sm:$0xff]
        %v1178 = vld [vmem:[%s350 + $0xb58] sm:$0xff]
        %v1179 = vld [vmem:[%s350 + $0xb60] sm:$0xff]
        %v1180 = vld [vmem:[%s350 + $0xb68] sm:$0xff]
        %v1181 = vld [vmem:[%s350 + $0xb70] sm:$0xff]
        %v1182 = vld [vmem:[%s350 + $0xb78] sm:$0xff]
        %v1183 = vld [vmem:[%s350 + $0xb80] sm:$0xff]
        %v1184 = vld [vmem:[%s350 + $0xb88] sm:$0xff]
        %v1185 = vld [vmem:[%s350 + $0xb90] sm:$0xff]
        %v1186 = vld [vmem:[%s350 + $0xb98] sm:$0xff]
        %v1187 = vld [vmem:[%s350 + $0xba0] sm:$0xff]
        %v1188 = vld [vmem:[%s350 + $0xba8] sm:$0xff]
        %v1189 = vld [vmem:[%s350 + $0xbb0] sm:$0xff]
        %v1190 = vld [vmem:[%s350 + $0xbb8] sm:$0xff]
        %v1191 = vld [vmem:[%s350 + $0xbc0] sm:$0xff]
        %v1192 = vld [vmem:[%s350 + $0xbc8] sm:$0xff]
        %v1193 = vld [vmem:[%s350 + $0xbd0] sm:$0xff]
        %v1194 = vld [vmem:[%s350 + $0xbd8] sm:$0xff]
        %v1195 = vld [vmem:[%s350 + $0xbe0] sm:$0xff]
        %v1196 = vld [vmem:[%s350 + $0xbe8] sm:$0xff]
        %v1197 = vld [vmem:[%s350 + $0xbf0] sm:$0xff]
        %v1198 = vld [vmem:[%s350 + $0xbf8] sm:$0xff]
        %v1199 = vld [vmem:[%s350 + $0xc00] sm:$0xff]
        %v1200 = vld [vmem:[%s350 + $0xc08] sm:$0xff]
        %v1201 = vld [vmem:[%s350 + $0xc10] sm:$0xff]
        %v1202 = vld [vmem:[%s350 + $0xc18] sm:$0xff]
        %v1203 = vld [vmem:[%s350 + $0xc20] sm:$0xff]
        %v1204 = vld [vmem:[%s350 + $0xc28] sm:$0xff]
        %v1205 = vld [vmem:[%s350 + $0xc30] sm:$0xff]
        %v1206 = vld [vmem:[%s350 + $0xc38] sm:$0xff]
        %v1207 = vld [vmem:[%s350 + $0xc40] sm:$0xff]
        %v1208 = vld [vmem:[%s350 + $0xc48] sm:$0xff]
        %v1209 = vld [vmem:[%s350 + $0xc50] sm:$0xff]
        %v1210 = vld [vmem:[%s350 + $0xc58] sm:$0xff]
        %v1211 = vld [vmem:[%s350 + $0xc60] sm:$0xff]
        %v1212 = vld [vmem:[%s350 + $0xc68] sm:$0xff]
        %v1213 = vld [vmem:[%s350 + $0xc70] sm:$0xff]
        %v1214 = vld [vmem:[%s350 + $0xc78] sm:$0xff]
        %v1215 = vld [vmem:[#allocation6] ss:$4 sm:$0xff]
        %v1217 = vlaneseq
        %v1218 = vshrl.u32 %v1217, 7
        %v1219 = vsub.s32 0, %v1218
        %v1220 = vrot.slane %v1215, %v1219
        %v1221 = vlaneseq
        %v1222 = vshrl.u32 %v1221, 7
        %v1223 = vsub.s32 1, %v1222
        %v1224 = vrot.slane %v1215, %v1223
        %v1225 = vlaneseq
        %v1226 = vshrl.u32 %v1225, 7
        %v1227 = vsub.s32 2, %v1226
        %v1228 = vrot.slane %v1215, %v1227
        %v1229 = vlaneseq
        %v1230 = vshrl.u32 %v1229, 7
        %v1231 = vsub.s32 3, %v1230
        %v1232 = vrot.slane %v1215, %v1231
        %v1233 = vlaneseq
        %v1234 = vshrl.u32 %v1233, 7
        %v1235 = vsub.s32 4, %v1234
        %v1236 = vrot.slane %v1215, %v1235
        %v1237 = vlaneseq
        %v1238 = vshrl.u32 %v1237, 7
        %v1239 = vsub.s32 5, %v1238
        %v1240 = vrot.slane %v1215, %v1239
        %v1241 = vlaneseq
        %v1242 = vshrl.u32 %v1241, 7
        %v1243 = vsub.s32 6, %v1242
        %v1244 = vrot.slane %v1215, %v1243
        %v1245 = vlaneseq
        %v1246 = vshrl.u32 %v1245, 7
        %v1247 = vsub.s32 7, %v1246
        %v1248 = vrot.slane %v1215, %v1247
        %v1257 = vmul.f32 %v415, %v1220
        %v1258 = vmul.f32 %v416, %v1224
        %v1259 = vmul.f32 %v417, %v1228
        %v1260 = vmul.f32 %v418, %v1232
        %v1261 = vmul.f32 %v419, %v1236
        %v1262 = vmul.f32 %v420, %v1240
        %v1263 = vmul.f32 %v421, %v1244
        %v1264 = vmul.f32 %v422, %v1248
        %v1265 = vmul.f32 %v423, %v1220
        %v1266 = vmul.f32 %v424, %v1224
        %v1267 = vmul.f32 %v425, %v1228
        %v1268 = vmul.f32 %v426, %v1232
        %v1269 = vmul.f32 %v427, %v1236
        %v1270 = vmul.f32 %v428, %v1240
        %v1271 = vmul.f32 %v429, %v1244
        %v1272 = vmul.f32 %v430, %v1248
        %v1273 = vmul.f32 %v431, %v1220
        %v1274 = vmul.f32 %v432, %v1224
        %v1275 = vmul.f32 %v433, %v1228
        %v1276 = vmul.f32 %v434, %v1232
        %v1277 = vmul.f32 %v435, %v1236
        %v1278 = vmul.f32 %v436, %v1240
        %v1279 = vmul.f32 %v437, %v1244
        %v1280 = vmul.f32 %v438, %v1248
        %v1281 = vmul.f32 %v439, %v1220
        %v1282 = vmul.f32 %v440, %v1224
        %v1283 = vmul.f32 %v441, %v1228
        %v1284 = vmul.f32 %v442, %v1232
        %v1285 = vmul.f32 %v443, %v1236
        %v1286 = vmul.f32 %v444, %v1240
        %v1287 = vmul.f32 %v445, %v1244
        %v1288 = vmul.f32 %v446, %v1248
        %v1289 = vmul.f32 %v447, %v1220
        %v1290 = vmul.f32 %v448, %v1224
        %v1291 = vmul.f32 %v449, %v1228
        %v1292 = vmul.f32 %v450, %v1232
        %v1293 = vmul.f32 %v451, %v1236
        %v1294 = vmul.f32 %v452, %v1240
        %v1295 = vmul.f32 %v453, %v1244
        %v1296 = vmul.f32 %v454, %v1248
        %v1297 = vmul.f32 %v455, %v1220
        %v1298 = vmul.f32 %v456, %v1224
        %v1299 = vmul.f32 %v457, %v1228
        %v1300 = vmul.f32 %v458, %v1232
        %v1301 = vmul.f32 %v459, %v1236
        %v1302 = vmul.f32 %v460, %v1240
        %v1303 = vmul.f32 %v461, %v1244
        %v1304 = vmul.f32 %v462, %v1248
        %v1305 = vmul.f32 %v463, %v1220
        %v1306 = vmul.f32 %v464, %v1224
        %v1307 = vmul.f32 %v465, %v1228
        %v1308 = vmul.f32 %v466, %v1232
        %v1309 = vmul.f32 %v467, %v1236
        %v1310 = vmul.f32 %v468, %v1240
        %v1311 = vmul.f32 %v469, %v1244
        %v1312 = vmul.f32 %v470, %v1248
        %v1313 = vmul.f32 %v471, %v1220
        %v1314 = vmul.f32 %v472, %v1224
        %v1315 = vmul.f32 %v473, %v1228
        %v1316 = vmul.f32 %v474, %v1232
        %v1317 = vmul.f32 %v475, %v1236
        %v1318 = vmul.f32 %v476, %v1240
        %v1319 = vmul.f32 %v477, %v1244
        %v1320 = vmul.f32 %v478, %v1248
        %v1321 = vmul.f32 %v479, %v1220
        %v1322 = vmul.f32 %v480, %v1224
        %v1323 = vmul.f32 %v481, %v1228
        %v1324 = vmul.f32 %v482, %v1232
        %v1325 = vmul.f32 %v483, %v1236
        %v1326 = vmul.f32 %v484, %v1240
        %v1327 = vmul.f32 %v485, %v1244
        %v1328 = vmul.f32 %v486, %v1248
        %v1329 = vmul.f32 %v487, %v1220
        %v1330 = vmul.f32 %v488, %v1224
        %v1331 = vmul.f32 %v489, %v1228
        %v1332 = vmul.f32 %v490, %v1232
        %v1333 = vmul.f32 %v491, %v1236
        %v1334 = vmul.f32 %v492, %v1240
        %v1335 = vmul.f32 %v493, %v1244
        %v1336 = vmul.f32 %v494, %v1248
        %v1337 = vmul.f32 %v495, %v1220
        %v1338 = vmul.f32 %v496, %v1224
        %v1339 = vmul.f32 %v497, %v1228
        %v1340 = vmul.f32 %v498, %v1232
        %v1341 = vmul.f32 %v499, %v1236
        %v1342 = vmul.f32 %v500, %v1240
        %v1343 = vmul.f32 %v501, %v1244
        %v1344 = vmul.f32 %v502, %v1248
        %v1345 = vmul.f32 %v503, %v1220
        %v1346 = vmul.f32 %v504, %v1224
        %v1347 = vmul.f32 %v505, %v1228
        %v1348 = vmul.f32 %v506, %v1232
        %v1349 = vmul.f32 %v507, %v1236
        %v1350 = vmul.f32 %v508, %v1240
        %v1351 = vmul.f32 %v509, %v1244
        %v1352 = vmul.f32 %v510, %v1248
        %v1353 = vmul.f32 %v511, %v1220
        %v1354 = vmul.f32 %v512, %v1224
        %v1355 = vmul.f32 %v513, %v1228
        %v1356 = vmul.f32 %v514, %v1232
        %v1357 = vmul.f32 %v515, %v1236
        %v1358 = vmul.f32 %v516, %v1240
        %v1359 = vmul.f32 %v517, %v1244
        %v1360 = vmul.f32 %v518, %v1248
        %v1361 = vmul.f32 %v519, %v1220
        %v1362 = vmul.f32 %v520, %v1224
        %v1363 = vmul.f32 %v521, %v1228
        %v1364 = vmul.f32 %v522, %v1232
        %v1365 = vmul.f32 %v523, %v1236
        %v1366 = vmul.f32 %v524, %v1240
        %v1367 = vmul.f32 %v525, %v1244
        %v1368 = vmul.f32 %v526, %v1248
        %v1369 = vmul.f32 %v527, %v1220
        %v1370 = vmul.f32 %v528, %v1224
        %v1371 = vmul.f32 %v529, %v1228
        %v1372 = vmul.f32 %v530, %v1232
        %v1373 = vmul.f32 %v531, %v1236
        %v1374 = vmul.f32 %v532, %v1240
        %v1375 = vmul.f32 %v533, %v1244
        %v1376 = vmul.f32 %v534, %v1248
        %v1377 = vmul.f32 %v535, %v1220
        %v1378 = vmul.f32 %v536, %v1224
        %v1379 = vmul.f32 %v537, %v1228
        %v1380 = vmul.f32 %v538, %v1232
        %v1381 = vmul.f32 %v539, %v1236
        %v1382 = vmul.f32 %v540, %v1240
        %v1383 = vmul.f32 %v541, %v1244
        %v1384 = vmul.f32 %v542, %v1248
        %v1385 = vmul.f32 %v543, %v1220
        %v1386 = vmul.f32 %v544, %v1224
        %v1387 = vmul.f32 %v545, %v1228
        %v1388 = vmul.f32 %v546, %v1232
        %v1389 = vmul.f32 %v547, %v1236
        %v1390 = vmul.f32 %v548, %v1240
        %v1391 = vmul.f32 %v549, %v1244
        %v1392 = vmul.f32 %v550, %v1248
        %v1393 = vmul.f32 %v551, %v1220
        %v1394 = vmul.f32 %v552, %v1224
        %v1395 = vmul.f32 %v553, %v1228
        %v1396 = vmul.f32 %v554, %v1232
        %v1397 = vmul.f32 %v555, %v1236
        %v1398 = vmul.f32 %v556, %v1240
        %v1399 = vmul.f32 %v557, %v1244
        %v1400 = vmul.f32 %v558, %v1248
        %v1401 = vmul.f32 %v559, %v1220
        %v1402 = vmul.f32 %v560, %v1224
        %v1403 = vmul.f32 %v561, %v1228
        %v1404 = vmul.f32 %v562, %v1232
        %v1405 = vmul.f32 %v563, %v1236
        %v1406 = vmul.f32 %v564, %v1240
        %v1407 = vmul.f32 %v565, %v1244
        %v1408 = vmul.f32 %v566, %v1248
        %v1409 = vmul.f32 %v567, %v1220
        %v1410 = vmul.f32 %v568, %v1224
        %v1411 = vmul.f32 %v569, %v1228
        %v1412 = vmul.f32 %v570, %v1232
        %v1413 = vmul.f32 %v571, %v1236
        %v1414 = vmul.f32 %v572, %v1240
        %v1415 = vmul.f32 %v573, %v1244
        %v1416 = vmul.f32 %v574, %v1248
        %v1417 = vmul.f32 %v575, %v1220
        %v1418 = vmul.f32 %v576, %v1224
        %v1419 = vmul.f32 %v577, %v1228
        %v1420 = vmul.f32 %v578, %v1232
        %v1421 = vmul.f32 %v579, %v1236
        %v1422 = vmul.f32 %v580, %v1240
        %v1423 = vmul.f32 %v581, %v1244
        %v1424 = vmul.f32 %v582, %v1248
        %v1425 = vmul.f32 %v583, %v1220
        %v1426 = vmul.f32 %v584, %v1224
        %v1427 = vmul.f32 %v585, %v1228
        %v1428 = vmul.f32 %v586, %v1232
        %v1429 = vmul.f32 %v587, %v1236
        %v1430 = vmul.f32 %v588, %v1240
        %v1431 = vmul.f32 %v589, %v1244
        %v1432 = vmul.f32 %v590, %v1248
        %v1433 = vmul.f32 %v591, %v1220
        %v1434 = vmul.f32 %v592, %v1224
        %v1435 = vmul.f32 %v593, %v1228
        %v1436 = vmul.f32 %v594, %v1232
        %v1437 = vmul.f32 %v595, %v1236
        %v1438 = vmul.f32 %v596, %v1240
        %v1439 = vmul.f32 %v597, %v1244
        %v1440 = vmul.f32 %v598, %v1248
        %v1441 = vmul.f32 %v599, %v1220
        %v1442 = vmul.f32 %v600, %v1224
        %v1443 = vmul.f32 %v601, %v1228
        %v1444 = vmul.f32 %v602, %v1232
        %v1445 = vmul.f32 %v603, %v1236
        %v1446 = vmul.f32 %v604, %v1240
        %v1447 = vmul.f32 %v605, %v1244
        %v1448 = vmul.f32 %v606, %v1248
        %v1449 = vmul.f32 %v607, %v1220
        %v1450 = vmul.f32 %v608, %v1224
        %v1451 = vmul.f32 %v609, %v1228
        %v1452 = vmul.f32 %v610, %v1232
        %v1453 = vmul.f32 %v611, %v1236
        %v1454 = vmul.f32 %v612, %v1240
        %v1455 = vmul.f32 %v613, %v1244
        %v1456 = vmul.f32 %v614, %v1248
        %v1457 = vmul.f32 %v615, %v1220
        %v1458 = vmul.f32 %v616, %v1224
        %v1459 = vmul.f32 %v617, %v1228
        %v1460 = vmul.f32 %v618, %v1232
        %v1461 = vmul.f32 %v619, %v1236
        %v1462 = vmul.f32 %v620, %v1240
        %v1463 = vmul.f32 %v621, %v1244
        %v1464 = vmul.f32 %v622, %v1248
        %v1465 = vmul.f32 %v623, %v1220
        %v1466 = vmul.f32 %v624, %v1224
        %v1467 = vmul.f32 %v625, %v1228
        %v1468 = vmul.f32 %v626, %v1232
        %v1469 = vmul.f32 %v627, %v1236
        %v1470 = vmul.f32 %v628, %v1240
        %v1471 = vmul.f32 %v629, %v1244
        %v1472 = vmul.f32 %v630, %v1248
        %v1473 = vmul.f32 %v631, %v1220
        %v1474 = vmul.f32 %v632, %v1224
        %v1475 = vmul.f32 %v633, %v1228
        %v1476 = vmul.f32 %v634, %v1232
        %v1477 = vmul.f32 %v635, %v1236
        %v1478 = vmul.f32 %v636, %v1240
        %v1479 = vmul.f32 %v637, %v1244
        %v1480 = vmul.f32 %v638, %v1248
        %v1481 = vmul.f32 %v639, %v1220
        %v1482 = vmul.f32 %v640, %v1224
        %v1483 = vmul.f32 %v641, %v1228
        %v1484 = vmul.f32 %v642, %v1232
        %v1485 = vmul.f32 %v643, %v1236
        %v1486 = vmul.f32 %v644, %v1240
        %v1487 = vmul.f32 %v645, %v1244
        %v1488 = vmul.f32 %v646, %v1248
        %v1489 = vmul.f32 %v647, %v1220
        %v1490 = vmul.f32 %v648, %v1224
        %v1491 = vmul.f32 %v649, %v1228
        %v1492 = vmul.f32 %v650, %v1232
        %v1493 = vmul.f32 %v651, %v1236
        %v1494 = vmul.f32 %v652, %v1240
        %v1495 = vmul.f32 %v653, %v1244
        %v1496 = vmul.f32 %v654, %v1248
        %v1497 = vmul.f32 %v655, %v1220
        %v1498 = vmul.f32 %v656, %v1224
        %v1499 = vmul.f32 %v657, %v1228
        %v1500 = vmul.f32 %v658, %v1232
        %v1501 = vmul.f32 %v659, %v1236
        %v1502 = vmul.f32 %v660, %v1240
        %v1503 = vmul.f32 %v661, %v1244
        %v1504 = vmul.f32 %v662, %v1248
        %v1505 = vmul.f32 %v663, %v1220
        %v1506 = vmul.f32 %v664, %v1224
        %v1507 = vmul.f32 %v665, %v1228
        %v1508 = vmul.f32 %v666, %v1232
        %v1509 = vmul.f32 %v667, %v1236
        %v1510 = vmul.f32 %v668, %v1240
        %v1511 = vmul.f32 %v669, %v1244
        %v1512 = vmul.f32 %v670, %v1248
        %v1513 = vmul.f32 %v671, %v1220
        %v1514 = vmul.f32 %v672, %v1224
        %v1515 = vmul.f32 %v673, %v1228
        %v1516 = vmul.f32 %v674, %v1232
        %v1517 = vmul.f32 %v675, %v1236
        %v1518 = vmul.f32 %v676, %v1240
        %v1519 = vmul.f32 %v677, %v1244
        %v1520 = vmul.f32 %v678, %v1248
        %v1521 = vmul.f32 %v679, %v1220
        %v1522 = vmul.f32 %v680, %v1224
        %v1523 = vmul.f32 %v681, %v1228
        %v1524 = vmul.f32 %v682, %v1232
        %v1525 = vmul.f32 %v683, %v1236
        %v1526 = vmul.f32 %v684, %v1240
        %v1527 = vmul.f32 %v685, %v1244
        %v1528 = vmul.f32 %v686, %v1248
        %v1529 = vmul.f32 %v687, %v1220
        %v1530 = vmul.f32 %v688, %v1224
        %v1531 = vmul.f32 %v689, %v1228
        %v1532 = vmul.f32 %v690, %v1232
        %v1533 = vmul.f32 %v691, %v1236
        %v1534 = vmul.f32 %v692, %v1240
        %v1535 = vmul.f32 %v693, %v1244
        %v1536 = vmul.f32 %v694, %v1248
        %v1537 = vmul.f32 %v695, %v1220
        %v1538 = vmul.f32 %v696, %v1224
        %v1539 = vmul.f32 %v697, %v1228
        %v1540 = vmul.f32 %v698, %v1232
        %v1541 = vmul.f32 %v699, %v1236
        %v1542 = vmul.f32 %v700, %v1240
        %v1543 = vmul.f32 %v701, %v1244
        %v1544 = vmul.f32 %v702, %v1248
        %v1545 = vmul.f32 %v703, %v1220
        %v1546 = vmul.f32 %v704, %v1224
        %v1547 = vmul.f32 %v705, %v1228
        %v1548 = vmul.f32 %v706, %v1232
        %v1549 = vmul.f32 %v707, %v1236
        %v1550 = vmul.f32 %v708, %v1240
        %v1551 = vmul.f32 %v709, %v1244
        %v1552 = vmul.f32 %v710, %v1248
        %v1553 = vmul.f32 %v711, %v1220
        %v1554 = vmul.f32 %v712, %v1224
        %v1555 = vmul.f32 %v713, %v1228
        %v1556 = vmul.f32 %v714, %v1232
        %v1557 = vmul.f32 %v715, %v1236
        %v1558 = vmul.f32 %v716, %v1240
        %v1559 = vmul.f32 %v717, %v1244
        %v1560 = vmul.f32 %v718, %v1248
        %v1561 = vmul.f32 %v719, %v1220
        %v1562 = vmul.f32 %v720, %v1224
        %v1563 = vmul.f32 %v721, %v1228
        %v1564 = vmul.f32 %v722, %v1232
        %v1565 = vmul.f32 %v723, %v1236
        %v1566 = vmul.f32 %v724, %v1240
        %v1567 = vmul.f32 %v725, %v1244
        %v1568 = vmul.f32 %v726, %v1248
        %v1569 = vmul.f32 %v727, %v1220
        %v1570 = vmul.f32 %v728, %v1224
        %v1571 = vmul.f32 %v729, %v1228
        %v1572 = vmul.f32 %v730, %v1232
        %v1573 = vmul.f32 %v731, %v1236
        %v1574 = vmul.f32 %v732, %v1240
        %v1575 = vmul.f32 %v733, %v1244
        %v1576 = vmul.f32 %v734, %v1248
        %v1577 = vmul.f32 %v735, %v1220
        %v1578 = vmul.f32 %v736, %v1224
        %v1579 = vmul.f32 %v737, %v1228
        %v1580 = vmul.f32 %v738, %v1232
        %v1581 = vmul.f32 %v739, %v1236
        %v1582 = vmul.f32 %v740, %v1240
        %v1583 = vmul.f32 %v741, %v1244
        %v1584 = vmul.f32 %v742, %v1248
        %v1585 = vmul.f32 %v743, %v1220
        %v1586 = vmul.f32 %v744, %v1224
        %v1587 = vmul.f32 %v745, %v1228
        %v1588 = vmul.f32 %v746, %v1232
        %v1589 = vmul.f32 %v747, %v1236
        %v1590 = vmul.f32 %v748, %v1240
        %v1591 = vmul.f32 %v749, %v1244
        %v1592 = vmul.f32 %v750, %v1248
        %v1593 = vmul.f32 %v751, %v1220
        %v1594 = vmul.f32 %v752, %v1224
        %v1595 = vmul.f32 %v753, %v1228
        %v1596 = vmul.f32 %v754, %v1232
        %v1597 = vmul.f32 %v755, %v1236
        %v1598 = vmul.f32 %v756, %v1240
        %v1599 = vmul.f32 %v757, %v1244
        %v1600 = vmul.f32 %v758, %v1248
        %v1601 = vmul.f32 %v759, %v1220
        %v1602 = vmul.f32 %v760, %v1224
        %v1603 = vmul.f32 %v761, %v1228
        %v1604 = vmul.f32 %v762, %v1232
        %v1605 = vmul.f32 %v763, %v1236
        %v1606 = vmul.f32 %v764, %v1240
        %v1607 = vmul.f32 %v765, %v1244
        %v1608 = vmul.f32 %v766, %v1248
        %v1609 = vmul.f32 %v767, %v1220
        %v1610 = vmul.f32 %v768, %v1224
        %v1611 = vmul.f32 %v769, %v1228
        %v1612 = vmul.f32 %v770, %v1232
        %v1613 = vmul.f32 %v771, %v1236
        %v1614 = vmul.f32 %v772, %v1240
        %v1615 = vmul.f32 %v773, %v1244
        %v1616 = vmul.f32 %v774, %v1248
        %v1617 = vmul.f32 %v775, %v1220
        %v1618 = vmul.f32 %v776, %v1224
        %v1619 = vmul.f32 %v777, %v1228
        %v1620 = vmul.f32 %v778, %v1232
        %v1621 = vmul.f32 %v779, %v1236
        %v1622 = vmul.f32 %v780, %v1240
        %v1623 = vmul.f32 %v781, %v1244
        %v1624 = vmul.f32 %v782, %v1248
        %v1625 = vmul.f32 %v783, %v1220
        %v1626 = vmul.f32 %v784, %v1224
        %v1627 = vmul.f32 %v785, %v1228
        %v1628 = vmul.f32 %v786, %v1232
        %v1629 = vmul.f32 %v787, %v1236
        %v1630 = vmul.f32 %v788, %v1240
        %v1631 = vmul.f32 %v789, %v1244
        %v1632 = vmul.f32 %v790, %v1248
        %v1633 = vmul.f32 %v791, %v1220
        %v1634 = vmul.f32 %v792, %v1224
        %v1635 = vmul.f32 %v793, %v1228
        %v1636 = vmul.f32 %v794, %v1232
        %v1637 = vmul.f32 %v795, %v1236
        %v1638 = vmul.f32 %v796, %v1240
        %v1639 = vmul.f32 %v797, %v1244
        %v1640 = vmul.f32 %v798, %v1248
        %v1641 = vmul.f32 %v799, %v1220
        %v1642 = vmul.f32 %v800, %v1224
        %v1643 = vmul.f32 %v801, %v1228
        %v1644 = vmul.f32 %v802, %v1232
        %v1645 = vmul.f32 %v803, %v1236
        %v1646 = vmul.f32 %v804, %v1240
        %v1647 = vmul.f32 %v805, %v1244
        %v1648 = vmul.f32 %v806, %v1248
        %v1649 = vmul.f32 %v807, %v1220
        %v1650 = vmul.f32 %v808, %v1224
        %v1651 = vmul.f32 %v809, %v1228
        %v1652 = vmul.f32 %v810, %v1232
        %v1653 = vmul.f32 %v811, %v1236
        %v1654 = vmul.f32 %v812, %v1240
        %v1655 = vmul.f32 %v813, %v1244
        %v1656 = vmul.f32 %v814, %v1248
        %s1657 = scalar_lea.vmem [#allocation6], 1
        %v1658 = vld [vmem:[%s1657] ss:$4 sm:$0xff]
        %v1660 = vlaneseq
        %v1661 = vshrl.u32 %v1660, 7
        %v1662 = vsub.s32 0, %v1661
        %v1663 = vrot.slane %v1658, %v1662
        %v1664 = vlaneseq
        %v1665 = vshrl.u32 %v1664, 7
        %v1666 = vsub.s32 1, %v1665
        %v1667 = vrot.slane %v1658, %v1666
        %v1668 = vlaneseq
        %v1669 = vshrl.u32 %v1668, 7
        %v1670 = vsub.s32 2, %v1669
        %v1671 = vrot.slane %v1658, %v1670
        %v1672 = vlaneseq
        %v1673 = vshrl.u32 %v1672, 7
        %v1674 = vsub.s32 3, %v1673
        %v1675 = vrot.slane %v1658, %v1674
        %v1676 = vlaneseq
        %v1677 = vshrl.u32 %v1676, 7
        %v1678 = vsub.s32 4, %v1677
        %v1679 = vrot.slane %v1658, %v1678
        %v1680 = vlaneseq
        %v1681 = vshrl.u32 %v1680, 7
        %v1682 = vsub.s32 5, %v1681
        %v1683 = vrot.slane %v1658, %v1682
        %v1684 = vlaneseq
        %v1685 = vshrl.u32 %v1684, 7
        %v1686 = vsub.s32 6, %v1685
        %v1687 = vrot.slane %v1658, %v1686
        %v1688 = vlaneseq
        %v1689 = vshrl.u32 %v1688, 7
        %v1690 = vsub.s32 7, %v1689
        %v1691 = vrot.slane %v1658, %v1690
        %v1700 = vadd.f32 %v1257, %v1663
        %v1701 = vadd.f32 %v1258, %v1667
        %v1702 = vadd.f32 %v1259, %v1671
        %v1703 = vadd.f32 %v1260, %v1675
        %v1704 = vadd.f32 %v1261, %v1679
        %v1705 = vadd.f32 %v1262, %v1683
        %v1706 = vadd.f32 %v1263, %v1687
        %v1707 = vadd.f32 %v1264, %v1691
        %v1708 = vadd.f32 %v1265, %v1663
        %v1709 = vadd.f32 %v1266, %v1667
        %v1710 = vadd.f32 %v1267, %v1671
        %v1711 = vadd.f32 %v1268, %v1675
        %v1712 = vadd.f32 %v1269, %v1679
        %v1713 = vadd.f32 %v1270, %v1683
        %v1714 = vadd.f32 %v1271, %v1687
        %v1715 = vadd.f32 %v1272, %v1691
        %v1716 = vadd.f32 %v1273, %v1663
        %v1717 = vadd.f32 %v1274, %v1667
        %v1718 = vadd.f32 %v1275, %v1671
        %v1719 = vadd.f32 %v1276, %v1675
        %v1720 = vadd.f32 %v1277, %v1679
        %v1721 = vadd.f32 %v1278, %v1683
        %v1722 = vadd.f32 %v1279, %v1687
        %v1723 = vadd.f32 %v1280, %v1691
        %v1724 = vadd.f32 %v1281, %v1663
        %v1725 = vadd.f32 %v1282, %v1667
        %v1726 = vadd.f32 %v1283, %v1671
        %v1727 = vadd.f32 %v1284, %v1675
        %v1728 = vadd.f32 %v1285, %v1679
        %v1729 = vadd.f32 %v1286, %v1683
        %v1730 = vadd.f32 %v1287, %v1687
        %v1731 = vadd.f32 %v1288, %v1691
        %v1732 = vadd.f32 %v1289, %v1663
        %v1733 = vadd.f32 %v1290, %v1667
        %v1734 = vadd.f32 %v1291, %v1671
        %v1735 = vadd.f32 %v1292, %v1675
        %v1736 = vadd.f32 %v1293, %v1679
        %v1737 = vadd.f32 %v1294, %v1683
        %v1738 = vadd.f32 %v1295, %v1687
        %v1739 = vadd.f32 %v1296, %v1691
        %v1740 = vadd.f32 %v1297, %v1663
        %v1741 = vadd.f32 %v1298, %v1667
        %v1742 = vadd.f32 %v1299, %v1671
        %v1743 = vadd.f32 %v1300, %v1675
        %v1744 = vadd.f32 %v1301, %v1679
        %v1745 = vadd.f32 %v1302, %v1683
        %v1746 = vadd.f32 %v1303, %v1687
        %v1747 = vadd.f32 %v1304, %v1691
        %v1748 = vadd.f32 %v1305, %v1663
        %v1749 = vadd.f32 %v1306, %v1667
        %v1750 = vadd.f32 %v1307, %v1671
        %v1751 = vadd.f32 %v1308, %v1675
        %v1752 = vadd.f32 %v1309, %v1679
        %v1753 = vadd.f32 %v1310, %v1683
        %v1754 = vadd.f32 %v1311, %v1687
        %v1755 = vadd.f32 %v1312, %v1691
        %v1756 = vadd.f32 %v1313, %v1663
        %v1757 = vadd.f32 %v1314, %v1667
        %v1758 = vadd.f32 %v1315, %v1671
        %v1759 = vadd.f32 %v1316, %v1675
        %v1760 = vadd.f32 %v1317, %v1679
        %v1761 = vadd.f32 %v1318, %v1683
        %v1762 = vadd.f32 %v1319, %v1687
        %v1763 = vadd.f32 %v1320, %v1691
        %v1764 = vadd.f32 %v1321, %v1663
        %v1765 = vadd.f32 %v1322, %v1667
        %v1766 = vadd.f32 %v1323, %v1671
        %v1767 = vadd.f32 %v1324, %v1675
        %v1768 = vadd.f32 %v1325, %v1679
        %v1769 = vadd.f32 %v1326, %v1683
        %v1770 = vadd.f32 %v1327, %v1687
        %v1771 = vadd.f32 %v1328, %v1691
        %v1772 = vadd.f32 %v1329, %v1663
        %v1773 = vadd.f32 %v1330, %v1667
        %v1774 = vadd.f32 %v1331, %v1671
        %v1775 = vadd.f32 %v1332, %v1675
        %v1776 = vadd.f32 %v1333, %v1679
        %v1777 = vadd.f32 %v1334, %v1683
        %v1778 = vadd.f32 %v1335, %v1687
        %v1779 = vadd.f32 %v1336, %v1691
        %v1780 = vadd.f32 %v1337, %v1663
        %v1781 = vadd.f32 %v1338, %v1667
        %v1782 = vadd.f32 %v1339, %v1671
        %v1783 = vadd.f32 %v1340, %v1675
        %v1784 = vadd.f32 %v1341, %v1679
        %v1785 = vadd.f32 %v1342, %v1683
        %v1786 = vadd.f32 %v1343, %v1687
        %v1787 = vadd.f32 %v1344, %v1691
        %v1788 = vadd.f32 %v1345, %v1663
        %v1789 = vadd.f32 %v1346, %v1667
        %v1790 = vadd.f32 %v1347, %v1671
        %v1791 = vadd.f32 %v1348, %v1675
        %v1792 = vadd.f32 %v1349, %v1679
        %v1793 = vadd.f32 %v1350, %v1683
        %v1794 = vadd.f32 %v1351, %v1687
        %v1795 = vadd.f32 %v1352, %v1691
        %v1796 = vadd.f32 %v1353, %v1663
        %v1797 = vadd.f32 %v1354, %v1667
        %v1798 = vadd.f32 %v1355, %v1671
        %v1799 = vadd.f32 %v1356, %v1675
        %v1800 = vadd.f32 %v1357, %v1679
        %v1801 = vadd.f32 %v1358, %v1683
        %v1802 = vadd.f32 %v1359, %v1687
        %v1803 = vadd.f32 %v1360, %v1691
        %v1804 = vadd.f32 %v1361, %v1663
        %v1805 = vadd.f32 %v1362, %v1667
        %v1806 = vadd.f32 %v1363, %v1671
        %v1807 = vadd.f32 %v1364, %v1675
        %v1808 = vadd.f32 %v1365, %v1679
        %v1809 = vadd.f32 %v1366, %v1683
        %v1810 = vadd.f32 %v1367, %v1687
        %v1811 = vadd.f32 %v1368, %v1691
        %v1812 = vadd.f32 %v1369, %v1663
        %v1813 = vadd.f32 %v1370, %v1667
        %v1814 = vadd.f32 %v1371, %v1671
        %v1815 = vadd.f32 %v1372, %v1675
        %v1816 = vadd.f32 %v1373, %v1679
        %v1817 = vadd.f32 %v1374, %v1683
        %v1818 = vadd.f32 %v1375, %v1687
        %v1819 = vadd.f32 %v1376, %v1691
        %v1820 = vadd.f32 %v1377, %v1663
        %v1821 = vadd.f32 %v1378, %v1667
        %v1822 = vadd.f32 %v1379, %v1671
        %v1823 = vadd.f32 %v1380, %v1675
        %v1824 = vadd.f32 %v1381, %v1679
        %v1825 = vadd.f32 %v1382, %v1683
        %v1826 = vadd.f32 %v1383, %v1687
        %v1827 = vadd.f32 %v1384, %v1691
        %v1828 = vadd.f32 %v1385, %v1663
        %v1829 = vadd.f32 %v1386, %v1667
        %v1830 = vadd.f32 %v1387, %v1671
        %v1831 = vadd.f32 %v1388, %v1675
        %v1832 = vadd.f32 %v1389, %v1679
        %v1833 = vadd.f32 %v1390, %v1683
        %v1834 = vadd.f32 %v1391, %v1687
        %v1835 = vadd.f32 %v1392, %v1691
        %v1836 = vadd.f32 %v1393, %v1663
        %v1837 = vadd.f32 %v1394, %v1667
        %v1838 = vadd.f32 %v1395, %v1671
        %v1839 = vadd.f32 %v1396, %v1675
        %v1840 = vadd.f32 %v1397, %v1679
        %v1841 = vadd.f32 %v1398, %v1683
        %v1842 = vadd.f32 %v1399, %v1687
        %v1843 = vadd.f32 %v1400, %v1691
        %v1844 = vadd.f32 %v1401, %v1663
        %v1845 = vadd.f32 %v1402, %v1667
        %v1846 = vadd.f32 %v1403, %v1671
        %v1847 = vadd.f32 %v1404, %v1675
        %v1848 = vadd.f32 %v1405, %v1679
        %v1849 = vadd.f32 %v1406, %v1683
        %v1850 = vadd.f32 %v1407, %v1687
        %v1851 = vadd.f32 %v1408, %v1691
        %v1852 = vadd.f32 %v1409, %v1663
        %v1853 = vadd.f32 %v1410, %v1667
        %v1854 = vadd.f32 %v1411, %v1671
        %v1855 = vadd.f32 %v1412, %v1675
        %v1856 = vadd.f32 %v1413, %v1679
        %v1857 = vadd.f32 %v1414, %v1683
        %v1858 = vadd.f32 %v1415, %v1687
        %v1859 = vadd.f32 %v1416, %v1691
        %v1860 = vadd.f32 %v1417, %v1663
        %v1861 = vadd.f32 %v1418, %v1667
        %v1862 = vadd.f32 %v1419, %v1671
        %v1863 = vadd.f32 %v1420, %v1675
        %v1864 = vadd.f32 %v1421, %v1679
        %v1865 = vadd.f32 %v1422, %v1683
        %v1866 = vadd.f32 %v1423, %v1687
        %v1867 = vadd.f32 %v1424, %v1691
        %v1868 = vadd.f32 %v1425, %v1663
        %v1869 = vadd.f32 %v1426, %v1667
        %v1870 = vadd.f32 %v1427, %v1671
        %v1871 = vadd.f32 %v1428, %v1675
        %v1872 = vadd.f32 %v1429, %v1679
        %v1873 = vadd.f32 %v1430, %v1683
        %v1874 = vadd.f32 %v1431, %v1687
        %v1875 = vadd.f32 %v1432, %v1691
        %v1876 = vadd.f32 %v1433, %v1663
        %v1877 = vadd.f32 %v1434, %v1667
        %v1878 = vadd.f32 %v1435, %v1671
        %v1879 = vadd.f32 %v1436, %v1675
        %v1880 = vadd.f32 %v1437, %v1679
        %v1881 = vadd.f32 %v1438, %v1683
        %v1882 = vadd.f32 %v1439, %v1687
        %v1883 = vadd.f32 %v1440, %v1691
        %v1884 = vadd.f32 %v1441, %v1663
        %v1885 = vadd.f32 %v1442, %v1667
        %v1886 = vadd.f32 %v1443, %v1671
        %v1887 = vadd.f32 %v1444, %v1675
        %v1888 = vadd.f32 %v1445, %v1679
        %v1889 = vadd.f32 %v1446, %v1683
        %v1890 = vadd.f32 %v1447, %v1687
        %v1891 = vadd.f32 %v1448, %v1691
        %v1892 = vadd.f32 %v1449, %v1663
        %v1893 = vadd.f32 %v1450, %v1667
        %v1894 = vadd.f32 %v1451, %v1671
        %v1895 = vadd.f32 %v1452, %v1675
        %v1896 = vadd.f32 %v1453, %v1679
        %v1897 = vadd.f32 %v1454, %v1683
        %v1898 = vadd.f32 %v1455, %v1687
        %v1899 = vadd.f32 %v1456, %v1691
        %v1900 = vadd.f32 %v1457, %v1663
        %v1901 = vadd.f32 %v1458, %v1667
        %v1902 = vadd.f32 %v1459, %v1671
        %v1903 = vadd.f32 %v1460, %v1675
        %v1904 = vadd.f32 %v1461, %v1679
        %v1905 = vadd.f32 %v1462, %v1683
        %v1906 = vadd.f32 %v1463, %v1687
        %v1907 = vadd.f32 %v1464, %v1691
        %v1908 = vadd.f32 %v1465, %v1663
        %v1909 = vadd.f32 %v1466, %v1667
        %v1910 = vadd.f32 %v1467, %v1671
        %v1911 = vadd.f32 %v1468, %v1675
        %v1912 = vadd.f32 %v1469, %v1679
        %v1913 = vadd.f32 %v1470, %v1683
        %v1914 = vadd.f32 %v1471, %v1687
        %v1915 = vadd.f32 %v1472, %v1691
        %v1916 = vadd.f32 %v1473, %v1663
        %v1917 = vadd.f32 %v1474, %v1667
        %v1918 = vadd.f32 %v1475, %v1671
        %v1919 = vadd.f32 %v1476, %v1675
        %v1920 = vadd.f32 %v1477, %v1679
        %v1921 = vadd.f32 %v1478, %v1683
        %v1922 = vadd.f32 %v1479, %v1687
        %v1923 = vadd.f32 %v1480, %v1691
        %v1924 = vadd.f32 %v1481, %v1663
        %v1925 = vadd.f32 %v1482, %v1667
        %v1926 = vadd.f32 %v1483, %v1671
        %v1927 = vadd.f32 %v1484, %v1675
        %v1928 = vadd.f32 %v1485, %v1679
        %v1929 = vadd.f32 %v1486, %v1683
        %v1930 = vadd.f32 %v1487, %v1687
        %v1931 = vadd.f32 %v1488, %v1691
        %v1932 = vadd.f32 %v1489, %v1663
        %v1933 = vadd.f32 %v1490, %v1667
        %v1934 = vadd.f32 %v1491, %v1671
        %v1935 = vadd.f32 %v1492, %v1675
        %v1936 = vadd.f32 %v1493, %v1679
        %v1937 = vadd.f32 %v1494, %v1683
        %v1938 = vadd.f32 %v1495, %v1687
        %v1939 = vadd.f32 %v1496, %v1691
        %v1940 = vadd.f32 %v1497, %v1663
        %v1941 = vadd.f32 %v1498, %v1667
        %v1942 = vadd.f32 %v1499, %v1671
        %v1943 = vadd.f32 %v1500, %v1675
        %v1944 = vadd.f32 %v1501, %v1679
        %v1945 = vadd.f32 %v1502, %v1683
        %v1946 = vadd.f32 %v1503, %v1687
        %v1947 = vadd.f32 %v1504, %v1691
        %v1948 = vadd.f32 %v1505, %v1663
        %v1949 = vadd.f32 %v1506, %v1667
        %v1950 = vadd.f32 %v1507, %v1671
        %v1951 = vadd.f32 %v1508, %v1675
        %v1952 = vadd.f32 %v1509, %v1679
        %v1953 = vadd.f32 %v1510, %v1683
        %v1954 = vadd.f32 %v1511, %v1687
        %v1955 = vadd.f32 %v1512, %v1691
        %v1956 = vadd.f32 %v1513, %v1663
        %v1957 = vadd.f32 %v1514, %v1667
        %v1958 = vadd.f32 %v1515, %v1671
        %v1959 = vadd.f32 %v1516, %v1675
        %v1960 = vadd.f32 %v1517, %v1679
        %v1961 = vadd.f32 %v1518, %v1683
        %v1962 = vadd.f32 %v1519, %v1687
        %v1963 = vadd.f32 %v1520, %v1691
        %v1964 = vadd.f32 %v1521, %v1663
        %v1965 = vadd.f32 %v1522, %v1667
        %v1966 = vadd.f32 %v1523, %v1671
        %v1967 = vadd.f32 %v1524, %v1675
        %v1968 = vadd.f32 %v1525, %v1679
        %v1969 = vadd.f32 %v1526, %v1683
        %v1970 = vadd.f32 %v1527, %v1687
        %v1971 = vadd.f32 %v1528, %v1691
        %v1972 = vadd.f32 %v1529, %v1663
        %v1973 = vadd.f32 %v1530, %v1667
        %v1974 = vadd.f32 %v1531, %v1671
        %v1975 = vadd.f32 %v1532, %v1675
        %v1976 = vadd.f32 %v1533, %v1679
        %v1977 = vadd.f32 %v1534, %v1683
        %v1978 = vadd.f32 %v1535, %v1687
        %v1979 = vadd.f32 %v1536, %v1691
        %v1980 = vadd.f32 %v1537, %v1663
        %v1981 = vadd.f32 %v1538, %v1667
        %v1982 = vadd.f32 %v1539, %v1671
        %v1983 = vadd.f32 %v1540, %v1675
        %v1984 = vadd.f32 %v1541, %v1679
        %v1985 = vadd.f32 %v1542, %v1683
        %v1986 = vadd.f32 %v1543, %v1687
        %v1987 = vadd.f32 %v1544, %v1691
        %v1988 = vadd.f32 %v1545, %v1663
        %v1989 = vadd.f32 %v1546, %v1667
        %v1990 = vadd.f32 %v1547, %v1671
        %v1991 = vadd.f32 %v1548, %v1675
        %v1992 = vadd.f32 %v1549, %v1679
        %v1993 = vadd.f32 %v1550, %v1683
        %v1994 = vadd.f32 %v1551, %v1687
        %v1995 = vadd.f32 %v1552, %v1691
        %v1996 = vadd.f32 %v1553, %v1663
        %v1997 = vadd.f32 %v1554, %v1667
        %v1998 = vadd.f32 %v1555, %v1671
        %v1999 = vadd.f32 %v1556, %v1675
        %v2000 = vadd.f32 %v1557, %v1679
        %v2001 = vadd.f32 %v1558, %v1683
        %v2002 = vadd.f32 %v1559, %v1687
        %v2003 = vadd.f32 %v1560, %v1691
        %v2004 = vadd.f32 %v1561, %v1663
        %v2005 = vadd.f32 %v1562, %v1667
        %v2006 = vadd.f32 %v1563, %v1671
        %v2007 = vadd.f32 %v1564, %v1675
        %v2008 = vadd.f32 %v1565, %v1679
        %v2009 = vadd.f32 %v1566, %v1683
        %v2010 = vadd.f32 %v1567, %v1687
        %v2011 = vadd.f32 %v1568, %v1691
        %v2012 = vadd.f32 %v1569, %v1663
        %v2013 = vadd.f32 %v1570, %v1667
        %v2014 = vadd.f32 %v1571, %v1671
        %v2015 = vadd.f32 %v1572, %v1675
        %v2016 = vadd.f32 %v1573, %v1679
        %v2017 = vadd.f32 %v1574, %v1683
        %v2018 = vadd.f32 %v1575, %v1687
        %v2019 = vadd.f32 %v1576, %v1691
        %v2020 = vadd.f32 %v1577, %v1663
        %v2021 = vadd.f32 %v1578, %v1667
        %v2022 = vadd.f32 %v1579, %v1671
        %v2023 = vadd.f32 %v1580, %v1675
        %v2024 = vadd.f32 %v1581, %v1679
        %v2025 = vadd.f32 %v1582, %v1683
        %v2026 = vadd.f32 %v1583, %v1687
        %v2027 = vadd.f32 %v1584, %v1691
        %v2028 = vadd.f32 %v1585, %v1663
        %v2029 = vadd.f32 %v1586, %v1667
        %v2030 = vadd.f32 %v1587, %v1671
        %v2031 = vadd.f32 %v1588, %v1675
        %v2032 = vadd.f32 %v1589, %v1679
        %v2033 = vadd.f32 %v1590, %v1683
        %v2034 = vadd.f32 %v1591, %v1687
        %v2035 = vadd.f32 %v1592, %v1691
        %v2036 = vadd.f32 %v1593, %v1663
        %v2037 = vadd.f32 %v1594, %v1667
        %v2038 = vadd.f32 %v1595, %v1671
        %v2039 = vadd.f32 %v1596, %v1675
        %v2040 = vadd.f32 %v1597, %v1679
        %v2041 = vadd.f32 %v1598, %v1683
        %v2042 = vadd.f32 %v1599, %v1687
        %v2043 = vadd.f32 %v1600, %v1691
        %v2044 = vadd.f32 %v1601, %v1663
        %v2045 = vadd.f32 %v1602, %v1667
        %v2046 = vadd.f32 %v1603, %v1671
        %v2047 = vadd.f32 %v1604, %v1675
        %v2048 = vadd.f32 %v1605, %v1679
        %v2049 = vadd.f32 %v1606, %v1683
        %v2050 = vadd.f32 %v1607, %v1687
        %v2051 = vadd.f32 %v1608, %v1691
        %v2052 = vadd.f32 %v1609, %v1663
        %v2053 = vadd.f32 %v1610, %v1667
        %v2054 = vadd.f32 %v1611, %v1671
        %v2055 = vadd.f32 %v1612, %v1675
        %v2056 = vadd.f32 %v1613, %v1679
        %v2057 = vadd.f32 %v1614, %v1683
        %v2058 = vadd.f32 %v1615, %v1687
        %v2059 = vadd.f32 %v1616, %v1691
        %v2060 = vadd.f32 %v1617, %v1663
        %v2061 = vadd.f32 %v1618, %v1667
        %v2062 = vadd.f32 %v1619, %v1671
        %v2063 = vadd.f32 %v1620, %v1675
        %v2064 = vadd.f32 %v1621, %v1679
        %v2065 = vadd.f32 %v1622, %v1683
        %v2066 = vadd.f32 %v1623, %v1687
        %v2067 = vadd.f32 %v1624, %v1691
        %v2068 = vadd.f32 %v1625, %v1663
        %v2069 = vadd.f32 %v1626, %v1667
        %v2070 = vadd.f32 %v1627, %v1671
        %v2071 = vadd.f32 %v1628, %v1675
        %v2072 = vadd.f32 %v1629, %v1679
        %v2073 = vadd.f32 %v1630, %v1683
        %v2074 = vadd.f32 %v1631, %v1687
        %v2075 = vadd.f32 %v1632, %v1691
        %v2076 = vadd.f32 %v1633, %v1663
        %v2077 = vadd.f32 %v1634, %v1667
        %v2078 = vadd.f32 %v1635, %v1671
        %v2079 = vadd.f32 %v1636, %v1675
        %v2080 = vadd.f32 %v1637, %v1679
        %v2081 = vadd.f32 %v1638, %v1683
        %v2082 = vadd.f32 %v1639, %v1687
        %v2083 = vadd.f32 %v1640, %v1691
        %v2084 = vadd.f32 %v1641, %v1663
        %v2085 = vadd.f32 %v1642, %v1667
        %v2086 = vadd.f32 %v1643, %v1671
        %v2087 = vadd.f32 %v1644, %v1675
        %v2088 = vadd.f32 %v1645, %v1679
        %v2089 = vadd.f32 %v1646, %v1683
        %v2090 = vadd.f32 %v1647, %v1687
        %v2091 = vadd.f32 %v1648, %v1691
        %v2092 = vadd.f32 %v1649, %v1663
        %v2093 = vadd.f32 %v1650, %v1667
        %v2094 = vadd.f32 %v1651, %v1671
        %v2095 = vadd.f32 %v1652, %v1675
        %v2096 = vadd.f32 %v1653, %v1679
        %v2097 = vadd.f32 %v1654, %v1683
        %v2098 = vadd.f32 %v1655, %v1687
        %v2099 = vadd.f32 %v1656, %v1691
        %v2100 = vmax.f32 %v1700, 0.0
        %v2101 = vmax.f32 %v1701, 0.0
        %v2102 = vmax.f32 %v1702, 0.0
        %v2103 = vmax.f32 %v1703, 0.0
        %v2104 = vmax.f32 %v1704, 0.0
        %v2105 = vmax.f32 %v1705, 0.0
        %v2106 = vmax.f32 %v1706, 0.0
        %v2107 = vmax.f32 %v1707, 0.0
        %v2108 = vmax.f32 %v1708, 0.0
        %v2109 = vmax.f32 %v1709, 0.0
        %v2110 = vmax.f32 %v1710, 0.0
        %v2111 = vmax.f32 %v1711, 0.0
        %v2112 = vmax.f32 %v1712, 0.0
        %v2113 = vmax.f32 %v1713, 0.0
        %v2114 = vmax.f32 %v1714, 0.0
        %v2115 = vmax.f32 %v1715, 0.0
        %v2116 = vmax.f32 %v1716, 0.0
        %v2117 = vmax.f32 %v1717, 0.0
        %v2118 = vmax.f32 %v1718, 0.0
        %v2119 = vmax.f32 %v1719, 0.0
        %v2120 = vmax.f32 %v1720, 0.0
        %v2121 = vmax.f32 %v1721, 0.0
        %v2122 = vmax.f32 %v1722, 0.0
        %v2123 = vmax.f32 %v1723, 0.0
        %v2124 = vmax.f32 %v1724, 0.0
        %v2125 = vmax.f32 %v1725, 0.0
        %v2126 = vmax.f32 %v1726, 0.0
        %v2127 = vmax.f32 %v1727, 0.0
        %v2128 = vmax.f32 %v1728, 0.0
        %v2129 = vmax.f32 %v1729, 0.0
        %v2130 = vmax.f32 %v1730, 0.0
        %v2131 = vmax.f32 %v1731, 0.0
        %v2132 = vmax.f32 %v1732, 0.0
        %v2133 = vmax.f32 %v1733, 0.0
        %v2134 = vmax.f32 %v1734, 0.0
        %v2135 = vmax.f32 %v1735, 0.0
        %v2136 = vmax.f32 %v1736, 0.0
        %v2137 = vmax.f32 %v1737, 0.0
        %v2138 = vmax.f32 %v1738, 0.0
        %v2139 = vmax.f32 %v1739, 0.0
        %v2140 = vmax.f32 %v1740, 0.0
        %v2141 = vmax.f32 %v1741, 0.0
        %v2142 = vmax.f32 %v1742, 0.0
        %v2143 = vmax.f32 %v1743, 0.0
        %v2144 = vmax.f32 %v1744, 0.0
        %v2145 = vmax.f32 %v1745, 0.0
        %v2146 = vmax.f32 %v1746, 0.0
        %v2147 = vmax.f32 %v1747, 0.0
        %v2148 = vmax.f32 %v1748, 0.0
        %v2149 = vmax.f32 %v1749, 0.0
        %v2150 = vmax.f32 %v1750, 0.0
        %v2151 = vmax.f32 %v1751, 0.0
        %v2152 = vmax.f32 %v1752, 0.0
        %v2153 = vmax.f32 %v1753, 0.0
        %v2154 = vmax.f32 %v1754, 0.0
        %v2155 = vmax.f32 %v1755, 0.0
        %v2156 = vmax.f32 %v1756, 0.0
        %v2157 = vmax.f32 %v1757, 0.0
        %v2158 = vmax.f32 %v1758, 0.0
        %v2159 = vmax.f32 %v1759, 0.0
        %v2160 = vmax.f32 %v1760, 0.0
        %v2161 = vmax.f32 %v1761, 0.0
        %v2162 = vmax.f32 %v1762, 0.0
        %v2163 = vmax.f32 %v1763, 0.0
        %v2164 = vmax.f32 %v1764, 0.0
        %v2165 = vmax.f32 %v1765, 0.0
        %v2166 = vmax.f32 %v1766, 0.0
        %v2167 = vmax.f32 %v1767, 0.0
        %v2168 = vmax.f32 %v1768, 0.0
        %v2169 = vmax.f32 %v1769, 0.0
        %v2170 = vmax.f32 %v1770, 0.0
        %v2171 = vmax.f32 %v1771, 0.0
        %v2172 = vmax.f32 %v1772, 0.0
        %v2173 = vmax.f32 %v1773, 0.0
        %v2174 = vmax.f32 %v1774, 0.0
        %v2175 = vmax.f32 %v1775, 0.0
        %v2176 = vmax.f32 %v1776, 0.0
        %v2177 = vmax.f32 %v1777, 0.0
        %v2178 = vmax.f32 %v1778, 0.0
        %v2179 = vmax.f32 %v1779, 0.0
        %v2180 = vmax.f32 %v1780, 0.0
        %v2181 = vmax.f32 %v1781, 0.0
        %v2182 = vmax.f32 %v1782, 0.0
        %v2183 = vmax.f32 %v1783, 0.0
        %v2184 = vmax.f32 %v1784, 0.0
        %v2185 = vmax.f32 %v1785, 0.0
        %v2186 = vmax.f32 %v1786, 0.0
        %v2187 = vmax.f32 %v1787, 0.0
        %v2188 = vmax.f32 %v1788, 0.0
        %v2189 = vmax.f32 %v1789, 0.0
        %v2190 = vmax.f32 %v1790, 0.0
        %v2191 = vmax.f32 %v1791, 0.0
        %v2192 = vmax.f32 %v1792, 0.0
        %v2193 = vmax.f32 %v1793, 0.0
        %v2194 = vmax.f32 %v1794, 0.0
        %v2195 = vmax.f32 %v1795, 0.0
        %v2196 = vmax.f32 %v1796, 0.0
        %v2197 = vmax.f32 %v1797, 0.0
        %v2198 = vmax.f32 %v1798, 0.0
        %v2199 = vmax.f32 %v1799, 0.0
        %v2200 = vmax.f32 %v1800, 0.0
        %v2201 = vmax.f32 %v1801, 0.0
        %v2202 = vmax.f32 %v1802, 0.0
        %v2203 = vmax.f32 %v1803, 0.0
        %v2204 = vmax.f32 %v1804, 0.0
        %v2205 = vmax.f32 %v1805, 0.0
        %v2206 = vmax.f32 %v1806, 0.0
        %v2207 = vmax.f32 %v1807, 0.0
        %v2208 = vmax.f32 %v1808, 0.0
        %v2209 = vmax.f32 %v1809, 0.0
        %v2210 = vmax.f32 %v1810, 0.0
        %v2211 = vmax.f32 %v1811, 0.0
        %v2212 = vmax.f32 %v1812, 0.0
        %v2213 = vmax.f32 %v1813, 0.0
        %v2214 = vmax.f32 %v1814, 0.0
        %v2215 = vmax.f32 %v1815, 0.0
        %v2216 = vmax.f32 %v1816, 0.0
        %v2217 = vmax.f32 %v1817, 0.0
        %v2218 = vmax.f32 %v1818, 0.0
        %v2219 = vmax.f32 %v1819, 0.0
        %v2220 = vmax.f32 %v1820, 0.0
        %v2221 = vmax.f32 %v1821, 0.0
        %v2222 = vmax.f32 %v1822, 0.0
        %v2223 = vmax.f32 %v1823, 0.0
        %v2224 = vmax.f32 %v1824, 0.0
        %v2225 = vmax.f32 %v1825, 0.0
        %v2226 = vmax.f32 %v1826, 0.0
        %v2227 = vmax.f32 %v1827, 0.0
        %v2228 = vmax.f32 %v1828, 0.0
        %v2229 = vmax.f32 %v1829, 0.0
        %v2230 = vmax.f32 %v1830, 0.0
        %v2231 = vmax.f32 %v1831, 0.0
        %v2232 = vmax.f32 %v1832, 0.0
        %v2233 = vmax.f32 %v1833, 0.0
        %v2234 = vmax.f32 %v1834, 0.0
        %v2235 = vmax.f32 %v1835, 0.0
        %v2236 = vmax.f32 %v1836, 0.0
        %v2237 = vmax.f32 %v1837, 0.0
        %v2238 = vmax.f32 %v1838, 0.0
        %v2239 = vmax.f32 %v1839, 0.0
        %v2240 = vmax.f32 %v1840, 0.0
        %v2241 = vmax.f32 %v1841, 0.0
        %v2242 = vmax.f32 %v1842, 0.0
        %v2243 = vmax.f32 %v1843, 0.0
        %v2244 = vmax.f32 %v1844, 0.0
        %v2245 = vmax.f32 %v1845, 0.0
        %v2246 = vmax.f32 %v1846, 0.0
        %v2247 = vmax.f32 %v1847, 0.0
        %v2248 = vmax.f32 %v1848, 0.0
        %v2249 = vmax.f32 %v1849, 0.0
        %v2250 = vmax.f32 %v1850, 0.0
        %v2251 = vmax.f32 %v1851, 0.0
        %v2252 = vmax.f32 %v1852, 0.0
        %v2253 = vmax.f32 %v1853, 0.0
        %v2254 = vmax.f32 %v1854, 0.0
        %v2255 = vmax.f32 %v1855, 0.0
        %v2256 = vmax.f32 %v1856, 0.0
        %v2257 = vmax.f32 %v1857, 0.0
        %v2258 = vmax.f32 %v1858, 0.0
        %v2259 = vmax.f32 %v1859, 0.0
        %v2260 = vmax.f32 %v1860, 0.0
        %v2261 = vmax.f32 %v1861, 0.0
        %v2262 = vmax.f32 %v1862, 0.0
        %v2263 = vmax.f32 %v1863, 0.0
        %v2264 = vmax.f32 %v1864, 0.0
        %v2265 = vmax.f32 %v1865, 0.0
        %v2266 = vmax.f32 %v1866, 0.0
        %v2267 = vmax.f32 %v1867, 0.0
        %v2268 = vmax.f32 %v1868, 0.0
        %v2269 = vmax.f32 %v1869, 0.0
        %v2270 = vmax.f32 %v1870, 0.0
        %v2271 = vmax.f32 %v1871, 0.0
        %v2272 = vmax.f32 %v1872, 0.0
        %v2273 = vmax.f32 %v1873, 0.0
        %v2274 = vmax.f32 %v1874, 0.0
        %v2275 = vmax.f32 %v1875, 0.0
        %v2276 = vmax.f32 %v1876, 0.0
        %v2277 = vmax.f32 %v1877, 0.0
        %v2278 = vmax.f32 %v1878, 0.0
        %v2279 = vmax.f32 %v1879, 0.0
        %v2280 = vmax.f32 %v1880, 0.0
        %v2281 = vmax.f32 %v1881, 0.0
        %v2282 = vmax.f32 %v1882, 0.0
        %v2283 = vmax.f32 %v1883, 0.0
        %v2284 = vmax.f32 %v1884, 0.0
        %v2285 = vmax.f32 %v1885, 0.0
        %v2286 = vmax.f32 %v1886, 0.0
        %v2287 = vmax.f32 %v1887, 0.0
        %v2288 = vmax.f32 %v1888, 0.0
        %v2289 = vmax.f32 %v1889, 0.0
        %v2290 = vmax.f32 %v1890, 0.0
        %v2291 = vmax.f32 %v1891, 0.0
        %v2292 = vmax.f32 %v1892, 0.0
        %v2293 = vmax.f32 %v1893, 0.0
        %v2294 = vmax.f32 %v1894, 0.0
        %v2295 = vmax.f32 %v1895, 0.0
        %v2296 = vmax.f32 %v1896, 0.0
        %v2297 = vmax.f32 %v1897, 0.0
        %v2298 = vmax.f32 %v1898, 0.0
        %v2299 = vmax.f32 %v1899, 0.0
        %v2300 = vmax.f32 %v1900, 0.0
        %v2301 = vmax.f32 %v1901, 0.0
        %v2302 = vmax.f32 %v1902, 0.0
        %v2303 = vmax.f32 %v1903, 0.0
        %v2304 = vmax.f32 %v1904, 0.0
        %v2305 = vmax.f32 %v1905, 0.0
        %v2306 = vmax.f32 %v1906, 0.0
        %v2307 = vmax.f32 %v1907, 0.0
        %v2308 = vmax.f32 %v1908, 0.0
        %v2309 = vmax.f32 %v1909, 0.0
        %v2310 = vmax.f32 %v1910, 0.0
        %v2311 = vmax.f32 %v1911, 0.0
        %v2312 = vmax.f32 %v1912, 0.0
        %v2313 = vmax.f32 %v1913, 0.0
        %v2314 = vmax.f32 %v1914, 0.0
        %v2315 = vmax.f32 %v1915, 0.0
        %v2316 = vmax.f32 %v1916, 0.0
        %v2317 = vmax.f32 %v1917, 0.0
        %v2318 = vmax.f32 %v1918, 0.0
        %v2319 = vmax.f32 %v1919, 0.0
        %v2320 = vmax.f32 %v1920, 0.0
        %v2321 = vmax.f32 %v1921, 0.0
        %v2322 = vmax.f32 %v1922, 0.0
        %v2323 = vmax.f32 %v1923, 0.0
        %v2324 = vmax.f32 %v1924, 0.0
        %v2325 = vmax.f32 %v1925, 0.0
        %v2326 = vmax.f32 %v1926, 0.0
        %v2327 = vmax.f32 %v1927, 0.0
        %v2328 = vmax.f32 %v1928, 0.0
        %v2329 = vmax.f32 %v1929, 0.0
        %v2330 = vmax.f32 %v1930, 0.0
        %v2331 = vmax.f32 %v1931, 0.0
        %v2332 = vmax.f32 %v1932, 0.0
        %v2333 = vmax.f32 %v1933, 0.0
        %v2334 = vmax.f32 %v1934, 0.0
        %v2335 = vmax.f32 %v1935, 0.0
        %v2336 = vmax.f32 %v1936, 0.0
        %v2337 = vmax.f32 %v1937, 0.0
        %v2338 = vmax.f32 %v1938, 0.0
        %v2339 = vmax.f32 %v1939, 0.0
        %v2340 = vmax.f32 %v1940, 0.0
        %v2341 = vmax.f32 %v1941, 0.0
        %v2342 = vmax.f32 %v1942, 0.0
        %v2343 = vmax.f32 %v1943, 0.0
        %v2344 = vmax.f32 %v1944, 0.0
        %v2345 = vmax.f32 %v1945, 0.0
        %v2346 = vmax.f32 %v1946, 0.0
        %v2347 = vmax.f32 %v1947, 0.0
        %v2348 = vmax.f32 %v1948, 0.0
        %v2349 = vmax.f32 %v1949, 0.0
        %v2350 = vmax.f32 %v1950, 0.0
        %v2351 = vmax.f32 %v1951, 0.0
        %v2352 = vmax.f32 %v1952, 0.0
        %v2353 = vmax.f32 %v1953, 0.0
        %v2354 = vmax.f32 %v1954, 0.0
        %v2355 = vmax.f32 %v1955, 0.0
        %v2356 = vmax.f32 %v1956, 0.0
        %v2357 = vmax.f32 %v1957, 0.0
        %v2358 = vmax.f32 %v1958, 0.0
        %v2359 = vmax.f32 %v1959, 0.0
        %v2360 = vmax.f32 %v1960, 0.0
        %v2361 = vmax.f32 %v1961, 0.0
        %v2362 = vmax.f32 %v1962, 0.0
        %v2363 = vmax.f32 %v1963, 0.0
        %v2364 = vmax.f32 %v1964, 0.0
        %v2365 = vmax.f32 %v1965, 0.0
        %v2366 = vmax.f32 %v1966, 0.0
        %v2367 = vmax.f32 %v1967, 0.0
        %v2368 = vmax.f32 %v1968, 0.0
        %v2369 = vmax.f32 %v1969, 0.0
        %v2370 = vmax.f32 %v1970, 0.0
        %v2371 = vmax.f32 %v1971, 0.0
        %v2372 = vmax.f32 %v1972, 0.0
        %v2373 = vmax.f32 %v1973, 0.0
        %v2374 = vmax.f32 %v1974, 0.0
        %v2375 = vmax.f32 %v1975, 0.0
        %v2376 = vmax.f32 %v1976, 0.0
        %v2377 = vmax.f32 %v1977, 0.0
        %v2378 = vmax.f32 %v1978, 0.0
        %v2379 = vmax.f32 %v1979, 0.0
        %v2380 = vmax.f32 %v1980, 0.0
        %v2381 = vmax.f32 %v1981, 0.0
        %v2382 = vmax.f32 %v1982, 0.0
        %v2383 = vmax.f32 %v1983, 0.0
        %v2384 = vmax.f32 %v1984, 0.0
        %v2385 = vmax.f32 %v1985, 0.0
        %v2386 = vmax.f32 %v1986, 0.0
        %v2387 = vmax.f32 %v1987, 0.0
        %v2388 = vmax.f32 %v1988, 0.0
        %v2389 = vmax.f32 %v1989, 0.0
        %v2390 = vmax.f32 %v1990, 0.0
        %v2391 = vmax.f32 %v1991, 0.0
        %v2392 = vmax.f32 %v1992, 0.0
        %v2393 = vmax.f32 %v1993, 0.0
        %v2394 = vmax.f32 %v1994, 0.0
        %v2395 = vmax.f32 %v1995, 0.0
        %v2396 = vmax.f32 %v1996, 0.0
        %v2397 = vmax.f32 %v1997, 0.0
        %v2398 = vmax.f32 %v1998, 0.0
        %v2399 = vmax.f32 %v1999, 0.0
        %v2400 = vmax.f32 %v2000, 0.0
        %v2401 = vmax.f32 %v2001, 0.0
        %v2402 = vmax.f32 %v2002, 0.0
        %v2403 = vmax.f32 %v2003, 0.0
        %v2404 = vmax.f32 %v2004, 0.0
        %v2405 = vmax.f32 %v2005, 0.0
        %v2406 = vmax.f32 %v2006, 0.0
        %v2407 = vmax.f32 %v2007, 0.0
        %v2408 = vmax.f32 %v2008, 0.0
        %v2409 = vmax.f32 %v2009, 0.0
        %v2410 = vmax.f32 %v2010, 0.0
        %v2411 = vmax.f32 %v2011, 0.0
        %v2412 = vmax.f32 %v2012, 0.0
        %v2413 = vmax.f32 %v2013, 0.0
        %v2414 = vmax.f32 %v2014, 0.0
        %v2415 = vmax.f32 %v2015, 0.0
        %v2416 = vmax.f32 %v2016, 0.0
        %v2417 = vmax.f32 %v2017, 0.0
        %v2418 = vmax.f32 %v2018, 0.0
        %v2419 = vmax.f32 %v2019, 0.0
        %v2420 = vmax.f32 %v2020, 0.0
        %v2421 = vmax.f32 %v2021, 0.0
        %v2422 = vmax.f32 %v2022, 0.0
        %v2423 = vmax.f32 %v2023, 0.0
        %v2424 = vmax.f32 %v2024, 0.0
        %v2425 = vmax.f32 %v2025, 0.0
        %v2426 = vmax.f32 %v2026, 0.0
        %v2427 = vmax.f32 %v2027, 0.0
        %v2428 = vmax.f32 %v2028, 0.0
        %v2429 = vmax.f32 %v2029, 0.0
        %v2430 = vmax.f32 %v2030, 0.0
        %v2431 = vmax.f32 %v2031, 0.0
        %v2432 = vmax.f32 %v2032, 0.0
        %v2433 = vmax.f32 %v2033, 0.0
        %v2434 = vmax.f32 %v2034, 0.0
        %v2435 = vmax.f32 %v2035, 0.0
        %v2436 = vmax.f32 %v2036, 0.0
        %v2437 = vmax.f32 %v2037, 0.0
        %v2438 = vmax.f32 %v2038, 0.0
        %v2439 = vmax.f32 %v2039, 0.0
        %v2440 = vmax.f32 %v2040, 0.0
        %v2441 = vmax.f32 %v2041, 0.0
        %v2442 = vmax.f32 %v2042, 0.0
        %v2443 = vmax.f32 %v2043, 0.0
        %v2444 = vmax.f32 %v2044, 0.0
        %v2445 = vmax.f32 %v2045, 0.0
        %v2446 = vmax.f32 %v2046, 0.0
        %v2447 = vmax.f32 %v2047, 0.0
        %v2448 = vmax.f32 %v2048, 0.0
        %v2449 = vmax.f32 %v2049, 0.0
        %v2450 = vmax.f32 %v2050, 0.0
        %v2451 = vmax.f32 %v2051, 0.0
        %v2452 = vmax.f32 %v2052, 0.0
        %v2453 = vmax.f32 %v2053, 0.0
        %v2454 = vmax.f32 %v2054, 0.0
        %v2455 = vmax.f32 %v2055, 0.0
        %v2456 = vmax.f32 %v2056, 0.0
        %v2457 = vmax.f32 %v2057, 0.0
        %v2458 = vmax.f32 %v2058, 0.0
        %v2459 = vmax.f32 %v2059, 0.0
        %v2460 = vmax.f32 %v2060, 0.0
        %v2461 = vmax.f32 %v2061, 0.0
        %v2462 = vmax.f32 %v2062, 0.0
        %v2463 = vmax.f32 %v2063, 0.0
        %v2464 = vmax.f32 %v2064, 0.0
        %v2465 = vmax.f32 %v2065, 0.0
        %v2466 = vmax.f32 %v2066, 0.0
        %v2467 = vmax.f32 %v2067, 0.0
        %v2468 = vmax.f32 %v2068, 0.0
        %v2469 = vmax.f32 %v2069, 0.0
        %v2470 = vmax.f32 %v2070, 0.0
        %v2471 = vmax.f32 %v2071, 0.0
        %v2472 = vmax.f32 %v2072, 0.0
        %v2473 = vmax.f32 %v2073, 0.0
        %v2474 = vmax.f32 %v2074, 0.0
        %v2475 = vmax.f32 %v2075, 0.0
        %v2476 = vmax.f32 %v2076, 0.0
        %v2477 = vmax.f32 %v2077, 0.0
        %v2478 = vmax.f32 %v2078, 0.0
        %v2479 = vmax.f32 %v2079, 0.0
        %v2480 = vmax.f32 %v2080, 0.0
        %v2481 = vmax.f32 %v2081, 0.0
        %v2482 = vmax.f32 %v2082, 0.0
        %v2483 = vmax.f32 %v2083, 0.0
        %v2484 = vmax.f32 %v2084, 0.0
        %v2485 = vmax.f32 %v2085, 0.0
        %v2486 = vmax.f32 %v2086, 0.0
        %v2487 = vmax.f32 %v2087, 0.0
        %v2488 = vmax.f32 %v2088, 0.0
        %v2489 = vmax.f32 %v2089, 0.0
        %v2490 = vmax.f32 %v2090, 0.0
        %v2491 = vmax.f32 %v2091, 0.0
        %v2492 = vmax.f32 %v2092, 0.0
        %v2493 = vmax.f32 %v2093, 0.0
        %v2494 = vmax.f32 %v2094, 0.0
        %v2495 = vmax.f32 %v2095, 0.0
        %v2496 = vmax.f32 %v2096, 0.0
        %v2497 = vmax.f32 %v2097, 0.0
        %v2498 = vmax.f32 %v2098, 0.0
        %v2499 = vmax.f32 %v2099, 0.0
        %s2500 = scalar_lea.vmem [#allocation6], 2
        %v2501 = vld [vmem:[%s2500] ss:$4 sm:$0xff]
        %v2503 = vlaneseq
        %v2504 = vshrl.u32 %v2503, 7
        %v2505 = vsub.s32 0, %v2504
        %v2506 = vrot.slane %v2501, %v2505
        %v2507 = vlaneseq
        %v2508 = vshrl.u32 %v2507, 7
        %v2509 = vsub.s32 1, %v2508
        %v2510 = vrot.slane %v2501, %v2509
        %v2511 = vlaneseq
        %v2512 = vshrl.u32 %v2511, 7
        %v2513 = vsub.s32 2, %v2512
        %v2514 = vrot.slane %v2501, %v2513
        %v2515 = vlaneseq
        %v2516 = vshrl.u32 %v2515, 7
        %v2517 = vsub.s32 3, %v2516
        %v2518 = vrot.slane %v2501, %v2517
        %v2519 = vlaneseq
        %v2520 = vshrl.u32 %v2519, 7
        %v2521 = vsub.s32 4, %v2520
        %v2522 = vrot.slane %v2501, %v2521
        %v2523 = vlaneseq
        %v2524 = vshrl.u32 %v2523, 7
        %v2525 = vsub.s32 5, %v2524
        %v2526 = vrot.slane %v2501, %v2525
        %v2527 = vlaneseq
        %v2528 = vshrl.u32 %v2527, 7
        %v2529 = vsub.s32 6, %v2528
        %v2530 = vrot.slane %v2501, %v2529
        %v2531 = vlaneseq
        %v2532 = vshrl.u32 %v2531, 7
        %v2533 = vsub.s32 7, %v2532
        %v2534 = vrot.slane %v2501, %v2533
        %v2543 = vmul.f32 %v815, %v2506
        %v2544 = vmul.f32 %v816, %v2510
        %v2545 = vmul.f32 %v817, %v2514
        %v2546 = vmul.f32 %v818, %v2518
        %v2547 = vmul.f32 %v819, %v2522
        %v2548 = vmul.f32 %v820, %v2526
        %v2549 = vmul.f32 %v821, %v2530
        %v2550 = vmul.f32 %v822, %v2534
        %v2551 = vmul.f32 %v823, %v2506
        %v2552 = vmul.f32 %v824, %v2510
        %v2553 = vmul.f32 %v825, %v2514
        %v2554 = vmul.f32 %v826, %v2518
        %v2555 = vmul.f32 %v827, %v2522
        %v2556 = vmul.f32 %v828, %v2526
        %v2557 = vmul.f32 %v829, %v2530
        %v2558 = vmul.f32 %v830, %v2534
        %v2559 = vmul.f32 %v831, %v2506
        %v2560 = vmul.f32 %v832, %v2510
        %v2561 = vmul.f32 %v833, %v2514
        %v2562 = vmul.f32 %v834, %v2518
        %v2563 = vmul.f32 %v835, %v2522
        %v2564 = vmul.f32 %v836, %v2526
        %v2565 = vmul.f32 %v837, %v2530
        %v2566 = vmul.f32 %v838, %v2534
        %v2567 = vmul.f32 %v839, %v2506
        %v2568 = vmul.f32 %v840, %v2510
        %v2569 = vmul.f32 %v841, %v2514
        %v2570 = vmul.f32 %v842, %v2518
        %v2571 = vmul.f32 %v843, %v2522
        %v2572 = vmul.f32 %v844, %v2526
        %v2573 = vmul.f32 %v845, %v2530
        %v2574 = vmul.f32 %v846, %v2534
        %v2575 = vmul.f32 %v847, %v2506
        %v2576 = vmul.f32 %v848, %v2510
        %v2577 = vmul.f32 %v849, %v2514
        %v2578 = vmul.f32 %v850, %v2518
        %v2579 = vmul.f32 %v851, %v2522
        %v2580 = vmul.f32 %v852, %v2526
        %v2581 = vmul.f32 %v853, %v2530
        %v2582 = vmul.f32 %v854, %v2534
        %v2583 = vmul.f32 %v855, %v2506
        %v2584 = vmul.f32 %v856, %v2510
        %v2585 = vmul.f32 %v857, %v2514
        %v2586 = vmul.f32 %v858, %v2518
        %v2587 = vmul.f32 %v859, %v2522
        %v2588 = vmul.f32 %v860, %v2526
        %v2589 = vmul.f32 %v861, %v2530
        %v2590 = vmul.f32 %v862, %v2534
        %v2591 = vmul.f32 %v863, %v2506
        %v2592 = vmul.f32 %v864, %v2510
        %v2593 = vmul.f32 %v865, %v2514
        %v2594 = vmul.f32 %v866, %v2518
        %v2595 = vmul.f32 %v867, %v2522
        %v2596 = vmul.f32 %v868, %v2526
        %v2597 = vmul.f32 %v869, %v2530
        %v2598 = vmul.f32 %v870, %v2534
        %v2599 = vmul.f32 %v871, %v2506
        %v2600 = vmul.f32 %v872, %v2510
        %v2601 = vmul.f32 %v873, %v2514
        %v2602 = vmul.f32 %v874, %v2518
        %v2603 = vmul.f32 %v875, %v2522
        %v2604 = vmul.f32 %v876, %v2526
        %v2605 = vmul.f32 %v877, %v2530
        %v2606 = vmul.f32 %v878, %v2534
        %v2607 = vmul.f32 %v879, %v2506
        %v2608 = vmul.f32 %v880, %v2510
        %v2609 = vmul.f32 %v881, %v2514
        %v2610 = vmul.f32 %v882, %v2518
        %v2611 = vmul.f32 %v883, %v2522
        %v2612 = vmul.f32 %v884, %v2526
        %v2613 = vmul.f32 %v885, %v2530
        %v2614 = vmul.f32 %v886, %v2534
        %v2615 = vmul.f32 %v887, %v2506
        %v2616 = vmul.f32 %v888, %v2510
        %v2617 = vmul.f32 %v889, %v2514
        %v2618 = vmul.f32 %v890, %v2518
        %v2619 = vmul.f32 %v891, %v2522
        %v2620 = vmul.f32 %v892, %v2526
        %v2621 = vmul.f32 %v893, %v2530
        %v2622 = vmul.f32 %v894, %v2534
        %v2623 = vmul.f32 %v895, %v2506
        %v2624 = vmul.f32 %v896, %v2510
        %v2625 = vmul.f32 %v897, %v2514
        %v2626 = vmul.f32 %v898, %v2518
        %v2627 = vmul.f32 %v899, %v2522
        %v2628 = vmul.f32 %v900, %v2526
        %v2629 = vmul.f32 %v901, %v2530
        %v2630 = vmul.f32 %v902, %v2534
        %v2631 = vmul.f32 %v903, %v2506
        %v2632 = vmul.f32 %v904, %v2510
        %v2633 = vmul.f32 %v905, %v2514
        %v2634 = vmul.f32 %v906, %v2518
        %v2635 = vmul.f32 %v907, %v2522
        %v2636 = vmul.f32 %v908, %v2526
        %v2637 = vmul.f32 %v909, %v2530
        %v2638 = vmul.f32 %v910, %v2534
        %v2639 = vmul.f32 %v911, %v2506
        %v2640 = vmul.f32 %v912, %v2510
        %v2641 = vmul.f32 %v913, %v2514
        %v2642 = vmul.f32 %v914, %v2518
        %v2643 = vmul.f32 %v915, %v2522
        %v2644 = vmul.f32 %v916, %v2526
        %v2645 = vmul.f32 %v917, %v2530
        %v2646 = vmul.f32 %v918, %v2534
        %v2647 = vmul.f32 %v919, %v2506
        %v2648 = vmul.f32 %v920, %v2510
        %v2649 = vmul.f32 %v921, %v2514
        %v2650 = vmul.f32 %v922, %v2518
        %v2651 = vmul.f32 %v923, %v2522
        %v2652 = vmul.f32 %v924, %v2526
        %v2653 = vmul.f32 %v925, %v2530
        %v2654 = vmul.f32 %v926, %v2534
        %v2655 = vmul.f32 %v927, %v2506
        %v2656 = vmul.f32 %v928, %v2510
        %v2657 = vmul.f32 %v929, %v2514
        %v2658 = vmul.f32 %v930, %v2518
        %v2659 = vmul.f32 %v931, %v2522
        %v2660 = vmul.f32 %v932, %v2526
        %v2661 = vmul.f32 %v933, %v2530
        %v2662 = vmul.f32 %v934, %v2534
        %v2663 = vmul.f32 %v935, %v2506
        %v2664 = vmul.f32 %v936, %v2510
        %v2665 = vmul.f32 %v937, %v2514
        %v2666 = vmul.f32 %v938, %v2518
        %v2667 = vmul.f32 %v939, %v2522
        %v2668 = vmul.f32 %v940, %v2526
        %v2669 = vmul.f32 %v941, %v2530
        %v2670 = vmul.f32 %v942, %v2534
        %v2671 = vmul.f32 %v943, %v2506
        %v2672 = vmul.f32 %v944, %v2510
        %v2673 = vmul.f32 %v945, %v2514
        %v2674 = vmul.f32 %v946, %v2518
        %v2675 = vmul.f32 %v947, %v2522
        %v2676 = vmul.f32 %v948, %v2526
        %v2677 = vmul.f32 %v949, %v2530
        %v2678 = vmul.f32 %v950, %v2534
        %v2679 = vmul.f32 %v951, %v2506
        %v2680 = vmul.f32 %v952, %v2510
        %v2681 = vmul.f32 %v953, %v2514
        %v2682 = vmul.f32 %v954, %v2518
        %v2683 = vmul.f32 %v955, %v2522
        %v2684 = vmul.f32 %v956, %v2526
        %v2685 = vmul.f32 %v957, %v2530
        %v2686 = vmul.f32 %v958, %v2534
        %v2687 = vmul.f32 %v959, %v2506
        %v2688 = vmul.f32 %v960, %v2510
        %v2689 = vmul.f32 %v961, %v2514
        %v2690 = vmul.f32 %v962, %v2518
        %v2691 = vmul.f32 %v963, %v2522
        %v2692 = vmul.f32 %v964, %v2526
        %v2693 = vmul.f32 %v965, %v2530
        %v2694 = vmul.f32 %v966, %v2534
        %v2695 = vmul.f32 %v967, %v2506
        %v2696 = vmul.f32 %v968, %v2510
        %v2697 = vmul.f32 %v969, %v2514
        %v2698 = vmul.f32 %v970, %v2518
        %v2699 = vmul.f32 %v971, %v2522
        %v2700 = vmul.f32 %v972, %v2526
        %v2701 = vmul.f32 %v973, %v2530
        %v2702 = vmul.f32 %v974, %v2534
        %v2703 = vmul.f32 %v975, %v2506
        %v2704 = vmul.f32 %v976, %v2510
        %v2705 = vmul.f32 %v977, %v2514
        %v2706 = vmul.f32 %v978, %v2518
        %v2707 = vmul.f32 %v979, %v2522
        %v2708 = vmul.f32 %v980, %v2526
        %v2709 = vmul.f32 %v981, %v2530
        %v2710 = vmul.f32 %v982, %v2534
        %v2711 = vmul.f32 %v983, %v2506
        %v2712 = vmul.f32 %v984, %v2510
        %v2713 = vmul.f32 %v985, %v2514
        %v2714 = vmul.f32 %v986, %v2518
        %v2715 = vmul.f32 %v987, %v2522
        %v2716 = vmul.f32 %v988, %v2526
        %v2717 = vmul.f32 %v989, %v2530
        %v2718 = vmul.f32 %v990, %v2534
        %v2719 = vmul.f32 %v991, %v2506
        %v2720 = vmul.f32 %v992, %v2510
        %v2721 = vmul.f32 %v993, %v2514
        %v2722 = vmul.f32 %v994, %v2518
        %v2723 = vmul.f32 %v995, %v2522
        %v2724 = vmul.f32 %v996, %v2526
        %v2725 = vmul.f32 %v997, %v2530
        %v2726 = vmul.f32 %v998, %v2534
        %v2727 = vmul.f32 %v999, %v2506
        %v2728 = vmul.f32 %v1000, %v2510
        %v2729 = vmul.f32 %v1001, %v2514
        %v2730 = vmul.f32 %v1002, %v2518
        %v2731 = vmul.f32 %v1003, %v2522
        %v2732 = vmul.f32 %v1004, %v2526
        %v2733 = vmul.f32 %v1005, %v2530
        %v2734 = vmul.f32 %v1006, %v2534
        %v2735 = vmul.f32 %v1007, %v2506
        %v2736 = vmul.f32 %v1008, %v2510
        %v2737 = vmul.f32 %v1009, %v2514
        %v2738 = vmul.f32 %v1010, %v2518
        %v2739 = vmul.f32 %v1011, %v2522
        %v2740 = vmul.f32 %v1012, %v2526
        %v2741 = vmul.f32 %v1013, %v2530
        %v2742 = vmul.f32 %v1014, %v2534
        %v2743 = vmul.f32 %v1015, %v2506
        %v2744 = vmul.f32 %v1016, %v2510
        %v2745 = vmul.f32 %v1017, %v2514
        %v2746 = vmul.f32 %v1018, %v2518
        %v2747 = vmul.f32 %v1019, %v2522
        %v2748 = vmul.f32 %v1020, %v2526
        %v2749 = vmul.f32 %v1021, %v2530
        %v2750 = vmul.f32 %v1022, %v2534
        %v2751 = vmul.f32 %v1023, %v2506
        %v2752 = vmul.f32 %v1024, %v2510
        %v2753 = vmul.f32 %v1025, %v2514
        %v2754 = vmul.f32 %v1026, %v2518
        %v2755 = vmul.f32 %v1027, %v2522
        %v2756 = vmul.f32 %v1028, %v2526
        %v2757 = vmul.f32 %v1029, %v2530
        %v2758 = vmul.f32 %v1030, %v2534
        %v2759 = vmul.f32 %v1031, %v2506
        %v2760 = vmul.f32 %v1032, %v2510
        %v2761 = vmul.f32 %v1033, %v2514
        %v2762 = vmul.f32 %v1034, %v2518
        %v2763 = vmul.f32 %v1035, %v2522
        %v2764 = vmul.f32 %v1036, %v2526
        %v2765 = vmul.f32 %v1037, %v2530
        %v2766 = vmul.f32 %v1038, %v2534
        %v2767 = vmul.f32 %v1039, %v2506
        %v2768 = vmul.f32 %v1040, %v2510
        %v2769 = vmul.f32 %v1041, %v2514
        %v2770 = vmul.f32 %v1042, %v2518
        %v2771 = vmul.f32 %v1043, %v2522
        %v2772 = vmul.f32 %v1044, %v2526
        %v2773 = vmul.f32 %v1045, %v2530
        %v2774 = vmul.f32 %v1046, %v2534
        %v2775 = vmul.f32 %v1047, %v2506
        %v2776 = vmul.f32 %v1048, %v2510
        %v2777 = vmul.f32 %v1049, %v2514
        %v2778 = vmul.f32 %v1050, %v2518
        %v2779 = vmul.f32 %v1051, %v2522
        %v2780 = vmul.f32 %v1052, %v2526
        %v2781 = vmul.f32 %v1053, %v2530
        %v2782 = vmul.f32 %v1054, %v2534
        %v2783 = vmul.f32 %v1055, %v2506
        %v2784 = vmul.f32 %v1056, %v2510
        %v2785 = vmul.f32 %v1057, %v2514
        %v2786 = vmul.f32 %v1058, %v2518
        %v2787 = vmul.f32 %v1059, %v2522
        %v2788 = vmul.f32 %v1060, %v2526
        %v2789 = vmul.f32 %v1061, %v2530
        %v2790 = vmul.f32 %v1062, %v2534
        %v2791 = vmul.f32 %v1063, %v2506
        %v2792 = vmul.f32 %v1064, %v2510
        %v2793 = vmul.f32 %v1065, %v2514
        %v2794 = vmul.f32 %v1066, %v2518
        %v2795 = vmul.f32 %v1067, %v2522
        %v2796 = vmul.f32 %v1068, %v2526
        %v2797 = vmul.f32 %v1069, %v2530
        %v2798 = vmul.f32 %v1070, %v2534
        %v2799 = vmul.f32 %v1071, %v2506
        %v2800 = vmul.f32 %v1072, %v2510
        %v2801 = vmul.f32 %v1073, %v2514
        %v2802 = vmul.f32 %v1074, %v2518
        %v2803 = vmul.f32 %v1075, %v2522
        %v2804 = vmul.f32 %v1076, %v2526
        %v2805 = vmul.f32 %v1077, %v2530
        %v2806 = vmul.f32 %v1078, %v2534
        %v2807 = vmul.f32 %v1079, %v2506
        %v2808 = vmul.f32 %v1080, %v2510
        %v2809 = vmul.f32 %v1081, %v2514
        %v2810 = vmul.f32 %v1082, %v2518
        %v2811 = vmul.f32 %v1083, %v2522
        %v2812 = vmul.f32 %v1084, %v2526
        %v2813 = vmul.f32 %v1085, %v2530
        %v2814 = vmul.f32 %v1086, %v2534
        %v2815 = vmul.f32 %v1087, %v2506
        %v2816 = vmul.f32 %v1088, %v2510
        %v2817 = vmul.f32 %v1089, %v2514
        %v2818 = vmul.f32 %v1090, %v2518
        %v2819 = vmul.f32 %v1091, %v2522
        %v2820 = vmul.f32 %v1092, %v2526
        %v2821 = vmul.f32 %v1093, %v2530
        %v2822 = vmul.f32 %v1094, %v2534
        %v2823 = vmul.f32 %v1095, %v2506
        %v2824 = vmul.f32 %v1096, %v2510
        %v2825 = vmul.f32 %v1097, %v2514
        %v2826 = vmul.f32 %v1098, %v2518
        %v2827 = vmul.f32 %v1099, %v2522
        %v2828 = vmul.f32 %v1100, %v2526
        %v2829 = vmul.f32 %v1101, %v2530
        %v2830 = vmul.f32 %v1102, %v2534
        %v2831 = vmul.f32 %v1103, %v2506
        %v2832 = vmul.f32 %v1104, %v2510
        %v2833 = vmul.f32 %v1105, %v2514
        %v2834 = vmul.f32 %v1106, %v2518
        %v2835 = vmul.f32 %v1107, %v2522
        %v2836 = vmul.f32 %v1108, %v2526
        %v2837 = vmul.f32 %v1109, %v2530
        %v2838 = vmul.f32 %v1110, %v2534
        %v2839 = vmul.f32 %v1111, %v2506
        %v2840 = vmul.f32 %v1112, %v2510
        %v2841 = vmul.f32 %v1113, %v2514
        %v2842 = vmul.f32 %v1114, %v2518
        %v2843 = vmul.f32 %v1115, %v2522
        %v2844 = vmul.f32 %v1116, %v2526
        %v2845 = vmul.f32 %v1117, %v2530
        %v2846 = vmul.f32 %v1118, %v2534
        %v2847 = vmul.f32 %v1119, %v2506
        %v2848 = vmul.f32 %v1120, %v2510
        %v2849 = vmul.f32 %v1121, %v2514
        %v2850 = vmul.f32 %v1122, %v2518
        %v2851 = vmul.f32 %v1123, %v2522
        %v2852 = vmul.f32 %v1124, %v2526
        %v2853 = vmul.f32 %v1125, %v2530
        %v2854 = vmul.f32 %v1126, %v2534
        %v2855 = vmul.f32 %v1127, %v2506
        %v2856 = vmul.f32 %v1128, %v2510
        %v2857 = vmul.f32 %v1129, %v2514
        %v2858 = vmul.f32 %v1130, %v2518
        %v2859 = vmul.f32 %v1131, %v2522
        %v2860 = vmul.f32 %v1132, %v2526
        %v2861 = vmul.f32 %v1133, %v2530
        %v2862 = vmul.f32 %v1134, %v2534
        %v2863 = vmul.f32 %v1135, %v2506
        %v2864 = vmul.f32 %v1136, %v2510
        %v2865 = vmul.f32 %v1137, %v2514
        %v2866 = vmul.f32 %v1138, %v2518
        %v2867 = vmul.f32 %v1139, %v2522
        %v2868 = vmul.f32 %v1140, %v2526
        %v2869 = vmul.f32 %v1141, %v2530
        %v2870 = vmul.f32 %v1142, %v2534
        %v2871 = vmul.f32 %v1143, %v2506
        %v2872 = vmul.f32 %v1144, %v2510
        %v2873 = vmul.f32 %v1145, %v2514
        %v2874 = vmul.f32 %v1146, %v2518
        %v2875 = vmul.f32 %v1147, %v2522
        %v2876 = vmul.f32 %v1148, %v2526
        %v2877 = vmul.f32 %v1149, %v2530
        %v2878 = vmul.f32 %v1150, %v2534
        %v2879 = vmul.f32 %v1151, %v2506
        %v2880 = vmul.f32 %v1152, %v2510
        %v2881 = vmul.f32 %v1153, %v2514
        %v2882 = vmul.f32 %v1154, %v2518
        %v2883 = vmul.f32 %v1155, %v2522
        %v2884 = vmul.f32 %v1156, %v2526
        %v2885 = vmul.f32 %v1157, %v2530
        %v2886 = vmul.f32 %v1158, %v2534
        %v2887 = vmul.f32 %v1159, %v2506
        %v2888 = vmul.f32 %v1160, %v2510
        %v2889 = vmul.f32 %v1161, %v2514
        %v2890 = vmul.f32 %v1162, %v2518
        %v2891 = vmul.f32 %v1163, %v2522
        %v2892 = vmul.f32 %v1164, %v2526
        %v2893 = vmul.f32 %v1165, %v2530
        %v2894 = vmul.f32 %v1166, %v2534
        %v2895 = vmul.f32 %v1167, %v2506
        %v2896 = vmul.f32 %v1168, %v2510
        %v2897 = vmul.f32 %v1169, %v2514
        %v2898 = vmul.f32 %v1170, %v2518
        %v2899 = vmul.f32 %v1171, %v2522
        %v2900 = vmul.f32 %v1172, %v2526
        %v2901 = vmul.f32 %v1173, %v2530
        %v2902 = vmul.f32 %v1174, %v2534
        %v2903 = vmul.f32 %v1175, %v2506
        %v2904 = vmul.f32 %v1176, %v2510
        %v2905 = vmul.f32 %v1177, %v2514
        %v2906 = vmul.f32 %v1178, %v2518
        %v2907 = vmul.f32 %v1179, %v2522
        %v2908 = vmul.f32 %v1180, %v2526
        %v2909 = vmul.f32 %v1181, %v2530
        %v2910 = vmul.f32 %v1182, %v2534
        %v2911 = vmul.f32 %v1183, %v2506
        %v2912 = vmul.f32 %v1184, %v2510
        %v2913 = vmul.f32 %v1185, %v2514
        %v2914 = vmul.f32 %v1186, %v2518
        %v2915 = vmul.f32 %v1187, %v2522
        %v2916 = vmul.f32 %v1188, %v2526
        %v2917 = vmul.f32 %v1189, %v2530
        %v2918 = vmul.f32 %v1190, %v2534
        %v2919 = vmul.f32 %v1191, %v2506
        %v2920 = vmul.f32 %v1192, %v2510
        %v2921 = vmul.f32 %v1193, %v2514
        %v2922 = vmul.f32 %v1194, %v2518
        %v2923 = vmul.f32 %v1195, %v2522
        %v2924 = vmul.f32 %v1196, %v2526
        %v2925 = vmul.f32 %v1197, %v2530
        %v2926 = vmul.f32 %v1198, %v2534
        %v2927 = vmul.f32 %v1199, %v2506
        %v2928 = vmul.f32 %v1200, %v2510
        %v2929 = vmul.f32 %v1201, %v2514
        %v2930 = vmul.f32 %v1202, %v2518
        %v2931 = vmul.f32 %v1203, %v2522
        %v2932 = vmul.f32 %v1204, %v2526
        %v2933 = vmul.f32 %v1205, %v2530
        %v2934 = vmul.f32 %v1206, %v2534
        %v2935 = vmul.f32 %v1207, %v2506
        %v2936 = vmul.f32 %v1208, %v2510
        %v2937 = vmul.f32 %v1209, %v2514
        %v2938 = vmul.f32 %v1210, %v2518
        %v2939 = vmul.f32 %v1211, %v2522
        %v2940 = vmul.f32 %v1212, %v2526
        %v2941 = vmul.f32 %v1213, %v2530
        %v2942 = vmul.f32 %v1214, %v2534
        %s2943 = scalar_lea.vmem [#allocation6], 3
        %v2944 = vld [vmem:[%s2943] ss:$4 sm:$0xff]
        %v2946 = vlaneseq
        %v2947 = vshrl.u32 %v2946, 7
        %v2948 = vsub.s32 0, %v2947
        %v2949 = vrot.slane %v2944, %v2948
        %v2950 = vlaneseq
        %v2951 = vshrl.u32 %v2950, 7
        %v2952 = vsub.s32 1, %v2951
        %v2953 = vrot.slane %v2944, %v2952
        %v2954 = vlaneseq
        %v2955 = vshrl.u32 %v2954, 7
        %v2956 = vsub.s32 2, %v2955
        %v2957 = vrot.slane %v2944, %v2956
        %v2958 = vlaneseq
        %v2959 = vshrl.u32 %v2958, 7
        %v2960 = vsub.s32 3, %v2959
        %v2961 = vrot.slane %v2944, %v2960
        %v2962 = vlaneseq
        %v2963 = vshrl.u32 %v2962, 7
        %v2964 = vsub.s32 4, %v2963
        %v2965 = vrot.slane %v2944, %v2964
        %v2966 = vlaneseq
        %v2967 = vshrl.u32 %v2966, 7
        %v2968 = vsub.s32 5, %v2967
        %v2969 = vrot.slane %v2944, %v2968
        %v2970 = vlaneseq
        %v2971 = vshrl.u32 %v2970, 7
        %v2972 = vsub.s32 6, %v2971
        %v2973 = vrot.slane %v2944, %v2972
        %v2974 = vlaneseq
        %v2975 = vshrl.u32 %v2974, 7
        %v2976 = vsub.s32 7, %v2975
        %v2977 = vrot.slane %v2944, %v2976
        %v2986 = vadd.f32 %v2543, %v2949
        %v2987 = vadd.f32 %v2544, %v2953
        %v2988 = vadd.f32 %v2545, %v2957
        %v2989 = vadd.f32 %v2546, %v2961
        %v2990 = vadd.f32 %v2547, %v2965
        %v2991 = vadd.f32 %v2548, %v2969
        %v2992 = vadd.f32 %v2549, %v2973
        %v2993 = vadd.f32 %v2550, %v2977
        %v2994 = vadd.f32 %v2551, %v2949
        %v2995 = vadd.f32 %v2552, %v2953
        %v2996 = vadd.f32 %v2553, %v2957
        %v2997 = vadd.f32 %v2554, %v2961
        %v2998 = vadd.f32 %v2555, %v2965
        %v2999 = vadd.f32 %v2556, %v2969
        %v3000 = vadd.f32 %v2557, %v2973
        %v3001 = vadd.f32 %v2558, %v2977
        %v3002 = vadd.f32 %v2559, %v2949
        %v3003 = vadd.f32 %v2560, %v2953
        %v3004 = vadd.f32 %v2561, %v2957
        %v3005 = vadd.f32 %v2562, %v2961
        %v3006 = vadd.f32 %v2563, %v2965
        %v3007 = vadd.f32 %v2564, %v2969
        %v3008 = vadd.f32 %v2565, %v2973
        %v3009 = vadd.f32 %v2566, %v2977
        %v3010 = vadd.f32 %v2567, %v2949
        %v3011 = vadd.f32 %v2568, %v2953
        %v3012 = vadd.f32 %v2569, %v2957
        %v3013 = vadd.f32 %v2570, %v2961
        %v3014 = vadd.f32 %v2571, %v2965
        %v3015 = vadd.f32 %v2572, %v2969
        %v3016 = vadd.f32 %v2573, %v2973
        %v3017 = vadd.f32 %v2574, %v2977
        %v3018 = vadd.f32 %v2575, %v2949
        %v3019 = vadd.f32 %v2576, %v2953
        %v3020 = vadd.f32 %v2577, %v2957
        %v3021 = vadd.f32 %v2578, %v2961
        %v3022 = vadd.f32 %v2579, %v2965
        %v3023 = vadd.f32 %v2580, %v2969
        %v3024 = vadd.f32 %v2581, %v2973
        %v3025 = vadd.f32 %v2582, %v2977
        %v3026 = vadd.f32 %v2583, %v2949
        %v3027 = vadd.f32 %v2584, %v2953
        %v3028 = vadd.f32 %v2585, %v2957
        %v3029 = vadd.f32 %v2586, %v2961
        %v3030 = vadd.f32 %v2587, %v2965
        %v3031 = vadd.f32 %v2588, %v2969
        %v3032 = vadd.f32 %v2589, %v2973
        %v3033 = vadd.f32 %v2590, %v2977
        %v3034 = vadd.f32 %v2591, %v2949
        %v3035 = vadd.f32 %v2592, %v2953
        %v3036 = vadd.f32 %v2593, %v2957
        %v3037 = vadd.f32 %v2594, %v2961
        %v3038 = vadd.f32 %v2595, %v2965
        %v3039 = vadd.f32 %v2596, %v2969
        %v3040 = vadd.f32 %v2597, %v2973
        %v3041 = vadd.f32 %v2598, %v2977
        %v3042 = vadd.f32 %v2599, %v2949
        %v3043 = vadd.f32 %v2600, %v2953
        %v3044 = vadd.f32 %v2601, %v2957
        %v3045 = vadd.f32 %v2602, %v2961
        %v3046 = vadd.f32 %v2603, %v2965
        %v3047 = vadd.f32 %v2604, %v2969
        %v3048 = vadd.f32 %v2605, %v2973
        %v3049 = vadd.f32 %v2606, %v2977
        %v3050 = vadd.f32 %v2607, %v2949
        %v3051 = vadd.f32 %v2608, %v2953
        %v3052 = vadd.f32 %v2609, %v2957
        %v3053 = vadd.f32 %v2610, %v2961
        %v3054 = vadd.f32 %v2611, %v2965
        %v3055 = vadd.f32 %v2612, %v2969
        %v3056 = vadd.f32 %v2613, %v2973
        %v3057 = vadd.f32 %v2614, %v2977
        %v3058 = vadd.f32 %v2615, %v2949
        %v3059 = vadd.f32 %v2616, %v2953
        %v3060 = vadd.f32 %v2617, %v2957
        %v3061 = vadd.f32 %v2618, %v2961
        %v3062 = vadd.f32 %v2619, %v2965
        %v3063 = vadd.f32 %v2620, %v2969
        %v3064 = vadd.f32 %v2621, %v2973
        %v3065 = vadd.f32 %v2622, %v2977
        %v3066 = vadd.f32 %v2623, %v2949
        %v3067 = vadd.f32 %v2624, %v2953
        %v3068 = vadd.f32 %v2625, %v2957
        %v3069 = vadd.f32 %v2626, %v2961
        %v3070 = vadd.f32 %v2627, %v2965
        %v3071 = vadd.f32 %v2628, %v2969
        %v3072 = vadd.f32 %v2629, %v2973
        %v3073 = vadd.f32 %v2630, %v2977
        %v3074 = vadd.f32 %v2631, %v2949
        %v3075 = vadd.f32 %v2632, %v2953
        %v3076 = vadd.f32 %v2633, %v2957
        %v3077 = vadd.f32 %v2634, %v2961
        %v3078 = vadd.f32 %v2635, %v2965
        %v3079 = vadd.f32 %v2636, %v2969
        %v3080 = vadd.f32 %v2637, %v2973
        %v3081 = vadd.f32 %v2638, %v2977
        %v3082 = vadd.f32 %v2639, %v2949
        %v3083 = vadd.f32 %v2640, %v2953
        %v3084 = vadd.f32 %v2641, %v2957
        %v3085 = vadd.f32 %v2642, %v2961
        %v3086 = vadd.f32 %v2643, %v2965
        %v3087 = vadd.f32 %v2644, %v2969
        %v3088 = vadd.f32 %v2645, %v2973
        %v3089 = vadd.f32 %v2646, %v2977
        %v3090 = vadd.f32 %v2647, %v2949
        %v3091 = vadd.f32 %v2648, %v2953
        %v3092 = vadd.f32 %v2649, %v2957
        %v3093 = vadd.f32 %v2650, %v2961
        %v3094 = vadd.f32 %v2651, %v2965
        %v3095 = vadd.f32 %v2652, %v2969
        %v3096 = vadd.f32 %v2653, %v2973
        %v3097 = vadd.f32 %v2654, %v2977
        %v3098 = vadd.f32 %v2655, %v2949
        %v3099 = vadd.f32 %v2656, %v2953
        %v3100 = vadd.f32 %v2657, %v2957
        %v3101 = vadd.f32 %v2658, %v2961
        %v3102 = vadd.f32 %v2659, %v2965
        %v3103 = vadd.f32 %v2660, %v2969
        %v3104 = vadd.f32 %v2661, %v2973
        %v3105 = vadd.f32 %v2662, %v2977
        %v3106 = vadd.f32 %v2663, %v2949
        %v3107 = vadd.f32 %v2664, %v2953
        %v3108 = vadd.f32 %v2665, %v2957
        %v3109 = vadd.f32 %v2666, %v2961
        %v3110 = vadd.f32 %v2667, %v2965
        %v3111 = vadd.f32 %v2668, %v2969
        %v3112 = vadd.f32 %v2669, %v2973
        %v3113 = vadd.f32 %v2670, %v2977
        %v3114 = vadd.f32 %v2671, %v2949
        %v3115 = vadd.f32 %v2672, %v2953
        %v3116 = vadd.f32 %v2673, %v2957
        %v3117 = vadd.f32 %v2674, %v2961
        %v3118 = vadd.f32 %v2675, %v2965
        %v3119 = vadd.f32 %v2676, %v2969
        %v3120 = vadd.f32 %v2677, %v2973
        %v3121 = vadd.f32 %v2678, %v2977
        %v3122 = vadd.f32 %v2679, %v2949
        %v3123 = vadd.f32 %v2680, %v2953
        %v3124 = vadd.f32 %v2681, %v2957
        %v3125 = vadd.f32 %v2682, %v2961
        %v3126 = vadd.f32 %v2683, %v2965
        %v3127 = vadd.f32 %v2684, %v2969
        %v3128 = vadd.f32 %v2685, %v2973
        %v3129 = vadd.f32 %v2686, %v2977
        %v3130 = vadd.f32 %v2687, %v2949
        %v3131 = vadd.f32 %v2688, %v2953
        %v3132 = vadd.f32 %v2689, %v2957
        %v3133 = vadd.f32 %v2690, %v2961
        %v3134 = vadd.f32 %v2691, %v2965
        %v3135 = vadd.f32 %v2692, %v2969
        %v3136 = vadd.f32 %v2693, %v2973
        %v3137 = vadd.f32 %v2694, %v2977
        %v3138 = vadd.f32 %v2695, %v2949
        %v3139 = vadd.f32 %v2696, %v2953
        %v3140 = vadd.f32 %v2697, %v2957
        %v3141 = vadd.f32 %v2698, %v2961
        %v3142 = vadd.f32 %v2699, %v2965
        %v3143 = vadd.f32 %v2700, %v2969
        %v3144 = vadd.f32 %v2701, %v2973
        %v3145 = vadd.f32 %v2702, %v2977
        %v3146 = vadd.f32 %v2703, %v2949
        %v3147 = vadd.f32 %v2704, %v2953
        %v3148 = vadd.f32 %v2705, %v2957
        %v3149 = vadd.f32 %v2706, %v2961
        %v3150 = vadd.f32 %v2707, %v2965
        %v3151 = vadd.f32 %v2708, %v2969
        %v3152 = vadd.f32 %v2709, %v2973
        %v3153 = vadd.f32 %v2710, %v2977
        %v3154 = vadd.f32 %v2711, %v2949
        %v3155 = vadd.f32 %v2712, %v2953
        %v3156 = vadd.f32 %v2713, %v2957
        %v3157 = vadd.f32 %v2714, %v2961
        %v3158 = vadd.f32 %v2715, %v2965
        %v3159 = vadd.f32 %v2716, %v2969
        %v3160 = vadd.f32 %v2717, %v2973
        %v3161 = vadd.f32 %v2718, %v2977
        %v3162 = vadd.f32 %v2719, %v2949
        %v3163 = vadd.f32 %v2720, %v2953
        %v3164 = vadd.f32 %v2721, %v2957
        %v3165 = vadd.f32 %v2722, %v2961
        %v3166 = vadd.f32 %v2723, %v2965
        %v3167 = vadd.f32 %v2724, %v2969
        %v3168 = vadd.f32 %v2725, %v2973
        %v3169 = vadd.f32 %v2726, %v2977
        %v3170 = vadd.f32 %v2727, %v2949
        %v3171 = vadd.f32 %v2728, %v2953
        %v3172 = vadd.f32 %v2729, %v2957
        %v3173 = vadd.f32 %v2730, %v2961
        %v3174 = vadd.f32 %v2731, %v2965
        %v3175 = vadd.f32 %v2732, %v2969
        %v3176 = vadd.f32 %v2733, %v2973
        %v3177 = vadd.f32 %v2734, %v2977
        %v3178 = vadd.f32 %v2735, %v2949
        %v3179 = vadd.f32 %v2736, %v2953
        %v3180 = vadd.f32 %v2737, %v2957
        %v3181 = vadd.f32 %v2738, %v2961
        %v3182 = vadd.f32 %v2739, %v2965
        %v3183 = vadd.f32 %v2740, %v2969
        %v3184 = vadd.f32 %v2741, %v2973
        %v3185 = vadd.f32 %v2742, %v2977
        %v3186 = vadd.f32 %v2743, %v2949
        %v3187 = vadd.f32 %v2744, %v2953
        %v3188 = vadd.f32 %v2745, %v2957
        %v3189 = vadd.f32 %v2746, %v2961
        %v3190 = vadd.f32 %v2747, %v2965
        %v3191 = vadd.f32 %v2748, %v2969
        %v3192 = vadd.f32 %v2749, %v2973
        %v3193 = vadd.f32 %v2750, %v2977
        %v3194 = vadd.f32 %v2751, %v2949
        %v3195 = vadd.f32 %v2752, %v2953
        %v3196 = vadd.f32 %v2753, %v2957
        %v3197 = vadd.f32 %v2754, %v2961
        %v3198 = vadd.f32 %v2755, %v2965
        %v3199 = vadd.f32 %v2756, %v2969
        %v3200 = vadd.f32 %v2757, %v2973
        %v3201 = vadd.f32 %v2758, %v2977
        %v3202 = vadd.f32 %v2759, %v2949
        %v3203 = vadd.f32 %v2760, %v2953
        %v3204 = vadd.f32 %v2761, %v2957
        %v3205 = vadd.f32 %v2762, %v2961
        %v3206 = vadd.f32 %v2763, %v2965
        %v3207 = vadd.f32 %v2764, %v2969
        %v3208 = vadd.f32 %v2765, %v2973
        %v3209 = vadd.f32 %v2766, %v2977
        %v3210 = vadd.f32 %v2767, %v2949
        %v3211 = vadd.f32 %v2768, %v2953
        %v3212 = vadd.f32 %v2769, %v2957
        %v3213 = vadd.f32 %v2770, %v2961
        %v3214 = vadd.f32 %v2771, %v2965
        %v3215 = vadd.f32 %v2772, %v2969
        %v3216 = vadd.f32 %v2773, %v2973
        %v3217 = vadd.f32 %v2774, %v2977
        %v3218 = vadd.f32 %v2775, %v2949
        %v3219 = vadd.f32 %v2776, %v2953
        %v3220 = vadd.f32 %v2777, %v2957
        %v3221 = vadd.f32 %v2778, %v2961
        %v3222 = vadd.f32 %v2779, %v2965
        %v3223 = vadd.f32 %v2780, %v2969
        %v3224 = vadd.f32 %v2781, %v2973
        %v3225 = vadd.f32 %v2782, %v2977
        %v3226 = vadd.f32 %v2783, %v2949
        %v3227 = vadd.f32 %v2784, %v2953
        %v3228 = vadd.f32 %v2785, %v2957
        %v3229 = vadd.f32 %v2786, %v2961
        %v3230 = vadd.f32 %v2787, %v2965
        %v3231 = vadd.f32 %v2788, %v2969
        %v3232 = vadd.f32 %v2789, %v2973
        %v3233 = vadd.f32 %v2790, %v2977
        %v3234 = vadd.f32 %v2791, %v2949
        %v3235 = vadd.f32 %v2792, %v2953
        %v3236 = vadd.f32 %v2793, %v2957
        %v3237 = vadd.f32 %v2794, %v2961
        %v3238 = vadd.f32 %v2795, %v2965
        %v3239 = vadd.f32 %v2796, %v2969
        %v3240 = vadd.f32 %v2797, %v2973
        %v3241 = vadd.f32 %v2798, %v2977
        %v3242 = vadd.f32 %v2799, %v2949
        %v3243 = vadd.f32 %v2800, %v2953
        %v3244 = vadd.f32 %v2801, %v2957
        %v3245 = vadd.f32 %v2802, %v2961
        %v3246 = vadd.f32 %v2803, %v2965
        %v3247 = vadd.f32 %v2804, %v2969
        %v3248 = vadd.f32 %v2805, %v2973
        %v3249 = vadd.f32 %v2806, %v2977
        %v3250 = vadd.f32 %v2807, %v2949
        %v3251 = vadd.f32 %v2808, %v2953
        %v3252 = vadd.f32 %v2809, %v2957
        %v3253 = vadd.f32 %v2810, %v2961
        %v3254 = vadd.f32 %v2811, %v2965
        %v3255 = vadd.f32 %v2812, %v2969
        %v3256 = vadd.f32 %v2813, %v2973
        %v3257 = vadd.f32 %v2814, %v2977
        %v3258 = vadd.f32 %v2815, %v2949
        %v3259 = vadd.f32 %v2816, %v2953
        %v3260 = vadd.f32 %v2817, %v2957
        %v3261 = vadd.f32 %v2818, %v2961
        %v3262 = vadd.f32 %v2819, %v2965
        %v3263 = vadd.f32 %v2820, %v2969
        %v3264 = vadd.f32 %v2821, %v2973
        %v3265 = vadd.f32 %v2822, %v2977
        %v3266 = vadd.f32 %v2823, %v2949
        %v3267 = vadd.f32 %v2824, %v2953
        %v3268 = vadd.f32 %v2825, %v2957
        %v3269 = vadd.f32 %v2826, %v2961
        %v3270 = vadd.f32 %v2827, %v2965
        %v3271 = vadd.f32 %v2828, %v2969
        %v3272 = vadd.f32 %v2829, %v2973
        %v3273 = vadd.f32 %v2830, %v2977
        %v3274 = vadd.f32 %v2831, %v2949
        %v3275 = vadd.f32 %v2832, %v2953
        %v3276 = vadd.f32 %v2833, %v2957
        %v3277 = vadd.f32 %v2834, %v2961
        %v3278 = vadd.f32 %v2835, %v2965
        %v3279 = vadd.f32 %v2836, %v2969
        %v3280 = vadd.f32 %v2837, %v2973
        %v3281 = vadd.f32 %v2838, %v2977
        %v3282 = vadd.f32 %v2839, %v2949
        %v3283 = vadd.f32 %v2840, %v2953
        %v3284 = vadd.f32 %v2841, %v2957
        %v3285 = vadd.f32 %v2842, %v2961
        %v3286 = vadd.f32 %v2843, %v2965
        %v3287 = vadd.f32 %v2844, %v2969
        %v3288 = vadd.f32 %v2845, %v2973
        %v3289 = vadd.f32 %v2846, %v2977
        %v3290 = vadd.f32 %v2847, %v2949
        %v3291 = vadd.f32 %v2848, %v2953
        %v3292 = vadd.f32 %v2849, %v2957
        %v3293 = vadd.f32 %v2850, %v2961
        %v3294 = vadd.f32 %v2851, %v2965
        %v3295 = vadd.f32 %v2852, %v2969
        %v3296 = vadd.f32 %v2853, %v2973
        %v3297 = vadd.f32 %v2854, %v2977
        %v3298 = vadd.f32 %v2855, %v2949
        %v3299 = vadd.f32 %v2856, %v2953
        %v3300 = vadd.f32 %v2857, %v2957
        %v3301 = vadd.f32 %v2858, %v2961
        %v3302 = vadd.f32 %v2859, %v2965
        %v3303 = vadd.f32 %v2860, %v2969
        %v3304 = vadd.f32 %v2861, %v2973
        %v3305 = vadd.f32 %v2862, %v2977
        %v3306 = vadd.f32 %v2863, %v2949
        %v3307 = vadd.f32 %v2864, %v2953
        %v3308 = vadd.f32 %v2865, %v2957
        %v3309 = vadd.f32 %v2866, %v2961
        %v3310 = vadd.f32 %v2867, %v2965
        %v3311 = vadd.f32 %v2868, %v2969
        %v3312 = vadd.f32 %v2869, %v2973
        %v3313 = vadd.f32 %v2870, %v2977
        %v3314 = vadd.f32 %v2871, %v2949
        %v3315 = vadd.f32 %v2872, %v2953
        %v3316 = vadd.f32 %v2873, %v2957
        %v3317 = vadd.f32 %v2874, %v2961
        %v3318 = vadd.f32 %v2875, %v2965
        %v3319 = vadd.f32 %v2876, %v2969
        %v3320 = vadd.f32 %v2877, %v2973
        %v3321 = vadd.f32 %v2878, %v2977
        %v3322 = vadd.f32 %v2879, %v2949
        %v3323 = vadd.f32 %v2880, %v2953
        %v3324 = vadd.f32 %v2881, %v2957
        %v3325 = vadd.f32 %v2882, %v2961
        %v3326 = vadd.f32 %v2883, %v2965
        %v3327 = vadd.f32 %v2884, %v2969
        %v3328 = vadd.f32 %v2885, %v2973
        %v3329 = vadd.f32 %v2886, %v2977
        %v3330 = vadd.f32 %v2887, %v2949
        %v3331 = vadd.f32 %v2888, %v2953
        %v3332 = vadd.f32 %v2889, %v2957
        %v3333 = vadd.f32 %v2890, %v2961
        %v3334 = vadd.f32 %v2891, %v2965
        %v3335 = vadd.f32 %v2892, %v2969
        %v3336 = vadd.f32 %v2893, %v2973
        %v3337 = vadd.f32 %v2894, %v2977
        %v3338 = vadd.f32 %v2895, %v2949
        %v3339 = vadd.f32 %v2896, %v2953
        %v3340 = vadd.f32 %v2897, %v2957
        %v3341 = vadd.f32 %v2898, %v2961
        %v3342 = vadd.f32 %v2899, %v2965
        %v3343 = vadd.f32 %v2900, %v2969
        %v3344 = vadd.f32 %v2901, %v2973
        %v3345 = vadd.f32 %v2902, %v2977
        %v3346 = vadd.f32 %v2903, %v2949
        %v3347 = vadd.f32 %v2904, %v2953
        %v3348 = vadd.f32 %v2905, %v2957
        %v3349 = vadd.f32 %v2906, %v2961
        %v3350 = vadd.f32 %v2907, %v2965
        %v3351 = vadd.f32 %v2908, %v2969
        %v3352 = vadd.f32 %v2909, %v2973
        %v3353 = vadd.f32 %v2910, %v2977
        %v3354 = vadd.f32 %v2911, %v2949
        %v3355 = vadd.f32 %v2912, %v2953
        %v3356 = vadd.f32 %v2913, %v2957
        %v3357 = vadd.f32 %v2914, %v2961
        %v3358 = vadd.f32 %v2915, %v2965
        %v3359 = vadd.f32 %v2916, %v2969
        %v3360 = vadd.f32 %v2917, %v2973
        %v3361 = vadd.f32 %v2918, %v2977
        %v3362 = vadd.f32 %v2919, %v2949
        %v3363 = vadd.f32 %v2920, %v2953
        %v3364 = vadd.f32 %v2921, %v2957
        %v3365 = vadd.f32 %v2922, %v2961
        %v3366 = vadd.f32 %v2923, %v2965
        %v3367 = vadd.f32 %v2924, %v2969
        %v3368 = vadd.f32 %v2925, %v2973
        %v3369 = vadd.f32 %v2926, %v2977
        %v3370 = vadd.f32 %v2927, %v2949
        %v3371 = vadd.f32 %v2928, %v2953
        %v3372 = vadd.f32 %v2929, %v2957
        %v3373 = vadd.f32 %v2930, %v2961
        %v3374 = vadd.f32 %v2931, %v2965
        %v3375 = vadd.f32 %v2932, %v2969
        %v3376 = vadd.f32 %v2933, %v2973
        %v3377 = vadd.f32 %v2934, %v2977
        %v3378 = vadd.f32 %v2935, %v2949
        %v3379 = vadd.f32 %v2936, %v2953
        %v3380 = vadd.f32 %v2937, %v2957
        %v3381 = vadd.f32 %v2938, %v2961
        %v3382 = vadd.f32 %v2939, %v2965
        %v3383 = vadd.f32 %v2940, %v2969
        %v3384 = vadd.f32 %v2941, %v2973
        %v3385 = vadd.f32 %v2942, %v2977
        %v3386 = vmax.f32 %v2986, 0.0
        %v3387 = vmax.f32 %v2987, 0.0
        %v3388 = vmax.f32 %v2988, 0.0
        %v3389 = vmax.f32 %v2989, 0.0
        %v3390 = vmax.f32 %v2990, 0.0
        %v3391 = vmax.f32 %v2991, 0.0
        %v3392 = vmax.f32 %v2992, 0.0
        %v3393 = vmax.f32 %v2993, 0.0
        %v3394 = vmax.f32 %v2994, 0.0
        %v3395 = vmax.f32 %v2995, 0.0
        %v3396 = vmax.f32 %v2996, 0.0
        %v3397 = vmax.f32 %v2997, 0.0
        %v3398 = vmax.f32 %v2998, 0.0
        %v3399 = vmax.f32 %v2999, 0.0
        %v3400 = vmax.f32 %v3000, 0.0
        %v3401 = vmax.f32 %v3001, 0.0
        %v3402 = vmax.f32 %v3002, 0.0
        %v3403 = vmax.f32 %v3003, 0.0
        %v3404 = vmax.f32 %v3004, 0.0
        %v3405 = vmax.f32 %v3005, 0.0
        %v3406 = vmax.f32 %v3006, 0.0
        %v3407 = vmax.f32 %v3007, 0.0
        %v3408 = vmax.f32 %v3008, 0.0
        %v3409 = vmax.f32 %v3009, 0.0
        %v3410 = vmax.f32 %v3010, 0.0
        %v3411 = vmax.f32 %v3011, 0.0
        %v3412 = vmax.f32 %v3012, 0.0
        %v3413 = vmax.f32 %v3013, 0.0
        %v3414 = vmax.f32 %v3014, 0.0
        %v3415 = vmax.f32 %v3015, 0.0
        %v3416 = vmax.f32 %v3016, 0.0
        %v3417 = vmax.f32 %v3017, 0.0
        %v3418 = vmax.f32 %v3018, 0.0
        %v3419 = vmax.f32 %v3019, 0.0
        %v3420 = vmax.f32 %v3020, 0.0
        %v3421 = vmax.f32 %v3021, 0.0
        %v3422 = vmax.f32 %v3022, 0.0
        %v3423 = vmax.f32 %v3023, 0.0
        %v3424 = vmax.f32 %v3024, 0.0
        %v3425 = vmax.f32 %v3025, 0.0
        %v3426 = vmax.f32 %v3026, 0.0
        %v3427 = vmax.f32 %v3027, 0.0
        %v3428 = vmax.f32 %v3028, 0.0
        %v3429 = vmax.f32 %v3029, 0.0
        %v3430 = vmax.f32 %v3030, 0.0
        %v3431 = vmax.f32 %v3031, 0.0
        %v3432 = vmax.f32 %v3032, 0.0
        %v3433 = vmax.f32 %v3033, 0.0
        %v3434 = vmax.f32 %v3034, 0.0
        %v3435 = vmax.f32 %v3035, 0.0
        %v3436 = vmax.f32 %v3036, 0.0
        %v3437 = vmax.f32 %v3037, 0.0
        %v3438 = vmax.f32 %v3038, 0.0
        %v3439 = vmax.f32 %v3039, 0.0
        %v3440 = vmax.f32 %v3040, 0.0
        %v3441 = vmax.f32 %v3041, 0.0
        %v3442 = vmax.f32 %v3042, 0.0
        %v3443 = vmax.f32 %v3043, 0.0
        %v3444 = vmax.f32 %v3044, 0.0
        %v3445 = vmax.f32 %v3045, 0.0
        %v3446 = vmax.f32 %v3046, 0.0
        %v3447 = vmax.f32 %v3047, 0.0
        %v3448 = vmax.f32 %v3048, 0.0
        %v3449 = vmax.f32 %v3049, 0.0
        %v3450 = vmax.f32 %v3050, 0.0
        %v3451 = vmax.f32 %v3051, 0.0
        %v3452 = vmax.f32 %v3052, 0.0
        %v3453 = vmax.f32 %v3053, 0.0
        %v3454 = vmax.f32 %v3054, 0.0
        %v3455 = vmax.f32 %v3055, 0.0
        %v3456 = vmax.f32 %v3056, 0.0
        %v3457 = vmax.f32 %v3057, 0.0
        %v3458 = vmax.f32 %v3058, 0.0
        %v3459 = vmax.f32 %v3059, 0.0
        %v3460 = vmax.f32 %v3060, 0.0
        %v3461 = vmax.f32 %v3061, 0.0
        %v3462 = vmax.f32 %v3062, 0.0
        %v3463 = vmax.f32 %v3063, 0.0
        %v3464 = vmax.f32 %v3064, 0.0
        %v3465 = vmax.f32 %v3065, 0.0
        %v3466 = vmax.f32 %v3066, 0.0
        %v3467 = vmax.f32 %v3067, 0.0
        %v3468 = vmax.f32 %v3068, 0.0
        %v3469 = vmax.f32 %v3069, 0.0
        %v3470 = vmax.f32 %v3070, 0.0
        %v3471 = vmax.f32 %v3071, 0.0
        %v3472 = vmax.f32 %v3072, 0.0
        %v3473 = vmax.f32 %v3073, 0.0
        %v3474 = vmax.f32 %v3074, 0.0
        %v3475 = vmax.f32 %v3075, 0.0
        %v3476 = vmax.f32 %v3076, 0.0
        %v3477 = vmax.f32 %v3077, 0.0
        %v3478 = vmax.f32 %v3078, 0.0
        %v3479 = vmax.f32 %v3079, 0.0
        %v3480 = vmax.f32 %v3080, 0.0
        %v3481 = vmax.f32 %v3081, 0.0
        %v3482 = vmax.f32 %v3082, 0.0
        %v3483 = vmax.f32 %v3083, 0.0
        %v3484 = vmax.f32 %v3084, 0.0
        %v3485 = vmax.f32 %v3085, 0.0
        %v3486 = vmax.f32 %v3086, 0.0
        %v3487 = vmax.f32 %v3087, 0.0
        %v3488 = vmax.f32 %v3088, 0.0
        %v3489 = vmax.f32 %v3089, 0.0
        %v3490 = vmax.f32 %v3090, 0.0
        %v3491 = vmax.f32 %v3091, 0.0
        %v3492 = vmax.f32 %v3092, 0.0
        %v3493 = vmax.f32 %v3093, 0.0
        %v3494 = vmax.f32 %v3094, 0.0
        %v3495 = vmax.f32 %v3095, 0.0
        %v3496 = vmax.f32 %v3096, 0.0
        %v3497 = vmax.f32 %v3097, 0.0
        %v3498 = vmax.f32 %v3098, 0.0
        %v3499 = vmax.f32 %v3099, 0.0
        %v3500 = vmax.f32 %v3100, 0.0
        %v3501 = vmax.f32 %v3101, 0.0
        %v3502 = vmax.f32 %v3102, 0.0
        %v3503 = vmax.f32 %v3103, 0.0
        %v3504 = vmax.f32 %v3104, 0.0
        %v3505 = vmax.f32 %v3105, 0.0
        %v3506 = vmax.f32 %v3106, 0.0
        %v3507 = vmax.f32 %v3107, 0.0
        %v3508 = vmax.f32 %v3108, 0.0
        %v3509 = vmax.f32 %v3109, 0.0
        %v3510 = vmax.f32 %v3110, 0.0
        %v3511 = vmax.f32 %v3111, 0.0
        %v3512 = vmax.f32 %v3112, 0.0
        %v3513 = vmax.f32 %v3113, 0.0
        %v3514 = vmax.f32 %v3114, 0.0
        %v3515 = vmax.f32 %v3115, 0.0
        %v3516 = vmax.f32 %v3116, 0.0
        %v3517 = vmax.f32 %v3117, 0.0
        %v3518 = vmax.f32 %v3118, 0.0
        %v3519 = vmax.f32 %v3119, 0.0
        %v3520 = vmax.f32 %v3120, 0.0
        %v3521 = vmax.f32 %v3121, 0.0
        %v3522 = vmax.f32 %v3122, 0.0
        %v3523 = vmax.f32 %v3123, 0.0
        %v3524 = vmax.f32 %v3124, 0.0
        %v3525 = vmax.f32 %v3125, 0.0
        %v3526 = vmax.f32 %v3126, 0.0
        %v3527 = vmax.f32 %v3127, 0.0
        %v3528 = vmax.f32 %v3128, 0.0
        %v3529 = vmax.f32 %v3129, 0.0
        %v3530 = vmax.f32 %v3130, 0.0
        %v3531 = vmax.f32 %v3131, 0.0
        %v3532 = vmax.f32 %v3132, 0.0
        %v3533 = vmax.f32 %v3133, 0.0
        %v3534 = vmax.f32 %v3134, 0.0
        %v3535 = vmax.f32 %v3135, 0.0
        %v3536 = vmax.f32 %v3136, 0.0
        %v3537 = vmax.f32 %v3137, 0.0
        %v3538 = vmax.f32 %v3138, 0.0
        %v3539 = vmax.f32 %v3139, 0.0
        %v3540 = vmax.f32 %v3140, 0.0
        %v3541 = vmax.f32 %v3141, 0.0
        %v3542 = vmax.f32 %v3142, 0.0
        %v3543 = vmax.f32 %v3143, 0.0
        %v3544 = vmax.f32 %v3144, 0.0
        %v3545 = vmax.f32 %v3145, 0.0
        %v3546 = vmax.f32 %v3146, 0.0
        %v3547 = vmax.f32 %v3147, 0.0
        %v3548 = vmax.f32 %v3148, 0.0
        %v3549 = vmax.f32 %v3149, 0.0
        %v3550 = vmax.f32 %v3150, 0.0
        %v3551 = vmax.f32 %v3151, 0.0
        %v3552 = vmax.f32 %v3152, 0.0
        %v3553 = vmax.f32 %v3153, 0.0
        %v3554 = vmax.f32 %v3154, 0.0
        %v3555 = vmax.f32 %v3155, 0.0
        %v3556 = vmax.f32 %v3156, 0.0
        %v3557 = vmax.f32 %v3157, 0.0
        %v3558 = vmax.f32 %v3158, 0.0
        %v3559 = vmax.f32 %v3159, 0.0
        %v3560 = vmax.f32 %v3160, 0.0
        %v3561 = vmax.f32 %v3161, 0.0
        %v3562 = vmax.f32 %v3162, 0.0
        %v3563 = vmax.f32 %v3163, 0.0
        %v3564 = vmax.f32 %v3164, 0.0
        %v3565 = vmax.f32 %v3165, 0.0
        %v3566 = vmax.f32 %v3166, 0.0
        %v3567 = vmax.f32 %v3167, 0.0
        %v3568 = vmax.f32 %v3168, 0.0
        %v3569 = vmax.f32 %v3169, 0.0
        %v3570 = vmax.f32 %v3170, 0.0
        %v3571 = vmax.f32 %v3171, 0.0
        %v3572 = vmax.f32 %v3172, 0.0
        %v3573 = vmax.f32 %v3173, 0.0
        %v3574 = vmax.f32 %v3174, 0.0
        %v3575 = vmax.f32 %v3175, 0.0
        %v3576 = vmax.f32 %v3176, 0.0
        %v3577 = vmax.f32 %v3177, 0.0
        %v3578 = vmax.f32 %v3178, 0.0
        %v3579 = vmax.f32 %v3179, 0.0
        %v3580 = vmax.f32 %v3180, 0.0
        %v3581 = vmax.f32 %v3181, 0.0
        %v3582 = vmax.f32 %v3182, 0.0
        %v3583 = vmax.f32 %v3183, 0.0
        %v3584 = vmax.f32 %v3184, 0.0
        %v3585 = vmax.f32 %v3185, 0.0
        %v3586 = vmax.f32 %v3186, 0.0
        %v3587 = vmax.f32 %v3187, 0.0
        %v3588 = vmax.f32 %v3188, 0.0
        %v3589 = vmax.f32 %v3189, 0.0
        %v3590 = vmax.f32 %v3190, 0.0
        %v3591 = vmax.f32 %v3191, 0.0
        %v3592 = vmax.f32 %v3192, 0.0
        %v3593 = vmax.f32 %v3193, 0.0
        %v3594 = vmax.f32 %v3194, 0.0
        %v3595 = vmax.f32 %v3195, 0.0
        %v3596 = vmax.f32 %v3196, 0.0
        %v3597 = vmax.f32 %v3197, 0.0
        %v3598 = vmax.f32 %v3198, 0.0
        %v3599 = vmax.f32 %v3199, 0.0
        %v3600 = vmax.f32 %v3200, 0.0
        %v3601 = vmax.f32 %v3201, 0.0
        %v3602 = vmax.f32 %v3202, 0.0
        %v3603 = vmax.f32 %v3203, 0.0
        %v3604 = vmax.f32 %v3204, 0.0
        %v3605 = vmax.f32 %v3205, 0.0
        %v3606 = vmax.f32 %v3206, 0.0
        %v3607 = vmax.f32 %v3207, 0.0
        %v3608 = vmax.f32 %v3208, 0.0
        %v3609 = vmax.f32 %v3209, 0.0
        %v3610 = vmax.f32 %v3210, 0.0
        %v3611 = vmax.f32 %v3211, 0.0
        %v3612 = vmax.f32 %v3212, 0.0
        %v3613 = vmax.f32 %v3213, 0.0
        %v3614 = vmax.f32 %v3214, 0.0
        %v3615 = vmax.f32 %v3215, 0.0
        %v3616 = vmax.f32 %v3216, 0.0
        %v3617 = vmax.f32 %v3217, 0.0
        %v3618 = vmax.f32 %v3218, 0.0
        %v3619 = vmax.f32 %v3219, 0.0
        %v3620 = vmax.f32 %v3220, 0.0
        %v3621 = vmax.f32 %v3221, 0.0
        %v3622 = vmax.f32 %v3222, 0.0
        %v3623 = vmax.f32 %v3223, 0.0
        %v3624 = vmax.f32 %v3224, 0.0
        %v3625 = vmax.f32 %v3225, 0.0
        %v3626 = vmax.f32 %v3226, 0.0
        %v3627 = vmax.f32 %v3227, 0.0
        %v3628 = vmax.f32 %v3228, 0.0
        %v3629 = vmax.f32 %v3229, 0.0
        %v3630 = vmax.f32 %v3230, 0.0
        %v3631 = vmax.f32 %v3231, 0.0
        %v3632 = vmax.f32 %v3232, 0.0
        %v3633 = vmax.f32 %v3233, 0.0
        %v3634 = vmax.f32 %v3234, 0.0
        %v3635 = vmax.f32 %v3235, 0.0
        %v3636 = vmax.f32 %v3236, 0.0
        %v3637 = vmax.f32 %v3237, 0.0
        %v3638 = vmax.f32 %v3238, 0.0
        %v3639 = vmax.f32 %v3239, 0.0
        %v3640 = vmax.f32 %v3240, 0.0
        %v3641 = vmax.f32 %v3241, 0.0
        %v3642 = vmax.f32 %v3242, 0.0
        %v3643 = vmax.f32 %v3243, 0.0
        %v3644 = vmax.f32 %v3244, 0.0
        %v3645 = vmax.f32 %v3245, 0.0
        %v3646 = vmax.f32 %v3246, 0.0
        %v3647 = vmax.f32 %v3247, 0.0
        %v3648 = vmax.f32 %v3248, 0.0
        %v3649 = vmax.f32 %v3249, 0.0
        %v3650 = vmax.f32 %v3250, 0.0
        %v3651 = vmax.f32 %v3251, 0.0
        %v3652 = vmax.f32 %v3252, 0.0
        %v3653 = vmax.f32 %v3253, 0.0
        %v3654 = vmax.f32 %v3254, 0.0
        %v3655 = vmax.f32 %v3255, 0.0
        %v3656 = vmax.f32 %v3256, 0.0
        %v3657 = vmax.f32 %v3257, 0.0
        %v3658 = vmax.f32 %v3258, 0.0
        %v3659 = vmax.f32 %v3259, 0.0
        %v3660 = vmax.f32 %v3260, 0.0
        %v3661 = vmax.f32 %v3261, 0.0
        %v3662 = vmax.f32 %v3262, 0.0
        %v3663 = vmax.f32 %v3263, 0.0
        %v3664 = vmax.f32 %v3264, 0.0
        %v3665 = vmax.f32 %v3265, 0.0
        %v3666 = vmax.f32 %v3266, 0.0
        %v3667 = vmax.f32 %v3267, 0.0
        %v3668 = vmax.f32 %v3268, 0.0
        %v3669 = vmax.f32 %v3269, 0.0
        %v3670 = vmax.f32 %v3270, 0.0
        %v3671 = vmax.f32 %v3271, 0.0
        %v3672 = vmax.f32 %v3272, 0.0
        %v3673 = vmax.f32 %v3273, 0.0
        %v3674 = vmax.f32 %v3274, 0.0
        %v3675 = vmax.f32 %v3275, 0.0
        %v3676 = vmax.f32 %v3276, 0.0
        %v3677 = vmax.f32 %v3277, 0.0
        %v3678 = vmax.f32 %v3278, 0.0
        %v3679 = vmax.f32 %v3279, 0.0
        %v3680 = vmax.f32 %v3280, 0.0
        %v3681 = vmax.f32 %v3281, 0.0
        %v3682 = vmax.f32 %v3282, 0.0
        %v3683 = vmax.f32 %v3283, 0.0
        %v3684 = vmax.f32 %v3284, 0.0
        %v3685 = vmax.f32 %v3285, 0.0
        %v3686 = vmax.f32 %v3286, 0.0
        %v3687 = vmax.f32 %v3287, 0.0
        %v3688 = vmax.f32 %v3288, 0.0
        %v3689 = vmax.f32 %v3289, 0.0
        %v3690 = vmax.f32 %v3290, 0.0
        %v3691 = vmax.f32 %v3291, 0.0
        %v3692 = vmax.f32 %v3292, 0.0
        %v3693 = vmax.f32 %v3293, 0.0
        %v3694 = vmax.f32 %v3294, 0.0
        %v3695 = vmax.f32 %v3295, 0.0
        %v3696 = vmax.f32 %v3296, 0.0
        %v3697 = vmax.f32 %v3297, 0.0
        %v3698 = vmax.f32 %v3298, 0.0
        %v3699 = vmax.f32 %v3299, 0.0
        %v3700 = vmax.f32 %v3300, 0.0
        %v3701 = vmax.f32 %v3301, 0.0
        %v3702 = vmax.f32 %v3302, 0.0
        %v3703 = vmax.f32 %v3303, 0.0
        %v3704 = vmax.f32 %v3304, 0.0
        %v3705 = vmax.f32 %v3305, 0.0
        %v3706 = vmax.f32 %v3306, 0.0
        %v3707 = vmax.f32 %v3307, 0.0
        %v3708 = vmax.f32 %v3308, 0.0
        %v3709 = vmax.f32 %v3309, 0.0
        %v3710 = vmax.f32 %v3310, 0.0
        %v3711 = vmax.f32 %v3311, 0.0
        %v3712 = vmax.f32 %v3312, 0.0
        %v3713 = vmax.f32 %v3313, 0.0
        %v3714 = vmax.f32 %v3314, 0.0
        %v3715 = vmax.f32 %v3315, 0.0
        %v3716 = vmax.f32 %v3316, 0.0
        %v3717 = vmax.f32 %v3317, 0.0
        %v3718 = vmax.f32 %v3318, 0.0
        %v3719 = vmax.f32 %v3319, 0.0
        %v3720 = vmax.f32 %v3320, 0.0
        %v3721 = vmax.f32 %v3321, 0.0
        %v3722 = vmax.f32 %v3322, 0.0
        %v3723 = vmax.f32 %v3323, 0.0
        %v3724 = vmax.f32 %v3324, 0.0
        %v3725 = vmax.f32 %v3325, 0.0
        %v3726 = vmax.f32 %v3326, 0.0
        %v3727 = vmax.f32 %v3327, 0.0
        %v3728 = vmax.f32 %v3328, 0.0
        %v3729 = vmax.f32 %v3329, 0.0
        %v3730 = vmax.f32 %v3330, 0.0
        %v3731 = vmax.f32 %v3331, 0.0
        %v3732 = vmax.f32 %v3332, 0.0
        %v3733 = vmax.f32 %v3333, 0.0
        %v3734 = vmax.f32 %v3334, 0.0
        %v3735 = vmax.f32 %v3335, 0.0
        %v3736 = vmax.f32 %v3336, 0.0
        %v3737 = vmax.f32 %v3337, 0.0
        %v3738 = vmax.f32 %v3338, 0.0
        %v3739 = vmax.f32 %v3339, 0.0
        %v3740 = vmax.f32 %v3340, 0.0
        %v3741 = vmax.f32 %v3341, 0.0
        %v3742 = vmax.f32 %v3342, 0.0
        %v3743 = vmax.f32 %v3343, 0.0
        %v3744 = vmax.f32 %v3344, 0.0
        %v3745 = vmax.f32 %v3345, 0.0
        %v3746 = vmax.f32 %v3346, 0.0
        %v3747 = vmax.f32 %v3347, 0.0
        %v3748 = vmax.f32 %v3348, 0.0
        %v3749 = vmax.f32 %v3349, 0.0
        %v3750 = vmax.f32 %v3350, 0.0
        %v3751 = vmax.f32 %v3351, 0.0
        %v3752 = vmax.f32 %v3352, 0.0
        %v3753 = vmax.f32 %v3353, 0.0
        %v3754 = vmax.f32 %v3354, 0.0
        %v3755 = vmax.f32 %v3355, 0.0
        %v3756 = vmax.f32 %v3356, 0.0
        %v3757 = vmax.f32 %v3357, 0.0
        %v3758 = vmax.f32 %v3358, 0.0
        %v3759 = vmax.f32 %v3359, 0.0
        %v3760 = vmax.f32 %v3360, 0.0
        %v3761 = vmax.f32 %v3361, 0.0
        %v3762 = vmax.f32 %v3362, 0.0
        %v3763 = vmax.f32 %v3363, 0.0
        %v3764 = vmax.f32 %v3364, 0.0
        %v3765 = vmax.f32 %v3365, 0.0
        %v3766 = vmax.f32 %v3366, 0.0
        %v3767 = vmax.f32 %v3367, 0.0
        %v3768 = vmax.f32 %v3368, 0.0
        %v3769 = vmax.f32 %v3369, 0.0
        %v3770 = vmax.f32 %v3370, 0.0
        %v3771 = vmax.f32 %v3371, 0.0
        %v3772 = vmax.f32 %v3372, 0.0
        %v3773 = vmax.f32 %v3373, 0.0
        %v3774 = vmax.f32 %v3374, 0.0
        %v3775 = vmax.f32 %v3375, 0.0
        %v3776 = vmax.f32 %v3376, 0.0
        %v3777 = vmax.f32 %v3377, 0.0
        %v3778 = vmax.f32 %v3378, 0.0
        %v3779 = vmax.f32 %v3379, 0.0
        %v3780 = vmax.f32 %v3380, 0.0
        %v3781 = vmax.f32 %v3381, 0.0
        %v3782 = vmax.f32 %v3382, 0.0
        %v3783 = vmax.f32 %v3383, 0.0
        %v3784 = vmax.f32 %v3384, 0.0
        %v3785 = vmax.f32 %v3385, 0.0
        %v3786 = vpack.c.bf16 %v2108, %v2100
        %v3787 = vpack.c.bf16 %v2109, %v2101
        %v3788 = vpack.c.bf16 %v2110, %v2102
        %v3789 = vpack.c.bf16 %v2111, %v2103
        %v3790 = vpack.c.bf16 %v2112, %v2104
        %v3791 = vpack.c.bf16 %v2113, %v2105
        %v3792 = vpack.c.bf16 %v2114, %v2106
        %v3793 = vpack.c.bf16 %v2115, %v2107
        %v3794 = vpack.c.bf16 %v2124, %v2116
        %v3795 = vpack.c.bf16 %v2125, %v2117
        %v3796 = vpack.c.bf16 %v2126, %v2118
        %v3797 = vpack.c.bf16 %v2127, %v2119
        %v3798 = vpack.c.bf16 %v2128, %v2120
        %v3799 = vpack.c.bf16 %v2129, %v2121
        %v3800 = vpack.c.bf16 %v2130, %v2122
        %v3801 = vpack.c.bf16 %v2131, %v2123
        %v3802 = vpack.c.bf16 %v2140, %v2132
        %v3803 = vpack.c.bf16 %v2141, %v2133
        %v3804 = vpack.c.bf16 %v2142, %v2134
        %v3805 = vpack.c.bf16 %v2143, %v2135
        %v3806 = vpack.c.bf16 %v2144, %v2136
        %v3807 = vpack.c.bf16 %v2145, %v2137
        %v3808 = vpack.c.bf16 %v2146, %v2138
        %v3809 = vpack.c.bf16 %v2147, %v2139
        %v3810 = vpack.c.bf16 %v2156, %v2148
        %v3811 = vpack.c.bf16 %v2157, %v2149
        %v3812 = vpack.c.bf16 %v2158, %v2150
        %v3813 = vpack.c.bf16 %v2159, %v2151
        %v3814 = vpack.c.bf16 %v2160, %v2152
        %v3815 = vpack.c.bf16 %v2161, %v2153
        %v3816 = vpack.c.bf16 %v2162, %v2154
        %v3817 = vpack.c.bf16 %v2163, %v2155
        %v3818 = vpack.c.bf16 %v2172, %v2164
        %v3819 = vpack.c.bf16 %v2173, %v2165
        %v3820 = vpack.c.bf16 %v2174, %v2166
        %v3821 = vpack.c.bf16 %v2175, %v2167
        %v3822 = vpack.c.bf16 %v2176, %v2168
        %v3823 = vpack.c.bf16 %v2177, %v2169
        %v3824 = vpack.c.bf16 %v2178, %v2170
        %v3825 = vpack.c.bf16 %v2179, %v2171
        %v3826 = vpack.c.bf16 %v2188, %v2180
        %v3827 = vpack.c.bf16 %v2189, %v2181
        %v3828 = vpack.c.bf16 %v2190, %v2182
        %v3829 = vpack.c.bf16 %v2191, %v2183
        %v3830 = vpack.c.bf16 %v2192, %v2184
        %v3831 = vpack.c.bf16 %v2193, %v2185
        %v3832 = vpack.c.bf16 %v2194, %v2186
        %v3833 = vpack.c.bf16 %v2195, %v2187
        %v3834 = vpack.c.bf16 %v2204, %v2196
        %v3835 = vpack.c.bf16 %v2205, %v2197
        %v3836 = vpack.c.bf16 %v2206, %v2198
        %v3837 = vpack.c.bf16 %v2207, %v2199
        %v3838 = vpack.c.bf16 %v2208, %v2200
        %v3839 = vpack.c.bf16 %v2209, %v2201
        %v3840 = vpack.c.bf16 %v2210, %v2202
        %v3841 = vpack.c.bf16 %v2211, %v2203
        %v3842 = vpack.c.bf16 %v2220, %v2212
        %v3843 = vpack.c.bf16 %v2221, %v2213
        %v3844 = vpack.c.bf16 %v2222, %v2214
        %v3845 = vpack.c.bf16 %v2223, %v2215
        %v3846 = vpack.c.bf16 %v2224, %v2216
        %v3847 = vpack.c.bf16 %v2225, %v2217
        %v3848 = vpack.c.bf16 %v2226, %v2218
        %v3849 = vpack.c.bf16 %v2227, %v2219
        %v3850 = vpack.c.bf16 %v2236, %v2228
        %v3851 = vpack.c.bf16 %v2237, %v2229
        %v3852 = vpack.c.bf16 %v2238, %v2230
        %v3853 = vpack.c.bf16 %v2239, %v2231
        %v3854 = vpack.c.bf16 %v2240, %v2232
        %v3855 = vpack.c.bf16 %v2241, %v2233
        %v3856 = vpack.c.bf16 %v2242, %v2234
        %v3857 = vpack.c.bf16 %v2243, %v2235
        %v3858 = vpack.c.bf16 %v2252, %v2244
        %v3859 = vpack.c.bf16 %v2253, %v2245
        %v3860 = vpack.c.bf16 %v2254, %v2246
        %v3861 = vpack.c.bf16 %v2255, %v2247
        %v3862 = vpack.c.bf16 %v2256, %v2248
        %v3863 = vpack.c.bf16 %v2257, %v2249
        %v3864 = vpack.c.bf16 %v2258, %v2250
        %v3865 = vpack.c.bf16 %v2259, %v2251
        %v3866 = vpack.c.bf16 %v2268, %v2260
        %v3867 = vpack.c.bf16 %v2269, %v2261
        %v3868 = vpack.c.bf16 %v2270, %v2262
        %v3869 = vpack.c.bf16 %v2271, %v2263
        %v3870 = vpack.c.bf16 %v2272, %v2264
        %v3871 = vpack.c.bf16 %v2273, %v2265
        %v3872 = vpack.c.bf16 %v2274, %v2266
        %v3873 = vpack.c.bf16 %v2275, %v2267
        %v3874 = vpack.c.bf16 %v2284, %v2276
        %v3875 = vpack.c.bf16 %v2285, %v2277
        %v3876 = vpack.c.bf16 %v2286, %v2278
        %v3877 = vpack.c.bf16 %v2287, %v2279
        %v3878 = vpack.c.bf16 %v2288, %v2280
        %v3879 = vpack.c.bf16 %v2289, %v2281
        %v3880 = vpack.c.bf16 %v2290, %v2282
        %v3881 = vpack.c.bf16 %v2291, %v2283
        %v3882 = vpack.c.bf16 %v2300, %v2292
        %v3883 = vpack.c.bf16 %v2301, %v2293
        %v3884 = vpack.c.bf16 %v2302, %v2294
        %v3885 = vpack.c.bf16 %v2303, %v2295
        %v3886 = vpack.c.bf16 %v2304, %v2296
        %v3887 = vpack.c.bf16 %v2305, %v2297
        %v3888 = vpack.c.bf16 %v2306, %v2298
        %v3889 = vpack.c.bf16 %v2307, %v2299
        %v3890 = vpack.c.bf16 %v2316, %v2308
        %v3891 = vpack.c.bf16 %v2317, %v2309
        %v3892 = vpack.c.bf16 %v2318, %v2310
        %v3893 = vpack.c.bf16 %v2319, %v2311
        %v3894 = vpack.c.bf16 %v2320, %v2312
        %v3895 = vpack.c.bf16 %v2321, %v2313
        %v3896 = vpack.c.bf16 %v2322, %v2314
        %v3897 = vpack.c.bf16 %v2323, %v2315
        %v3898 = vpack.c.bf16 %v2332, %v2324
        %v3899 = vpack.c.bf16 %v2333, %v2325
        %v3900 = vpack.c.bf16 %v2334, %v2326
        %v3901 = vpack.c.bf16 %v2335, %v2327
        %v3902 = vpack.c.bf16 %v2336, %v2328
        %v3903 = vpack.c.bf16 %v2337, %v2329
        %v3904 = vpack.c.bf16 %v2338, %v2330
        %v3905 = vpack.c.bf16 %v2339, %v2331
        %v3906 = vpack.c.bf16 %v2348, %v2340
        %v3907 = vpack.c.bf16 %v2349, %v2341
        %v3908 = vpack.c.bf16 %v2350, %v2342
        %v3909 = vpack.c.bf16 %v2351, %v2343
        %v3910 = vpack.c.bf16 %v2352, %v2344
        %v3911 = vpack.c.bf16 %v2353, %v2345
        %v3912 = vpack.c.bf16 %v2354, %v2346
        %v3913 = vpack.c.bf16 %v2355, %v2347
        %v3914 = vpack.c.bf16 %v2364, %v2356
        %v3915 = vpack.c.bf16 %v2365, %v2357
        %v3916 = vpack.c.bf16 %v2366, %v2358
        %v3917 = vpack.c.bf16 %v2367, %v2359
        %v3918 = vpack.c.bf16 %v2368, %v2360
        %v3919 = vpack.c.bf16 %v2369, %v2361
        %v3920 = vpack.c.bf16 %v2370, %v2362
        %v3921 = vpack.c.bf16 %v2371, %v2363
        %v3922 = vpack.c.bf16 %v2380, %v2372
        %v3923 = vpack.c.bf16 %v2381, %v2373
        %v3924 = vpack.c.bf16 %v2382, %v2374
        %v3925 = vpack.c.bf16 %v2383, %v2375
        %v3926 = vpack.c.bf16 %v2384, %v2376
        %v3927 = vpack.c.bf16 %v2385, %v2377
        %v3928 = vpack.c.bf16 %v2386, %v2378
        %v3929 = vpack.c.bf16 %v2387, %v2379
        %v3930 = vpack.c.bf16 %v2396, %v2388
        %v3931 = vpack.c.bf16 %v2397, %v2389
        %v3932 = vpack.c.bf16 %v2398, %v2390
        %v3933 = vpack.c.bf16 %v2399, %v2391
        %v3934 = vpack.c.bf16 %v2400, %v2392
        %v3935 = vpack.c.bf16 %v2401, %v2393
        %v3936 = vpack.c.bf16 %v2402, %v2394
        %v3937 = vpack.c.bf16 %v2403, %v2395
        %v3938 = vpack.c.bf16 %v2412, %v2404
        %v3939 = vpack.c.bf16 %v2413, %v2405
        %v3940 = vpack.c.bf16 %v2414, %v2406
        %v3941 = vpack.c.bf16 %v2415, %v2407
        %v3942 = vpack.c.bf16 %v2416, %v2408
        %v3943 = vpack.c.bf16 %v2417, %v2409
        %v3944 = vpack.c.bf16 %v2418, %v2410
        %v3945 = vpack.c.bf16 %v2419, %v2411
        %v3946 = vpack.c.bf16 %v2428, %v2420
        %v3947 = vpack.c.bf16 %v2429, %v2421
        %v3948 = vpack.c.bf16 %v2430, %v2422
        %v3949 = vpack.c.bf16 %v2431, %v2423
        %v3950 = vpack.c.bf16 %v2432, %v2424
        %v3951 = vpack.c.bf16 %v2433, %v2425
        %v3952 = vpack.c.bf16 %v2434, %v2426
        %v3953 = vpack.c.bf16 %v2435, %v2427
        %v3954 = vpack.c.bf16 %v2444, %v2436
        %v3955 = vpack.c.bf16 %v2445, %v2437
        %v3956 = vpack.c.bf16 %v2446, %v2438
        %v3957 = vpack.c.bf16 %v2447, %v2439
        %v3958 = vpack.c.bf16 %v2448, %v2440
        %v3959 = vpack.c.bf16 %v2449, %v2441
        %v3960 = vpack.c.bf16 %v2450, %v2442
        %v3961 = vpack.c.bf16 %v2451, %v2443
        %v3962 = vpack.c.bf16 %v2460, %v2452
        %v3963 = vpack.c.bf16 %v2461, %v2453
        %v3964 = vpack.c.bf16 %v2462, %v2454
        %v3965 = vpack.c.bf16 %v2463, %v2455
        %v3966 = vpack.c.bf16 %v2464, %v2456
        %v3967 = vpack.c.bf16 %v2465, %v2457
        %v3968 = vpack.c.bf16 %v2466, %v2458
        %v3969 = vpack.c.bf16 %v2467, %v2459
        %v3970 = vpack.c.bf16 %v2476, %v2468
        %v3971 = vpack.c.bf16 %v2477, %v2469
        %v3972 = vpack.c.bf16 %v2478, %v2470
        %v3973 = vpack.c.bf16 %v2479, %v2471
        %v3974 = vpack.c.bf16 %v2480, %v2472
        %v3975 = vpack.c.bf16 %v2481, %v2473
        %v3976 = vpack.c.bf16 %v2482, %v2474
        %v3977 = vpack.c.bf16 %v2483, %v2475
        %v3978 = vpack.c.bf16 %v2492, %v2484
        %v3979 = vpack.c.bf16 %v2493, %v2485
        %v3980 = vpack.c.bf16 %v2494, %v2486
        %v3981 = vpack.c.bf16 %v2495, %v2487
        %v3982 = vpack.c.bf16 %v2496, %v2488
        %v3983 = vpack.c.bf16 %v2497, %v2489
        %v3984 = vpack.c.bf16 %v2498, %v2490
        %v3985 = vpack.c.bf16 %v2499, %v2491
        %v3986 = vld [vmem:[%s3] sm:$0xf]
        %v3987 = vld [vmem:[%s3 + $0x4] sm:$0xf]
        %v3988 = vld [vmem:[%s3 + $0x8] sm:$0xf]
        %v3989 = vld [vmem:[%s3 + $0xc] sm:$0xf]
        %v3990 = vld [vmem:[%s3 + $0x10] sm:$0xf]
        %v3991 = vld [vmem:[%s3 + $0x14] sm:$0xf]
        %v3992 = vld [vmem:[%s3 + $0x18] sm:$0xf]
        %v3993 = vld [vmem:[%s3 + $0x1c] sm:$0xf]
        %v3994 = vld [vmem:[%s3 + $0x20] sm:$0xf]
        %v3995 = vld [vmem:[%s3 + $0x24] sm:$0xf]
        %v3996 = vld [vmem:[%s3 + $0x28] sm:$0xf]
        %v3997 = vld [vmem:[%s3 + $0x2c] sm:$0xf]
        %v3998 = vld [vmem:[%s3 + $0x30] sm:$0xf]
        %v3999 = vld [vmem:[%s3 + $0x34] sm:$0xf]
        %v4000 = vld [vmem:[%s3 + $0x38] sm:$0xf]
        %v4001 = vld [vmem:[%s3 + $0x3c] sm:$0xf]
        %v4002 = vld [vmem:[%s3 + $0x40] sm:$0xf]
        %v4003 = vld [vmem:[%s3 + $0x44] sm:$0xf]
        %v4004 = vld [vmem:[%s3 + $0x48] sm:$0xf]
        %v4005 = vld [vmem:[%s3 + $0x4c] sm:$0xf]
        %v4006 = vld [vmem:[%s3 + $0x50] sm:$0xf]
        %v4007 = vld [vmem:[%s3 + $0x54] sm:$0xf]
        %v4008 = vld [vmem:[%s3 + $0x58] sm:$0xf]
        %v4009 = vld [vmem:[%s3 + $0x5c] sm:$0xf]
        %v4010 = vld [vmem:[%s3 + $0x60] sm:$0xf]
        %v4011 = vld [vmem:[%s3 + $0x64] sm:$0xf]
        %v4012 = vld [vmem:[%s3 + $0x68] sm:$0xf]
        %v4013 = vld [vmem:[%s3 + $0x6c] sm:$0xf]
        %v4014 = vld [vmem:[%s3 + $0x70] sm:$0xf]
        %v4015 = vld [vmem:[%s3 + $0x74] sm:$0xf]
        %v4016 = vld [vmem:[%s3 + $0x78] sm:$0xf]
        %v4017 = vld [vmem:[%s3 + $0x7c] sm:$0xf]
        %v4018 = vld [vmem:[%s3 + $0x80] sm:$0xf]
        %v4019 = vld [vmem:[%s3 + $0x84] sm:$0xf]
        %v4020 = vld [vmem:[%s3 + $0x88] sm:$0xf]
        %v4021 = vld [vmem:[%s3 + $0x8c] sm:$0xf]
        %v4022 = vld [vmem:[%s3 + $0x90] sm:$0xf]
        %v4023 = vld [vmem:[%s3 + $0x94] sm:$0xf]
        %v4024 = vld [vmem:[%s3 + $0x98] sm:$0xf]
        %v4025 = vld [vmem:[%s3 + $0x9c] sm:$0xf]
        %v4026 = vld [vmem:[%s3 + $0xa0] sm:$0xf]
        %v4027 = vld [vmem:[%s3 + $0xa4] sm:$0xf]
        %v4028 = vld [vmem:[%s3 + $0xa8] sm:$0xf]
        %v4029 = vld [vmem:[%s3 + $0xac] sm:$0xf]
        %v4030 = vld [vmem:[%s3 + $0xb0] sm:$0xf]
        %v4031 = vld [vmem:[%s3 + $0xb4] sm:$0xf]
        %v4032 = vld [vmem:[%s3 + $0xb8] sm:$0xf]
        %v4033 = vld [vmem:[%s3 + $0xbc] sm:$0xf]
        %v4034 = vld [vmem:[%s3 + $0xc0] sm:$0xf]
        %v4035 = vld [vmem:[%s3 + $0xc4] sm:$0xf]
        %v4036 = vld [vmem:[%s3 + $0xc8] sm:$0xf]
        %v4037 = vld [vmem:[%s3 + $0xcc] sm:$0xf]
        %v4038 = vld [vmem:[%s3 + $0xd0] sm:$0xf]
        %v4039 = vld [vmem:[%s3 + $0xd4] sm:$0xf]
        %v4040 = vld [vmem:[%s3 + $0xd8] sm:$0xf]
        %v4041 = vld [vmem:[%s3 + $0xdc] sm:$0xf]
        %v4042 = vld [vmem:[%s3 + $0xe0] sm:$0xf]
        %v4043 = vld [vmem:[%s3 + $0xe4] sm:$0xf]
        %v4044 = vld [vmem:[%s3 + $0xe8] sm:$0xf]
        %v4045 = vld [vmem:[%s3 + $0xec] sm:$0xf]
        %v4046 = vld [vmem:[%s3 + $0xf0] sm:$0xf]
        %v4047 = vld [vmem:[%s3 + $0xf4] sm:$0xf]
        %v4048 = vld [vmem:[%s3 + $0xf8] sm:$0xf]
        %v4049 = vld [vmem:[%s3 + $0xfc] sm:$0xf]
        %v4050 = vld [vmem:[%s3 + $0x100] sm:$0xf]
        %v4051 = vld [vmem:[%s3 + $0x104] sm:$0xf]
        %v4052 = vld [vmem:[%s3 + $0x108] sm:$0xf]
        %v4053 = vld [vmem:[%s3 + $0x10c] sm:$0xf]
        %v4054 = vld [vmem:[%s3 + $0x110] sm:$0xf]
        %v4055 = vld [vmem:[%s3 + $0x114] sm:$0xf]
        %v4056 = vld [vmem:[%s3 + $0x118] sm:$0xf]
        %v4057 = vld [vmem:[%s3 + $0x11c] sm:$0xf]
        %v4058 = vld [vmem:[%s3 + $0x120] sm:$0xf]
        %v4059 = vld [vmem:[%s3 + $0x124] sm:$0xf]
        %v4060 = vld [vmem:[%s3 + $0x128] sm:$0xf]
        %v4061 = vld [vmem:[%s3 + $0x12c] sm:$0xf]
        %v4062 = vld [vmem:[%s3 + $0x130] sm:$0xf]
        %v4063 = vld [vmem:[%s3 + $0x134] sm:$0xf]
        %v4064 = vld [vmem:[%s3 + $0x138] sm:$0xf]
        %v4065 = vld [vmem:[%s3 + $0x13c] sm:$0xf]
        %v4066 = vld [vmem:[%s3 + $0x140] sm:$0xf]
        %v4067 = vld [vmem:[%s3 + $0x144] sm:$0xf]
        %v4068 = vld [vmem:[%s3 + $0x148] sm:$0xf]
        %v4069 = vld [vmem:[%s3 + $0x14c] sm:$0xf]
        %v4070 = vld [vmem:[%s3 + $0x150] sm:$0xf]
        %v4071 = vld [vmem:[%s3 + $0x154] sm:$0xf]
        %v4072 = vld [vmem:[%s3 + $0x158] sm:$0xf]
        %v4073 = vld [vmem:[%s3 + $0x15c] sm:$0xf]
        %v4074 = vld [vmem:[%s3 + $0x160] sm:$0xf]
        %v4075 = vld [vmem:[%s3 + $0x164] sm:$0xf]
        %v4076 = vld [vmem:[%s3 + $0x168] sm:$0xf]
        %v4077 = vld [vmem:[%s3 + $0x16c] sm:$0xf]
        %v4078 = vld [vmem:[%s3 + $0x170] sm:$0xf]
        %v4079 = vld [vmem:[%s3 + $0x174] sm:$0xf]
        %v4080 = vld [vmem:[%s3 + $0x178] sm:$0xf]
        %v4081 = vld [vmem:[%s3 + $0x17c] sm:$0xf]
        %v4082 = vld [vmem:[%s3 + $0x180] sm:$0xf]
        %v4083 = vld [vmem:[%s3 + $0x184] sm:$0xf]
        %v4084 = vld [vmem:[%s3 + $0x188] sm:$0xf]
        %v4085 = vld [vmem:[%s3 + $0x18c] sm:$0xf]
        %v4086 = vld [vmem:[%s3 + $0x190] sm:$0xf]
        %v4087 = vld [vmem:[%s3 + $0x194] sm:$0xf]
        %v4088 = vld [vmem:[%s3 + $0x198] sm:$0xf]
        %v4089 = vld [vmem:[%s3 + $0x19c] sm:$0xf]
        %v4090 = vld [vmem:[%s3 + $0x1a0] sm:$0xf]
        %v4091 = vld [vmem:[%s3 + $0x1a4] sm:$0xf]
        %v4092 = vld [vmem:[%s3 + $0x1a8] sm:$0xf]
        %v4093 = vld [vmem:[%s3 + $0x1ac] sm:$0xf]
        %v4094 = vld [vmem:[%s3 + $0x1b0] sm:$0xf]
        %v4095 = vld [vmem:[%s3 + $0x1b4] sm:$0xf]
        %v4096 = vld [vmem:[%s3 + $0x1b8] sm:$0xf]
        %v4097 = vld [vmem:[%s3 + $0x1bc] sm:$0xf]
        %v4098 = vld [vmem:[%s3 + $0x1c0] sm:$0xf]
        %v4099 = vld [vmem:[%s3 + $0x1c4] sm:$0xf]
        %v4100 = vld [vmem:[%s3 + $0x1c8] sm:$0xf]
        %v4101 = vld [vmem:[%s3 + $0x1cc] sm:$0xf]
        %v4102 = vld [vmem:[%s3 + $0x1d0] sm:$0xf]
        %v4103 = vld [vmem:[%s3 + $0x1d4] sm:$0xf]
        %v4104 = vld [vmem:[%s3 + $0x1d8] sm:$0xf]
        %v4105 = vld [vmem:[%s3 + $0x1dc] sm:$0xf]
        %v4106 = vld [vmem:[%s3 + $0x1e0] sm:$0xf]
        %v4107 = vld [vmem:[%s3 + $0x1e4] sm:$0xf]
        %v4108 = vld [vmem:[%s3 + $0x1e8] sm:$0xf]
        %v4109 = vld [vmem:[%s3 + $0x1ec] sm:$0xf]
        %v4110 = vld [vmem:[%s3 + $0x1f0] sm:$0xf]
        %v4111 = vld [vmem:[%s3 + $0x1f4] sm:$0xf]
        %v4112 = vld [vmem:[%s3 + $0x1f8] sm:$0xf]
        %v4113 = vld [vmem:[%s3 + $0x1fc] sm:$0xf]
        %v4114 = vpack.c.bf16 %v3394, %v3386
        %v4115 = vpack.c.bf16 %v3395, %v3387
        %v4116 = vpack.c.bf16 %v3396, %v3388
        %v4117 = vpack.c.bf16 %v3397, %v3389
        %v4118 = vpack.c.bf16 %v3398, %v3390
        %v4119 = vpack.c.bf16 %v3399, %v3391
        %v4120 = vpack.c.bf16 %v3400, %v3392
        %v4121 = vpack.c.bf16 %v3401, %v3393
        %v4122 = vpack.c.bf16 %v3410, %v3402
        %v4123 = vpack.c.bf16 %v3411, %v3403
        %v4124 = vpack.c.bf16 %v3412, %v3404
        %v4125 = vpack.c.bf16 %v3413, %v3405
        %v4126 = vpack.c.bf16 %v3414, %v3406
        %v4127 = vpack.c.bf16 %v3415, %v3407
        %v4128 = vpack.c.bf16 %v3416, %v3408
        %v4129 = vpack.c.bf16 %v3417, %v3409
        %v4130 = vpack.c.bf16 %v3426, %v3418
        %v4131 = vpack.c.bf16 %v3427, %v3419
        %v4132 = vpack.c.bf16 %v3428, %v3420
        %v4133 = vpack.c.bf16 %v3429, %v3421
        %v4134 = vpack.c.bf16 %v3430, %v3422
        %v4135 = vpack.c.bf16 %v3431, %v3423
        %v4136 = vpack.c.bf16 %v3432, %v3424
        %v4137 = vpack.c.bf16 %v3433, %v3425
        %v4138 = vpack.c.bf16 %v3442, %v3434
        %v4139 = vpack.c.bf16 %v3443, %v3435
        %v4140 = vpack.c.bf16 %v3444, %v3436
        %v4141 = vpack.c.bf16 %v3445, %v3437
        %v4142 = vpack.c.bf16 %v3446, %v3438
        %v4143 = vpack.c.bf16 %v3447, %v3439
        %v4144 = vpack.c.bf16 %v3448, %v3440
        %v4145 = vpack.c.bf16 %v3449, %v3441
        %v4146 = vpack.c.bf16 %v3458, %v3450
        %v4147 = vpack.c.bf16 %v3459, %v3451
        %v4148 = vpack.c.bf16 %v3460, %v3452
        %v4149 = vpack.c.bf16 %v3461, %v3453
        %v4150 = vpack.c.bf16 %v3462, %v3454
        %v4151 = vpack.c.bf16 %v3463, %v3455
        %v4152 = vpack.c.bf16 %v3464, %v3456
        %v4153 = vpack.c.bf16 %v3465, %v3457
        %v4154 = vpack.c.bf16 %v3474, %v3466
        %v4155 = vpack.c.bf16 %v3475, %v3467
        %v4156 = vpack.c.bf16 %v3476, %v3468
        %v4157 = vpack.c.bf16 %v3477, %v3469
        %v4158 = vpack.c.bf16 %v3478, %v3470
        %v4159 = vpack.c.bf16 %v3479, %v3471
        %v4160 = vpack.c.bf16 %v3480, %v3472
        %v4161 = vpack.c.bf16 %v3481, %v3473
        %v4162 = vpack.c.bf16 %v3490, %v3482
        %v4163 = vpack.c.bf16 %v3491, %v3483
        %v4164 = vpack.c.bf16 %v3492, %v3484
        %v4165 = vpack.c.bf16 %v3493, %v3485
        %v4166 = vpack.c.bf16 %v3494, %v3486
        %v4167 = vpack.c.bf16 %v3495, %v3487
        %v4168 = vpack.c.bf16 %v3496, %v3488
        %v4169 = vpack.c.bf16 %v3497, %v3489
        %v4170 = vpack.c.bf16 %v3506, %v3498
        %v4171 = vpack.c.bf16 %v3507, %v3499
        %v4172 = vpack.c.bf16 %v3508, %v3500
        %v4173 = vpack.c.bf16 %v3509, %v3501
        %v4174 = vpack.c.bf16 %v3510, %v3502
        %v4175 = vpack.c.bf16 %v3511, %v3503
        %v4176 = vpack.c.bf16 %v3512, %v3504
        %v4177 = vpack.c.bf16 %v3513, %v3505
        %v4178 = vpack.c.bf16 %v3522, %v3514
        %v4179 = vpack.c.bf16 %v3523, %v3515
        %v4180 = vpack.c.bf16 %v3524, %v3516
        %v4181 = vpack.c.bf16 %v3525, %v3517
        %v4182 = vpack.c.bf16 %v3526, %v3518
        %v4183 = vpack.c.bf16 %v3527, %v3519
        %v4184 = vpack.c.bf16 %v3528, %v3520
        %v4185 = vpack.c.bf16 %v3529, %v3521
        %v4186 = vpack.c.bf16 %v3538, %v3530
        %v4187 = vpack.c.bf16 %v3539, %v3531
        %v4188 = vpack.c.bf16 %v3540, %v3532
        %v4189 = vpack.c.bf16 %v3541, %v3533
        %v4190 = vpack.c.bf16 %v3542, %v3534
        %v4191 = vpack.c.bf16 %v3543, %v3535
        %v4192 = vpack.c.bf16 %v3544, %v3536
        %v4193 = vpack.c.bf16 %v3545, %v3537
        %v4194 = vpack.c.bf16 %v3554, %v3546
        %v4195 = vpack.c.bf16 %v3555, %v3547
        %v4196 = vpack.c.bf16 %v3556, %v3548
        %v4197 = vpack.c.bf16 %v3557, %v3549
        %v4198 = vpack.c.bf16 %v3558, %v3550
        %v4199 = vpack.c.bf16 %v3559, %v3551
        %v4200 = vpack.c.bf16 %v3560, %v3552
        %v4201 = vpack.c.bf16 %v3561, %v3553
        %v4202 = vpack.c.bf16 %v3570, %v3562
        %v4203 = vpack.c.bf16 %v3571, %v3563
        %v4204 = vpack.c.bf16 %v3572, %v3564
        %v4205 = vpack.c.bf16 %v3573, %v3565
        %v4206 = vpack.c.bf16 %v3574, %v3566
        %v4207 = vpack.c.bf16 %v3575, %v3567
        %v4208 = vpack.c.bf16 %v3576, %v3568
        %v4209 = vpack.c.bf16 %v3577, %v3569
        %v4210 = vpack.c.bf16 %v3586, %v3578
        %v4211 = vpack.c.bf16 %v3587, %v3579
        %v4212 = vpack.c.bf16 %v3588, %v3580
        %v4213 = vpack.c.bf16 %v3589, %v3581
        %v4214 = vpack.c.bf16 %v3590, %v3582
        %v4215 = vpack.c.bf16 %v3591, %v3583
        %v4216 = vpack.c.bf16 %v3592, %v3584
        %v4217 = vpack.c.bf16 %v3593, %v3585
        %v4218 = vpack.c.bf16 %v3602, %v3594
        %v4219 = vpack.c.bf16 %v3603, %v3595
        %v4220 = vpack.c.bf16 %v3604, %v3596
        %v4221 = vpack.c.bf16 %v3605, %v3597
        %v4222 = vpack.c.bf16 %v3606, %v3598
        %v4223 = vpack.c.bf16 %v3607, %v3599
        %v4224 = vpack.c.bf16 %v3608, %v3600
        %v4225 = vpack.c.bf16 %v3609, %v3601
        %v4226 = vpack.c.bf16 %v3618, %v3610
        %v4227 = vpack.c.bf16 %v3619, %v3611
        %v4228 = vpack.c.bf16 %v3620, %v3612
        %v4229 = vpack.c.bf16 %v3621, %v3613
        %v4230 = vpack.c.bf16 %v3622, %v3614
        %v4231 = vpack.c.bf16 %v3623, %v3615
        %v4232 = vpack.c.bf16 %v3624, %v3616
        %v4233 = vpack.c.bf16 %v3625, %v3617
        %v4234 = vpack.c.bf16 %v3634, %v3626
        %v4235 = vpack.c.bf16 %v3635, %v3627
        %v4236 = vpack.c.bf16 %v3636, %v3628
        %v4237 = vpack.c.bf16 %v3637, %v3629
        %v4238 = vpack.c.bf16 %v3638, %v3630
        %v4239 = vpack.c.bf16 %v3639, %v3631
        %v4240 = vpack.c.bf16 %v3640, %v3632
        %v4241 = vpack.c.bf16 %v3641, %v3633
        %v4242 = vpack.c.bf16 %v3650, %v3642
        %v4243 = vpack.c.bf16 %v3651, %v3643
        %v4244 = vpack.c.bf16 %v3652, %v3644
        %v4245 = vpack.c.bf16 %v3653, %v3645
        %v4246 = vpack.c.bf16 %v3654, %v3646
        %v4247 = vpack.c.bf16 %v3655, %v3647
        %v4248 = vpack.c.bf16 %v3656, %v3648
        %v4249 = vpack.c.bf16 %v3657, %v3649
        %v4250 = vpack.c.bf16 %v3666, %v3658
        %v4251 = vpack.c.bf16 %v3667, %v3659
        %v4252 = vpack.c.bf16 %v3668, %v3660
        %v4253 = vpack.c.bf16 %v3669, %v3661
        %v4254 = vpack.c.bf16 %v3670, %v3662
        %v4255 = vpack.c.bf16 %v3671, %v3663
        %v4256 = vpack.c.bf16 %v3672, %v3664
        %v4257 = vpack.c.bf16 %v3673, %v3665
        %v4258 = vpack.c.bf16 %v3682, %v3674
        %v4259 = vpack.c.bf16 %v3683, %v3675
        %v4260 = vpack.c.bf16 %v3684, %v3676
        %v4261 = vpack.c.bf16 %v3685, %v3677
        %v4262 = vpack.c.bf16 %v3686, %v3678
        %v4263 = vpack.c.bf16 %v3687, %v3679
        %v4264 = vpack.c.bf16 %v3688, %v3680
        %v4265 = vpack.c.bf16 %v3689, %v3681
        %v4266 = vpack.c.bf16 %v3698, %v3690
        %v4267 = vpack.c.bf16 %v3699, %v3691
        %v4268 = vpack.c.bf16 %v3700, %v3692
        %v4269 = vpack.c.bf16 %v3701, %v3693
        %v4270 = vpack.c.bf16 %v3702, %v3694
        %v4271 = vpack.c.bf16 %v3703, %v3695
        %v4272 = vpack.c.bf16 %v3704, %v3696
        %v4273 = vpack.c.bf16 %v3705, %v3697
        %v4274 = vpack.c.bf16 %v3714, %v3706
        %v4275 = vpack.c.bf16 %v3715, %v3707
        %v4276 = vpack.c.bf16 %v3716, %v3708
        %v4277 = vpack.c.bf16 %v3717, %v3709
        %v4278 = vpack.c.bf16 %v3718, %v3710
        %v4279 = vpack.c.bf16 %v3719, %v3711
        %v4280 = vpack.c.bf16 %v3720, %v3712
        %v4281 = vpack.c.bf16 %v3721, %v3713
        %v4282 = vpack.c.bf16 %v3730, %v3722
        %v4283 = vpack.c.bf16 %v3731, %v3723
        %v4284 = vpack.c.bf16 %v3732, %v3724
        %v4285 = vpack.c.bf16 %v3733, %v3725
        %v4286 = vpack.c.bf16 %v3734, %v3726
        %v4287 = vpack.c.bf16 %v3735, %v3727
        %v4288 = vpack.c.bf16 %v3736, %v3728
        %v4289 = vpack.c.bf16 %v3737, %v3729
        %v4290 = vpack.c.bf16 %v3746, %v3738
        %v4291 = vpack.c.bf16 %v3747, %v3739
        %v4292 = vpack.c.bf16 %v3748, %v3740
        %v4293 = vpack.c.bf16 %v3749, %v3741
        %v4294 = vpack.c.bf16 %v3750, %v3742
        %v4295 = vpack.c.bf16 %v3751, %v3743
        %v4296 = vpack.c.bf16 %v3752, %v3744
        %v4297 = vpack.c.bf16 %v3753, %v3745
        %v4298 = vpack.c.bf16 %v3762, %v3754
        %v4299 = vpack.c.bf16 %v3763, %v3755
        %v4300 = vpack.c.bf16 %v3764, %v3756
        %v4301 = vpack.c.bf16 %v3765, %v3757
        %v4302 = vpack.c.bf16 %v3766, %v3758
        %v4303 = vpack.c.bf16 %v3767, %v3759
        %v4304 = vpack.c.bf16 %v3768, %v3760
        %v4305 = vpack.c.bf16 %v3769, %v3761
        %v4306 = vpack.c.bf16 %v3778, %v3770
        %v4307 = vpack.c.bf16 %v3779, %v3771
        %v4308 = vpack.c.bf16 %v3780, %v3772
        %v4309 = vpack.c.bf16 %v3781, %v3773
        %v4310 = vpack.c.bf16 %v3782, %v3774
        %v4311 = vpack.c.bf16 %v3783, %v3775
        %v4312 = vpack.c.bf16 %v3784, %v3776
        %v4313 = vpack.c.bf16 %v3785, %v3777
        %v4314 = vld [vmem:[%s4] sm:$0xf]
        %v4315 = vld [vmem:[%s4 + $0x4] sm:$0xf]
        %v4316 = vld [vmem:[%s4 + $0x8] sm:$0xf]
        %v4317 = vld [vmem:[%s4 + $0xc] sm:$0xf]
        %v4318 = vld [vmem:[%s4 + $0x10] sm:$0xf]
        %v4319 = vld [vmem:[%s4 + $0x14] sm:$0xf]
        %v4320 = vld [vmem:[%s4 + $0x18] sm:$0xf]
        %v4321 = vld [vmem:[%s4 + $0x1c] sm:$0xf]
        %v4322 = vld [vmem:[%s4 + $0x20] sm:$0xf]
        %v4323 = vld [vmem:[%s4 + $0x24] sm:$0xf]
        %v4324 = vld [vmem:[%s4 + $0x28] sm:$0xf]
        %v4325 = vld [vmem:[%s4 + $0x2c] sm:$0xf]
        %v4326 = vld [vmem:[%s4 + $0x30] sm:$0xf]
        %v4327 = vld [vmem:[%s4 + $0x34] sm:$0xf]
        %v4328 = vld [vmem:[%s4 + $0x38] sm:$0xf]
        %v4329 = vld [vmem:[%s4 + $0x3c] sm:$0xf]
        %v4330 = vld [vmem:[%s4 + $0x40] sm:$0xf]
        %v4331 = vld [vmem:[%s4 + $0x44] sm:$0xf]
        %v4332 = vld [vmem:[%s4 + $0x48] sm:$0xf]
        %v4333 = vld [vmem:[%s4 + $0x4c] sm:$0xf]
        %v4334 = vld [vmem:[%s4 + $0x50] sm:$0xf]
        %v4335 = vld [vmem:[%s4 + $0x54] sm:$0xf]
        %v4336 = vld [vmem:[%s4 + $0x58] sm:$0xf]
        %v4337 = vld [vmem:[%s4 + $0x5c] sm:$0xf]
        %v4338 = vld [vmem:[%s4 + $0x60] sm:$0xf]
        %v4339 = vld [vmem:[%s4 + $0x64] sm:$0xf]
        %v4340 = vld [vmem:[%s4 + $0x68] sm:$0xf]
        %v4341 = vld [vmem:[%s4 + $0x6c] sm:$0xf]
        %v4342 = vld [vmem:[%s4 + $0x70] sm:$0xf]
        %v4343 = vld [vmem:[%s4 + $0x74] sm:$0xf]
        %v4344 = vld [vmem:[%s4 + $0x78] sm:$0xf]
        %v4345 = vld [vmem:[%s4 + $0x7c] sm:$0xf]
        %v4346 = vld [vmem:[%s4 + $0x80] sm:$0xf]
        %v4347 = vld [vmem:[%s4 + $0x84] sm:$0xf]
        %v4348 = vld [vmem:[%s4 + $0x88] sm:$0xf]
        %v4349 = vld [vmem:[%s4 + $0x8c] sm:$0xf]
        %v4350 = vld [vmem:[%s4 + $0x90] sm:$0xf]
        %v4351 = vld [vmem:[%s4 + $0x94] sm:$0xf]
        %v4352 = vld [vmem:[%s4 + $0x98] sm:$0xf]
        %v4353 = vld [vmem:[%s4 + $0x9c] sm:$0xf]
        %v4354 = vld [vmem:[%s4 + $0xa0] sm:$0xf]
        %v4355 = vld [vmem:[%s4 + $0xa4] sm:$0xf]
        %v4356 = vld [vmem:[%s4 + $0xa8] sm:$0xf]
        %v4357 = vld [vmem:[%s4 + $0xac] sm:$0xf]
        %v4358 = vld [vmem:[%s4 + $0xb0] sm:$0xf]
        %v4359 = vld [vmem:[%s4 + $0xb4] sm:$0xf]
        %v4360 = vld [vmem:[%s4 + $0xb8] sm:$0xf]
        %v4361 = vld [vmem:[%s4 + $0xbc] sm:$0xf]
        %v4362 = vld [vmem:[%s4 + $0xc0] sm:$0xf]
        %v4363 = vld [vmem:[%s4 + $0xc4] sm:$0xf]
        %v4364 = vld [vmem:[%s4 + $0xc8] sm:$0xf]
        %v4365 = vld [vmem:[%s4 + $0xcc] sm:$0xf]
        %v4366 = vld [vmem:[%s4 + $0xd0] sm:$0xf]
        %v4367 = vld [vmem:[%s4 + $0xd4] sm:$0xf]
        %v4368 = vld [vmem:[%s4 + $0xd8] sm:$0xf]
        %v4369 = vld [vmem:[%s4 + $0xdc] sm:$0xf]
        %v4370 = vld [vmem:[%s4 + $0xe0] sm:$0xf]
        %v4371 = vld [vmem:[%s4 + $0xe4] sm:$0xf]
        %v4372 = vld [vmem:[%s4 + $0xe8] sm:$0xf]
        %v4373 = vld [vmem:[%s4 + $0xec] sm:$0xf]
        %v4374 = vld [vmem:[%s4 + $0xf0] sm:$0xf]
        %v4375 = vld [vmem:[%s4 + $0xf4] sm:$0xf]
        %v4376 = vld [vmem:[%s4 + $0xf8] sm:$0xf]
        %v4377 = vld [vmem:[%s4 + $0xfc] sm:$0xf]
        %v4378 = vld [vmem:[%s4 + $0x100] sm:$0xf]
        %v4379 = vld [vmem:[%s4 + $0x104] sm:$0xf]
        %v4380 = vld [vmem:[%s4 + $0x108] sm:$0xf]
        %v4381 = vld [vmem:[%s4 + $0x10c] sm:$0xf]
        %v4382 = vld [vmem:[%s4 + $0x110] sm:$0xf]
        %v4383 = vld [vmem:[%s4 + $0x114] sm:$0xf]
        %v4384 = vld [vmem:[%s4 + $0x118] sm:$0xf]
        %v4385 = vld [vmem:[%s4 + $0x11c] sm:$0xf]
        %v4386 = vld [vmem:[%s4 + $0x120] sm:$0xf]
        %v4387 = vld [vmem:[%s4 + $0x124] sm:$0xf]
        %v4388 = vld [vmem:[%s4 + $0x128] sm:$0xf]
        %v4389 = vld [vmem:[%s4 + $0x12c] sm:$0xf]
        %v4390 = vld [vmem:[%s4 + $0x130] sm:$0xf]
        %v4391 = vld [vmem:[%s4 + $0x134] sm:$0xf]
        %v4392 = vld [vmem:[%s4 + $0x138] sm:$0xf]
        %v4393 = vld [vmem:[%s4 + $0x13c] sm:$0xf]
        %v4394 = vld [vmem:[%s4 + $0x140] sm:$0xf]
        %v4395 = vld [vmem:[%s4 + $0x144] sm:$0xf]
        %v4396 = vld [vmem:[%s4 + $0x148] sm:$0xf]
        %v4397 = vld [vmem:[%s4 + $0x14c] sm:$0xf]
        %v4398 = vld [vmem:[%s4 + $0x150] sm:$0xf]
        %v4399 = vld [vmem:[%s4 + $0x154] sm:$0xf]
        %v4400 = vld [vmem:[%s4 + $0x158] sm:$0xf]
        %v4401 = vld [vmem:[%s4 + $0x15c] sm:$0xf]
        %v4402 = vld [vmem:[%s4 + $0x160] sm:$0xf]
        %v4403 = vld [vmem:[%s4 + $0x164] sm:$0xf]
        %v4404 = vld [vmem:[%s4 + $0x168] sm:$0xf]
        %v4405 = vld [vmem:[%s4 + $0x16c] sm:$0xf]
        %v4406 = vld [vmem:[%s4 + $0x170] sm:$0xf]
        %v4407 = vld [vmem:[%s4 + $0x174] sm:$0xf]
        %v4408 = vld [vmem:[%s4 + $0x178] sm:$0xf]
        %v4409 = vld [vmem:[%s4 + $0x17c] sm:$0xf]
        %v4410 = vld [vmem:[%s4 + $0x180] sm:$0xf]
        %v4411 = vld [vmem:[%s4 + $0x184] sm:$0xf]
        %v4412 = vld [vmem:[%s4 + $0x188] sm:$0xf]
        %v4413 = vld [vmem:[%s4 + $0x18c] sm:$0xf]
        %v4414 = vld [vmem:[%s4 + $0x190] sm:$0xf]
        %v4415 = vld [vmem:[%s4 + $0x194] sm:$0xf]
        %v4416 = vld [vmem:[%s4 + $0x198] sm:$0xf]
        %v4417 = vld [vmem:[%s4 + $0x19c] sm:$0xf]
        %v4418 = vld [vmem:[%s4 + $0x1a0] sm:$0xf]
        %v4419 = vld [vmem:[%s4 + $0x1a4] sm:$0xf]
        %v4420 = vld [vmem:[%s4 + $0x1a8] sm:$0xf]
        %v4421 = vld [vmem:[%s4 + $0x1ac] sm:$0xf]
        %v4422 = vld [vmem:[%s4 + $0x1b0] sm:$0xf]
        %v4423 = vld [vmem:[%s4 + $0x1b4] sm:$0xf]
        %v4424 = vld [vmem:[%s4 + $0x1b8] sm:$0xf]
        %v4425 = vld [vmem:[%s4 + $0x1bc] sm:$0xf]
        %v4426 = vld [vmem:[%s4 + $0x1c0] sm:$0xf]
        %v4427 = vld [vmem:[%s4 + $0x1c4] sm:$0xf]
        %v4428 = vld [vmem:[%s4 + $0x1c8] sm:$0xf]
        %v4429 = vld [vmem:[%s4 + $0x1cc] sm:$0xf]
        %v4430 = vld [vmem:[%s4 + $0x1d0] sm:$0xf]
        %v4431 = vld [vmem:[%s4 + $0x1d4] sm:$0xf]
        %v4432 = vld [vmem:[%s4 + $0x1d8] sm:$0xf]
        %v4433 = vld [vmem:[%s4 + $0x1dc] sm:$0xf]
        %v4434 = vld [vmem:[%s4 + $0x1e0] sm:$0xf]
        %v4435 = vld [vmem:[%s4 + $0x1e4] sm:$0xf]
        %v4436 = vld [vmem:[%s4 + $0x1e8] sm:$0xf]
        %v4437 = vld [vmem:[%s4 + $0x1ec] sm:$0xf]
        %v4438 = vld [vmem:[%s4 + $0x1f0] sm:$0xf]
        %v4439 = vld [vmem:[%s4 + $0x1f4] sm:$0xf]
        %v4440 = vld [vmem:[%s4 + $0x1f8] sm:$0xf]
        %v4441 = vld [vmem:[%s4 + $0x1fc] sm:$0xf]
        %v4570 = vunpack.c.l.b16 %v4314
        %v4571 = vunpack.c.l.b16 %v4315
        %v4572 = vunpack.c.l.b16 %v4316
        %v4573 = vunpack.c.l.b16 %v4317
        %v4574 = vunpack.c.l.b16 %v4318
        %v4575 = vunpack.c.l.b16 %v4319
        %v4576 = vunpack.c.l.b16 %v4320
        %v4577 = vunpack.c.l.b16 %v4321
        %v4578 = vunpack.c.l.b16 %v4322
        %v4579 = vunpack.c.l.b16 %v4323
        %v4580 = vunpack.c.l.b16 %v4324
        %v4581 = vunpack.c.l.b16 %v4325
        %v4582 = vunpack.c.l.b16 %v4326
        %v4583 = vunpack.c.l.b16 %v4327
        %v4584 = vunpack.c.l.b16 %v4328
        %v4585 = vunpack.c.l.b16 %v4329
        %v4586 = vunpack.c.l.b16 %v4330
        %v4587 = vunpack.c.l.b16 %v4331
        %v4588 = vunpack.c.l.b16 %v4332
        %v4589 = vunpack.c.l.b16 %v4333
        %v4590 = vunpack.c.l.b16 %v4334
        %v4591 = vunpack.c.l.b16 %v4335
        %v4592 = vunpack.c.l.b16 %v4336
        %v4593 = vunpack.c.l.b16 %v4337
        %v4594 = vunpack.c.l.b16 %v4338
        %v4595 = vunpack.c.l.b16 %v4339
        %v4596 = vunpack.c.l.b16 %v4340
        %v4597 = vunpack.c.l.b16 %v4341
        %v4598 = vunpack.c.l.b16 %v4342
        %v4599 = vunpack.c.l.b16 %v4343
        %v4600 = vunpack.c.l.b16 %v4344
        %v4601 = vunpack.c.l.b16 %v4345
        %v4602 = vunpack.c.l.b16 %v4346
        %v4603 = vunpack.c.l.b16 %v4347
        %v4604 = vunpack.c.l.b16 %v4348
        %v4605 = vunpack.c.l.b16 %v4349
        %v4606 = vunpack.c.l.b16 %v4350
        %v4607 = vunpack.c.l.b16 %v4351
        %v4608 = vunpack.c.l.b16 %v4352
        %v4609 = vunpack.c.l.b16 %v4353
        %v4610 = vunpack.c.l.b16 %v4354
        %v4611 = vunpack.c.l.b16 %v4355
        %v4612 = vunpack.c.l.b16 %v4356
        %v4613 = vunpack.c.l.b16 %v4357
        %v4614 = vunpack.c.l.b16 %v4358
        %v4615 = vunpack.c.l.b16 %v4359
        %v4616 = vunpack.c.l.b16 %v4360
        %v4617 = vunpack.c.l.b16 %v4361
        %v4618 = vunpack.c.l.b16 %v4362
        %v4619 = vunpack.c.l.b16 %v4363
        %v4620 = vunpack.c.l.b16 %v4364
        %v4621 = vunpack.c.l.b16 %v4365
        %v4622 = vunpack.c.l.b16 %v4366
        %v4623 = vunpack.c.l.b16 %v4367
        %v4624 = vunpack.c.l.b16 %v4368
        %v4625 = vunpack.c.l.b16 %v4369
        %v4626 = vunpack.c.l.b16 %v4370
        %v4627 = vunpack.c.l.b16 %v4371
        %v4628 = vunpack.c.l.b16 %v4372
        %v4629 = vunpack.c.l.b16 %v4373
        %v4630 = vunpack.c.l.b16 %v4374
        %v4631 = vunpack.c.l.b16 %v4375
        %v4632 = vunpack.c.l.b16 %v4376
        %v4633 = vunpack.c.l.b16 %v4377
        %v4634 = vunpack.c.l.b16 %v4378
        %v4635 = vunpack.c.l.b16 %v4379
        %v4636 = vunpack.c.l.b16 %v4380
        %v4637 = vunpack.c.l.b16 %v4381
        %v4638 = vunpack.c.l.b16 %v4382
        %v4639 = vunpack.c.l.b16 %v4383
        %v4640 = vunpack.c.l.b16 %v4384
        %v4641 = vunpack.c.l.b16 %v4385
        %v4642 = vunpack.c.l.b16 %v4386
        %v4643 = vunpack.c.l.b16 %v4387
        %v4644 = vunpack.c.l.b16 %v4388
        %v4645 = vunpack.c.l.b16 %v4389
        %v4646 = vunpack.c.l.b16 %v4390
        %v4647 = vunpack.c.l.b16 %v4391
        %v4648 = vunpack.c.l.b16 %v4392
        %v4649 = vunpack.c.l.b16 %v4393
        %v4650 = vunpack.c.l.b16 %v4394
        %v4651 = vunpack.c.l.b16 %v4395
        %v4652 = vunpack.c.l.b16 %v4396
        %v4653 = vunpack.c.l.b16 %v4397
        %v4654 = vunpack.c.l.b16 %v4398
        %v4655 = vunpack.c.l.b16 %v4399
        %v4656 = vunpack.c.l.b16 %v4400
        %v4657 = vunpack.c.l.b16 %v4401
        %v4658 = vunpack.c.l.b16 %v4402
        %v4659 = vunpack.c.l.b16 %v4403
        %v4660 = vunpack.c.l.b16 %v4404
        %v4661 = vunpack.c.l.b16 %v4405
        %v4662 = vunpack.c.l.b16 %v4406
        %v4663 = vunpack.c.l.b16 %v4407
        %v4664 = vunpack.c.l.b16 %v4408
        %v4665 = vunpack.c.l.b16 %v4409
        %v4666 = vunpack.c.l.b16 %v4410
        %v4667 = vunpack.c.l.b16 %v4411
        %v4668 = vunpack.c.l.b16 %v4412
        %v4669 = vunpack.c.l.b16 %v4413
        %v4670 = vunpack.c.l.b16 %v4414
        %v4671 = vunpack.c.l.b16 %v4415
        %v4672 = vunpack.c.l.b16 %v4416
        %v4673 = vunpack.c.l.b16 %v4417
        %v4674 = vunpack.c.l.b16 %v4418
        %v4675 = vunpack.c.l.b16 %v4419
        %v4676 = vunpack.c.l.b16 %v4420
        %v4677 = vunpack.c.l.b16 %v4421
        %v4678 = vunpack.c.l.b16 %v4422
        %v4679 = vunpack.c.l.b16 %v4423
        %v4680 = vunpack.c.l.b16 %v4424
        %v4681 = vunpack.c.l.b16 %v4425
        %v4682 = vunpack.c.l.b16 %v4426
        %v4683 = vunpack.c.l.b16 %v4427
        %v4684 = vunpack.c.l.b16 %v4428
        %v4685 = vunpack.c.l.b16 %v4429
        %v4686 = vunpack.c.l.b16 %v4430
        %v4687 = vunpack.c.l.b16 %v4431
        %v4688 = vunpack.c.l.b16 %v4432
        %v4689 = vunpack.c.l.b16 %v4433
        %v4690 = vunpack.c.l.b16 %v4434
        %v4691 = vunpack.c.l.b16 %v4435
        %v4692 = vunpack.c.l.b16 %v4436
        %v4693 = vunpack.c.l.b16 %v4437
        %v4694 = vunpack.c.l.b16 %v4438
        %v4695 = vunpack.c.l.b16 %v4439
        %v4696 = vunpack.c.l.b16 %v4440
        %v4697 = vunpack.c.l.b16 %v4441
        %v4698 = vpack.c.b16 %v4571, %v4570
        %v4699 = vpack.c.b16 %v4573, %v4572
        %v4700 = vpack.c.b16 %v4575, %v4574
        %v4701 = vpack.c.b16 %v4577, %v4576
        %v4702 = vpack.c.b16 %v4579, %v4578
        %v4703 = vpack.c.b16 %v4581, %v4580
        %v4704 = vpack.c.b16 %v4583, %v4582
        %v4705 = vpack.c.b16 %v4585, %v4584
        %v4706 = vpack.c.b16 %v4587, %v4586
        %v4707 = vpack.c.b16 %v4589, %v4588
        %v4708 = vpack.c.b16 %v4591, %v4590
        %v4709 = vpack.c.b16 %v4593, %v4592
        %v4710 = vpack.c.b16 %v4595, %v4594
        %v4711 = vpack.c.b16 %v4597, %v4596
        %v4712 = vpack.c.b16 %v4599, %v4598
        %v4713 = vpack.c.b16 %v4601, %v4600
        %v4714 = vpack.c.b16 %v4603, %v4602
        %v4715 = vpack.c.b16 %v4605, %v4604
        %v4716 = vpack.c.b16 %v4607, %v4606
        %v4717 = vpack.c.b16 %v4609, %v4608
        %v4718 = vpack.c.b16 %v4611, %v4610
        %v4719 = vpack.c.b16 %v4613, %v4612
        %v4720 = vpack.c.b16 %v4615, %v4614
        %v4721 = vpack.c.b16 %v4617, %v4616
        %v4722 = vpack.c.b16 %v4619, %v4618
        %v4723 = vpack.c.b16 %v4621, %v4620
        %v4724 = vpack.c.b16 %v4623, %v4622
        %v4725 = vpack.c.b16 %v4625, %v4624
        %v4726 = vpack.c.b16 %v4627, %v4626
        %v4727 = vpack.c.b16 %v4629, %v4628
        %v4728 = vpack.c.b16 %v4631, %v4630
        %v4729 = vpack.c.b16 %v4633, %v4632
        %v4730 = vpack.c.b16 %v4635, %v4634
        %v4731 = vpack.c.b16 %v4637, %v4636
        %v4732 = vpack.c.b16 %v4639, %v4638
        %v4733 = vpack.c.b16 %v4641, %v4640
        %v4734 = vpack.c.b16 %v4643, %v4642
        %v4735 = vpack.c.b16 %v4645, %v4644
        %v4736 = vpack.c.b16 %v4647, %v4646
        %v4737 = vpack.c.b16 %v4649, %v4648
        %v4738 = vpack.c.b16 %v4651, %v4650
        %v4739 = vpack.c.b16 %v4653, %v4652
        %v4740 = vpack.c.b16 %v4655, %v4654
        %v4741 = vpack.c.b16 %v4657, %v4656
        %v4742 = vpack.c.b16 %v4659, %v4658
        %v4743 = vpack.c.b16 %v4661, %v4660
        %v4744 = vpack.c.b16 %v4663, %v4662
        %v4745 = vpack.c.b16 %v4665, %v4664
        %v4746 = vpack.c.b16 %v4667, %v4666
        %v4747 = vpack.c.b16 %v4669, %v4668
        %v4748 = vpack.c.b16 %v4671, %v4670
        %v4749 = vpack.c.b16 %v4673, %v4672
        %v4750 = vpack.c.b16 %v4675, %v4674
        %v4751 = vpack.c.b16 %v4677, %v4676
        %v4752 = vpack.c.b16 %v4679, %v4678
        %v4753 = vpack.c.b16 %v4681, %v4680
        %v4754 = vpack.c.b16 %v4683, %v4682
        %v4755 = vpack.c.b16 %v4685, %v4684
        %v4756 = vpack.c.b16 %v4687, %v4686
        %v4757 = vpack.c.b16 %v4689, %v4688
        %v4758 = vpack.c.b16 %v4691, %v4690
        %v4759 = vpack.c.b16 %v4693, %v4692
        %v4760 = vpack.c.b16 %v4695, %v4694
        %v4761 = vpack.c.b16 %v4697, %v4696
        %4826 = vmatprep.subr.bf16.mxu0 0
        %4827 = vmatpush1.bf16.msra.mxu0 %v4705
        %4828 = vmatprep.subr.bf16.mxu0 0
        %4829 = vmatpush1.bf16.msra.mxu0 %v4704
        %4830 = vmatprep.subr.bf16.mxu0 0
        %4831 = vmatpush1.bf16.msra.mxu0 %v4703
        %4832 = vmatprep.subr.bf16.mxu0 0
        %4833 = vmatpush1.bf16.msra.mxu0 %v4702
        %4834 = vmatprep.subr.bf16.mxu0 0
        %4835 = vmatpush1.bf16.msra.mxu0 %v4701
        %4836 = vmatprep.subr.bf16.mxu0 0
        %4837 = vmatpush1.bf16.msra.mxu0 %v4700
        %4838 = vmatprep.subr.bf16.mxu0 0
        %4839 = vmatpush1.bf16.msra.mxu0 %v4699
        %4840 = vmatprep.subr.bf16.mxu0 0
        %4841 = vmatpush1.bf16.msra.mxu0 %v4698
        %4842 = vmatprep.subr.bf16.mxu0 0
        %4843 = vmatpush2.bf16.msra.mxu0 %v4713
        %4844 = vmatprep.subr.bf16.mxu0 0
        %4845 = vmatpush2.bf16.msra.mxu0 %v4712
        %4846 = vmatprep.subr.bf16.mxu0 0
        %4847 = vmatpush2.bf16.msra.mxu0 %v4711
        %4848 = vmatprep.subr.bf16.mxu0 0
        %4849 = vmatpush2.bf16.msra.mxu0 %v4710
        %4850 = vmatprep.subr.bf16.mxu0 0
        %4851 = vmatpush2.bf16.msra.mxu0 %v4709
        %4852 = vmatprep.subr.bf16.mxu0 0
        %4853 = vmatpush2.bf16.msra.mxu0 %v4708
        %4854 = vmatprep.subr.bf16.mxu0 0
        %4855 = vmatpush2.bf16.msra.mxu0 %v4707
        %4856 = vmatprep.subr.bf16.mxu0 0
        %4857 = vmatpush2.bf16.msra.mxu0 %v4706
        %4858 = vmatprep.mubr.bf16.mxu0 %v4115
        %4859 = vmatmul.mubr.bf16.gmra.mxu0 %v4114
        %v4860 = vpop.f32.mrf.mxu0
        %v4861 = vadd.f32 0.0, %v4860
        %v4862 = vpop.f32.mrf.mxu0
        %v4863 = vpop.f32.mrf.mxu0
        %v4864 = vadd.f32 0.0, %v4863
        %v4865 = vpop.f32.mrf.mxu0
        %4866 = vmatprep.mubr.bf16.mxu0 %v4123
        %4867 = vmatmul.mubr.bf16.gmra.mxu0 %v4122
        %v4868 = vpop.f32.mrf.mxu0
        %v4869 = vadd.f32 0.0, %v4868
        %v4870 = vpop.f32.mrf.mxu0
        %v4871 = vpop.f32.mrf.mxu0
        %v4872 = vadd.f32 0.0, %v4871
        %v4873 = vpop.f32.mrf.mxu0
        %4874 = vmatprep.mubr.bf16.mxu0 %v4131
        %4875 = vmatmul.mubr.bf16.gmra.mxu0 %v4130
        %v4876 = vpop.f32.mrf.mxu0
        %v4877 = vadd.f32 0.0, %v4876
        %v4878 = vpop.f32.mrf.mxu0
        %v4879 = vpop.f32.mrf.mxu0
        %v4880 = vadd.f32 0.0, %v4879
        %v4881 = vpop.f32.mrf.mxu0
        %4882 = vmatprep.mubr.bf16.mxu0 %v4139
        %4883 = vmatmul.mubr.bf16.gmra.mxu0 %v4138
        %v4884 = vpop.f32.mrf.mxu0
        %v4885 = vadd.f32 0.0, %v4884
        %v4886 = vpop.f32.mrf.mxu0
        %v4887 = vpop.f32.mrf.mxu0
        %v4888 = vadd.f32 0.0, %v4887
        %v4889 = vpop.f32.mrf.mxu0
        %4890 = vmatprep.mubr.bf16.mxu0 %v4147
        %4891 = vmatmul.mubr.bf16.gmra.mxu0 %v4146
        %v4892 = vpop.f32.mrf.mxu0
        %v4893 = vadd.f32 0.0, %v4892
        %v4894 = vpop.f32.mrf.mxu0
        %v4895 = vpop.f32.mrf.mxu0
        %v4896 = vadd.f32 0.0, %v4895
        %v4897 = vpop.f32.mrf.mxu0
        %4898 = vmatprep.mubr.bf16.mxu0 %v4155
        %4899 = vmatmul.mubr.bf16.gmra.mxu0 %v4154
        %v4900 = vpop.f32.mrf.mxu0
        %v4901 = vadd.f32 0.0, %v4900
        %v4902 = vpop.f32.mrf.mxu0
        %v4903 = vpop.f32.mrf.mxu0
        %v4904 = vadd.f32 0.0, %v4903
        %v4905 = vpop.f32.mrf.mxu0
        %4906 = vmatprep.mubr.bf16.mxu0 %v4163
        %4907 = vmatmul.mubr.bf16.gmra.mxu0 %v4162
        %v4908 = vpop.f32.mrf.mxu0
        %v4909 = vadd.f32 0.0, %v4908
        %v4910 = vpop.f32.mrf.mxu0
        %v4911 = vpop.f32.mrf.mxu0
        %v4912 = vadd.f32 0.0, %v4911
        %v4913 = vpop.f32.mrf.mxu0
        %4914 = vmatprep.mubr.bf16.mxu0 %v4171
        %4915 = vmatmul.mubr.bf16.gmra.mxu0 %v4170
        %v4916 = vpop.f32.mrf.mxu0
        %v4917 = vadd.f32 0.0, %v4916
        %v4918 = vpop.f32.mrf.mxu0
        %v4919 = vpop.f32.mrf.mxu0
        %v4920 = vadd.f32 0.0, %v4919
        %v4921 = vpop.f32.mrf.mxu0
        %4922 = vmatprep.mubr.bf16.mxu0 %v4179
        %4923 = vmatmul.mubr.bf16.gmra.mxu0 %v4178
        %v4924 = vpop.f32.mrf.mxu0
        %v4925 = vadd.f32 0.0, %v4924
        %v4926 = vpop.f32.mrf.mxu0
        %v4927 = vpop.f32.mrf.mxu0
        %v4928 = vadd.f32 0.0, %v4927
        %v4929 = vpop.f32.mrf.mxu0
        %4930 = vmatprep.mubr.bf16.mxu0 %v4187
        %4931 = vmatmul.mubr.bf16.gmra.mxu0 %v4186
        %v4932 = vpop.f32.mrf.mxu0
        %v4933 = vadd.f32 0.0, %v4932
        %v4934 = vpop.f32.mrf.mxu0
        %v4935 = vpop.f32.mrf.mxu0
        %v4936 = vadd.f32 0.0, %v4935
        %v4937 = vpop.f32.mrf.mxu0
        %4938 = vmatprep.mubr.bf16.mxu0 %v4195
        %4939 = vmatmul.mubr.bf16.gmra.mxu0 %v4194
        %v4940 = vpop.f32.mrf.mxu0
        %v4941 = vadd.f32 0.0, %v4940
        %v4942 = vpop.f32.mrf.mxu0
        %v4943 = vpop.f32.mrf.mxu0
        %v4944 = vadd.f32 0.0, %v4943
        %v4945 = vpop.f32.mrf.mxu0
        %4946 = vmatprep.mubr.bf16.mxu0 %v4203
        %4947 = vmatmul.mubr.bf16.gmra.mxu0 %v4202
        %v4948 = vpop.f32.mrf.mxu0
        %v4949 = vadd.f32 0.0, %v4948
        %v4950 = vpop.f32.mrf.mxu0
        %v4951 = vpop.f32.mrf.mxu0
        %v4952 = vadd.f32 0.0, %v4951
        %v4953 = vpop.f32.mrf.mxu0
        %4954 = vmatprep.mubr.bf16.mxu0 %v4211
        %4955 = vmatmul.mubr.bf16.gmra.mxu0 %v4210
        %v4956 = vpop.f32.mrf.mxu0
        %v4957 = vadd.f32 0.0, %v4956
        %v4958 = vpop.f32.mrf.mxu0
        %v4959 = vpop.f32.mrf.mxu0
        %v4960 = vadd.f32 0.0, %v4959
        %v4961 = vpop.f32.mrf.mxu0
        %4962 = vmatprep.mubr.bf16.mxu0 %v4219
        %4963 = vmatmul.mubr.bf16.gmra.mxu0 %v4218
        %v4964 = vpop.f32.mrf.mxu0
        %v4965 = vadd.f32 0.0, %v4964
        %v4966 = vpop.f32.mrf.mxu0
        %v4967 = vpop.f32.mrf.mxu0
        %v4968 = vadd.f32 0.0, %v4967
        %v4969 = vpop.f32.mrf.mxu0
        %4970 = vmatprep.mubr.bf16.mxu0 %v4227
        %4971 = vmatmul.mubr.bf16.gmra.mxu0 %v4226
        %v4972 = vpop.f32.mrf.mxu0
        %v4973 = vadd.f32 0.0, %v4972
        %v4974 = vpop.f32.mrf.mxu0
        %v4975 = vpop.f32.mrf.mxu0
        %v4976 = vadd.f32 0.0, %v4975
        %v4977 = vpop.f32.mrf.mxu0
        %4978 = vmatprep.mubr.bf16.mxu0 %v4235
        %4979 = vmatmul.mubr.bf16.gmra.mxu0 %v4234
        %v4980 = vpop.f32.mrf.mxu0
        %v4981 = vadd.f32 0.0, %v4980
        %v4982 = vpop.f32.mrf.mxu0
        %v4983 = vpop.f32.mrf.mxu0
        %v4984 = vadd.f32 0.0, %v4983
        %v4985 = vpop.f32.mrf.mxu0
        %4986 = vmatprep.mubr.bf16.mxu0 %v4243
        %4987 = vmatmul.mubr.bf16.gmra.mxu0 %v4242
        %v4988 = vpop.f32.mrf.mxu0
        %v4989 = vadd.f32 0.0, %v4988
        %v4990 = vpop.f32.mrf.mxu0
        %v4991 = vpop.f32.mrf.mxu0
        %v4992 = vadd.f32 0.0, %v4991
        %v4993 = vpop.f32.mrf.mxu0
        %4994 = vmatprep.mubr.bf16.mxu0 %v4251
        %4995 = vmatmul.mubr.bf16.gmra.mxu0 %v4250
        %v4996 = vpop.f32.mrf.mxu0
        %v4997 = vadd.f32 0.0, %v4996
        %v4998 = vpop.f32.mrf.mxu0
        %v4999 = vpop.f32.mrf.mxu0
        %v5000 = vadd.f32 0.0, %v4999
        %v5001 = vpop.f32.mrf.mxu0
        %5002 = vmatprep.mubr.bf16.mxu0 %v4259
        %5003 = vmatmul.mubr.bf16.gmra.mxu0 %v4258
        %v5004 = vpop.f32.mrf.mxu0
        %v5005 = vadd.f32 0.0, %v5004
        %v5006 = vpop.f32.mrf.mxu0
        %v5007 = vpop.f32.mrf.mxu0
        %v5008 = vadd.f32 0.0, %v5007
        %v5009 = vpop.f32.mrf.mxu0
        %5010 = vmatprep.mubr.bf16.mxu0 %v4267
        %5011 = vmatmul.mubr.bf16.gmra.mxu0 %v4266
        %v5012 = vpop.f32.mrf.mxu0
        %v5013 = vadd.f32 0.0, %v5012
        %v5014 = vpop.f32.mrf.mxu0
        %v5015 = vpop.f32.mrf.mxu0
        %v5016 = vadd.f32 0.0, %v5015
        %v5017 = vpop.f32.mrf.mxu0
        %5018 = vmatprep.mubr.bf16.mxu0 %v4275
        %5019 = vmatmul.mubr.bf16.gmra.mxu0 %v4274
        %v5020 = vpop.f32.mrf.mxu0
        %v5021 = vadd.f32 0.0, %v5020
        %v5022 = vpop.f32.mrf.mxu0
        %v5023 = vpop.f32.mrf.mxu0
        %v5024 = vadd.f32 0.0, %v5023
        %v5025 = vpop.f32.mrf.mxu0
        %5026 = vmatprep.mubr.bf16.mxu0 %v4283
        %5027 = vmatmul.mubr.bf16.gmra.mxu0 %v4282
        %v5028 = vpop.f32.mrf.mxu0
        %v5029 = vadd.f32 0.0, %v5028
        %v5030 = vpop.f32.mrf.mxu0
        %v5031 = vpop.f32.mrf.mxu0
        %v5032 = vadd.f32 0.0, %v5031
        %v5033 = vpop.f32.mrf.mxu0
        %5034 = vmatprep.mubr.bf16.mxu0 %v4291
        %5035 = vmatmul.mubr.bf16.gmra.mxu0 %v4290
        %v5036 = vpop.f32.mrf.mxu0
        %v5037 = vadd.f32 0.0, %v5036
        %v5038 = vpop.f32.mrf.mxu0
        %v5039 = vpop.f32.mrf.mxu0
        %v5040 = vadd.f32 0.0, %v5039
        %v5041 = vpop.f32.mrf.mxu0
        %5042 = vmatprep.mubr.bf16.mxu0 %v4299
        %5043 = vmatmul.mubr.bf16.gmra.mxu0 %v4298
        %v5044 = vpop.f32.mrf.mxu0
        %v5045 = vadd.f32 0.0, %v5044
        %v5046 = vpop.f32.mrf.mxu0
        %v5047 = vpop.f32.mrf.mxu0
        %v5048 = vadd.f32 0.0, %v5047
        %v5049 = vpop.f32.mrf.mxu0
        %5050 = vmatprep.mubr.bf16.mxu0 %v4307
        %5051 = vmatmul.mubr.bf16.gmra.mxu0 %v4306
        %v5052 = vpop.f32.mrf.mxu0
        %v5053 = vadd.f32 0.0, %v5052
        %v5054 = vpop.f32.mrf.mxu0
        %v5055 = vpop.f32.mrf.mxu0
        %v5056 = vadd.f32 0.0, %v5055
        %v5057 = vpop.f32.mrf.mxu0
        %5058 = vdwg.mxu0
        %5059 = vmatprep.subr.bf16.mxu0 0
        %5060 = vmatpush1.bf16.msra.mxu0 %v4721
        %5061 = vmatprep.subr.bf16.mxu0 0
        %5062 = vmatpush1.bf16.msra.mxu0 %v4720
        %5063 = vmatprep.subr.bf16.mxu0 0
        %5064 = vmatpush1.bf16.msra.mxu0 %v4719
        %5065 = vmatprep.subr.bf16.mxu0 0
        %5066 = vmatpush1.bf16.msra.mxu0 %v4718
        %5067 = vmatprep.subr.bf16.mxu0 0
        %5068 = vmatpush1.bf16.msra.mxu0 %v4717
        %5069 = vmatprep.subr.bf16.mxu0 0
        %5070 = vmatpush1.bf16.msra.mxu0 %v4716
        %5071 = vmatprep.subr.bf16.mxu0 0
        %5072 = vmatpush1.bf16.msra.mxu0 %v4715
        %5073 = vmatprep.subr.bf16.mxu0 0
        %5074 = vmatpush1.bf16.msra.mxu0 %v4714
        %5075 = vmatprep.subr.bf16.mxu0 0
        %5076 = vmatpush2.bf16.msra.mxu0 %v4729
        %5077 = vmatprep.subr.bf16.mxu0 0
        %5078 = vmatpush2.bf16.msra.mxu0 %v4728
        %5079 = vmatprep.subr.bf16.mxu0 0
        %5080 = vmatpush2.bf16.msra.mxu0 %v4727
        %5081 = vmatprep.subr.bf16.mxu0 0
        %5082 = vmatpush2.bf16.msra.mxu0 %v4726
        %5083 = vmatprep.subr.bf16.mxu0 0
        %5084 = vmatpush2.bf16.msra.mxu0 %v4725
        %5085 = vmatprep.subr.bf16.mxu0 0
        %5086 = vmatpush2.bf16.msra.mxu0 %v4724
        %5087 = vmatprep.subr.bf16.mxu0 0
        %5088 = vmatpush2.bf16.msra.mxu0 %v4723
        %5089 = vmatprep.subr.bf16.mxu0 0
        %5090 = vmatpush2.bf16.msra.mxu0 %v4722
        %5091 = vmatprep.mubr.bf16.mxu0 %v4117
        %5092 = vmatmul.mubr.bf16.gmra.mxu0 %v4116
        %v5093 = vpop.f32.mrf.mxu0
        %v5094 = vadd.f32 %v4861, %v5093
        %v5095 = vpop.f32.mrf.mxu0
        %v5096 = vpop.f32.mrf.mxu0
        %v5097 = vadd.f32 %v4864, %v5096
        %v5098 = vpop.f32.mrf.mxu0
        %5099 = vmatprep.mubr.bf16.mxu0 %v4125
        %5100 = vmatmul.mubr.bf16.gmra.mxu0 %v4124
        %v5101 = vpop.f32.mrf.mxu0
        %v5102 = vadd.f32 %v4869, %v5101
        %v5103 = vpop.f32.mrf.mxu0
        %v5104 = vpop.f32.mrf.mxu0
        %v5105 = vadd.f32 %v4872, %v5104
        %v5106 = vpop.f32.mrf.mxu0
        %5107 = vmatprep.mubr.bf16.mxu0 %v4133
        %5108 = vmatmul.mubr.bf16.gmra.mxu0 %v4132
        %v5109 = vpop.f32.mrf.mxu0
        %v5110 = vadd.f32 %v4877, %v5109
        %v5111 = vpop.f32.mrf.mxu0
        %v5112 = vpop.f32.mrf.mxu0
        %v5113 = vadd.f32 %v4880, %v5112
        %v5114 = vpop.f32.mrf.mxu0
        %5115 = vmatprep.mubr.bf16.mxu0 %v4141
        %5116 = vmatmul.mubr.bf16.gmra.mxu0 %v4140
        %v5117 = vpop.f32.mrf.mxu0
        %v5118 = vadd.f32 %v4885, %v5117
        %v5119 = vpop.f32.mrf.mxu0
        %v5120 = vpop.f32.mrf.mxu0
        %v5121 = vadd.f32 %v4888, %v5120
        %v5122 = vpop.f32.mrf.mxu0
        %5123 = vmatprep.mubr.bf16.mxu0 %v4149
        %5124 = vmatmul.mubr.bf16.gmra.mxu0 %v4148
        %v5125 = vpop.f32.mrf.mxu0
        %v5126 = vadd.f32 %v4893, %v5125
        %v5127 = vpop.f32.mrf.mxu0
        %v5128 = vpop.f32.mrf.mxu0
        %v5129 = vadd.f32 %v4896, %v5128
        %v5130 = vpop.f32.mrf.mxu0
        %5131 = vmatprep.mubr.bf16.mxu0 %v4157
        %5132 = vmatmul.mubr.bf16.gmra.mxu0 %v4156
        %v5133 = vpop.f32.mrf.mxu0
        %v5134 = vadd.f32 %v4901, %v5133
        %v5135 = vpop.f32.mrf.mxu0
        %v5136 = vpop.f32.mrf.mxu0
        %v5137 = vadd.f32 %v4904, %v5136
        %v5138 = vpop.f32.mrf.mxu0
        %5139 = vmatprep.mubr.bf16.mxu0 %v4165
        %5140 = vmatmul.mubr.bf16.gmra.mxu0 %v4164
        %v5141 = vpop.f32.mrf.mxu0
        %v5142 = vadd.f32 %v4909, %v5141
        %v5143 = vpop.f32.mrf.mxu0
        %v5144 = vpop.f32.mrf.mxu0
        %v5145 = vadd.f32 %v4912, %v5144
        %v5146 = vpop.f32.mrf.mxu0
        %5147 = vmatprep.mubr.bf16.mxu0 %v4173
        %5148 = vmatmul.mubr.bf16.gmra.mxu0 %v4172
        %v5149 = vpop.f32.mrf.mxu0
        %v5150 = vadd.f32 %v4917, %v5149
        %v5151 = vpop.f32.mrf.mxu0
        %v5152 = vpop.f32.mrf.mxu0
        %v5153 = vadd.f32 %v4920, %v5152
        %v5154 = vpop.f32.mrf.mxu0
        %5155 = vmatprep.mubr.bf16.mxu0 %v4181
        %5156 = vmatmul.mubr.bf16.gmra.mxu0 %v4180
        %v5157 = vpop.f32.mrf.mxu0
        %v5158 = vadd.f32 %v4925, %v5157
        %v5159 = vpop.f32.mrf.mxu0
        %v5160 = vpop.f32.mrf.mxu0
        %v5161 = vadd.f32 %v4928, %v5160
        %v5162 = vpop.f32.mrf.mxu0
        %5163 = vmatprep.mubr.bf16.mxu0 %v4189
        %5164 = vmatmul.mubr.bf16.gmra.mxu0 %v4188
        %v5165 = vpop.f32.mrf.mxu0
        %v5166 = vadd.f32 %v4933, %v5165
        %v5167 = vpop.f32.mrf.mxu0
        %v5168 = vpop.f32.mrf.mxu0
        %v5169 = vadd.f32 %v4936, %v5168
        %v5170 = vpop.f32.mrf.mxu0
        %5171 = vmatprep.mubr.bf16.mxu0 %v4197
        %5172 = vmatmul.mubr.bf16.gmra.mxu0 %v4196
        %v5173 = vpop.f32.mrf.mxu0
        %v5174 = vadd.f32 %v4941, %v5173
        %v5175 = vpop.f32.mrf.mxu0
        %v5176 = vpop.f32.mrf.mxu0
        %v5177 = vadd.f32 %v4944, %v5176
        %v5178 = vpop.f32.mrf.mxu0
        %5179 = vmatprep.mubr.bf16.mxu0 %v4205
        %5180 = vmatmul.mubr.bf16.gmra.mxu0 %v4204
        %v5181 = vpop.f32.mrf.mxu0
        %v5182 = vadd.f32 %v4949, %v5181
        %v5183 = vpop.f32.mrf.mxu0
        %v5184 = vpop.f32.mrf.mxu0
        %v5185 = vadd.f32 %v4952, %v5184
        %v5186 = vpop.f32.mrf.mxu0
        %5187 = vmatprep.mubr.bf16.mxu0 %v4213
        %5188 = vmatmul.mubr.bf16.gmra.mxu0 %v4212
        %v5189 = vpop.f32.mrf.mxu0
        %v5190 = vadd.f32 %v4957, %v5189
        %v5191 = vpop.f32.mrf.mxu0
        %v5192 = vpop.f32.mrf.mxu0
        %v5193 = vadd.f32 %v4960, %v5192
        %v5194 = vpop.f32.mrf.mxu0
        %5195 = vmatprep.mubr.bf16.mxu0 %v4221
        %5196 = vmatmul.mubr.bf16.gmra.mxu0 %v4220
        %v5197 = vpop.f32.mrf.mxu0
        %v5198 = vadd.f32 %v4965, %v5197
        %v5199 = vpop.f32.mrf.mxu0
        %v5200 = vpop.f32.mrf.mxu0
        %v5201 = vadd.f32 %v4968, %v5200
        %v5202 = vpop.f32.mrf.mxu0
        %5203 = vmatprep.mubr.bf16.mxu0 %v4229
        %5204 = vmatmul.mubr.bf16.gmra.mxu0 %v4228
        %v5205 = vpop.f32.mrf.mxu0
        %v5206 = vadd.f32 %v4973, %v5205
        %v5207 = vpop.f32.mrf.mxu0
        %v5208 = vpop.f32.mrf.mxu0
        %v5209 = vadd.f32 %v4976, %v5208
        %v5210 = vpop.f32.mrf.mxu0
        %5211 = vmatprep.mubr.bf16.mxu0 %v4237
        %5212 = vmatmul.mubr.bf16.gmra.mxu0 %v4236
        %v5213 = vpop.f32.mrf.mxu0
        %v5214 = vadd.f32 %v4981, %v5213
        %v5215 = vpop.f32.mrf.mxu0
        %v5216 = vpop.f32.mrf.mxu0
        %v5217 = vadd.f32 %v4984, %v5216
        %v5218 = vpop.f32.mrf.mxu0
        %5219 = vmatprep.mubr.bf16.mxu0 %v4245
        %5220 = vmatmul.mubr.bf16.gmra.mxu0 %v4244
        %v5221 = vpop.f32.mrf.mxu0
        %v5222 = vadd.f32 %v4989, %v5221
        %v5223 = vpop.f32.mrf.mxu0
        %v5224 = vpop.f32.mrf.mxu0
        %v5225 = vadd.f32 %v4992, %v5224
        %v5226 = vpop.f32.mrf.mxu0
        %5227 = vmatprep.mubr.bf16.mxu0 %v4253
        %5228 = vmatmul.mubr.bf16.gmra.mxu0 %v4252
        %v5229 = vpop.f32.mrf.mxu0
        %v5230 = vadd.f32 %v4997, %v5229
        %v5231 = vpop.f32.mrf.mxu0
        %v5232 = vpop.f32.mrf.mxu0
        %v5233 = vadd.f32 %v5000, %v5232
        %v5234 = vpop.f32.mrf.mxu0
        %5235 = vmatprep.mubr.bf16.mxu0 %v4261
        %5236 = vmatmul.mubr.bf16.gmra.mxu0 %v4260
        %v5237 = vpop.f32.mrf.mxu0
        %v5238 = vadd.f32 %v5005, %v5237
        %v5239 = vpop.f32.mrf.mxu0
        %v5240 = vpop.f32.mrf.mxu0
        %v5241 = vadd.f32 %v5008, %v5240
        %v5242 = vpop.f32.mrf.mxu0
        %5243 = vmatprep.mubr.bf16.mxu0 %v4269
        %5244 = vmatmul.mubr.bf16.gmra.mxu0 %v4268
        %v5245 = vpop.f32.mrf.mxu0
        %v5246 = vadd.f32 %v5013, %v5245
        %v5247 = vpop.f32.mrf.mxu0
        %v5248 = vpop.f32.mrf.mxu0
        %v5249 = vadd.f32 %v5016, %v5248
        %v5250 = vpop.f32.mrf.mxu0
        %5251 = vmatprep.mubr.bf16.mxu0 %v4277
        %5252 = vmatmul.mubr.bf16.gmra.mxu0 %v4276
        %v5253 = vpop.f32.mrf.mxu0
        %v5254 = vadd.f32 %v5021, %v5253
        %v5255 = vpop.f32.mrf.mxu0
        %v5256 = vpop.f32.mrf.mxu0
        %v5257 = vadd.f32 %v5024, %v5256
        %v5258 = vpop.f32.mrf.mxu0
        %5259 = vmatprep.mubr.bf16.mxu0 %v4285
        %5260 = vmatmul.mubr.bf16.gmra.mxu0 %v4284
        %v5261 = vpop.f32.mrf.mxu0
        %v5262 = vadd.f32 %v5029, %v5261
        %v5263 = vpop.f32.mrf.mxu0
        %v5264 = vpop.f32.mrf.mxu0
        %v5265 = vadd.f32 %v5032, %v5264
        %v5266 = vpop.f32.mrf.mxu0
        %5267 = vmatprep.mubr.bf16.mxu0 %v4293
        %5268 = vmatmul.mubr.bf16.gmra.mxu0 %v4292
        %v5269 = vpop.f32.mrf.mxu0
        %v5270 = vadd.f32 %v5037, %v5269
        %v5271 = vpop.f32.mrf.mxu0
        %v5272 = vpop.f32.mrf.mxu0
        %v5273 = vadd.f32 %v5040, %v5272
        %v5274 = vpop.f32.mrf.mxu0
        %5275 = vmatprep.mubr.bf16.mxu0 %v4301
        %5276 = vmatmul.mubr.bf16.gmra.mxu0 %v4300
        %v5277 = vpop.f32.mrf.mxu0
        %v5278 = vadd.f32 %v5045, %v5277
        %v5279 = vpop.f32.mrf.mxu0
        %v5280 = vpop.f32.mrf.mxu0
        %v5281 = vadd.f32 %v5048, %v5280
        %v5282 = vpop.f32.mrf.mxu0
        %5283 = vmatprep.mubr.bf16.mxu0 %v4309
        %5284 = vmatmul.mubr.bf16.gmra.mxu0 %v4308
        %v5285 = vpop.f32.mrf.mxu0
        %v5286 = vadd.f32 %v5053, %v5285
        %v5287 = vpop.f32.mrf.mxu0
        %v5288 = vpop.f32.mrf.mxu0
        %v5289 = vadd.f32 %v5056, %v5288
        %v5290 = vpop.f32.mrf.mxu0
        %5291 = vdwg.mxu0
        %5292 = vmatprep.subr.bf16.mxu0 0
        %5293 = vmatpush1.bf16.msra.mxu0 %v4737
        %5294 = vmatprep.subr.bf16.mxu0 0
        %5295 = vmatpush1.bf16.msra.mxu0 %v4736
        %5296 = vmatprep.subr.bf16.mxu0 0
        %5297 = vmatpush1.bf16.msra.mxu0 %v4735
        %5298 = vmatprep.subr.bf16.mxu0 0
        %5299 = vmatpush1.bf16.msra.mxu0 %v4734
        %5300 = vmatprep.subr.bf16.mxu0 0
        %5301 = vmatpush1.bf16.msra.mxu0 %v4733
        %5302 = vmatprep.subr.bf16.mxu0 0
        %5303 = vmatpush1.bf16.msra.mxu0 %v4732
        %5304 = vmatprep.subr.bf16.mxu0 0
        %5305 = vmatpush1.bf16.msra.mxu0 %v4731
        %5306 = vmatprep.subr.bf16.mxu0 0
        %5307 = vmatpush1.bf16.msra.mxu0 %v4730
        %5308 = vmatprep.subr.bf16.mxu0 0
        %5309 = vmatpush2.bf16.msra.mxu0 %v4745
        %5310 = vmatprep.subr.bf16.mxu0 0
        %5311 = vmatpush2.bf16.msra.mxu0 %v4744
        %5312 = vmatprep.subr.bf16.mxu0 0
        %5313 = vmatpush2.bf16.msra.mxu0 %v4743
        %5314 = vmatprep.subr.bf16.mxu0 0
        %5315 = vmatpush2.bf16.msra.mxu0 %v4742
        %5316 = vmatprep.subr.bf16.mxu0 0
        %5317 = vmatpush2.bf16.msra.mxu0 %v4741
        %5318 = vmatprep.subr.bf16.mxu0 0
        %5319 = vmatpush2.bf16.msra.mxu0 %v4740
        %5320 = vmatprep.subr.bf16.mxu0 0
        %5321 = vmatpush2.bf16.msra.mxu0 %v4739
        %5322 = vmatprep.subr.bf16.mxu0 0
        %5323 = vmatpush2.bf16.msra.mxu0 %v4738
        %5324 = vmatprep.mubr.bf16.mxu0 %v4119
        %5325 = vmatmul.mubr.bf16.gmra.mxu0 %v4118
        %v5326 = vpop.f32.mrf.mxu0
        %v5327 = vadd.f32 %v5094, %v5326
        %v5328 = vpop.f32.mrf.mxu0
        %v5329 = vpop.f32.mrf.mxu0
        %v5330 = vadd.f32 %v5097, %v5329
        %v5331 = vpop.f32.mrf.mxu0
        %5332 = vmatprep.mubr.bf16.mxu0 %v4127
        %5333 = vmatmul.mubr.bf16.gmra.mxu0 %v4126
        %v5334 = vpop.f32.mrf.mxu0
        %v5335 = vadd.f32 %v5102, %v5334
        %v5336 = vpop.f32.mrf.mxu0
        %v5337 = vpop.f32.mrf.mxu0
        %v5338 = vadd.f32 %v5105, %v5337
        %v5339 = vpop.f32.mrf.mxu0
        %5340 = vmatprep.mubr.bf16.mxu0 %v4135
        %5341 = vmatmul.mubr.bf16.gmra.mxu0 %v4134
        %v5342 = vpop.f32.mrf.mxu0
        %v5343 = vadd.f32 %v5110, %v5342
        %v5344 = vpop.f32.mrf.mxu0
        %v5345 = vpop.f32.mrf.mxu0
        %v5346 = vadd.f32 %v5113, %v5345
        %v5347 = vpop.f32.mrf.mxu0
        %5348 = vmatprep.mubr.bf16.mxu0 %v4143
        %5349 = vmatmul.mubr.bf16.gmra.mxu0 %v4142
        %v5350 = vpop.f32.mrf.mxu0
        %v5351 = vadd.f32 %v5118, %v5350
        %v5352 = vpop.f32.mrf.mxu0
        %v5353 = vpop.f32.mrf.mxu0
        %v5354 = vadd.f32 %v5121, %v5353
        %v5355 = vpop.f32.mrf.mxu0
        %5356 = vmatprep.mubr.bf16.mxu0 %v4151
        %5357 = vmatmul.mubr.bf16.gmra.mxu0 %v4150
        %v5358 = vpop.f32.mrf.mxu0
        %v5359 = vadd.f32 %v5126, %v5358
        %v5360 = vpop.f32.mrf.mxu0
        %v5361 = vpop.f32.mrf.mxu0
        %v5362 = vadd.f32 %v5129, %v5361
        %v5363 = vpop.f32.mrf.mxu0
        %5364 = vmatprep.mubr.bf16.mxu0 %v4159
        %5365 = vmatmul.mubr.bf16.gmra.mxu0 %v4158
        %v5366 = vpop.f32.mrf.mxu0
        %v5367 = vadd.f32 %v5134, %v5366
        %v5368 = vpop.f32.mrf.mxu0
        %v5369 = vpop.f32.mrf.mxu0
        %v5370 = vadd.f32 %v5137, %v5369
        %v5371 = vpop.f32.mrf.mxu0
        %5372 = vmatprep.mubr.bf16.mxu0 %v4167
        %5373 = vmatmul.mubr.bf16.gmra.mxu0 %v4166
        %v5374 = vpop.f32.mrf.mxu0
        %v5375 = vadd.f32 %v5142, %v5374
        %v5376 = vpop.f32.mrf.mxu0
        %v5377 = vpop.f32.mrf.mxu0
        %v5378 = vadd.f32 %v5145, %v5377
        %v5379 = vpop.f32.mrf.mxu0
        %5380 = vmatprep.mubr.bf16.mxu0 %v4175
        %5381 = vmatmul.mubr.bf16.gmra.mxu0 %v4174
        %v5382 = vpop.f32.mrf.mxu0
        %v5383 = vadd.f32 %v5150, %v5382
        %v5384 = vpop.f32.mrf.mxu0
        %v5385 = vpop.f32.mrf.mxu0
        %v5386 = vadd.f32 %v5153, %v5385
        %v5387 = vpop.f32.mrf.mxu0
        %5388 = vmatprep.mubr.bf16.mxu0 %v4183
        %5389 = vmatmul.mubr.bf16.gmra.mxu0 %v4182
        %v5390 = vpop.f32.mrf.mxu0
        %v5391 = vadd.f32 %v5158, %v5390
        %v5392 = vpop.f32.mrf.mxu0
        %v5393 = vpop.f32.mrf.mxu0
        %v5394 = vadd.f32 %v5161, %v5393
        %v5395 = vpop.f32.mrf.mxu0
        %5396 = vmatprep.mubr.bf16.mxu0 %v4191
        %5397 = vmatmul.mubr.bf16.gmra.mxu0 %v4190
        %v5398 = vpop.f32.mrf.mxu0
        %v5399 = vadd.f32 %v5166, %v5398
        %v5400 = vpop.f32.mrf.mxu0
        %v5401 = vpop.f32.mrf.mxu0
        %v5402 = vadd.f32 %v5169, %v5401
        %v5403 = vpop.f32.mrf.mxu0
        %5404 = vmatprep.mubr.bf16.mxu0 %v4199
        %5405 = vmatmul.mubr.bf16.gmra.mxu0 %v4198
        %v5406 = vpop.f32.mrf.mxu0
        %v5407 = vadd.f32 %v5174, %v5406
        %v5408 = vpop.f32.mrf.mxu0
        %v5409 = vpop.f32.mrf.mxu0
        %v5410 = vadd.f32 %v5177, %v5409
        %v5411 = vpop.f32.mrf.mxu0
        %5412 = vmatprep.mubr.bf16.mxu0 %v4207
        %5413 = vmatmul.mubr.bf16.gmra.mxu0 %v4206
        %v5414 = vpop.f32.mrf.mxu0
        %v5415 = vadd.f32 %v5182, %v5414
        %v5416 = vpop.f32.mrf.mxu0
        %v5417 = vpop.f32.mrf.mxu0
        %v5418 = vadd.f32 %v5185, %v5417
        %v5419 = vpop.f32.mrf.mxu0
        %5420 = vmatprep.mubr.bf16.mxu0 %v4215
        %5421 = vmatmul.mubr.bf16.gmra.mxu0 %v4214
        %v5422 = vpop.f32.mrf.mxu0
        %v5423 = vadd.f32 %v5190, %v5422
        %v5424 = vpop.f32.mrf.mxu0
        %v5425 = vpop.f32.mrf.mxu0
        %v5426 = vadd.f32 %v5193, %v5425
        %v5427 = vpop.f32.mrf.mxu0
        %5428 = vmatprep.mubr.bf16.mxu0 %v4223
        %5429 = vmatmul.mubr.bf16.gmra.mxu0 %v4222
        %v5430 = vpop.f32.mrf.mxu0
        %v5431 = vadd.f32 %v5198, %v5430
        %v5432 = vpop.f32.mrf.mxu0
        %v5433 = vpop.f32.mrf.mxu0
        %v5434 = vadd.f32 %v5201, %v5433
        %v5435 = vpop.f32.mrf.mxu0
        %5436 = vmatprep.mubr.bf16.mxu0 %v4231
        %5437 = vmatmul.mubr.bf16.gmra.mxu0 %v4230
        %v5438 = vpop.f32.mrf.mxu0
        %v5439 = vadd.f32 %v5206, %v5438
        %v5440 = vpop.f32.mrf.mxu0
        %v5441 = vpop.f32.mrf.mxu0
        %v5442 = vadd.f32 %v5209, %v5441
        %v5443 = vpop.f32.mrf.mxu0
        %5444 = vmatprep.mubr.bf16.mxu0 %v4239
        %5445 = vmatmul.mubr.bf16.gmra.mxu0 %v4238
        %v5446 = vpop.f32.mrf.mxu0
        %v5447 = vadd.f32 %v5214, %v5446
        %v5448 = vpop.f32.mrf.mxu0
        %v5449 = vpop.f32.mrf.mxu0
        %v5450 = vadd.f32 %v5217, %v5449
        %v5451 = vpop.f32.mrf.mxu0
        %5452 = vmatprep.mubr.bf16.mxu0 %v4247
        %5453 = vmatmul.mubr.bf16.gmra.mxu0 %v4246
        %v5454 = vpop.f32.mrf.mxu0
        %v5455 = vadd.f32 %v5222, %v5454
        %v5456 = vpop.f32.mrf.mxu0
        %v5457 = vpop.f32.mrf.mxu0
        %v5458 = vadd.f32 %v5225, %v5457
        %v5459 = vpop.f32.mrf.mxu0
        %5460 = vmatprep.mubr.bf16.mxu0 %v4255
        %5461 = vmatmul.mubr.bf16.gmra.mxu0 %v4254
        %v5462 = vpop.f32.mrf.mxu0
        %v5463 = vadd.f32 %v5230, %v5462
        %v5464 = vpop.f32.mrf.mxu0
        %v5465 = vpop.f32.mrf.mxu0
        %v5466 = vadd.f32 %v5233, %v5465
        %v5467 = vpop.f32.mrf.mxu0
        %5468 = vmatprep.mubr.bf16.mxu0 %v4263
        %5469 = vmatmul.mubr.bf16.gmra.mxu0 %v4262
        %v5470 = vpop.f32.mrf.mxu0
        %v5471 = vadd.f32 %v5238, %v5470
        %v5472 = vpop.f32.mrf.mxu0
        %v5473 = vpop.f32.mrf.mxu0
        %v5474 = vadd.f32 %v5241, %v5473
        %v5475 = vpop.f32.mrf.mxu0
        %5476 = vmatprep.mubr.bf16.mxu0 %v4271
        %5477 = vmatmul.mubr.bf16.gmra.mxu0 %v4270
        %v5478 = vpop.f32.mrf.mxu0
        %v5479 = vadd.f32 %v5246, %v5478
        %v5480 = vpop.f32.mrf.mxu0
        %v5481 = vpop.f32.mrf.mxu0
        %v5482 = vadd.f32 %v5249, %v5481
        %v5483 = vpop.f32.mrf.mxu0
        %5484 = vmatprep.mubr.bf16.mxu0 %v4279
        %5485 = vmatmul.mubr.bf16.gmra.mxu0 %v4278
        %v5486 = vpop.f32.mrf.mxu0
        %v5487 = vadd.f32 %v5254, %v5486
        %v5488 = vpop.f32.mrf.mxu0
        %v5489 = vpop.f32.mrf.mxu0
        %v5490 = vadd.f32 %v5257, %v5489
        %v5491 = vpop.f32.mrf.mxu0
        %5492 = vmatprep.mubr.bf16.mxu0 %v4287
        %5493 = vmatmul.mubr.bf16.gmra.mxu0 %v4286
        %v5494 = vpop.f32.mrf.mxu0
        %v5495 = vadd.f32 %v5262, %v5494
        %v5496 = vpop.f32.mrf.mxu0
        %v5497 = vpop.f32.mrf.mxu0
        %v5498 = vadd.f32 %v5265, %v5497
        %v5499 = vpop.f32.mrf.mxu0
        %5500 = vmatprep.mubr.bf16.mxu0 %v4295
        %5501 = vmatmul.mubr.bf16.gmra.mxu0 %v4294
        %v5502 = vpop.f32.mrf.mxu0
        %v5503 = vadd.f32 %v5270, %v5502
        %v5504 = vpop.f32.mrf.mxu0
        %v5505 = vpop.f32.mrf.mxu0
        %v5506 = vadd.f32 %v5273, %v5505
        %v5507 = vpop.f32.mrf.mxu0
        %5508 = vmatprep.mubr.bf16.mxu0 %v4303
        %5509 = vmatmul.mubr.bf16.gmra.mxu0 %v4302
        %v5510 = vpop.f32.mrf.mxu0
        %v5511 = vadd.f32 %v5278, %v5510
        %v5512 = vpop.f32.mrf.mxu0
        %v5513 = vpop.f32.mrf.mxu0
        %v5514 = vadd.f32 %v5281, %v5513
        %v5515 = vpop.f32.mrf.mxu0
        %5516 = vmatprep.mubr.bf16.mxu0 %v4311
        %5517 = vmatmul.mubr.bf16.gmra.mxu0 %v4310
        %v5518 = vpop.f32.mrf.mxu0
        %v5519 = vadd.f32 %v5286, %v5518
        %v5520 = vpop.f32.mrf.mxu0
        %v5521 = vpop.f32.mrf.mxu0
        %v5522 = vadd.f32 %v5289, %v5521
        %v5523 = vpop.f32.mrf.mxu0
        %5524 = vdwg.mxu0
        %5525 = vmatprep.subr.bf16.mxu0 0
        %5526 = vmatpush1.bf16.msra.mxu0 %v4753
        %5527 = vmatprep.subr.bf16.mxu0 0
        %5528 = vmatpush1.bf16.msra.mxu0 %v4752
        %5529 = vmatprep.subr.bf16.mxu0 0
        %5530 = vmatpush1.bf16.msra.mxu0 %v4751
        %5531 = vmatprep.subr.bf16.mxu0 0
        %5532 = vmatpush1.bf16.msra.mxu0 %v4750
        %5533 = vmatprep.subr.bf16.mxu0 0
        %5534 = vmatpush1.bf16.msra.mxu0 %v4749
        %5535 = vmatprep.subr.bf16.mxu0 0
        %5536 = vmatpush1.bf16.msra.mxu0 %v4748
        %5537 = vmatprep.subr.bf16.mxu0 0
        %5538 = vmatpush1.bf16.msra.mxu0 %v4747
        %5539 = vmatprep.subr.bf16.mxu0 0
        %5540 = vmatpush1.bf16.msra.mxu0 %v4746
        %5541 = vmatprep.subr.bf16.mxu0 0
        %5542 = vmatpush2.bf16.msra.mxu0 %v4761
        %5543 = vmatprep.subr.bf16.mxu0 0
        %5544 = vmatpush2.bf16.msra.mxu0 %v4760
        %5545 = vmatprep.subr.bf16.mxu0 0
        %5546 = vmatpush2.bf16.msra.mxu0 %v4759
        %5547 = vmatprep.subr.bf16.mxu0 0
        %5548 = vmatpush2.bf16.msra.mxu0 %v4758
        %5549 = vmatprep.subr.bf16.mxu0 0
        %5550 = vmatpush2.bf16.msra.mxu0 %v4757
        %5551 = vmatprep.subr.bf16.mxu0 0
        %5552 = vmatpush2.bf16.msra.mxu0 %v4756
        %5553 = vmatprep.subr.bf16.mxu0 0
        %5554 = vmatpush2.bf16.msra.mxu0 %v4755
        %5555 = vmatprep.subr.bf16.mxu0 0
        %5556 = vmatpush2.bf16.msra.mxu0 %v4754
        %5557 = vmatprep.mubr.bf16.mxu0 %v4121
        %5558 = vmatmul.mubr.bf16.gmra.mxu0 %v4120
        %v5559 = vpop.f32.mrf.mxu0
        %v5560 = vadd.f32 %v5327, %v5559
        %v5561 = vpop.f32.mrf.mxu0
        %v5562 = vpop.f32.mrf.mxu0
        %v5563 = vadd.f32 %v5330, %v5562
        %v5564 = vpop.f32.mrf.mxu0
        %5565 = vmatprep.mubr.bf16.mxu0 %v4129
        %5566 = vmatmul.mubr.bf16.gmra.mxu0 %v4128
        %v5567 = vpop.f32.mrf.mxu0
        %v5568 = vadd.f32 %v5335, %v5567
        %v5569 = vpop.f32.mrf.mxu0
        %v5570 = vpop.f32.mrf.mxu0
        %v5571 = vadd.f32 %v5338, %v5570
        %v5572 = vpop.f32.mrf.mxu0
        %5573 = vmatprep.mubr.bf16.mxu0 %v4137
        %5574 = vmatmul.mubr.bf16.gmra.mxu0 %v4136
        %v5575 = vpop.f32.mrf.mxu0
        %v5576 = vadd.f32 %v5343, %v5575
        %v5577 = vpop.f32.mrf.mxu0
        %v5578 = vpop.f32.mrf.mxu0
        %v5579 = vadd.f32 %v5346, %v5578
        %v5580 = vpop.f32.mrf.mxu0
        %5581 = vmatprep.mubr.bf16.mxu0 %v4145
        %5582 = vmatmul.mubr.bf16.gmra.mxu0 %v4144
        %v5583 = vpop.f32.mrf.mxu0
        %v5584 = vadd.f32 %v5351, %v5583
        %v5585 = vpop.f32.mrf.mxu0
        %v5586 = vpop.f32.mrf.mxu0
        %v5587 = vadd.f32 %v5354, %v5586
        %v5588 = vpop.f32.mrf.mxu0
        %5589 = vmatprep.mubr.bf16.mxu0 %v4153
        %5590 = vmatmul.mubr.bf16.gmra.mxu0 %v4152
        %v5591 = vpop.f32.mrf.mxu0
        %v5592 = vadd.f32 %v5359, %v5591
        %v5593 = vpop.f32.mrf.mxu0
        %v5594 = vpop.f32.mrf.mxu0
        %v5595 = vadd.f32 %v5362, %v5594
        %v5596 = vpop.f32.mrf.mxu0
        %5597 = vmatprep.mubr.bf16.mxu0 %v4161
        %5598 = vmatmul.mubr.bf16.gmra.mxu0 %v4160
        %v5599 = vpop.f32.mrf.mxu0
        %v5600 = vadd.f32 %v5367, %v5599
        %v5601 = vpop.f32.mrf.mxu0
        %v5602 = vpop.f32.mrf.mxu0
        %v5603 = vadd.f32 %v5370, %v5602
        %v5604 = vpop.f32.mrf.mxu0
        %5605 = vmatprep.mubr.bf16.mxu0 %v4169
        %5606 = vmatmul.mubr.bf16.gmra.mxu0 %v4168
        %v5607 = vpop.f32.mrf.mxu0
        %v5608 = vadd.f32 %v5375, %v5607
        %v5609 = vpop.f32.mrf.mxu0
        %v5610 = vpop.f32.mrf.mxu0
        %v5611 = vadd.f32 %v5378, %v5610
        %v5612 = vpop.f32.mrf.mxu0
        %5613 = vmatprep.mubr.bf16.mxu0 %v4177
        %5614 = vmatmul.mubr.bf16.gmra.mxu0 %v4176
        %v5615 = vpop.f32.mrf.mxu0
        %v5616 = vadd.f32 %v5383, %v5615
        %v5617 = vpop.f32.mrf.mxu0
        %v5618 = vpop.f32.mrf.mxu0
        %v5619 = vadd.f32 %v5386, %v5618
        %v5620 = vpop.f32.mrf.mxu0
        %5621 = vmatprep.mubr.bf16.mxu0 %v4185
        %5622 = vmatmul.mubr.bf16.gmra.mxu0 %v4184
        %v5623 = vpop.f32.mrf.mxu0
        %v5624 = vadd.f32 %v5391, %v5623
        %v5625 = vpop.f32.mrf.mxu0
        %v5626 = vpop.f32.mrf.mxu0
        %v5627 = vadd.f32 %v5394, %v5626
        %v5628 = vpop.f32.mrf.mxu0
        %5629 = vmatprep.mubr.bf16.mxu0 %v4193
        %5630 = vmatmul.mubr.bf16.gmra.mxu0 %v4192
        %v5631 = vpop.f32.mrf.mxu0
        %v5632 = vadd.f32 %v5399, %v5631
        %v5633 = vpop.f32.mrf.mxu0
        %v5634 = vpop.f32.mrf.mxu0
        %v5635 = vadd.f32 %v5402, %v5634
        %v5636 = vpop.f32.mrf.mxu0
        %5637 = vmatprep.mubr.bf16.mxu0 %v4201
        %5638 = vmatmul.mubr.bf16.gmra.mxu0 %v4200
        %v5639 = vpop.f32.mrf.mxu0
        %v5640 = vadd.f32 %v5407, %v5639
        %v5641 = vpop.f32.mrf.mxu0
        %v5642 = vpop.f32.mrf.mxu0
        %v5643 = vadd.f32 %v5410, %v5642
        %v5644 = vpop.f32.mrf.mxu0
        %5645 = vmatprep.mubr.bf16.mxu0 %v4209
        %5646 = vmatmul.mubr.bf16.gmra.mxu0 %v4208
        %v5647 = vpop.f32.mrf.mxu0
        %v5648 = vadd.f32 %v5415, %v5647
        %v5649 = vpop.f32.mrf.mxu0
        %v5650 = vpop.f32.mrf.mxu0
        %v5651 = vadd.f32 %v5418, %v5650
        %v5652 = vpop.f32.mrf.mxu0
        %5653 = vmatprep.mubr.bf16.mxu0 %v4217
        %5654 = vmatmul.mubr.bf16.gmra.mxu0 %v4216
        %v5655 = vpop.f32.mrf.mxu0
        %v5656 = vadd.f32 %v5423, %v5655
        %v5657 = vpop.f32.mrf.mxu0
        %v5658 = vpop.f32.mrf.mxu0
        %v5659 = vadd.f32 %v5426, %v5658
        %v5660 = vpop.f32.mrf.mxu0
        %5661 = vmatprep.mubr.bf16.mxu0 %v4225
        %5662 = vmatmul.mubr.bf16.gmra.mxu0 %v4224
        %v5663 = vpop.f32.mrf.mxu0
        %v5664 = vadd.f32 %v5431, %v5663
        %v5665 = vpop.f32.mrf.mxu0
        %v5666 = vpop.f32.mrf.mxu0
        %v5667 = vadd.f32 %v5434, %v5666
        %v5668 = vpop.f32.mrf.mxu0
        %5669 = vmatprep.mubr.bf16.mxu0 %v4233
        %5670 = vmatmul.mubr.bf16.gmra.mxu0 %v4232
        %v5671 = vpop.f32.mrf.mxu0
        %v5672 = vadd.f32 %v5439, %v5671
        %v5673 = vpop.f32.mrf.mxu0
        %v5674 = vpop.f32.mrf.mxu0
        %v5675 = vadd.f32 %v5442, %v5674
        %v5676 = vpop.f32.mrf.mxu0
        %5677 = vmatprep.mubr.bf16.mxu0 %v4241
        %5678 = vmatmul.mubr.bf16.gmra.mxu0 %v4240
        %v5679 = vpop.f32.mrf.mxu0
        %v5680 = vadd.f32 %v5447, %v5679
        %v5681 = vpop.f32.mrf.mxu0
        %v5682 = vpop.f32.mrf.mxu0
        %v5683 = vadd.f32 %v5450, %v5682
        %v5684 = vpop.f32.mrf.mxu0
        %5685 = vmatprep.mubr.bf16.mxu0 %v4249
        %5686 = vmatmul.mubr.bf16.gmra.mxu0 %v4248
        %v5687 = vpop.f32.mrf.mxu0
        %v5688 = vadd.f32 %v5455, %v5687
        %v5689 = vpop.f32.mrf.mxu0
        %v5690 = vpop.f32.mrf.mxu0
        %v5691 = vadd.f32 %v5458, %v5690
        %v5692 = vpop.f32.mrf.mxu0
        %5693 = vmatprep.mubr.bf16.mxu0 %v4257
        %5694 = vmatmul.mubr.bf16.gmra.mxu0 %v4256
        %v5695 = vpop.f32.mrf.mxu0
        %v5696 = vadd.f32 %v5463, %v5695
        %v5697 = vpop.f32.mrf.mxu0
        %v5698 = vpop.f32.mrf.mxu0
        %v5699 = vadd.f32 %v5466, %v5698
        %v5700 = vpop.f32.mrf.mxu0
        %5701 = vmatprep.mubr.bf16.mxu0 %v4265
        %5702 = vmatmul.mubr.bf16.gmra.mxu0 %v4264
        %v5703 = vpop.f32.mrf.mxu0
        %v5704 = vadd.f32 %v5471, %v5703
        %v5705 = vpop.f32.mrf.mxu0
        %v5706 = vpop.f32.mrf.mxu0
        %v5707 = vadd.f32 %v5474, %v5706
        %v5708 = vpop.f32.mrf.mxu0
        %5709 = vmatprep.mubr.bf16.mxu0 %v4273
        %5710 = vmatmul.mubr.bf16.gmra.mxu0 %v4272
        %v5711 = vpop.f32.mrf.mxu0
        %v5712 = vadd.f32 %v5479, %v5711
        %v5713 = vpop.f32.mrf.mxu0
        %v5714 = vpop.f32.mrf.mxu0
        %v5715 = vadd.f32 %v5482, %v5714
        %v5716 = vpop.f32.mrf.mxu0
        %5717 = vmatprep.mubr.bf16.mxu0 %v4281
        %5718 = vmatmul.mubr.bf16.gmra.mxu0 %v4280
        %v5719 = vpop.f32.mrf.mxu0
        %v5720 = vadd.f32 %v5487, %v5719
        %v5721 = vpop.f32.mrf.mxu0
        %v5722 = vpop.f32.mrf.mxu0
        %v5723 = vadd.f32 %v5490, %v5722
        %v5724 = vpop.f32.mrf.mxu0
        %5725 = vmatprep.mubr.bf16.mxu0 %v4289
        %5726 = vmatmul.mubr.bf16.gmra.mxu0 %v4288
        %v5727 = vpop.f32.mrf.mxu0
        %v5728 = vadd.f32 %v5495, %v5727
        %v5729 = vpop.f32.mrf.mxu0
        %v5730 = vpop.f32.mrf.mxu0
        %v5731 = vadd.f32 %v5498, %v5730
        %v5732 = vpop.f32.mrf.mxu0
        %5733 = vmatprep.mubr.bf16.mxu0 %v4297
        %5734 = vmatmul.mubr.bf16.gmra.mxu0 %v4296
        %v5735 = vpop.f32.mrf.mxu0
        %v5736 = vadd.f32 %v5503, %v5735
        %v5737 = vpop.f32.mrf.mxu0
        %v5738 = vpop.f32.mrf.mxu0
        %v5739 = vadd.f32 %v5506, %v5738
        %v5740 = vpop.f32.mrf.mxu0
        %5741 = vmatprep.mubr.bf16.mxu0 %v4305
        %5742 = vmatmul.mubr.bf16.gmra.mxu0 %v4304
        %v5743 = vpop.f32.mrf.mxu0
        %v5744 = vadd.f32 %v5511, %v5743
        %v5745 = vpop.f32.mrf.mxu0
        %v5746 = vpop.f32.mrf.mxu0
        %v5747 = vadd.f32 %v5514, %v5746
        %v5748 = vpop.f32.mrf.mxu0
        %5749 = vmatprep.mubr.bf16.mxu0 %v4313
        %5750 = vmatmul.mubr.bf16.gmra.mxu0 %v4312
        %v5751 = vpop.f32.mrf.mxu0
        %v5752 = vadd.f32 %v5519, %v5751
        %v5753 = vpop.f32.mrf.mxu0
        %v5754 = vpop.f32.mrf.mxu0
        %v5755 = vadd.f32 %v5522, %v5754
        %v5756 = vpop.f32.mrf.mxu0
        %5757 = vdwg.mxu0
        %v5886 = vunpack.c.l.b16 %v3986
        %v5887 = vunpack.c.l.b16 %v3987
        %v5888 = vunpack.c.l.b16 %v3988
        %v5889 = vunpack.c.l.b16 %v3989
        %v5890 = vunpack.c.l.b16 %v3990
        %v5891 = vunpack.c.l.b16 %v3991
        %v5892 = vunpack.c.l.b16 %v3992
        %v5893 = vunpack.c.l.b16 %v3993
        %v5894 = vunpack.c.l.b16 %v3994
        %v5895 = vunpack.c.l.b16 %v3995
        %v5896 = vunpack.c.l.b16 %v3996
        %v5897 = vunpack.c.l.b16 %v3997
        %v5898 = vunpack.c.l.b16 %v3998
        %v5899 = vunpack.c.l.b16 %v3999
        %v5900 = vunpack.c.l.b16 %v4000
        %v5901 = vunpack.c.l.b16 %v4001
        %v5902 = vunpack.c.l.b16 %v4002
        %v5903 = vunpack.c.l.b16 %v4003
        %v5904 = vunpack.c.l.b16 %v4004
        %v5905 = vunpack.c.l.b16 %v4005
        %v5906 = vunpack.c.l.b16 %v4006
        %v5907 = vunpack.c.l.b16 %v4007
        %v5908 = vunpack.c.l.b16 %v4008
        %v5909 = vunpack.c.l.b16 %v4009
        %v5910 = vunpack.c.l.b16 %v4010
        %v5911 = vunpack.c.l.b16 %v4011
        %v5912 = vunpack.c.l.b16 %v4012
        %v5913 = vunpack.c.l.b16 %v4013
        %v5914 = vunpack.c.l.b16 %v4014
        %v5915 = vunpack.c.l.b16 %v4015
        %v5916 = vunpack.c.l.b16 %v4016
        %v5917 = vunpack.c.l.b16 %v4017
        %v5918 = vunpack.c.l.b16 %v4018
        %v5919 = vunpack.c.l.b16 %v4019
        %v5920 = vunpack.c.l.b16 %v4020
        %v5921 = vunpack.c.l.b16 %v4021
        %v5922 = vunpack.c.l.b16 %v4022
        %v5923 = vunpack.c.l.b16 %v4023
        %v5924 = vunpack.c.l.b16 %v4024
        %v5925 = vunpack.c.l.b16 %v4025
        %v5926 = vunpack.c.l.b16 %v4026
        %v5927 = vunpack.c.l.b16 %v4027
        %v5928 = vunpack.c.l.b16 %v4028
        %v5929 = vunpack.c.l.b16 %v4029
        %v5930 = vunpack.c.l.b16 %v4030
        %v5931 = vunpack.c.l.b16 %v4031
        %v5932 = vunpack.c.l.b16 %v4032
        %v5933 = vunpack.c.l.b16 %v4033
        %v5934 = vunpack.c.l.b16 %v4034
        %v5935 = vunpack.c.l.b16 %v4035
        %v5936 = vunpack.c.l.b16 %v4036
        %v5937 = vunpack.c.l.b16 %v4037
        %v5938 = vunpack.c.l.b16 %v4038
        %v5939 = vunpack.c.l.b16 %v4039
        %v5940 = vunpack.c.l.b16 %v4040
        %v5941 = vunpack.c.l.b16 %v4041
        %v5942 = vunpack.c.l.b16 %v4042
        %v5943 = vunpack.c.l.b16 %v4043
        %v5944 = vunpack.c.l.b16 %v4044
        %v5945 = vunpack.c.l.b16 %v4045
        %v5946 = vunpack.c.l.b16 %v4046
        %v5947 = vunpack.c.l.b16 %v4047
        %v5948 = vunpack.c.l.b16 %v4048
        %v5949 = vunpack.c.l.b16 %v4049
        %v5950 = vunpack.c.l.b16 %v4050
        %v5951 = vunpack.c.l.b16 %v4051
        %v5952 = vunpack.c.l.b16 %v4052
        %v5953 = vunpack.c.l.b16 %v4053
        %v5954 = vunpack.c.l.b16 %v4054
        %v5955 = vunpack.c.l.b16 %v4055
        %v5956 = vunpack.c.l.b16 %v4056
        %v5957 = vunpack.c.l.b16 %v4057
        %v5958 = vunpack.c.l.b16 %v4058
        %v5959 = vunpack.c.l.b16 %v4059
        %v5960 = vunpack.c.l.b16 %v4060
        %v5961 = vunpack.c.l.b16 %v4061
        %v5962 = vunpack.c.l.b16 %v4062
        %v5963 = vunpack.c.l.b16 %v4063
        %v5964 = vunpack.c.l.b16 %v4064
        %v5965 = vunpack.c.l.b16 %v4065
        %v5966 = vunpack.c.l.b16 %v4066
        %v5967 = vunpack.c.l.b16 %v4067
        %v5968 = vunpack.c.l.b16 %v4068
        %v5969 = vunpack.c.l.b16 %v4069
        %v5970 = vunpack.c.l.b16 %v4070
        %v5971 = vunpack.c.l.b16 %v4071
        %v5972 = vunpack.c.l.b16 %v4072
        %v5973 = vunpack.c.l.b16 %v4073
        %v5974 = vunpack.c.l.b16 %v4074
        %v5975 = vunpack.c.l.b16 %v4075
        %v5976 = vunpack.c.l.b16 %v4076
        %v5977 = vunpack.c.l.b16 %v4077
        %v5978 = vunpack.c.l.b16 %v4078
        %v5979 = vunpack.c.l.b16 %v4079
        %v5980 = vunpack.c.l.b16 %v4080
        %v5981 = vunpack.c.l.b16 %v4081
        %v5982 = vunpack.c.l.b16 %v4082
        %v5983 = vunpack.c.l.b16 %v4083
        %v5984 = vunpack.c.l.b16 %v4084
        %v5985 = vunpack.c.l.b16 %v4085
        %v5986 = vunpack.c.l.b16 %v4086
        %v5987 = vunpack.c.l.b16 %v4087
        %v5988 = vunpack.c.l.b16 %v4088
        %v5989 = vunpack.c.l.b16 %v4089
        %v5990 = vunpack.c.l.b16 %v4090
        %v5991 = vunpack.c.l.b16 %v4091
        %v5992 = vunpack.c.l.b16 %v4092
        %v5993 = vunpack.c.l.b16 %v4093
        %v5994 = vunpack.c.l.b16 %v4094
        %v5995 = vunpack.c.l.b16 %v4095
        %v5996 = vunpack.c.l.b16 %v4096
        %v5997 = vunpack.c.l.b16 %v4097
        %v5998 = vunpack.c.l.b16 %v4098
        %v5999 = vunpack.c.l.b16 %v4099
        %v6000 = vunpack.c.l.b16 %v4100
        %v6001 = vunpack.c.l.b16 %v4101
        %v6002 = vunpack.c.l.b16 %v4102
        %v6003 = vunpack.c.l.b16 %v4103
        %v6004 = vunpack.c.l.b16 %v4104
        %v6005 = vunpack.c.l.b16 %v4105
        %v6006 = vunpack.c.l.b16 %v4106
        %v6007 = vunpack.c.l.b16 %v4107
        %v6008 = vunpack.c.l.b16 %v4108
        %v6009 = vunpack.c.l.b16 %v4109
        %v6010 = vunpack.c.l.b16 %v4110
        %v6011 = vunpack.c.l.b16 %v4111
        %v6012 = vunpack.c.l.b16 %v4112
        %v6013 = vunpack.c.l.b16 %v4113
        %v6014 = vpack.c.b16 %v5887, %v5886
        %v6015 = vpack.c.b16 %v5889, %v5888
        %v6016 = vpack.c.b16 %v5891, %v5890
        %v6017 = vpack.c.b16 %v5893, %v5892
        %v6018 = vpack.c.b16 %v5895, %v5894
        %v6019 = vpack.c.b16 %v5897, %v5896
        %v6020 = vpack.c.b16 %v5899, %v5898
        %v6021 = vpack.c.b16 %v5901, %v5900
        %v6022 = vpack.c.b16 %v5903, %v5902
        %v6023 = vpack.c.b16 %v5905, %v5904
        %v6024 = vpack.c.b16 %v5907, %v5906
        %v6025 = vpack.c.b16 %v5909, %v5908
        %v6026 = vpack.c.b16 %v5911, %v5910
        %v6027 = vpack.c.b16 %v5913, %v5912
        %v6028 = vpack.c.b16 %v5915, %v5914
        %v6029 = vpack.c.b16 %v5917, %v5916
        %v6030 = vpack.c.b16 %v5919, %v5918
        %v6031 = vpack.c.b16 %v5921, %v5920
        %v6032 = vpack.c.b16 %v5923, %v5922
        %v6033 = vpack.c.b16 %v5925, %v5924
        %v6034 = vpack.c.b16 %v5927, %v5926
        %v6035 = vpack.c.b16 %v5929, %v5928
        %v6036 = vpack.c.b16 %v5931, %v5930
        %v6037 = vpack.c.b16 %v5933, %v5932
        %v6038 = vpack.c.b16 %v5935, %v5934
        %v6039 = vpack.c.b16 %v5937, %v5936
        %v6040 = vpack.c.b16 %v5939, %v5938
        %v6041 = vpack.c.b16 %v5941, %v5940
        %v6042 = vpack.c.b16 %v5943, %v5942
        %v6043 = vpack.c.b16 %v5945, %v5944
        %v6044 = vpack.c.b16 %v5947, %v5946
        %v6045 = vpack.c.b16 %v5949, %v5948
        %v6046 = vpack.c.b16 %v5951, %v5950
        %v6047 = vpack.c.b16 %v5953, %v5952
        %v6048 = vpack.c.b16 %v5955, %v5954
        %v6049 = vpack.c.b16 %v5957, %v5956
        %v6050 = vpack.c.b16 %v5959, %v5958
        %v6051 = vpack.c.b16 %v5961, %v5960
        %v6052 = vpack.c.b16 %v5963, %v5962
        %v6053 = vpack.c.b16 %v5965, %v5964
        %v6054 = vpack.c.b16 %v5967, %v5966
        %v6055 = vpack.c.b16 %v5969, %v5968
        %v6056 = vpack.c.b16 %v5971, %v5970
        %v6057 = vpack.c.b16 %v5973, %v5972
        %v6058 = vpack.c.b16 %v5975, %v5974
        %v6059 = vpack.c.b16 %v5977, %v5976
        %v6060 = vpack.c.b16 %v5979, %v5978
        %v6061 = vpack.c.b16 %v5981, %v5980
        %v6062 = vpack.c.b16 %v5983, %v5982
        %v6063 = vpack.c.b16 %v5985, %v5984
        %v6064 = vpack.c.b16 %v5987, %v5986
        %v6065 = vpack.c.b16 %v5989, %v5988
        %v6066 = vpack.c.b16 %v5991, %v5990
        %v6067 = vpack.c.b16 %v5993, %v5992
        %v6068 = vpack.c.b16 %v5995, %v5994
        %v6069 = vpack.c.b16 %v5997, %v5996
        %v6070 = vpack.c.b16 %v5999, %v5998
        %v6071 = vpack.c.b16 %v6001, %v6000
        %v6072 = vpack.c.b16 %v6003, %v6002
        %v6073 = vpack.c.b16 %v6005, %v6004
        %v6074 = vpack.c.b16 %v6007, %v6006
        %v6075 = vpack.c.b16 %v6009, %v6008
        %v6076 = vpack.c.b16 %v6011, %v6010
        %v6077 = vpack.c.b16 %v6013, %v6012
        %6142 = vmatprep.subr.bf16.mxu0 0
        %6143 = vmatpush1.bf16.msra.mxu0 %v6021
        %6144 = vmatprep.subr.bf16.mxu0 0
        %6145 = vmatpush1.bf16.msra.mxu0 %v6020
        %6146 = vmatprep.subr.bf16.mxu0 0
        %6147 = vmatpush1.bf16.msra.mxu0 %v6019
        %6148 = vmatprep.subr.bf16.mxu0 0
        %6149 = vmatpush1.bf16.msra.mxu0 %v6018
        %6150 = vmatprep.subr.bf16.mxu0 0
        %6151 = vmatpush1.bf16.msra.mxu0 %v6017
        %6152 = vmatprep.subr.bf16.mxu0 0
        %6153 = vmatpush1.bf16.msra.mxu0 %v6016
        %6154 = vmatprep.subr.bf16.mxu0 0
        %6155 = vmatpush1.bf16.msra.mxu0 %v6015
        %6156 = vmatprep.subr.bf16.mxu0 0
        %6157 = vmatpush1.bf16.msra.mxu0 %v6014
        %6158 = vmatprep.subr.bf16.mxu0 0
        %6159 = vmatpush2.bf16.msra.mxu0 %v6029
        %6160 = vmatprep.subr.bf16.mxu0 0
        %6161 = vmatpush2.bf16.msra.mxu0 %v6028
        %6162 = vmatprep.subr.bf16.mxu0 0
        %6163 = vmatpush2.bf16.msra.mxu0 %v6027
        %6164 = vmatprep.subr.bf16.mxu0 0
        %6165 = vmatpush2.bf16.msra.mxu0 %v6026
        %6166 = vmatprep.subr.bf16.mxu0 0
        %6167 = vmatpush2.bf16.msra.mxu0 %v6025
        %6168 = vmatprep.subr.bf16.mxu0 0
        %6169 = vmatpush2.bf16.msra.mxu0 %v6024
        %6170 = vmatprep.subr.bf16.mxu0 0
        %6171 = vmatpush2.bf16.msra.mxu0 %v6023
        %6172 = vmatprep.subr.bf16.mxu0 0
        %6173 = vmatpush2.bf16.msra.mxu0 %v6022
        %6174 = vmatprep.mubr.bf16.mxu0 %v3787
        %6175 = vmatmul.mubr.bf16.gmra.mxu0 %v3786
        %v6176 = vpop.f32.mrf.mxu0
        %v6177 = vadd.f32 %v5560, %v6176
        %v6178 = vpop.f32.mrf.mxu0
        %v6179 = vpop.f32.mrf.mxu0
        %v6180 = vadd.f32 %v5563, %v6179
        %v6181 = vpop.f32.mrf.mxu0
        %6182 = vmatprep.mubr.bf16.mxu0 %v3795
        %6183 = vmatmul.mubr.bf16.gmra.mxu0 %v3794
        %v6184 = vpop.f32.mrf.mxu0
        %v6185 = vadd.f32 %v5568, %v6184
        %v6186 = vpop.f32.mrf.mxu0
        %v6187 = vpop.f32.mrf.mxu0
        %v6188 = vadd.f32 %v5571, %v6187
        %v6189 = vpop.f32.mrf.mxu0
        %6190 = vmatprep.mubr.bf16.mxu0 %v3803
        %6191 = vmatmul.mubr.bf16.gmra.mxu0 %v3802
        %v6192 = vpop.f32.mrf.mxu0
        %v6193 = vadd.f32 %v5576, %v6192
        %v6194 = vpop.f32.mrf.mxu0
        %v6195 = vpop.f32.mrf.mxu0
        %v6196 = vadd.f32 %v5579, %v6195
        %v6197 = vpop.f32.mrf.mxu0
        %6198 = vmatprep.mubr.bf16.mxu0 %v3811
        %6199 = vmatmul.mubr.bf16.gmra.mxu0 %v3810
        %v6200 = vpop.f32.mrf.mxu0
        %v6201 = vadd.f32 %v5584, %v6200
        %v6202 = vpop.f32.mrf.mxu0
        %v6203 = vpop.f32.mrf.mxu0
        %v6204 = vadd.f32 %v5587, %v6203
        %v6205 = vpop.f32.mrf.mxu0
        %6206 = vmatprep.mubr.bf16.mxu0 %v3819
        %6207 = vmatmul.mubr.bf16.gmra.mxu0 %v3818
        %v6208 = vpop.f32.mrf.mxu0
        %v6209 = vadd.f32 %v5592, %v6208
        %v6210 = vpop.f32.mrf.mxu0
        %v6211 = vpop.f32.mrf.mxu0
        %v6212 = vadd.f32 %v5595, %v6211
        %v6213 = vpop.f32.mrf.mxu0
        %6214 = vmatprep.mubr.bf16.mxu0 %v3827
        %6215 = vmatmul.mubr.bf16.gmra.mxu0 %v3826
        %v6216 = vpop.f32.mrf.mxu0
        %v6217 = vadd.f32 %v5600, %v6216
        %v6218 = vpop.f32.mrf.mxu0
        %v6219 = vpop.f32.mrf.mxu0
        %v6220 = vadd.f32 %v5603, %v6219
        %v6221 = vpop.f32.mrf.mxu0
        %6222 = vmatprep.mubr.bf16.mxu0 %v3835
        %6223 = vmatmul.mubr.bf16.gmra.mxu0 %v3834
        %v6224 = vpop.f32.mrf.mxu0
        %v6225 = vadd.f32 %v5608, %v6224
        %v6226 = vpop.f32.mrf.mxu0
        %v6227 = vpop.f32.mrf.mxu0
        %v6228 = vadd.f32 %v5611, %v6227
        %v6229 = vpop.f32.mrf.mxu0
        %6230 = vmatprep.mubr.bf16.mxu0 %v3843
        %6231 = vmatmul.mubr.bf16.gmra.mxu0 %v3842
        %v6232 = vpop.f32.mrf.mxu0
        %v6233 = vadd.f32 %v5616, %v6232
        %v6234 = vpop.f32.mrf.mxu0
        %v6235 = vpop.f32.mrf.mxu0
        %v6236 = vadd.f32 %v5619, %v6235
        %v6237 = vpop.f32.mrf.mxu0
        %6238 = vmatprep.mubr.bf16.mxu0 %v3851
        %6239 = vmatmul.mubr.bf16.gmra.mxu0 %v3850
        %v6240 = vpop.f32.mrf.mxu0
        %v6241 = vadd.f32 %v5624, %v6240
        %v6242 = vpop.f32.mrf.mxu0
        %v6243 = vpop.f32.mrf.mxu0
        %v6244 = vadd.f32 %v5627, %v6243
        %v6245 = vpop.f32.mrf.mxu0
        %6246 = vmatprep.mubr.bf16.mxu0 %v3859
        %6247 = vmatmul.mubr.bf16.gmra.mxu0 %v3858
        %v6248 = vpop.f32.mrf.mxu0
        %v6249 = vadd.f32 %v5632, %v6248
        %v6250 = vpop.f32.mrf.mxu0
        %v6251 = vpop.f32.mrf.mxu0
        %v6252 = vadd.f32 %v5635, %v6251
        %v6253 = vpop.f32.mrf.mxu0
        %6254 = vmatprep.mubr.bf16.mxu0 %v3867
        %6255 = vmatmul.mubr.bf16.gmra.mxu0 %v3866
        %v6256 = vpop.f32.mrf.mxu0
        %v6257 = vadd.f32 %v5640, %v6256
        %v6258 = vpop.f32.mrf.mxu0
        %v6259 = vpop.f32.mrf.mxu0
        %v6260 = vadd.f32 %v5643, %v6259
        %v6261 = vpop.f32.mrf.mxu0
        %6262 = vmatprep.mubr.bf16.mxu0 %v3875
        %6263 = vmatmul.mubr.bf16.gmra.mxu0 %v3874
        %v6264 = vpop.f32.mrf.mxu0
        %v6265 = vadd.f32 %v5648, %v6264
        %v6266 = vpop.f32.mrf.mxu0
        %v6267 = vpop.f32.mrf.mxu0
        %v6268 = vadd.f32 %v5651, %v6267
        %v6269 = vpop.f32.mrf.mxu0
        %6270 = vmatprep.mubr.bf16.mxu0 %v3883
        %6271 = vmatmul.mubr.bf16.gmra.mxu0 %v3882
        %v6272 = vpop.f32.mrf.mxu0
        %v6273 = vadd.f32 %v5656, %v6272
        %v6274 = vpop.f32.mrf.mxu0
        %v6275 = vpop.f32.mrf.mxu0
        %v6276 = vadd.f32 %v5659, %v6275
        %v6277 = vpop.f32.mrf.mxu0
        %6278 = vmatprep.mubr.bf16.mxu0 %v3891
        %6279 = vmatmul.mubr.bf16.gmra.mxu0 %v3890
        %v6280 = vpop.f32.mrf.mxu0
        %v6281 = vadd.f32 %v5664, %v6280
        %v6282 = vpop.f32.mrf.mxu0
        %v6283 = vpop.f32.mrf.mxu0
        %v6284 = vadd.f32 %v5667, %v6283
        %v6285 = vpop.f32.mrf.mxu0
        %6286 = vmatprep.mubr.bf16.mxu0 %v3899
        %6287 = vmatmul.mubr.bf16.gmra.mxu0 %v3898
        %v6288 = vpop.f32.mrf.mxu0
        %v6289 = vadd.f32 %v5672, %v6288
        %v6290 = vpop.f32.mrf.mxu0
        %v6291 = vpop.f32.mrf.mxu0
        %v6292 = vadd.f32 %v5675, %v6291
        %v6293 = vpop.f32.mrf.mxu0
        %6294 = vmatprep.mubr.bf16.mxu0 %v3907
        %6295 = vmatmul.mubr.bf16.gmra.mxu0 %v3906
        %v6296 = vpop.f32.mrf.mxu0
        %v6297 = vadd.f32 %v5680, %v6296
        %v6298 = vpop.f32.mrf.mxu0
        %v6299 = vpop.f32.mrf.mxu0
        %v6300 = vadd.f32 %v5683, %v6299
        %v6301 = vpop.f32.mrf.mxu0
        %6302 = vmatprep.mubr.bf16.mxu0 %v3915
        %6303 = vmatmul.mubr.bf16.gmra.mxu0 %v3914
        %v6304 = vpop.f32.mrf.mxu0
        %v6305 = vadd.f32 %v5688, %v6304
        %v6306 = vpop.f32.mrf.mxu0
        %v6307 = vpop.f32.mrf.mxu0
        %v6308 = vadd.f32 %v5691, %v6307
        %v6309 = vpop.f32.mrf.mxu0
        %6310 = vmatprep.mubr.bf16.mxu0 %v3923
        %6311 = vmatmul.mubr.bf16.gmra.mxu0 %v3922
        %v6312 = vpop.f32.mrf.mxu0
        %v6313 = vadd.f32 %v5696, %v6312
        %v6314 = vpop.f32.mrf.mxu0
        %v6315 = vpop.f32.mrf.mxu0
        %v6316 = vadd.f32 %v5699, %v6315
        %v6317 = vpop.f32.mrf.mxu0
        %6318 = vmatprep.mubr.bf16.mxu0 %v3931
        %6319 = vmatmul.mubr.bf16.gmra.mxu0 %v3930
        %v6320 = vpop.f32.mrf.mxu0
        %v6321 = vadd.f32 %v5704, %v6320
        %v6322 = vpop.f32.mrf.mxu0
        %v6323 = vpop.f32.mrf.mxu0
        %v6324 = vadd.f32 %v5707, %v6323
        %v6325 = vpop.f32.mrf.mxu0
        %6326 = vmatprep.mubr.bf16.mxu0 %v3939
        %6327 = vmatmul.mubr.bf16.gmra.mxu0 %v3938
        %v6328 = vpop.f32.mrf.mxu0
        %v6329 = vadd.f32 %v5712, %v6328
        %v6330 = vpop.f32.mrf.mxu0
        %v6331 = vpop.f32.mrf.mxu0
        %v6332 = vadd.f32 %v5715, %v6331
        %v6333 = vpop.f32.mrf.mxu0
        %6334 = vmatprep.mubr.bf16.mxu0 %v3947
        %6335 = vmatmul.mubr.bf16.gmra.mxu0 %v3946
        %v6336 = vpop.f32.mrf.mxu0
        %v6337 = vadd.f32 %v5720, %v6336
        %v6338 = vpop.f32.mrf.mxu0
        %v6339 = vpop.f32.mrf.mxu0
        %v6340 = vadd.f32 %v5723, %v6339
        %v6341 = vpop.f32.mrf.mxu0
        %6342 = vmatprep.mubr.bf16.mxu0 %v3955
        %6343 = vmatmul.mubr.bf16.gmra.mxu0 %v3954
        %v6344 = vpop.f32.mrf.mxu0
        %v6345 = vadd.f32 %v5728, %v6344
        %v6346 = vpop.f32.mrf.mxu0
        %v6347 = vpop.f32.mrf.mxu0
        %v6348 = vadd.f32 %v5731, %v6347
        %v6349 = vpop.f32.mrf.mxu0
        %6350 = vmatprep.mubr.bf16.mxu0 %v3963
        %6351 = vmatmul.mubr.bf16.gmra.mxu0 %v3962
        %v6352 = vpop.f32.mrf.mxu0
        %v6353 = vadd.f32 %v5736, %v6352
        %v6354 = vpop.f32.mrf.mxu0
        %v6355 = vpop.f32.mrf.mxu0
        %v6356 = vadd.f32 %v5739, %v6355
        %v6357 = vpop.f32.mrf.mxu0
        %6358 = vmatprep.mubr.bf16.mxu0 %v3971
        %6359 = vmatmul.mubr.bf16.gmra.mxu0 %v3970
        %v6360 = vpop.f32.mrf.mxu0
        %v6361 = vadd.f32 %v5744, %v6360
        %v6362 = vpop.f32.mrf.mxu0
        %v6363 = vpop.f32.mrf.mxu0
        %v6364 = vadd.f32 %v5747, %v6363
        %v6365 = vpop.f32.mrf.mxu0
        %6366 = vmatprep.mubr.bf16.mxu0 %v3979
        %6367 = vmatmul.mubr.bf16.gmra.mxu0 %v3978
        %v6368 = vpop.f32.mrf.mxu0
        %v6369 = vadd.f32 %v5752, %v6368
        %v6370 = vpop.f32.mrf.mxu0
        %v6371 = vpop.f32.mrf.mxu0
        %v6372 = vadd.f32 %v5755, %v6371
        %v6373 = vpop.f32.mrf.mxu0
        %6374 = vdwg.mxu0
        %6375 = vmatprep.subr.bf16.mxu0 0
        %6376 = vmatpush1.bf16.msra.mxu0 %v6037
        %6377 = vmatprep.subr.bf16.mxu0 0
        %6378 = vmatpush1.bf16.msra.mxu0 %v6036
        %6379 = vmatprep.subr.bf16.mxu0 0
        %6380 = vmatpush1.bf16.msra.mxu0 %v6035
        %6381 = vmatprep.subr.bf16.mxu0 0
        %6382 = vmatpush1.bf16.msra.mxu0 %v6034
        %6383 = vmatprep.subr.bf16.mxu0 0
        %6384 = vmatpush1.bf16.msra.mxu0 %v6033
        %6385 = vmatprep.subr.bf16.mxu0 0
        %6386 = vmatpush1.bf16.msra.mxu0 %v6032
        %6387 = vmatprep.subr.bf16.mxu0 0
        %6388 = vmatpush1.bf16.msra.mxu0 %v6031
        %6389 = vmatprep.subr.bf16.mxu0 0
        %6390 = vmatpush1.bf16.msra.mxu0 %v6030
        %6391 = vmatprep.subr.bf16.mxu0 0
        %6392 = vmatpush2.bf16.msra.mxu0 %v6045
        %6393 = vmatprep.subr.bf16.mxu0 0
        %6394 = vmatpush2.bf16.msra.mxu0 %v6044
        %6395 = vmatprep.subr.bf16.mxu0 0
        %6396 = vmatpush2.bf16.msra.mxu0 %v6043
        %6397 = vmatprep.subr.bf16.mxu0 0
        %6398 = vmatpush2.bf16.msra.mxu0 %v6042
        %6399 = vmatprep.subr.bf16.mxu0 0
        %6400 = vmatpush2.bf16.msra.mxu0 %v6041
        %6401 = vmatprep.subr.bf16.mxu0 0
        %6402 = vmatpush2.bf16.msra.mxu0 %v6040
        %6403 = vmatprep.subr.bf16.mxu0 0
        %6404 = vmatpush2.bf16.msra.mxu0 %v6039
        %6405 = vmatprep.subr.bf16.mxu0 0
        %6406 = vmatpush2.bf16.msra.mxu0 %v6038
        %6407 = vmatprep.mubr.bf16.mxu0 %v3789
        %6408 = vmatmul.mubr.bf16.gmra.mxu0 %v3788
        %v6409 = vpop.f32.mrf.mxu0
        %v6410 = vadd.f32 %v6177, %v6409
        %v6411 = vpop.f32.mrf.mxu0
        %v6412 = vpop.f32.mrf.mxu0
        %v6413 = vadd.f32 %v6180, %v6412
        %v6414 = vpop.f32.mrf.mxu0
        %6415 = vmatprep.mubr.bf16.mxu0 %v3797
        %6416 = vmatmul.mubr.bf16.gmra.mxu0 %v3796
        %v6417 = vpop.f32.mrf.mxu0
        %v6418 = vadd.f32 %v6185, %v6417
        %v6419 = vpop.f32.mrf.mxu0
        %v6420 = vpop.f32.mrf.mxu0
        %v6421 = vadd.f32 %v6188, %v6420
        %v6422 = vpop.f32.mrf.mxu0
        %6423 = vmatprep.mubr.bf16.mxu0 %v3805
        %6424 = vmatmul.mubr.bf16.gmra.mxu0 %v3804
        %v6425 = vpop.f32.mrf.mxu0
        %v6426 = vadd.f32 %v6193, %v6425
        %v6427 = vpop.f32.mrf.mxu0
        %v6428 = vpop.f32.mrf.mxu0
        %v6429 = vadd.f32 %v6196, %v6428
        %v6430 = vpop.f32.mrf.mxu0
        %6431 = vmatprep.mubr.bf16.mxu0 %v3813
        %6432 = vmatmul.mubr.bf16.gmra.mxu0 %v3812
        %v6433 = vpop.f32.mrf.mxu0
        %v6434 = vadd.f32 %v6201, %v6433
        %v6435 = vpop.f32.mrf.mxu0
        %v6436 = vpop.f32.mrf.mxu0
        %v6437 = vadd.f32 %v6204, %v6436
        %v6438 = vpop.f32.mrf.mxu0
        %6439 = vmatprep.mubr.bf16.mxu0 %v3821
        %6440 = vmatmul.mubr.bf16.gmra.mxu0 %v3820
        %v6441 = vpop.f32.mrf.mxu0
        %v6442 = vadd.f32 %v6209, %v6441
        %v6443 = vpop.f32.mrf.mxu0
        %v6444 = vpop.f32.mrf.mxu0
        %v6445 = vadd.f32 %v6212, %v6444
        %v6446 = vpop.f32.mrf.mxu0
        %6447 = vmatprep.mubr.bf16.mxu0 %v3829
        %6448 = vmatmul.mubr.bf16.gmra.mxu0 %v3828
        %v6449 = vpop.f32.mrf.mxu0
        %v6450 = vadd.f32 %v6217, %v6449
        %v6451 = vpop.f32.mrf.mxu0
        %v6452 = vpop.f32.mrf.mxu0
        %v6453 = vadd.f32 %v6220, %v6452
        %v6454 = vpop.f32.mrf.mxu0
        %6455 = vmatprep.mubr.bf16.mxu0 %v3837
        %6456 = vmatmul.mubr.bf16.gmra.mxu0 %v3836
        %v6457 = vpop.f32.mrf.mxu0
        %v6458 = vadd.f32 %v6225, %v6457
        %v6459 = vpop.f32.mrf.mxu0
        %v6460 = vpop.f32.mrf.mxu0
        %v6461 = vadd.f32 %v6228, %v6460
        %v6462 = vpop.f32.mrf.mxu0
        %6463 = vmatprep.mubr.bf16.mxu0 %v3845
        %6464 = vmatmul.mubr.bf16.gmra.mxu0 %v3844
        %v6465 = vpop.f32.mrf.mxu0
        %v6466 = vadd.f32 %v6233, %v6465
        %v6467 = vpop.f32.mrf.mxu0
        %v6468 = vpop.f32.mrf.mxu0
        %v6469 = vadd.f32 %v6236, %v6468
        %v6470 = vpop.f32.mrf.mxu0
        %6471 = vmatprep.mubr.bf16.mxu0 %v3853
        %6472 = vmatmul.mubr.bf16.gmra.mxu0 %v3852
        %v6473 = vpop.f32.mrf.mxu0
        %v6474 = vadd.f32 %v6241, %v6473
        %v6475 = vpop.f32.mrf.mxu0
        %v6476 = vpop.f32.mrf.mxu0
        %v6477 = vadd.f32 %v6244, %v6476
        %v6478 = vpop.f32.mrf.mxu0
        %6479 = vmatprep.mubr.bf16.mxu0 %v3861
        %6480 = vmatmul.mubr.bf16.gmra.mxu0 %v3860
        %v6481 = vpop.f32.mrf.mxu0
        %v6482 = vadd.f32 %v6249, %v6481
        %v6483 = vpop.f32.mrf.mxu0
        %v6484 = vpop.f32.mrf.mxu0
        %v6485 = vadd.f32 %v6252, %v6484
        %v6486 = vpop.f32.mrf.mxu0
        %6487 = vmatprep.mubr.bf16.mxu0 %v3869
        %6488 = vmatmul.mubr.bf16.gmra.mxu0 %v3868
        %v6489 = vpop.f32.mrf.mxu0
        %v6490 = vadd.f32 %v6257, %v6489
        %v6491 = vpop.f32.mrf.mxu0
        %v6492 = vpop.f32.mrf.mxu0
        %v6493 = vadd.f32 %v6260, %v6492
        %v6494 = vpop.f32.mrf.mxu0
        %6495 = vmatprep.mubr.bf16.mxu0 %v3877
        %6496 = vmatmul.mubr.bf16.gmra.mxu0 %v3876
        %v6497 = vpop.f32.mrf.mxu0
        %v6498 = vadd.f32 %v6265, %v6497
        %v6499 = vpop.f32.mrf.mxu0
        %v6500 = vpop.f32.mrf.mxu0
        %v6501 = vadd.f32 %v6268, %v6500
        %v6502 = vpop.f32.mrf.mxu0
        %6503 = vmatprep.mubr.bf16.mxu0 %v3885
        %6504 = vmatmul.mubr.bf16.gmra.mxu0 %v3884
        %v6505 = vpop.f32.mrf.mxu0
        %v6506 = vadd.f32 %v6273, %v6505
        %v6507 = vpop.f32.mrf.mxu0
        %v6508 = vpop.f32.mrf.mxu0
        %v6509 = vadd.f32 %v6276, %v6508
        %v6510 = vpop.f32.mrf.mxu0
        %6511 = vmatprep.mubr.bf16.mxu0 %v3893
        %6512 = vmatmul.mubr.bf16.gmra.mxu0 %v3892
        %v6513 = vpop.f32.mrf.mxu0
        %v6514 = vadd.f32 %v6281, %v6513
        %v6515 = vpop.f32.mrf.mxu0
        %v6516 = vpop.f32.mrf.mxu0
        %v6517 = vadd.f32 %v6284, %v6516
        %v6518 = vpop.f32.mrf.mxu0
        %6519 = vmatprep.mubr.bf16.mxu0 %v3901
        %6520 = vmatmul.mubr.bf16.gmra.mxu0 %v3900
        %v6521 = vpop.f32.mrf.mxu0
        %v6522 = vadd.f32 %v6289, %v6521
        %v6523 = vpop.f32.mrf.mxu0
        %v6524 = vpop.f32.mrf.mxu0
        %v6525 = vadd.f32 %v6292, %v6524
        %v6526 = vpop.f32.mrf.mxu0
        %6527 = vmatprep.mubr.bf16.mxu0 %v3909
        %6528 = vmatmul.mubr.bf16.gmra.mxu0 %v3908
        %v6529 = vpop.f32.mrf.mxu0
        %v6530 = vadd.f32 %v6297, %v6529
        %v6531 = vpop.f32.mrf.mxu0
        %v6532 = vpop.f32.mrf.mxu0
        %v6533 = vadd.f32 %v6300, %v6532
        %v6534 = vpop.f32.mrf.mxu0
        %6535 = vmatprep.mubr.bf16.mxu0 %v3917
        %6536 = vmatmul.mubr.bf16.gmra.mxu0 %v3916
        %v6537 = vpop.f32.mrf.mxu0
        %v6538 = vadd.f32 %v6305, %v6537
        %v6539 = vpop.f32.mrf.mxu0
        %v6540 = vpop.f32.mrf.mxu0
        %v6541 = vadd.f32 %v6308, %v6540
        %v6542 = vpop.f32.mrf.mxu0
        %6543 = vmatprep.mubr.bf16.mxu0 %v3925
        %6544 = vmatmul.mubr.bf16.gmra.mxu0 %v3924
        %v6545 = vpop.f32.mrf.mxu0
        %v6546 = vadd.f32 %v6313, %v6545
        %v6547 = vpop.f32.mrf.mxu0
        %v6548 = vpop.f32.mrf.mxu0
        %v6549 = vadd.f32 %v6316, %v6548
        %v6550 = vpop.f32.mrf.mxu0
        %6551 = vmatprep.mubr.bf16.mxu0 %v3933
        %6552 = vmatmul.mubr.bf16.gmra.mxu0 %v3932
        %v6553 = vpop.f32.mrf.mxu0
        %v6554 = vadd.f32 %v6321, %v6553
        %v6555 = vpop.f32.mrf.mxu0
        %v6556 = vpop.f32.mrf.mxu0
        %v6557 = vadd.f32 %v6324, %v6556
        %v6558 = vpop.f32.mrf.mxu0
        %6559 = vmatprep.mubr.bf16.mxu0 %v3941
        %6560 = vmatmul.mubr.bf16.gmra.mxu0 %v3940
        %v6561 = vpop.f32.mrf.mxu0
        %v6562 = vadd.f32 %v6329, %v6561
        %v6563 = vpop.f32.mrf.mxu0
        %v6564 = vpop.f32.mrf.mxu0
        %v6565 = vadd.f32 %v6332, %v6564
        %v6566 = vpop.f32.mrf.mxu0
        %6567 = vmatprep.mubr.bf16.mxu0 %v3949
        %6568 = vmatmul.mubr.bf16.gmra.mxu0 %v3948
        %v6569 = vpop.f32.mrf.mxu0
        %v6570 = vadd.f32 %v6337, %v6569
        %v6571 = vpop.f32.mrf.mxu0
        %v6572 = vpop.f32.mrf.mxu0
        %v6573 = vadd.f32 %v6340, %v6572
        %v6574 = vpop.f32.mrf.mxu0
        %6575 = vmatprep.mubr.bf16.mxu0 %v3957
        %6576 = vmatmul.mubr.bf16.gmra.mxu0 %v3956
        %v6577 = vpop.f32.mrf.mxu0
        %v6578 = vadd.f32 %v6345, %v6577
        %v6579 = vpop.f32.mrf.mxu0
        %v6580 = vpop.f32.mrf.mxu0
        %v6581 = vadd.f32 %v6348, %v6580
        %v6582 = vpop.f32.mrf.mxu0
        %6583 = vmatprep.mubr.bf16.mxu0 %v3965
        %6584 = vmatmul.mubr.bf16.gmra.mxu0 %v3964
        %v6585 = vpop.f32.mrf.mxu0
        %v6586 = vadd.f32 %v6353, %v6585
        %v6587 = vpop.f32.mrf.mxu0
        %v6588 = vpop.f32.mrf.mxu0
        %v6589 = vadd.f32 %v6356, %v6588
        %v6590 = vpop.f32.mrf.mxu0
        %6591 = vmatprep.mubr.bf16.mxu0 %v3973
        %6592 = vmatmul.mubr.bf16.gmra.mxu0 %v3972
        %v6593 = vpop.f32.mrf.mxu0
        %v6594 = vadd.f32 %v6361, %v6593
        %v6595 = vpop.f32.mrf.mxu0
        %v6596 = vpop.f32.mrf.mxu0
        %v6597 = vadd.f32 %v6364, %v6596
        %v6598 = vpop.f32.mrf.mxu0
        %6599 = vmatprep.mubr.bf16.mxu0 %v3981
        %6600 = vmatmul.mubr.bf16.gmra.mxu0 %v3980
        %v6601 = vpop.f32.mrf.mxu0
        %v6602 = vadd.f32 %v6369, %v6601
        %v6603 = vpop.f32.mrf.mxu0
        %v6604 = vpop.f32.mrf.mxu0
        %v6605 = vadd.f32 %v6372, %v6604
        %v6606 = vpop.f32.mrf.mxu0
        %6607 = vdwg.mxu0
        %6608 = vmatprep.subr.bf16.mxu0 0
        %6609 = vmatpush1.bf16.msra.mxu0 %v6053
        %6610 = vmatprep.subr.bf16.mxu0 0
        %6611 = vmatpush1.bf16.msra.mxu0 %v6052
        %6612 = vmatprep.subr.bf16.mxu0 0
        %6613 = vmatpush1.bf16.msra.mxu0 %v6051
        %6614 = vmatprep.subr.bf16.mxu0 0
        %6615 = vmatpush1.bf16.msra.mxu0 %v6050
        %6616 = vmatprep.subr.bf16.mxu0 0
        %6617 = vmatpush1.bf16.msra.mxu0 %v6049
        %6618 = vmatprep.subr.bf16.mxu0 0
        %6619 = vmatpush1.bf16.msra.mxu0 %v6048
        %6620 = vmatprep.subr.bf16.mxu0 0
        %6621 = vmatpush1.bf16.msra.mxu0 %v6047
        %6622 = vmatprep.subr.bf16.mxu0 0
        %6623 = vmatpush1.bf16.msra.mxu0 %v6046
        %6624 = vmatprep.subr.bf16.mxu0 0
        %6625 = vmatpush2.bf16.msra.mxu0 %v6061
        %6626 = vmatprep.subr.bf16.mxu0 0
        %6627 = vmatpush2.bf16.msra.mxu0 %v6060
        %6628 = vmatprep.subr.bf16.mxu0 0
        %6629 = vmatpush2.bf16.msra.mxu0 %v6059
        %6630 = vmatprep.subr.bf16.mxu0 0
        %6631 = vmatpush2.bf16.msra.mxu0 %v6058
        %6632 = vmatprep.subr.bf16.mxu0 0
        %6633 = vmatpush2.bf16.msra.mxu0 %v6057
        %6634 = vmatprep.subr.bf16.mxu0 0
        %6635 = vmatpush2.bf16.msra.mxu0 %v6056
        %6636 = vmatprep.subr.bf16.mxu0 0
        %6637 = vmatpush2.bf16.msra.mxu0 %v6055
        %6638 = vmatprep.subr.bf16.mxu0 0
        %6639 = vmatpush2.bf16.msra.mxu0 %v6054
        %6640 = vmatprep.mubr.bf16.mxu0 %v3791
        %6641 = vmatmul.mubr.bf16.gmra.mxu0 %v3790
        %v6642 = vpop.f32.mrf.mxu0
        %v6643 = vadd.f32 %v6410, %v6642
        %v6644 = vpop.f32.mrf.mxu0
        %v6645 = vpop.f32.mrf.mxu0
        %v6646 = vadd.f32 %v6413, %v6645
        %v6647 = vpop.f32.mrf.mxu0
        %6648 = vmatprep.mubr.bf16.mxu0 %v3799
        %6649 = vmatmul.mubr.bf16.gmra.mxu0 %v3798
        %v6650 = vpop.f32.mrf.mxu0
        %v6651 = vadd.f32 %v6418, %v6650
        %v6652 = vpop.f32.mrf.mxu0
        %v6653 = vpop.f32.mrf.mxu0
        %v6654 = vadd.f32 %v6421, %v6653
        %v6655 = vpop.f32.mrf.mxu0
        %6656 = vmatprep.mubr.bf16.mxu0 %v3807
        %6657 = vmatmul.mubr.bf16.gmra.mxu0 %v3806
        %v6658 = vpop.f32.mrf.mxu0
        %v6659 = vadd.f32 %v6426, %v6658
        %v6660 = vpop.f32.mrf.mxu0
        %v6661 = vpop.f32.mrf.mxu0
        %v6662 = vadd.f32 %v6429, %v6661
        %v6663 = vpop.f32.mrf.mxu0
        %6664 = vmatprep.mubr.bf16.mxu0 %v3815
        %6665 = vmatmul.mubr.bf16.gmra.mxu0 %v3814
        %v6666 = vpop.f32.mrf.mxu0
        %v6667 = vadd.f32 %v6434, %v6666
        %v6668 = vpop.f32.mrf.mxu0
        %v6669 = vpop.f32.mrf.mxu0
        %v6670 = vadd.f32 %v6437, %v6669
        %v6671 = vpop.f32.mrf.mxu0
        %6672 = vmatprep.mubr.bf16.mxu0 %v3823
        %6673 = vmatmul.mubr.bf16.gmra.mxu0 %v3822
        %v6674 = vpop.f32.mrf.mxu0
        %v6675 = vadd.f32 %v6442, %v6674
        %v6676 = vpop.f32.mrf.mxu0
        %v6677 = vpop.f32.mrf.mxu0
        %v6678 = vadd.f32 %v6445, %v6677
        %v6679 = vpop.f32.mrf.mxu0
        %6680 = vmatprep.mubr.bf16.mxu0 %v3831
        %6681 = vmatmul.mubr.bf16.gmra.mxu0 %v3830
        %v6682 = vpop.f32.mrf.mxu0
        %v6683 = vadd.f32 %v6450, %v6682
        %v6684 = vpop.f32.mrf.mxu0
        %v6685 = vpop.f32.mrf.mxu0
        %v6686 = vadd.f32 %v6453, %v6685
        %v6687 = vpop.f32.mrf.mxu0
        %6688 = vmatprep.mubr.bf16.mxu0 %v3839
        %6689 = vmatmul.mubr.bf16.gmra.mxu0 %v3838
        %v6690 = vpop.f32.mrf.mxu0
        %v6691 = vadd.f32 %v6458, %v6690
        %v6692 = vpop.f32.mrf.mxu0
        %v6693 = vpop.f32.mrf.mxu0
        %v6694 = vadd.f32 %v6461, %v6693
        %v6695 = vpop.f32.mrf.mxu0
        %6696 = vmatprep.mubr.bf16.mxu0 %v3847
        %6697 = vmatmul.mubr.bf16.gmra.mxu0 %v3846
        %v6698 = vpop.f32.mrf.mxu0
        %v6699 = vadd.f32 %v6466, %v6698
        %v6700 = vpop.f32.mrf.mxu0
        %v6701 = vpop.f32.mrf.mxu0
        %v6702 = vadd.f32 %v6469, %v6701
        %v6703 = vpop.f32.mrf.mxu0
        %6704 = vmatprep.mubr.bf16.mxu0 %v3855
        %6705 = vmatmul.mubr.bf16.gmra.mxu0 %v3854
        %v6706 = vpop.f32.mrf.mxu0
        %v6707 = vadd.f32 %v6474, %v6706
        %v6708 = vpop.f32.mrf.mxu0
        %v6709 = vpop.f32.mrf.mxu0
        %v6710 = vadd.f32 %v6477, %v6709
        %v6711 = vpop.f32.mrf.mxu0
        %6712 = vmatprep.mubr.bf16.mxu0 %v3863
        %6713 = vmatmul.mubr.bf16.gmra.mxu0 %v3862
        %v6714 = vpop.f32.mrf.mxu0
        %v6715 = vadd.f32 %v6482, %v6714
        %v6716 = vpop.f32.mrf.mxu0
        %v6717 = vpop.f32.mrf.mxu0
        %v6718 = vadd.f32 %v6485, %v6717
        %v6719 = vpop.f32.mrf.mxu0
        %6720 = vmatprep.mubr.bf16.mxu0 %v3871
        %6721 = vmatmul.mubr.bf16.gmra.mxu0 %v3870
        %v6722 = vpop.f32.mrf.mxu0
        %v6723 = vadd.f32 %v6490, %v6722
        %v6724 = vpop.f32.mrf.mxu0
        %v6725 = vpop.f32.mrf.mxu0
        %v6726 = vadd.f32 %v6493, %v6725
        %v6727 = vpop.f32.mrf.mxu0
        %6728 = vmatprep.mubr.bf16.mxu0 %v3879
        %6729 = vmatmul.mubr.bf16.gmra.mxu0 %v3878
        %v6730 = vpop.f32.mrf.mxu0
        %v6731 = vadd.f32 %v6498, %v6730
        %v6732 = vpop.f32.mrf.mxu0
        %v6733 = vpop.f32.mrf.mxu0
        %v6734 = vadd.f32 %v6501, %v6733
        %v6735 = vpop.f32.mrf.mxu0
        %6736 = vmatprep.mubr.bf16.mxu0 %v3887
        %6737 = vmatmul.mubr.bf16.gmra.mxu0 %v3886
        %v6738 = vpop.f32.mrf.mxu0
        %v6739 = vadd.f32 %v6506, %v6738
        %v6740 = vpop.f32.mrf.mxu0
        %v6741 = vpop.f32.mrf.mxu0
        %v6742 = vadd.f32 %v6509, %v6741
        %v6743 = vpop.f32.mrf.mxu0
        %6744 = vmatprep.mubr.bf16.mxu0 %v3895
        %6745 = vmatmul.mubr.bf16.gmra.mxu0 %v3894
        %v6746 = vpop.f32.mrf.mxu0
        %v6747 = vadd.f32 %v6514, %v6746
        %v6748 = vpop.f32.mrf.mxu0
        %v6749 = vpop.f32.mrf.mxu0
        %v6750 = vadd.f32 %v6517, %v6749
        %v6751 = vpop.f32.mrf.mxu0
        %6752 = vmatprep.mubr.bf16.mxu0 %v3903
        %6753 = vmatmul.mubr.bf16.gmra.mxu0 %v3902
        %v6754 = vpop.f32.mrf.mxu0
        %v6755 = vadd.f32 %v6522, %v6754
        %v6756 = vpop.f32.mrf.mxu0
        %v6757 = vpop.f32.mrf.mxu0
        %v6758 = vadd.f32 %v6525, %v6757
        %v6759 = vpop.f32.mrf.mxu0
        %6760 = vmatprep.mubr.bf16.mxu0 %v3911
        %6761 = vmatmul.mubr.bf16.gmra.mxu0 %v3910
        %v6762 = vpop.f32.mrf.mxu0
        %v6763 = vadd.f32 %v6530, %v6762
        %v6764 = vpop.f32.mrf.mxu0
        %v6765 = vpop.f32.mrf.mxu0
        %v6766 = vadd.f32 %v6533, %v6765
        %v6767 = vpop.f32.mrf.mxu0
        %6768 = vmatprep.mubr.bf16.mxu0 %v3919
        %6769 = vmatmul.mubr.bf16.gmra.mxu0 %v3918
        %v6770 = vpop.f32.mrf.mxu0
        %v6771 = vadd.f32 %v6538, %v6770
        %v6772 = vpop.f32.mrf.mxu0
        %v6773 = vpop.f32.mrf.mxu0
        %v6774 = vadd.f32 %v6541, %v6773
        %v6775 = vpop.f32.mrf.mxu0
        %6776 = vmatprep.mubr.bf16.mxu0 %v3927
        %6777 = vmatmul.mubr.bf16.gmra.mxu0 %v3926
        %v6778 = vpop.f32.mrf.mxu0
        %v6779 = vadd.f32 %v6546, %v6778
        %v6780 = vpop.f32.mrf.mxu0
        %v6781 = vpop.f32.mrf.mxu0
        %v6782 = vadd.f32 %v6549, %v6781
        %v6783 = vpop.f32.mrf.mxu0
        %6784 = vmatprep.mubr.bf16.mxu0 %v3935
        %6785 = vmatmul.mubr.bf16.gmra.mxu0 %v3934
        %v6786 = vpop.f32.mrf.mxu0
        %v6787 = vadd.f32 %v6554, %v6786
        %v6788 = vpop.f32.mrf.mxu0
        %v6789 = vpop.f32.mrf.mxu0
        %v6790 = vadd.f32 %v6557, %v6789
        %v6791 = vpop.f32.mrf.mxu0
        %6792 = vmatprep.mubr.bf16.mxu0 %v3943
        %6793 = vmatmul.mubr.bf16.gmra.mxu0 %v3942
        %v6794 = vpop.f32.mrf.mxu0
        %v6795 = vadd.f32 %v6562, %v6794
        %v6796 = vpop.f32.mrf.mxu0
        %v6797 = vpop.f32.mrf.mxu0
        %v6798 = vadd.f32 %v6565, %v6797
        %v6799 = vpop.f32.mrf.mxu0
        %6800 = vmatprep.mubr.bf16.mxu0 %v3951
        %6801 = vmatmul.mubr.bf16.gmra.mxu0 %v3950
        %v6802 = vpop.f32.mrf.mxu0
        %v6803 = vadd.f32 %v6570, %v6802
        %v6804 = vpop.f32.mrf.mxu0
        %v6805 = vpop.f32.mrf.mxu0
        %v6806 = vadd.f32 %v6573, %v6805
        %v6807 = vpop.f32.mrf.mxu0
        %6808 = vmatprep.mubr.bf16.mxu0 %v3959
        %6809 = vmatmul.mubr.bf16.gmra.mxu0 %v3958
        %v6810 = vpop.f32.mrf.mxu0
        %v6811 = vadd.f32 %v6578, %v6810
        %v6812 = vpop.f32.mrf.mxu0
        %v6813 = vpop.f32.mrf.mxu0
        %v6814 = vadd.f32 %v6581, %v6813
        %v6815 = vpop.f32.mrf.mxu0
        %6816 = vmatprep.mubr.bf16.mxu0 %v3967
        %6817 = vmatmul.mubr.bf16.gmra.mxu0 %v3966
        %v6818 = vpop.f32.mrf.mxu0
        %v6819 = vadd.f32 %v6586, %v6818
        %v6820 = vpop.f32.mrf.mxu0
        %v6821 = vpop.f32.mrf.mxu0
        %v6822 = vadd.f32 %v6589, %v6821
        %v6823 = vpop.f32.mrf.mxu0
        %6824 = vmatprep.mubr.bf16.mxu0 %v3975
        %6825 = vmatmul.mubr.bf16.gmra.mxu0 %v3974
        %v6826 = vpop.f32.mrf.mxu0
        %v6827 = vadd.f32 %v6594, %v6826
        %v6828 = vpop.f32.mrf.mxu0
        %v6829 = vpop.f32.mrf.mxu0
        %v6830 = vadd.f32 %v6597, %v6829
        %v6831 = vpop.f32.mrf.mxu0
        %6832 = vmatprep.mubr.bf16.mxu0 %v3983
        %6833 = vmatmul.mubr.bf16.gmra.mxu0 %v3982
        %v6834 = vpop.f32.mrf.mxu0
        %v6835 = vadd.f32 %v6602, %v6834
        %v6836 = vpop.f32.mrf.mxu0
        %v6837 = vpop.f32.mrf.mxu0
        %v6838 = vadd.f32 %v6605, %v6837
        %v6839 = vpop.f32.mrf.mxu0
        %6840 = vdwg.mxu0
        %6841 = vmatprep.subr.bf16.mxu0 0
        %6842 = vmatpush1.bf16.msra.mxu0 %v6069
        %6843 = vmatprep.subr.bf16.mxu0 0
        %6844 = vmatpush1.bf16.msra.mxu0 %v6068
        %6845 = vmatprep.subr.bf16.mxu0 0
        %6846 = vmatpush1.bf16.msra.mxu0 %v6067
        %6847 = vmatprep.subr.bf16.mxu0 0
        %6848 = vmatpush1.bf16.msra.mxu0 %v6066
        %6849 = vmatprep.subr.bf16.mxu0 0
        %6850 = vmatpush1.bf16.msra.mxu0 %v6065
        %6851 = vmatprep.subr.bf16.mxu0 0
        %6852 = vmatpush1.bf16.msra.mxu0 %v6064
        %6853 = vmatprep.subr.bf16.mxu0 0
        %6854 = vmatpush1.bf16.msra.mxu0 %v6063
        %6855 = vmatprep.subr.bf16.mxu0 0
        %6856 = vmatpush1.bf16.msra.mxu0 %v6062
        %6857 = vmatprep.subr.bf16.mxu0 0
        %6858 = vmatpush2.bf16.msra.mxu0 %v6077
        %6859 = vmatprep.subr.bf16.mxu0 0
        %6860 = vmatpush2.bf16.msra.mxu0 %v6076
        %6861 = vmatprep.subr.bf16.mxu0 0
        %6862 = vmatpush2.bf16.msra.mxu0 %v6075
        %6863 = vmatprep.subr.bf16.mxu0 0
        %6864 = vmatpush2.bf16.msra.mxu0 %v6074
        %6865 = vmatprep.subr.bf16.mxu0 0
        %6866 = vmatpush2.bf16.msra.mxu0 %v6073
        %6867 = vmatprep.subr.bf16.mxu0 0
        %6868 = vmatpush2.bf16.msra.mxu0 %v6072
        %6869 = vmatprep.subr.bf16.mxu0 0
        %6870 = vmatpush2.bf16.msra.mxu0 %v6071
        %6871 = vmatprep.subr.bf16.mxu0 0
        %6872 = vmatpush2.bf16.msra.mxu0 %v6070
        %6873 = vmatprep.mubr.bf16.mxu0 %v3793
        %6874 = vmatmul.mubr.bf16.gmra.mxu0 %v3792
        %v6875 = vpop.f32.mrf.mxu0
        %v6876 = vadd.f32 %v6643, %v6875
        %v6877 = vpop.f32.mrf.mxu0
        %v6878 = vpop.f32.mrf.mxu0
        %v6879 = vadd.f32 %v6646, %v6878
        %v6880 = vpop.f32.mrf.mxu0
        %6881 = vmatprep.mubr.bf16.mxu0 %v3801
        %6882 = vmatmul.mubr.bf16.gmra.mxu0 %v3800
        %v6883 = vpop.f32.mrf.mxu0
        %v6884 = vadd.f32 %v6651, %v6883
        %v6885 = vpop.f32.mrf.mxu0
        %v6886 = vpop.f32.mrf.mxu0
        %v6887 = vadd.f32 %v6654, %v6886
        %v6888 = vpop.f32.mrf.mxu0
        %6889 = vmatprep.mubr.bf16.mxu0 %v3809
        %6890 = vmatmul.mubr.bf16.gmra.mxu0 %v3808
        %v6891 = vpop.f32.mrf.mxu0
        %v6892 = vadd.f32 %v6659, %v6891
        %v6893 = vpop.f32.mrf.mxu0
        %v6894 = vpop.f32.mrf.mxu0
        %v6895 = vadd.f32 %v6662, %v6894
        %v6896 = vpop.f32.mrf.mxu0
        %6897 = vmatprep.mubr.bf16.mxu0 %v3817
        %6898 = vmatmul.mubr.bf16.gmra.mxu0 %v3816
        %v6899 = vpop.f32.mrf.mxu0
        %v6900 = vadd.f32 %v6667, %v6899
        %v6901 = vpop.f32.mrf.mxu0
        %v6902 = vpop.f32.mrf.mxu0
        %v6903 = vadd.f32 %v6670, %v6902
        %v6904 = vpop.f32.mrf.mxu0
        %6905 = vmatprep.mubr.bf16.mxu0 %v3825
        %6906 = vmatmul.mubr.bf16.gmra.mxu0 %v3824
        %v6907 = vpop.f32.mrf.mxu0
        %v6908 = vadd.f32 %v6675, %v6907
        %v6909 = vpop.f32.mrf.mxu0
        %v6910 = vpop.f32.mrf.mxu0
        %v6911 = vadd.f32 %v6678, %v6910
        %v6912 = vpop.f32.mrf.mxu0
        %6913 = vmatprep.mubr.bf16.mxu0 %v3833
        %6914 = vmatmul.mubr.bf16.gmra.mxu0 %v3832
        %v6915 = vpop.f32.mrf.mxu0
        %v6916 = vadd.f32 %v6683, %v6915
        %v6917 = vpop.f32.mrf.mxu0
        %v6918 = vpop.f32.mrf.mxu0
        %v6919 = vadd.f32 %v6686, %v6918
        %v6920 = vpop.f32.mrf.mxu0
        %6921 = vmatprep.mubr.bf16.mxu0 %v3841
        %6922 = vmatmul.mubr.bf16.gmra.mxu0 %v3840
        %v6923 = vpop.f32.mrf.mxu0
        %v6924 = vadd.f32 %v6691, %v6923
        %v6925 = vpop.f32.mrf.mxu0
        %v6926 = vpop.f32.mrf.mxu0
        %v6927 = vadd.f32 %v6694, %v6926
        %v6928 = vpop.f32.mrf.mxu0
        %6929 = vmatprep.mubr.bf16.mxu0 %v3849
        %6930 = vmatmul.mubr.bf16.gmra.mxu0 %v3848
        %v6931 = vpop.f32.mrf.mxu0
        %v6932 = vadd.f32 %v6699, %v6931
        %v6933 = vpop.f32.mrf.mxu0
        %v6934 = vpop.f32.mrf.mxu0
        %v6935 = vadd.f32 %v6702, %v6934
        %v6936 = vpop.f32.mrf.mxu0
        %6937 = vmatprep.mubr.bf16.mxu0 %v3857
        %6938 = vmatmul.mubr.bf16.gmra.mxu0 %v3856
        %v6939 = vpop.f32.mrf.mxu0
        %v6940 = vadd.f32 %v6707, %v6939
        %v6941 = vpop.f32.mrf.mxu0
        %v6942 = vpop.f32.mrf.mxu0
        %v6943 = vadd.f32 %v6710, %v6942
        %v6944 = vpop.f32.mrf.mxu0
        %6945 = vmatprep.mubr.bf16.mxu0 %v3865
        %6946 = vmatmul.mubr.bf16.gmra.mxu0 %v3864
        %v6947 = vpop.f32.mrf.mxu0
        %v6948 = vadd.f32 %v6715, %v6947
        %v6949 = vpop.f32.mrf.mxu0
        %v6950 = vpop.f32.mrf.mxu0
        %v6951 = vadd.f32 %v6718, %v6950
        %v6952 = vpop.f32.mrf.mxu0
        %6953 = vmatprep.mubr.bf16.mxu0 %v3873
        %6954 = vmatmul.mubr.bf16.gmra.mxu0 %v3872
        %v6955 = vpop.f32.mrf.mxu0
        %v6956 = vadd.f32 %v6723, %v6955
        %v6957 = vpop.f32.mrf.mxu0
        %v6958 = vpop.f32.mrf.mxu0
        %v6959 = vadd.f32 %v6726, %v6958
        %v6960 = vpop.f32.mrf.mxu0
        %6961 = vmatprep.mubr.bf16.mxu0 %v3881
        %6962 = vmatmul.mubr.bf16.gmra.mxu0 %v3880
        %v6963 = vpop.f32.mrf.mxu0
        %v6964 = vadd.f32 %v6731, %v6963
        %v6965 = vpop.f32.mrf.mxu0
        %v6966 = vpop.f32.mrf.mxu0
        %v6967 = vadd.f32 %v6734, %v6966
        %v6968 = vpop.f32.mrf.mxu0
        %6969 = vmatprep.mubr.bf16.mxu0 %v3889
        %6970 = vmatmul.mubr.bf16.gmra.mxu0 %v3888
        %v6971 = vpop.f32.mrf.mxu0
        %v6972 = vadd.f32 %v6739, %v6971
        %v6973 = vpop.f32.mrf.mxu0
        %v6974 = vpop.f32.mrf.mxu0
        %v6975 = vadd.f32 %v6742, %v6974
        %v6976 = vpop.f32.mrf.mxu0
        %6977 = vmatprep.mubr.bf16.mxu0 %v3897
        %6978 = vmatmul.mubr.bf16.gmra.mxu0 %v3896
        %v6979 = vpop.f32.mrf.mxu0
        %v6980 = vadd.f32 %v6747, %v6979
        %v6981 = vpop.f32.mrf.mxu0
        %v6982 = vpop.f32.mrf.mxu0
        %v6983 = vadd.f32 %v6750, %v6982
        %v6984 = vpop.f32.mrf.mxu0
        %6985 = vmatprep.mubr.bf16.mxu0 %v3905
        %6986 = vmatmul.mubr.bf16.gmra.mxu0 %v3904
        %v6987 = vpop.f32.mrf.mxu0
        %v6988 = vadd.f32 %v6755, %v6987
        %v6989 = vpop.f32.mrf.mxu0
        %v6990 = vpop.f32.mrf.mxu0
        %v6991 = vadd.f32 %v6758, %v6990
        %v6992 = vpop.f32.mrf.mxu0
        %6993 = vmatprep.mubr.bf16.mxu0 %v3913
        %6994 = vmatmul.mubr.bf16.gmra.mxu0 %v3912
        %v6995 = vpop.f32.mrf.mxu0
        %v6996 = vadd.f32 %v6763, %v6995
        %v6997 = vpop.f32.mrf.mxu0
        %v6998 = vpop.f32.mrf.mxu0
        %v6999 = vadd.f32 %v6766, %v6998
        %v7000 = vpop.f32.mrf.mxu0
        %7001 = vmatprep.mubr.bf16.mxu0 %v3921
        %7002 = vmatmul.mubr.bf16.gmra.mxu0 %v3920
        %v7003 = vpop.f32.mrf.mxu0
        %v7004 = vadd.f32 %v6771, %v7003
        %v7005 = vpop.f32.mrf.mxu0
        %v7006 = vpop.f32.mrf.mxu0
        %v7007 = vadd.f32 %v6774, %v7006
        %v7008 = vpop.f32.mrf.mxu0
        %7009 = vmatprep.mubr.bf16.mxu0 %v3929
        %7010 = vmatmul.mubr.bf16.gmra.mxu0 %v3928
        %v7011 = vpop.f32.mrf.mxu0
        %v7012 = vadd.f32 %v6779, %v7011
        %v7013 = vpop.f32.mrf.mxu0
        %v7014 = vpop.f32.mrf.mxu0
        %v7015 = vadd.f32 %v6782, %v7014
        %v7016 = vpop.f32.mrf.mxu0
        %7017 = vmatprep.mubr.bf16.mxu0 %v3937
        %7018 = vmatmul.mubr.bf16.gmra.mxu0 %v3936
        %v7019 = vpop.f32.mrf.mxu0
        %v7020 = vadd.f32 %v6787, %v7019
        %v7021 = vpop.f32.mrf.mxu0
        %v7022 = vpop.f32.mrf.mxu0
        %v7023 = vadd.f32 %v6790, %v7022
        %v7024 = vpop.f32.mrf.mxu0
        %7025 = vmatprep.mubr.bf16.mxu0 %v3945
        %7026 = vmatmul.mubr.bf16.gmra.mxu0 %v3944
        %v7027 = vpop.f32.mrf.mxu0
        %v7028 = vadd.f32 %v6795, %v7027
        %v7029 = vpop.f32.mrf.mxu0
        %v7030 = vpop.f32.mrf.mxu0
        %v7031 = vadd.f32 %v6798, %v7030
        %v7032 = vpop.f32.mrf.mxu0
        %7033 = vmatprep.mubr.bf16.mxu0 %v3953
        %7034 = vmatmul.mubr.bf16.gmra.mxu0 %v3952
        %v7035 = vpop.f32.mrf.mxu0
        %v7036 = vadd.f32 %v6803, %v7035
        %v7037 = vpop.f32.mrf.mxu0
        %v7038 = vpop.f32.mrf.mxu0
        %v7039 = vadd.f32 %v6806, %v7038
        %v7040 = vpop.f32.mrf.mxu0
        %7041 = vmatprep.mubr.bf16.mxu0 %v3961
        %7042 = vmatmul.mubr.bf16.gmra.mxu0 %v3960
        %v7043 = vpop.f32.mrf.mxu0
        %v7044 = vadd.f32 %v6811, %v7043
        %v7045 = vpop.f32.mrf.mxu0
        %v7046 = vpop.f32.mrf.mxu0
        %v7047 = vadd.f32 %v6814, %v7046
        %v7048 = vpop.f32.mrf.mxu0
        %7049 = vmatprep.mubr.bf16.mxu0 %v3969
        %7050 = vmatmul.mubr.bf16.gmra.mxu0 %v3968
        %v7051 = vpop.f32.mrf.mxu0
        %v7052 = vadd.f32 %v6819, %v7051
        %v7053 = vpop.f32.mrf.mxu0
        %v7054 = vpop.f32.mrf.mxu0
        %v7055 = vadd.f32 %v6822, %v7054
        %v7056 = vpop.f32.mrf.mxu0
        %7057 = vmatprep.mubr.bf16.mxu0 %v3977
        %7058 = vmatmul.mubr.bf16.gmra.mxu0 %v3976
        %v7059 = vpop.f32.mrf.mxu0
        %v7060 = vadd.f32 %v6827, %v7059
        %v7061 = vpop.f32.mrf.mxu0
        %v7062 = vpop.f32.mrf.mxu0
        %v7063 = vadd.f32 %v6830, %v7062
        %v7064 = vpop.f32.mrf.mxu0
        %7065 = vmatprep.mubr.bf16.mxu0 %v3985
        %7066 = vmatmul.mubr.bf16.gmra.mxu0 %v3984
        %v7067 = vpop.f32.mrf.mxu0
        %v7068 = vadd.f32 %v6835, %v7067
        %v7069 = vpop.f32.mrf.mxu0
        %v7070 = vpop.f32.mrf.mxu0
        %v7071 = vadd.f32 %v6838, %v7070
        %v7072 = vpop.f32.mrf.mxu0
        %7073 = vdwg.mxu0
        %v7074 = vld [vmem:[#allocation7] sm:$0x1]
        %v7076 = vlaneseq
        %v7077 = vshrl.u32 %v7076, 7
        %v7078 = vsub.s32 0, %v7077
        %v7079 = vrot.slane %v7074, %v7078
        %v7081 = vadd.f32 %v6876, %v7079
        %v7082 = vadd.f32 %v6879, %v7079
        %v7083 = vadd.f32 %v6884, %v7079
        %v7084 = vadd.f32 %v6887, %v7079
        %v7085 = vadd.f32 %v6892, %v7079
        %v7086 = vadd.f32 %v6895, %v7079
        %v7087 = vadd.f32 %v6900, %v7079
        %v7088 = vadd.f32 %v6903, %v7079
        %v7089 = vadd.f32 %v6908, %v7079
        %v7090 = vadd.f32 %v6911, %v7079
        %v7091 = vadd.f32 %v6916, %v7079
        %v7092 = vadd.f32 %v6919, %v7079
        %v7093 = vadd.f32 %v6924, %v7079
        %v7094 = vadd.f32 %v6927, %v7079
        %v7095 = vadd.f32 %v6932, %v7079
        %v7096 = vadd.f32 %v6935, %v7079
        %v7097 = vadd.f32 %v6940, %v7079
        %v7098 = vadd.f32 %v6943, %v7079
        %v7099 = vadd.f32 %v6948, %v7079
        %v7100 = vadd.f32 %v6951, %v7079
        %v7101 = vadd.f32 %v6956, %v7079
        %v7102 = vadd.f32 %v6959, %v7079
        %v7103 = vadd.f32 %v6964, %v7079
        %v7104 = vadd.f32 %v6967, %v7079
        %v7105 = vadd.f32 %v6972, %v7079
        %v7106 = vadd.f32 %v6975, %v7079
        %v7107 = vadd.f32 %v6980, %v7079
        %v7108 = vadd.f32 %v6983, %v7079
        %v7109 = vadd.f32 %v6988, %v7079
        %v7110 = vadd.f32 %v6991, %v7079
        %v7111 = vadd.f32 %v6996, %v7079
        %v7112 = vadd.f32 %v6999, %v7079
        %v7113 = vadd.f32 %v7004, %v7079
        %v7114 = vadd.f32 %v7007, %v7079
        %v7115 = vadd.f32 %v7012, %v7079
        %v7116 = vadd.f32 %v7015, %v7079
        %v7117 = vadd.f32 %v7020, %v7079
        %v7118 = vadd.f32 %v7023, %v7079
        %v7119 = vadd.f32 %v7028, %v7079
        %v7120 = vadd.f32 %v7031, %v7079
        %v7121 = vadd.f32 %v7036, %v7079
        %v7122 = vadd.f32 %v7039, %v7079
        %v7123 = vadd.f32 %v7044, %v7079
        %v7124 = vadd.f32 %v7047, %v7079
        %v7125 = vadd.f32 %v7052, %v7079
        %v7126 = vadd.f32 %v7055, %v7079
        %v7127 = vadd.f32 %v7060, %v7079
        %v7128 = vadd.f32 %v7063, %v7079
        %v7129 = vadd.f32 %v7068, %v7079
        %v7130 = vadd.f32 %v7071, %v7079
        %v7131 = vmax.f32 %v7081, 0.0
        %v7132 = vmax.f32 %v7082, 0.0
        %v7133 = vmax.f32 %v7083, 0.0
        %v7134 = vmax.f32 %v7084, 0.0
        %v7135 = vmax.f32 %v7085, 0.0
        %v7136 = vmax.f32 %v7086, 0.0
        %v7137 = vmax.f32 %v7087, 0.0
        %v7138 = vmax.f32 %v7088, 0.0
        %v7139 = vmax.f32 %v7089, 0.0
        %v7140 = vmax.f32 %v7090, 0.0
        %v7141 = vmax.f32 %v7091, 0.0
        %v7142 = vmax.f32 %v7092, 0.0
        %v7143 = vmax.f32 %v7093, 0.0
        %v7144 = vmax.f32 %v7094, 0.0
        %v7145 = vmax.f32 %v7095, 0.0
        %v7146 = vmax.f32 %v7096, 0.0
        %v7147 = vmax.f32 %v7097, 0.0
        %v7148 = vmax.f32 %v7098, 0.0
        %v7149 = vmax.f32 %v7099, 0.0
        %v7150 = vmax.f32 %v7100, 0.0
        %v7151 = vmax.f32 %v7101, 0.0
        %v7152 = vmax.f32 %v7102, 0.0
        %v7153 = vmax.f32 %v7103, 0.0
        %v7154 = vmax.f32 %v7104, 0.0
        %v7155 = vmax.f32 %v7105, 0.0
        %v7156 = vmax.f32 %v7106, 0.0
        %v7157 = vmax.f32 %v7107, 0.0
        %v7158 = vmax.f32 %v7108, 0.0
        %v7159 = vmax.f32 %v7109, 0.0
        %v7160 = vmax.f32 %v7110, 0.0
        %v7161 = vmax.f32 %v7111, 0.0
        %v7162 = vmax.f32 %v7112, 0.0
        %v7163 = vmax.f32 %v7113, 0.0
        %v7164 = vmax.f32 %v7114, 0.0
        %v7165 = vmax.f32 %v7115, 0.0
        %v7166 = vmax.f32 %v7116, 0.0
        %v7167 = vmax.f32 %v7117, 0.0
        %v7168 = vmax.f32 %v7118, 0.0
        %v7169 = vmax.f32 %v7119, 0.0
        %v7170 = vmax.f32 %v7120, 0.0
        %v7171 = vmax.f32 %v7121, 0.0
        %v7172 = vmax.f32 %v7122, 0.0
        %v7173 = vmax.f32 %v7123, 0.0
        %v7174 = vmax.f32 %v7124, 0.0
        %v7175 = vmax.f32 %v7125, 0.0
        %v7176 = vmax.f32 %v7126, 0.0
        %v7177 = vmax.f32 %v7127, 0.0
        %v7178 = vmax.f32 %v7128, 0.0
        %v7179 = vmax.f32 %v7129, 0.0
        %v7180 = vmax.f32 %v7130, 0.0
        %v7181 = vld [vmem:[%s406] sm:$0xff]
        %v7182 = vld [vmem:[%s406 + $0x8] sm:$0xff]
        %v7183 = vld [vmem:[%s406 + $0x10] sm:$0xff]
        %v7184 = vld [vmem:[%s406 + $0x18] sm:$0xff]
        %v7185 = vld [vmem:[%s406 + $0x20] sm:$0xff]
        %v7186 = vld [vmem:[%s406 + $0x28] sm:$0xff]
        %v7187 = vld [vmem:[%s406 + $0x30] sm:$0xff]
        %v7188 = vld [vmem:[%s406 + $0x38] sm:$0xff]
        %v7189 = vld [vmem:[%s406 + $0x40] sm:$0xff]
        %v7190 = vld [vmem:[%s406 + $0x48] sm:$0xff]
        %v7191 = vld [vmem:[%s406 + $0x50] sm:$0xff]
        %v7192 = vld [vmem:[%s406 + $0x58] sm:$0xff]
        %v7193 = vld [vmem:[%s406 + $0x60] sm:$0xff]
        %v7194 = vld [vmem:[%s406 + $0x68] sm:$0xff]
        %v7195 = vld [vmem:[%s406 + $0x70] sm:$0xff]
        %v7196 = vld [vmem:[%s406 + $0x78] sm:$0xff]
        %v7197 = vld [vmem:[%s406 + $0x80] sm:$0xff]
        %v7198 = vld [vmem:[%s406 + $0x88] sm:$0xff]
        %v7199 = vld [vmem:[%s406 + $0x90] sm:$0xff]
        %v7200 = vld [vmem:[%s406 + $0x98] sm:$0xff]
        %v7201 = vld [vmem:[%s406 + $0xa0] sm:$0xff]
        %v7202 = vld [vmem:[%s406 + $0xa8] sm:$0xff]
        %v7203 = vld [vmem:[%s406 + $0xb0] sm:$0xff]
        %v7204 = vld [vmem:[%s406 + $0xb8] sm:$0xff]
        %v7205 = vld [vmem:[%s406 + $0xc0] sm:$0xff]
        %v7206 = vld [vmem:[%s406 + $0xc8] sm:$0xff]
        %v7207 = vld [vmem:[%s406 + $0xd0] sm:$0xff]
        %v7208 = vld [vmem:[%s406 + $0xd8] sm:$0xff]
        %v7209 = vld [vmem:[%s406 + $0xe0] sm:$0xff]
        %v7210 = vld [vmem:[%s406 + $0xe8] sm:$0xff]
        %v7211 = vld [vmem:[%s406 + $0xf0] sm:$0xff]
        %v7212 = vld [vmem:[%s406 + $0xf8] sm:$0xff]
        %v7213 = vld [vmem:[%s406 + $0x100] sm:$0xff]
        %v7214 = vld [vmem:[%s406 + $0x108] sm:$0xff]
        %v7215 = vld [vmem:[%s406 + $0x110] sm:$0xff]
        %v7216 = vld [vmem:[%s406 + $0x118] sm:$0xff]
        %v7217 = vld [vmem:[%s406 + $0x120] sm:$0xff]
        %v7218 = vld [vmem:[%s406 + $0x128] sm:$0xff]
        %v7219 = vld [vmem:[%s406 + $0x130] sm:$0xff]
        %v7220 = vld [vmem:[%s406 + $0x138] sm:$0xff]
        %v7221 = vld [vmem:[%s406 + $0x140] sm:$0xff]
        %v7222 = vld [vmem:[%s406 + $0x148] sm:$0xff]
        %v7223 = vld [vmem:[%s406 + $0x150] sm:$0xff]
        %v7224 = vld [vmem:[%s406 + $0x158] sm:$0xff]
        %v7225 = vld [vmem:[%s406 + $0x160] sm:$0xff]
        %v7226 = vld [vmem:[%s406 + $0x168] sm:$0xff]
        %v7227 = vld [vmem:[%s406 + $0x170] sm:$0xff]
        %v7228 = vld [vmem:[%s406 + $0x178] sm:$0xff]
        %v7229 = vld [vmem:[%s406 + $0x180] sm:$0xff]
        %v7230 = vld [vmem:[%s406 + $0x188] sm:$0xff]
        %v7231 = vmul.f32 %v7181, %v7131
        %v7232 = vmul.f32 %v7182, %v7132
        %v7233 = vmul.f32 %v7183, %v7133
        %v7234 = vmul.f32 %v7184, %v7134
        %v7235 = vmul.f32 %v7185, %v7135
        %v7236 = vmul.f32 %v7186, %v7136
        %v7237 = vmul.f32 %v7187, %v7137
        %v7238 = vmul.f32 %v7188, %v7138
        %v7239 = vmul.f32 %v7189, %v7139
        %v7240 = vmul.f32 %v7190, %v7140
        %v7241 = vmul.f32 %v7191, %v7141
        %v7242 = vmul.f32 %v7192, %v7142
        %v7243 = vmul.f32 %v7193, %v7143
        %v7244 = vmul.f32 %v7194, %v7144
        %v7245 = vmul.f32 %v7195, %v7145
        %v7246 = vmul.f32 %v7196, %v7146
        %v7247 = vmul.f32 %v7197, %v7147
        %v7248 = vmul.f32 %v7198, %v7148
        %v7249 = vmul.f32 %v7199, %v7149
        %v7250 = vmul.f32 %v7200, %v7150
        %v7251 = vmul.f32 %v7201, %v7151
        %v7252 = vmul.f32 %v7202, %v7152
        %v7253 = vmul.f32 %v7203, %v7153
        %v7254 = vmul.f32 %v7204, %v7154
        %v7255 = vmul.f32 %v7205, %v7155
        %v7256 = vmul.f32 %v7206, %v7156
        %v7257 = vmul.f32 %v7207, %v7157
        %v7258 = vmul.f32 %v7208, %v7158
        %v7259 = vmul.f32 %v7209, %v7159
        %v7260 = vmul.f32 %v7210, %v7160
        %v7261 = vmul.f32 %v7211, %v7161
        %v7262 = vmul.f32 %v7212, %v7162
        %v7263 = vmul.f32 %v7213, %v7163
        %v7264 = vmul.f32 %v7214, %v7164
        %v7265 = vmul.f32 %v7215, %v7165
        %v7266 = vmul.f32 %v7216, %v7166
        %v7267 = vmul.f32 %v7217, %v7167
        %v7268 = vmul.f32 %v7218, %v7168
        %v7269 = vmul.f32 %v7219, %v7169
        %v7270 = vmul.f32 %v7220, %v7170
        %v7271 = vmul.f32 %v7221, %v7171
        %v7272 = vmul.f32 %v7222, %v7172
        %v7273 = vmul.f32 %v7223, %v7173
        %v7274 = vmul.f32 %v7224, %v7174
        %v7275 = vmul.f32 %v7225, %v7175
        %v7276 = vmul.f32 %v7226, %v7176
        %v7277 = vmul.f32 %v7227, %v7177
        %v7278 = vmul.f32 %v7228, %v7178
        %v7279 = vmul.f32 %v7229, %v7179
        %v7280 = vmul.f32 %v7230, %v7180
        %vm7281 = vcmask 523264
        %v7282 = vsel %vm7281, %v7231, 0.0
        %v7283 = vsel %vm7281, %v7232, 0.0
        %v7284 = vadd.f32 %v7282, %v7283
        %v7285 = vsel %vm7281, %v7233, 0.0
        %v7286 = vadd.f32 %v7284, %v7285
        %v7287 = vsel %vm7281, %v7234, 0.0
        %v7288 = vadd.f32 %v7286, %v7287
        %v7289 = vsel %vm7281, %v7235, 0.0
        %v7290 = vadd.f32 %v7288, %v7289
        %v7291 = vsel %vm7281, %v7236, 0.0
        %v7292 = vadd.f32 %v7290, %v7291
        %v7293 = vsel %vm7281, %v7237, 0.0
        %v7294 = vadd.f32 %v7292, %v7293
        %v7295 = vsel %vm7281, %v7238, 0.0
        %v7296 = vadd.f32 %v7294, %v7295
        %v7297 = vsel %vm7281, %v7239, 0.0
        %v7298 = vadd.f32 %v7296, %v7297
        %v7299 = vsel %vm7281, %v7240, 0.0
        %v7300 = vadd.f32 %v7298, %v7299
        %v7301 = vsel %vm7281, %v7241, 0.0
        %v7302 = vadd.f32 %v7300, %v7301
        %v7303 = vsel %vm7281, %v7242, 0.0
        %v7304 = vadd.f32 %v7302, %v7303
        %v7305 = vsel %vm7281, %v7243, 0.0
        %v7306 = vadd.f32 %v7304, %v7305
        %v7307 = vsel %vm7281, %v7244, 0.0
        %v7308 = vadd.f32 %v7306, %v7307
        %v7309 = vsel %vm7281, %v7245, 0.0
        %v7310 = vadd.f32 %v7308, %v7309
        %v7311 = vsel %vm7281, %v7246, 0.0
        %v7312 = vadd.f32 %v7310, %v7311
        %v7313 = vsel %vm7281, %v7247, 0.0
        %v7314 = vadd.f32 %v7312, %v7313
        %v7315 = vsel %vm7281, %v7248, 0.0
        %v7316 = vadd.f32 %v7314, %v7315
        %v7317 = vsel %vm7281, %v7249, 0.0
        %v7318 = vadd.f32 %v7316, %v7317
        %v7319 = vsel %vm7281, %v7250, 0.0
        %v7320 = vadd.f32 %v7318, %v7319
        %v7321 = vsel %vm7281, %v7251, 0.0
        %v7322 = vadd.f32 %v7320, %v7321
        %v7323 = vsel %vm7281, %v7252, 0.0
        %v7324 = vadd.f32 %v7322, %v7323
        %v7325 = vsel %vm7281, %v7253, 0.0
        %v7326 = vadd.f32 %v7324, %v7325
        %v7327 = vsel %vm7281, %v7254, 0.0
        %v7328 = vadd.f32 %v7326, %v7327
        %v7329 = vsel %vm7281, %v7255, 0.0
        %v7330 = vadd.f32 %v7328, %v7329
        %v7331 = vsel %vm7281, %v7256, 0.0
        %v7332 = vadd.f32 %v7330, %v7331
        %v7333 = vsel %vm7281, %v7257, 0.0
        %v7334 = vadd.f32 %v7332, %v7333
        %v7335 = vsel %vm7281, %v7258, 0.0
        %v7336 = vadd.f32 %v7334, %v7335
        %v7337 = vsel %vm7281, %v7259, 0.0
        %v7338 = vadd.f32 %v7336, %v7337
        %v7339 = vsel %vm7281, %v7260, 0.0
        %v7340 = vadd.f32 %v7338, %v7339
        %v7341 = vsel %vm7281, %v7261, 0.0
        %v7342 = vadd.f32 %v7340, %v7341
        %v7343 = vsel %vm7281, %v7262, 0.0
        %v7344 = vadd.f32 %v7342, %v7343
        %v7345 = vsel %vm7281, %v7263, 0.0
        %v7346 = vadd.f32 %v7344, %v7345
        %v7347 = vsel %vm7281, %v7264, 0.0
        %v7348 = vadd.f32 %v7346, %v7347
        %v7349 = vsel %vm7281, %v7265, 0.0
        %v7350 = vadd.f32 %v7348, %v7349
        %v7351 = vsel %vm7281, %v7266, 0.0
        %v7352 = vadd.f32 %v7350, %v7351
        %v7353 = vsel %vm7281, %v7267, 0.0
        %v7354 = vadd.f32 %v7352, %v7353
        %v7355 = vsel %vm7281, %v7268, 0.0
        %v7356 = vadd.f32 %v7354, %v7355
        %v7357 = vsel %vm7281, %v7269, 0.0
        %v7358 = vadd.f32 %v7356, %v7357
        %v7359 = vsel %vm7281, %v7270, 0.0
        %v7360 = vadd.f32 %v7358, %v7359
        %v7361 = vsel %vm7281, %v7271, 0.0
        %v7362 = vadd.f32 %v7360, %v7361
        %v7363 = vsel %vm7281, %v7272, 0.0
        %v7364 = vadd.f32 %v7362, %v7363
        %v7365 = vsel %vm7281, %v7273, 0.0
        %v7366 = vadd.f32 %v7364, %v7365
        %v7367 = vsel %vm7281, %v7274, 0.0
        %v7368 = vadd.f32 %v7366, %v7367
        %v7369 = vsel %vm7281, %v7275, 0.0
        %v7370 = vadd.f32 %v7368, %v7369
        %v7371 = vsel %vm7281, %v7276, 0.0
        %v7372 = vadd.f32 %v7370, %v7371
        %v7373 = vsel %vm7281, %v7277, 0.0
        %v7374 = vadd.f32 %v7372, %v7373
        %v7375 = vsel %vm7281, %v7278, 0.0
        %v7376 = vadd.f32 %v7374, %v7375
        %v7377 = vsel %vm7281, %v7279, 0.0
        %v7378 = vadd.f32 %v7376, %v7377
        %v7379 = vsel %vm7281, %v7280, 0.0
        %v7380 = vadd.f32 %v7378, %v7379
        %7381 = vadd.xlane.f32.xlu0 %v7380
        %v7382 = vpop.xlane.xlu0 %7381
        %v7383 = vrot.slane %v7382, 4
        %v7384 = vadd.f32 %v7382, %v7383
        %v7385 = vrot.slane %v7384, 2
        %v7386 = vadd.f32 %v7384, %v7385
        %v7387 = vrot.slane %v7386, 1
        %v7388 = vadd.f32 %v7386, %v7387
        %vm7389 = vcmask 0
        %7390 = vst.msk [vmem:[%s413] sm:$0x1] %vm7389, %v7388
        %p7391 = scmp.lt.s32.totalorder %s29, 1
        %s7392 = scalar_select %p7391, %s29, 1
        %p7393 = scmp.lt.s32.totalorder %s30, 0
        %s7394 = scalar_select %p7393, %s30, 0
        %s7395 = sadd.s32 %s7394, %s7392
        %s7396 = scalar_lea.vmem %s7, %s7395
        // Predicated region
        $region65: #{tpu_custom_call.1} parent=47 // pred_check
          %p7397 = pneg %p223
        $region66: #{tpu_custom_call.1} parent=47 // pred_check_branch
          %7399 = sbr.rel (%p7397) target = $region68
        $region67: #{tpu_custom_call.1} parent=47 // pred_region
          _
        $region68: #{tpu_custom_call.1} parent=47 // pred_fallthru
          _
      $region48: #{tpu_custom_call.1} parent=5 // pred_fallthru
        _
      %p7400 = scmp.le.s32.totalorder 2, %s20
      // Predicated region
      $region69: #{tpu_custom_call.1} parent=5 // pred_check
        %p7401 = pneg %p7400
      $region70: #{tpu_custom_call.1} parent=5 // pred_check_branch
        %7403 = sbr.rel (%p7401) target = $region72
      $region71: #{tpu_custom_call.1} parent=5 // pred_region
        %s7404 = ssub.s32 %s20, 2
        // Predicated region
        $region73: #{tpu_custom_call.1} parent=71 // pred_check
          %p7405 = pneg %p229
        $region74: #{tpu_custom_call.1} parent=71 // pred_check_branch
          %7407 = sbr.rel (%p7405) target = $region76
        $region75: #{tpu_custom_call.1} parent=71 // pred_region
          %p7408 = scmp.lt.s32.totalorder %s31, 1
          %s7409 = scalar_select %p7408, %s31, 1
          %p7410 = scmp.lt.s32.totalorder %s32, 0
          %s7411 = scalar_select %p7410, %s32, 0
          %s7412 = sadd.s32 %s7411, %s7409
          %s7413 = scalar_lea.vmem %s7, %s7412
        $region76: #{tpu_custom_call.1} parent=71 // pred_fallthru
          _
      $region72: #{tpu_custom_call.1} parent=5 // pred_fallthru
        _
    $region6: #{tpu_custom_call.1} parent=1 // loop_footer
      %s24 = sadd.s32 1, %s20
    $region7: #{tpu_custom_call.1} parent=1 // loop_footer_branch
      %19 = sbr.rel target = $region3
    $region8: #{tpu_custom_call.1} parent=1 // loop_exit
      _
    %7414 = vsyncpa [#allocation3], 1
    %s7415 = scalar_lea.sflag [#allocation3], 1
    %7416 = vsyncpa %s7415, 1
    %7417 = vsyncpa [#allocation5], 1
    %s7418 = scalar_lea.sflag [#allocation5], 1
    %7419 = vsyncpa %s7418, 1
    %7420 = vsyncpa [#allocation8], 1

</llo_original>
